<compile_context>
chip_gen: v7x
topology: tpu7x:2x2x1
jax: 0.10.0
libtpu: 0.0.40
codegen_flags: <defaults>
</compile_context>

<pallas_src>
import jax
import jax.numpy as jnp
from jax.experimental import pallas as pl
from jax.experimental.pallas import tpu as pltpu

INPUT_SIZE = 784
HIDDEN = 1000
NUM_CLASSES = 10

IN_PAD = 896    # 784 -> 7*128   (keeps K of fc1 lane-aligned)
HID_PAD = 1024  # 1000 -> 8*128  (keeps K of fc2/fc3 lane-aligned)

_LOG_SQRT_2PI = 0.9189385332046727  # 0.5 * log(2*pi)

_CPARAMS = pltpu.CompilerParams(
    vmem_limit_bytes=32 * 1024 * 1024,  # ~5 MiB actually used; safe on v5e/v6e/v7x
)


# ----------------------------------------------------------------- fused kernel
def _nnrn_kernel(x_ref, w1_ref, b1_ref, w2_ref, b2_ref, w3_ref, b3_ref,
                 out_ref, stats_ref):
    B = x_ref.shape[0]
    x = x_ref[...].astype(jnp.bfloat16)        # (B, IN_PAD); pad cols are zero

    # Hoisted once and reused by both RegularityEN calls (JAX does not CSE
    # duplicate iota/compare across the two trace instances).
    lane = jax.lax.broadcasted_iota(jnp.int32, (B, HID_PAD), 1)
    valid = lane < HIDDEN
    n = B * HIDDEN                             # true element count (static)
    inv_n = 1.0 / n
    inv_nm1 = 1.0 / (n - 1)

    def reg_en_relu(h, stat_base):
        """RegularityEN (x_history_stack=None path, COMP starts at 0) + F.relu.
        Padded lanes of h are exactly 0 but are excluded from every reduction,
        so mean / unbiased std / logsumexp match the unpadded reference."""
        mean = jnp.sum(h) * inv_n                       # padded entries are 0
        diff = jnp.where(valid, h - mean, 0.0)
        var = jnp.sum(diff * diff) * inv_nm1            # torch.std: unbiased
        std = jnp.sqrt(var)
        log_std = jnp.log(std)
        inv_2var = 0.5 / var
        # Normal(mean, std).log_prob(h); -inf on padded lanes so exp() -> 0
        log_p = jnp.where(valid,
                          -(diff * diff) * inv_2var - log_std - _LOG_SQRT_2PI,
                          -jnp.inf)
        lpmax = jnp.max(log_p)
        sum_p_x_thetax = lpmax + jnp.log(jnp.sum(jnp.exp(log_p - lpmax)))
        # COMP_old == 0 for every layer here, so both torch branches collapse to
        # logaddexp(0, sum_p_x_thetax); written max-shifted for stability.
        m0 = jnp.maximum(sum_p_x_thetax, 0.0)
        comp_new = m0 + jnp.log(jnp.exp(-m0) + jnp.exp(sum_p_x_thetax - m0))
        l_nml_x = comp_new - sum_p_x_thetax
        stats_ref[stat_base + 0] = mean
        stats_ref[stat_base + 1] = std
        stats_ref[stat_base + 2] = comp_new
        return jnp.maximum(l_nml_x * h, 0.0)            # scale then F.relu

    h1 = jnp.dot(x, w1_ref[...], preferred_element_type=jnp.float32) + b1_ref[...]
    h1 = reg_en_relu(h1, 0)
    h2 = jnp.dot(h1.astype(jnp.bfloat16), w2_ref[...],
                 preferred_element_type=jnp.float32) + b2_ref[...]
    h2 = reg_en_relu(h2, 3)
    logits = jnp.dot(h2.astype(jnp.bfloat16), w3_ref[...],
                     preferred_element_type=jnp.float32) + b3_ref[...]  # (B, 10)

    # log_softmax over the true NUM_CLASSES columns (no padding, no mask).
    m = jnp.max(logits, axis=1, keepdims=True)
    lse = m + jnp.log(jnp.sum(jnp.exp(logits - m), axis=1, keepdims=True))
    out_ref[...] = logits - lse


def _nnrn_call(xp, w1p, b1p, w2p, b2p, w3p, b3p):
    B = xp.shape[0]
    return pl.pallas_call(
        _nnrn_kernel,
        out_shape=(
            jax.ShapeDtypeStruct((B, NUM_CLASSES), jnp.float32),
            jax.ShapeDtypeStruct((6,), jnp.float32),  # mean/std/COMP for fc1,fc2
        ),
        # No grid: single invocation, whole arrays resident in VMEM, no double
        # buffering (the old grid=(1,) version paid for unused second buffers).
        in_specs=[pl.BlockSpec(memory_space=pltpu.VMEM) for _ in range(7)],
        out_specs=(
            pl.BlockSpec(memory_space=pltpu.VMEM),
            pl.BlockSpec(memory_space=pltpu.SMEM),
        ),
        compiler_params=_CPARAMS,
    )(xp, w1p, b1p, w2p, b2p, w3p, b3p)


# ---------------------------------------------------------------- host wrappers
def pad_params(params):
    """Pad to lane-aligned contraction dims ONCE and cast weights to bf16."""
    W1, b1, W2, b2, W3, b3 = params
    W1p = jnp.pad(W1, ((0, IN_PAD - INPUT_SIZE),
                       (0, HID_PAD - HIDDEN))).astype(jnp.bfloat16)
    b1p = jnp.pad(b1, (0, HID_PAD - HIDDEN)).reshape(1, HID_PAD).astype(jnp.float32)
    W2p = jnp.pad(W2, ((0, HID_PAD - HIDDEN),
                       (0, HID_PAD - HIDDEN))).astype(jnp.bfloat16)
    b2p = jnp.pad(b2, (0, HID_PAD - HIDDEN)).reshape(1, HID_PAD).astype(jnp.float32)
    # W3: only the contraction dim is padded; class dim stays 10 (no dead bytes,
    # no softmax mask).
    W3p = jnp.pad(W3, ((0, HID_PAD - HIDDEN), (0, 0))).astype(jnp.bfloat16)
    b3p = b3.reshape(1, NUM_CLASSES).astype(jnp.float32)
    return W1p, b1p, W2p, b2p, W3p, b3p


def nnrn_forward(x, padded_params):
    # TODO(synk): inputRN / isTest / running x_history_stack accumulation branches
    # are Python-level control flow; only the default-argument path is implemented.
    W1p, b1p, W2p, b2p, W3p, b3p = padded_params
    xf = x.reshape(-1, INPUT_SIZE).astype(jnp.float32)
    B = xf.shape[0]
    xp = jnp.pad(xf, ((0, 0), (0, IN_PAD - INPUT_SIZE)))

    out, stats = _nnrn_call(xp, W1p, b1p, W2p, b2p, W3p, b3p)

    n_hidden = B * HIDDEN
    x_history_input = -1
    COMP_input = -1
    x_history_fc1 = [stats[0], stats[1], n_hidden]
    x_history_fc2 = [stats[3], stats[4], n_hidden]
    x_history_stack = [x_history_input, x_history_fc1, x_history_fc2]
    COMP_stack = [COMP_input, stats[2], stats[5]]
    return out, x_history_stack, COMP_stack


# ------------------------------------------------------------------------ main
if __name__ == "__main__":
    key = jax.random.PRNGKey(0)
    kx, k1, kb1, k2, kb2, k3, kb3 = jax.random.split(key, 7)

    def uinit(k, shape, fan_in):
        bound = 1.0 / (fan_in ** 0.5)
        return jax.random.uniform(k, shape, jnp.float32, -bound, bound)

    # nn.Linear-style deterministic init, stored as (in, out)
    W1 = uinit(k1, (INPUT_SIZE, HIDDEN), INPUT_SIZE)
    b1 = uinit(kb1, (HIDDEN,), INPUT_SIZE)
    W2 = uinit(k2, (HIDDEN, HIDDEN), HIDDEN)
    b2 = uinit(kb2, (HIDDEN,), HIDDEN)
    W3 = uinit(k3, (HIDDEN, NUM_CLASSES), HIDDEN)
    b3 = uinit(kb3, (NUM_CLASSES,), HIDDEN)
    padded_params = pad_params((W1, b1, W2, b2, W3, b3))

    B = 2  # weight reads amortize linearly with B; raise per-call batch when possible
    x = jax.random.normal(kx, (B, 1, 28, 28), jnp.float32)  # MNIST-like input

    out, x_history_stack, COMP_stack = nnrn_forward(x, padded_params)
    jax.block_until_ready(out)
    jax.block_until_ready(COMP_stack[1])
    assert out.shape == (B, NUM_CLASSES)
    print("KERNEL_OK")
</pallas_src>

<mosaic_0001>
module attributes {stable_mosaic.version = 11 : i64} {
  func.func @_nnrn_kernel(%arg0: memref<2x896xf32, #tpu.memory_space<vmem>>, %arg1: memref<896x1024xbf16, #tpu.memory_space<vmem>>, %arg2: memref<1x1024xf32, #tpu.memory_space<vmem>>, %arg3: memref<1024x1024xbf16, #tpu.memory_space<vmem>>, %arg4: memref<1x1024xf32, #tpu.memory_space<vmem>>, %arg5: memref<1024x10xbf16, #tpu.memory_space<vmem>>, %arg6: memref<1x10xf32, #tpu.memory_space<vmem>>, %arg7: memref<2x10xf32, #tpu.memory_space<vmem>>, %arg8: memref<6xf32, #tpu.memory_space<smem>>) attributes {dimension_semantics = [], scalar_prefetch = 0 : i64, scratch_operands = 0 : i64, tpu.core_type = #tpu.core_type<tc>} {
    %c0 = arith.constant 0 : index
    %c0_0 = arith.constant 0 : index
    %0 = vector.load %arg0[%c0, %c0_0] : memref<2x896xf32, #tpu.memory_space<vmem>>, vector<2x896xf32>
    %1 = arith.truncf %0 : vector<2x896xf32> to vector<2x896xbf16>
    %2 = tpu.iota {dimensions = array<i32: 1>} : vector<2x1024xi32>
    %c1000_i32 = arith.constant 1000 : i32
    %3 = vector.broadcast %c1000_i32 : i32 to vector<2x1024xi32>
    %4 = arith.cmpi slt, %2, %3 : vector<2x1024xi32>
    %c0_1 = arith.constant 0 : index
    %c0_2 = arith.constant 0 : index
    %5 = vector.load %arg1[%c0_1, %c0_2] : memref<896x1024xbf16, #tpu.memory_space<vmem>>, vector<896x1024xbf16>
    %cst = arith.constant dense<0.000000e+00> : vector<2x1024xf32>
    %6 = tpu.matmul %1, %5, %cst {dimension_numbers = #tpu.dot_dimension_numbers<[1], [0], [0], [1], [0, 0, 1, 1], [], []>} : vector<2x896xbf16>, vector<896x1024xbf16>, vector<2x1024xf32> -> vector<2x1024xf32>
    %c0_3 = arith.constant 0 : index
    %c0_4 = arith.constant 0 : index
    %7 = vector.load %arg2[%c0_3, %c0_4] : memref<1x1024xf32, #tpu.memory_space<vmem>>, vector<1x1024xf32>
    %8 = vector.broadcast %7 : vector<1x1024xf32> to vector<2x1024xf32>
    %9 = arith.addf %6, %8 : vector<2x1024xf32>
    %10 = vector.shape_cast %9 : vector<2x1024xf32> to vector<1x2x1024xf32>
    %cst_5 = arith.constant dense<0.000000e+00> : vector<1xf32>
    %11 = vector.multi_reduction <add>, %10, %cst_5 [1, 2] : vector<1x2x1024xf32> to vector<1xf32>
    %12 = vector.shape_cast %11 : vector<1xf32> to vector<1x1x1xf32>
    %13 = vector.extract %12[0, 0, 0] : f32 from vector<1x1x1xf32>
    %cst_6 = arith.constant 5.000000e-04 : f32
    %14 = arith.mulf %13, %cst_6 : f32
    %15 = vector.broadcast %14 : f32 to vector<2x1024xf32>
    %16 = arith.subf %9, %15 : vector<2x1024xf32>
    %cst_7 = arith.constant 0.000000e+00 : f32
    %17 = vector.broadcast %cst_7 : f32 to vector<2x1024xf32>
    %18 = arith.select %4, %16, %17 : vector<2x1024xi1>, vector<2x1024xf32>
    %19 = arith.mulf %18, %18 : vector<2x1024xf32>
    %20 = vector.shape_cast %19 : vector<2x1024xf32> to vector<1x2x1024xf32>
    %cst_8 = arith.constant dense<0.000000e+00> : vector<1xf32>
    %21 = vector.multi_reduction <add>, %20, %cst_8 [1, 2] : vector<1x2x1024xf32> to vector<1xf32>
    %22 = vector.shape_cast %21 : vector<1xf32> to vector<1x1x1xf32>
    %23 = vector.extract %22[0, 0, 0] : f32 from vector<1x1x1xf32>
    %cst_9 = arith.constant 5.00250142E-4 : f32
    %24 = arith.mulf %23, %cst_9 : f32
    %25 = math.sqrt %24 : f32
    %26 = math.log %25 : f32
    %cst_10 = arith.constant 5.000000e-01 : f32
    %27 = arith.divf %cst_10, %24 : f32
    %28 = arith.mulf %18, %18 : vector<2x1024xf32>
    %cst_11 = arith.constant 0.000000e+00 : f32
    %29 = vector.broadcast %cst_11 : f32 to vector<2x1024xf32>
    %30 = arith.subf %29, %28 : vector<2x1024xf32>
    %31 = vector.broadcast %27 : f32 to vector<2x1024xf32>
    %32 = arith.mulf %30, %31 : vector<2x1024xf32>
    %33 = vector.broadcast %26 : f32 to vector<2x1024xf32>
    %34 = arith.subf %32, %33 : vector<2x1024xf32>
    %cst_12 = arith.constant 0.918938517 : f32
    %35 = vector.broadcast %cst_12 : f32 to vector<2x1024xf32>
    %36 = arith.subf %34, %35 : vector<2x1024xf32>
    %cst_13 = arith.constant 0xFF800000 : f32
    %37 = vector.broadcast %cst_13 : f32 to vector<2x1024xf32>
    %38 = arith.select %4, %36, %37 : vector<2x1024xi1>, vector<2x1024xf32>
    %39 = vector.shape_cast %38 : vector<2x1024xf32> to vector<1x2x1024xf32>
    %cst_14 = arith.constant dense<0xFF800000> : vector<1xf32>
    %40 = vector.multi_reduction <maximumf>, %39, %cst_14 [1, 2] : vector<1x2x1024xf32> to vector<1xf32>
    %41 = vector.shape_cast %40 : vector<1xf32> to vector<1x1x1xf32>
    %42 = vector.extract %41[0, 0, 0] : f32 from vector<1x1x1xf32>
    %43 = vector.broadcast %42 : f32 to vector<2x1024xf32>
    %44 = arith.subf %38, %43 : vector<2x1024xf32>
    %45 = math.exp %44 : vector<2x1024xf32>
    %46 = vector.shape_cast %45 : vector<2x1024xf32> to vector<1x2x1024xf32>
    %cst_15 = arith.constant dense<0.000000e+00> : vector<1xf32>
    %47 = vector.multi_reduction <add>, %46, %cst_15 [1, 2] : vector<1x2x1024xf32> to vector<1xf32>
    %48 = vector.shape_cast %47 : vector<1xf32> to vector<1x1x1xf32>
    %49 = vector.extract %48[0, 0, 0] : f32 from vector<1x1x1xf32>
    %50 = math.log %49 : f32
    %51 = arith.addf %42, %50 : f32
    %cst_16 = arith.constant 0.000000e+00 : f32
    %52 = arith.maximumf %51, %cst_16 : f32
    %cst_17 = arith.constant 0.000000e+00 : f32
    %53 = arith.subf %cst_17, %52 : f32
    %54 = math.exp %53 : f32
    %55 = arith.subf %51, %52 : f32
    %56 = math.exp %55 : f32
    %57 = arith.addf %54, %56 : f32
    %58 = math.log %57 : f32
    %59 = arith.addf %52, %58 : f32
    %60 = arith.subf %59, %51 : f32
    %c0_18 = arith.constant 0 : index
    %61 = memref.load %arg8[%c0_18] : memref<6xf32, #tpu.memory_space<smem>>
    memref.store %14, %arg8[%c0_18] : memref<6xf32, #tpu.memory_space<smem>>
    %c1 = arith.constant 1 : index
    %62 = memref.load %arg8[%c1] : memref<6xf32, #tpu.memory_space<smem>>
    memref.store %25, %arg8[%c1] : memref<6xf32, #tpu.memory_space<smem>>
    %c2 = arith.constant 2 : index
    %63 = memref.load %arg8[%c2] : memref<6xf32, #tpu.memory_space<smem>>
    memref.store %59, %arg8[%c2] : memref<6xf32, #tpu.memory_space<smem>>
    %64 = vector.broadcast %60 : f32 to vector<2x1024xf32>
    %65 = arith.mulf %64, %9 : vector<2x1024xf32>
    %cst_19 = arith.constant 0.000000e+00 : f32
    %66 = vector.broadcast %cst_19 : f32 to vector<2x1024xf32>
    %67 = arith.maximumf %65, %66 : vector<2x1024xf32>
    %68 = arith.truncf %67 : vector<2x1024xf32> to vector<2x1024xbf16>
    %c0_20 = arith.constant 0 : index
    %c0_21 = arith.constant 0 : index
    %69 = vector.load %arg3[%c0_20, %c0_21] : memref<1024x1024xbf16, #tpu.memory_space<vmem>>, vector<1024x1024xbf16>
    %cst_22 = arith.constant dense<0.000000e+00> : vector<2x1024xf32>
    %70 = tpu.matmul %68, %69, %cst_22 {dimension_numbers = #tpu.dot_dimension_numbers<[1], [0], [0], [1], [0, 0, 1, 1], [], []>} : vector<2x1024xbf16>, vector<1024x1024xbf16>, vector<2x1024xf32> -> vector<2x1024xf32>
    %c0_23 = arith.constant 0 : index
    %c0_24 = arith.constant 0 : index
    %71 = vector.load %arg4[%c0_23, %c0_24] : memref<1x1024xf32, #tpu.memory_space<vmem>>, vector<1x1024xf32>
    %72 = vector.broadcast %71 : vector<1x1024xf32> to vector<2x1024xf32>
    %73 = arith.addf %70, %72 : vector<2x1024xf32>
    %74 = vector.shape_cast %73 : vector<2x1024xf32> to vector<1x2x1024xf32>
    %cst_25 = arith.constant dense<0.000000e+00> : vector<1xf32>
    %75 = vector.multi_reduction <add>, %74, %cst_25 [1, 2] : vector<1x2x1024xf32> to vector<1xf32>
    %76 = vector.shape_cast %75 : vector<1xf32> to vector<1x1x1xf32>
    %77 = vector.extract %76[0, 0, 0] : f32 from vector<1x1x1xf32>
    %cst_26 = arith.constant 5.000000e-04 : f32
    %78 = arith.mulf %77, %cst_26 : f32
    %79 = vector.broadcast %78 : f32 to vector<2x1024xf32>
    %80 = arith.subf %73, %79 : vector<2x1024xf32>
    %cst_27 = arith.constant 0.000000e+00 : f32
    %81 = vector.broadcast %cst_27 : f32 to vector<2x1024xf32>
    %82 = arith.select %4, %80, %81 : vector<2x1024xi1>, vector<2x1024xf32>
    %83 = arith.mulf %82, %82 : vector<2x1024xf32>
    %84 = vector.shape_cast %83 : vector<2x1024xf32> to vector<1x2x1024xf32>
    %cst_28 = arith.constant dense<0.000000e+00> : vector<1xf32>
    %85 = vector.multi_reduction <add>, %84, %cst_28 [1, 2] : vector<1x2x1024xf32> to vector<1xf32>
    %86 = vector.shape_cast %85 : vector<1xf32> to vector<1x1x1xf32>
    %87 = vector.extract %86[0, 0, 0] : f32 from vector<1x1x1xf32>
    %cst_29 = arith.constant 5.00250142E-4 : f32
    %88 = arith.mulf %87, %cst_29 : f32
    %89 = math.sqrt %88 : f32
    %90 = math.log %89 : f32
    %cst_30 = arith.constant 5.000000e-01 : f32
    %91 = arith.divf %cst_30, %88 : f32
    %92 = arith.mulf %82, %82 : vector<2x1024xf32>
    %cst_31 = arith.constant 0.000000e+00 : f32
    %93 = vector.broadcast %cst_31 : f32 to vector<2x1024xf32>
    %94 = arith.subf %93, %92 : vector<2x1024xf32>
    %95 = vector.broadcast %91 : f32 to vector<2x1024xf32>
    %96 = arith.mulf %94, %95 : vector<2x1024xf32>
    %97 = vector.broadcast %90 : f32 to vector<2x1024xf32>
    %98 = arith.subf %96, %97 : vector<2x1024xf32>
    %cst_32 = arith.constant 0.918938517 : f32
    %99 = vector.broadcast %cst_32 : f32 to vector<2x1024xf32>
    %100 = arith.subf %98, %99 : vector<2x1024xf32>
    %cst_33 = arith.constant 0xFF800000 : f32
    %101 = vector.broadcast %cst_33 : f32 to vector<2x1024xf32>
    %102 = arith.select %4, %100, %101 : vector<2x1024xi1>, vector<2x1024xf32>
    %103 = vector.shape_cast %102 : vector<2x1024xf32> to vector<1x2x1024xf32>
    %cst_34 = arith.constant dense<0xFF800000> : vector<1xf32>
    %104 = vector.multi_reduction <maximumf>, %103, %cst_34 [1, 2] : vector<1x2x1024xf32> to vector<1xf32>
    %105 = vector.shape_cast %104 : vector<1xf32> to vector<1x1x1xf32>
    %106 = vector.extract %105[0, 0, 0] : f32 from vector<1x1x1xf32>
    %107 = vector.broadcast %106 : f32 to vector<2x1024xf32>
    %108 = arith.subf %102, %107 : vector<2x1024xf32>
    %109 = math.exp %108 : vector<2x1024xf32>
    %110 = vector.shape_cast %109 : vector<2x1024xf32> to vector<1x2x1024xf32>
    %cst_35 = arith.constant dense<0.000000e+00> : vector<1xf32>
    %111 = vector.multi_reduction <add>, %110, %cst_35 [1, 2] : vector<1x2x1024xf32> to vector<1xf32>
    %112 = vector.shape_cast %111 : vector<1xf32> to vector<1x1x1xf32>
    %113 = vector.extract %112[0, 0, 0] : f32 from vector<1x1x1xf32>
    %114 = math.log %113 : f32
    %115 = arith.addf %106, %114 : f32
    %cst_36 = arith.constant 0.000000e+00 : f32
    %116 = arith.maximumf %115, %cst_36 : f32
    %cst_37 = arith.constant 0.000000e+00 : f32
    %117 = arith.subf %cst_37, %116 : f32
    %118 = math.exp %117 : f32
    %119 = arith.subf %115, %116 : f32
    %120 = math.exp %119 : f32
    %121 = arith.addf %118, %120 : f32
    %122 = math.log %121 : f32
    %123 = arith.addf %116, %122 : f32
    %124 = arith.subf %123, %115 : f32
    %c3 = arith.constant 3 : index
    %125 = memref.load %arg8[%c3] : memref<6xf32, #tpu.memory_space<smem>>
    memref.store %78, %arg8[%c3] : memref<6xf32, #tpu.memory_space<smem>>
    %c4 = arith.constant 4 : index
    %126 = memref.load %arg8[%c4] : memref<6xf32, #tpu.memory_space<smem>>
    memref.store %89, %arg8[%c4] : memref<6xf32, #tpu.memory_space<smem>>
    %c5 = arith.constant 5 : index
    %127 = memref.load %arg8[%c5] : memref<6xf32, #tpu.memory_space<smem>>
    memref.store %123, %arg8[%c5] : memref<6xf32, #tpu.memory_space<smem>>
    %128 = vector.broadcast %124 : f32 to vector<2x1024xf32>
    %129 = arith.mulf %128, %73 : vector<2x1024xf32>
    %cst_38 = arith.constant 0.000000e+00 : f32
    %130 = vector.broadcast %cst_38 : f32 to vector<2x1024xf32>
    %131 = arith.maximumf %129, %130 : vector<2x1024xf32>
    %132 = arith.truncf %131 : vector<2x1024xf32> to vector<2x1024xbf16>
    %c0_39 = arith.constant 0 : index
    %c0_40 = arith.constant 0 : index
    %133 = vector.load %arg5[%c0_39, %c0_40] : memref<1024x10xbf16, #tpu.memory_space<vmem>>, vector<1024x10xbf16>
    %cst_41 = arith.constant dense<0.000000e+00> : vector<2x10xf32>
    %134 = tpu.matmul %132, %133, %cst_41 {dimension_numbers = #tpu.dot_dimension_numbers<[1], [0], [0], [1], [0, 0, 1, 1], [], []>} : vector<2x1024xbf16>, vector<1024x10xbf16>, vector<2x10xf32> -> vector<2x10xf32>
    %c0_42 = arith.constant 0 : index
    %c0_43 = arith.constant 0 : index
    %135 = vector.load %arg6[%c0_42, %c0_43] : memref<1x10xf32, #tpu.memory_space<vmem>>, vector<1x10xf32>
    %136 = vector.broadcast %135 : vector<1x10xf32> to vector<2x10xf32>
    %137 = arith.addf %134, %136 : vector<2x10xf32>
    %cst_44 = arith.constant dense<0xFF800000> : vector<2xf32>
    %138 = vector.multi_reduction <maximumf>, %137, %cst_44 [1] : vector<2x10xf32> to vector<2xf32>
    %139 = vector.shape_cast %138 : vector<2xf32> to vector<2x1xf32>
    %140 = vector.broadcast %139 : vector<2x1xf32> to vector<2x10xf32>
    %141 = arith.subf %137, %140 : vector<2x10xf32>
    %142 = math.exp %141 : vector<2x10xf32>
    %cst_45 = arith.constant dense<0.000000e+00> : vector<2xf32>
    %143 = vector.multi_reduction <add>, %142, %cst_45 [1] : vector<2x10xf32> to vector<2xf32>
    %144 = vector.shape_cast %143 : vector<2xf32> to vector<2x1xf32>
    %145 = math.log %144 : vector<2x1xf32>
    %146 = arith.addf %139, %145 : vector<2x1xf32>
    %147 = vector.broadcast %146 : vector<2x1xf32> to vector<2x10xf32>
    %148 = arith.subf %137, %147 : vector<2x10xf32>
    %c0_46 = arith.constant 0 : index
    %c0_47 = arith.constant 0 : index
    %149 = vector.load %arg7[%c0_46, %c0_47] : memref<2x10xf32, #tpu.memory_space<vmem>>, vector<2x10xf32>
    tpu.vector_store %arg7[%c0_46, %c0_47], %148 {strides = array<i32>} : memref<2x10xf32, #tpu.memory_space<vmem>>, vector<2x10xf32>,
    return
  }
}

</mosaic_0001>

<llo_original>
// kernel: tpu_custom_call.1
$region0: #{tpu_custom_call.1}
  #allocation0 [shape = 'u32[]', space=smem, size = 0x4, offset = 0x4, fixed_abs, tag = 'smem constant byte address 0x4 - core index']
  #allocation1 [shape = 'u32[144,128]{1,0:T(1,128)}', space=vmem, size = 0x12000, scoped, tag = 'internal scratch']
  %s0 = inlined_call_operand.hbm [shape: f32[2,896], index: 0, kind: input, shape index: {}]
  %s1 = inlined_call_operand.hbm [shape: bf16[896,1024], index: 1, kind: input, shape index: {}]
  %s2 = inlined_call_operand.hbm [shape: f32[1,1024], index: 2, kind: input, shape index: {}]
  %s3 = inlined_call_operand.hbm [shape: bf16[1024,1024], index: 3, kind: input, shape index: {}]
  %s4 = inlined_call_operand.hbm [shape: f32[1,1024], index: 4, kind: input, shape index: {}]
  %s5 = inlined_call_operand.vmem [shape: bf16[1024,10], index: 5, kind: input, shape index: {}]
  %s6 = inlined_call_operand.hbm [shape: f32[1,10], index: 6, kind: input, shape index: {}]
  %s7 = inlined_call_operand.hbm [shape: f32[2,10], index: 7, kind: output, shape index: {0}]
  %s8 = inlined_call_operand.hbm [shape: f32[6], index: 8, kind: output, shape index: {1}]
  %9 = xla_tuple %s7, %s8
  %s10 = sld [smem:[#allocation0]]
  $region70: #{tpu_custom_call.1} parent=0
    _
  %s12 = ssub.s32 1, %s10
  %s13 = scalar_select 0, %s12, %s10
  $region1: #{tpu_custom_call.1} parent=0
    #allocation2 [shape = 'u8[7168]{0}', space=vmem, size = 0x1c00, scoped, tag = 'input window, operand 0, single buffered']
    #allocation3 [shape = 's32[1]{0}', space=sflag, size = 0x4, scoped, tag = 'scoped memory for tpu_custom_call.1']
    #allocation4 [shape = 's32[1]{0}', space=sflag, size = 0x4, scoped, tag = 'scoped memory for tpu_custom_call.1']
    #allocation5 [shape = 's32[1]{0}', space=sflag, size = 0x4, scoped, tag = 'scoped memory for tpu_custom_call.1']
    #allocation6 [shape = 'u8[1835008]{0}', space=vmem, size = 0x1c0000, scoped, tag = 'input window, operand 1, single buffered']
    #allocation7 [shape = 's32[1]{0}', space=sflag, size = 0x4, scoped, tag = 'scoped memory for tpu_custom_call.1']
    #allocation8 [shape = 'u8[4096]{0}', space=vmem, size = 0x1000, scoped, tag = 'input window, operand 2, single buffered']
    #allocation9 [shape = 'u8[2097152]{0}', space=vmem, size = 0x200000, scoped, tag = 'input window, operand 3, single buffered']
    #allocation10 [shape = 's32[1]{0}', space=sflag, size = 0x4, scoped, tag = 'scoped memory for tpu_custom_call.1']
    #allocation11 [shape = 'u8[4096]{0}', space=vmem, size = 0x1000, scoped, tag = 'input window, operand 4, single buffered']
    #allocation12 [shape = 'u8[512]{0}', space=vmem, size = 0x400, scoped, tag = 'input window, operand 6, single buffered']
    #allocation13 [shape = 's32[1]{0}', space=sflag, size = 0x4, scoped, tag = 'scoped memory for tpu_custom_call.1']
    #allocation14 [shape = 'u8[1024]{0}', space=vmem, size = 0x400, scoped, tag = 'output window, operand 0, single buffered']
    #allocation15 [shape = 'u8[512]{0}', space=smem, size = 0x200, scoped, tag = 'output window, operand 1, single buffered']
    %14 = vsyncpa [#allocation3], 0
    %15 = vsyncpa [#allocation7], 0
    %16 = vsyncpa [#allocation10], 0
    %17 = vsyncpa [#allocation13], 0
    %18 = vsyncpa [#allocation4], 0
    %19 = vsyncpa [#allocation5], 0
    // Predicated region
    $region2: #{tpu_custom_call.1} parent=1 // pred_check
      _
    $region3: #{tpu_custom_call.1} parent=1 // pred_check_branch
      %21 = sbr.rel (0) target = $region5
    $region4: #{tpu_custom_call.1} parent=1 // pred_region
      %s23 = ssub.s32 224, 224
      %24 = vsyncadd [#allocation3], %s23
      %s26 = sshll.u32 [#allocation2], 4
      %s27 = int_to_ptr.vmem [resolvable:$true] %s26
      %29 = dma.hbm_to_vmem [thread:$0]  %s0, 224, %s27, [#allocation3]
    $region5: #{tpu_custom_call.1} parent=1 // pred_fallthru
      _
    // Predicated region
    $region6: #{tpu_custom_call.1} parent=1 // pred_check
      _
    $region7: #{tpu_custom_call.1} parent=1 // pred_check_branch
      %31 = sbr.rel (0) target = $region9
    $region8: #{tpu_custom_call.1} parent=1 // pred_region
      %s33 = ssub.s32 57344, 57344
      %34 = vsyncadd [#allocation7], %s33
      %s35 = sshll.u32 [#allocation6], 4
      %s36 = int_to_ptr.vmem [resolvable:$true] %s35
      %41 = dma.hbm_to_vmem [thread:$0]  %s1, 57344, %s36, [#allocation7], 512, 512, 32
    $region9: #{tpu_custom_call.1} parent=1 // pred_fallthru
      _
    // Predicated region
    $region10: #{tpu_custom_call.1} parent=1 // pred_check
      _
    $region11: #{tpu_custom_call.1} parent=1 // pred_check_branch
      %43 = sbr.rel (0) target = $region13
    $region12: #{tpu_custom_call.1} parent=1 // pred_region
      %s45 = ssub.s32 128, 128
      %46 = vsyncadd [#allocation7], %s45
      %s48 = sshll.u32 [#allocation8], 4
      %s49 = int_to_ptr.vmem [resolvable:$true] %s48
      %51 = dma.hbm_to_vmem [thread:$0]  %s2, 128, %s49, [#allocation7]
    $region13: #{tpu_custom_call.1} parent=1 // pred_fallthru
      _
    // Predicated region
    $region14: #{tpu_custom_call.1} parent=1 // pred_check
      _
    $region15: #{tpu_custom_call.1} parent=1 // pred_check_branch
      %53 = sbr.rel (0) target = $region17
    $region16: #{tpu_custom_call.1} parent=1 // pred_region
      %s55 = ssub.s32 65536, 65536
      %56 = vsyncadd [#allocation10], %s55
      %s57 = sshll.u32 [#allocation9], 4
      %s58 = int_to_ptr.vmem [resolvable:$true] %s57
      %63 = dma.hbm_to_vmem [thread:$0]  %s3, 65536, %s58, [#allocation10], 512, 512, 32
    $region17: #{tpu_custom_call.1} parent=1 // pred_fallthru
      _
    // Predicated region
    $region18: #{tpu_custom_call.1} parent=1 // pred_check
      _
    $region19: #{tpu_custom_call.1} parent=1 // pred_check_branch
      %65 = sbr.rel (0) target = $region21
    $region20: #{tpu_custom_call.1} parent=1 // pred_region
      %s67 = ssub.s32 128, 128
      %68 = vsyncadd [#allocation10], %s67
      %s70 = sshll.u32 [#allocation11], 4
      %s71 = int_to_ptr.vmem [resolvable:$true] %s70
      %73 = dma.hbm_to_vmem [thread:$0]  %s4, 128, %s71, [#allocation10]
    $region21: #{tpu_custom_call.1} parent=1 // pred_fallthru
      _
    // Predicated region
    $region22: #{tpu_custom_call.1} parent=1 // pred_check
      _
    $region23: #{tpu_custom_call.1} parent=1 // pred_check_branch
      %75 = sbr.rel (0) target = $region25
    $region24: #{tpu_custom_call.1} parent=1 // pred_region
      _
    $region25: #{tpu_custom_call.1} parent=1 // pred_fallthru
      _
    // Predicated region
    $region26: #{tpu_custom_call.1} parent=1 // pred_check
      _
    $region27: #{tpu_custom_call.1} parent=1 // pred_check_branch
      %77 = sbr.rel (0) target = $region29
    $region28: #{tpu_custom_call.1} parent=1 // pred_region
      %s79 = ssub.s32 16, 16
      %80 = vsyncadd [#allocation13], %s79
      %s82 = sshll.u32 [#allocation12], 4
      %s83 = int_to_ptr.vmem [resolvable:$true] %s82
      %85 = dma.hbm_to_vmem [thread:$0]  %s6, 16, %s83, [#allocation13]
    $region29: #{tpu_custom_call.1} parent=1 // pred_fallthru
      _
    // Predicated region
    $region30: #{tpu_custom_call.1} parent=1 // pred_check
      _
    $region31: #{tpu_custom_call.1} parent=1 // pred_check_branch
      %87 = sbr.rel (0) target = $region33
    $region32: #{tpu_custom_call.1} parent=1 // pred_region
      %88 = dma.done [#allocation3], 224
    $region33: #{tpu_custom_call.1} parent=1 // pred_fallthru
      _
    // Predicated region
    $region34: #{tpu_custom_call.1} parent=1 // pred_check
      _
    $region35: #{tpu_custom_call.1} parent=1 // pred_check_branch
      %90 = sbr.rel (0) target = $region37
    $region36: #{tpu_custom_call.1} parent=1 // pred_region
      %91 = dma.done [#allocation7], 57344
    $region37: #{tpu_custom_call.1} parent=1 // pred_fallthru
      _
    // Predicated region
    $region38: #{tpu_custom_call.1} parent=1 // pred_check
      _
    $region39: #{tpu_custom_call.1} parent=1 // pred_check_branch
      %93 = sbr.rel (0) target = $region41
    $region40: #{tpu_custom_call.1} parent=1 // pred_region
      %94 = dma.done [#allocation7], 128
    $region41: #{tpu_custom_call.1} parent=1 // pred_fallthru
      _
    // Predicated region
    $region42: #{tpu_custom_call.1} parent=1 // pred_check
      _
    $region43: #{tpu_custom_call.1} parent=1 // pred_check_branch
      %96 = sbr.rel (0) target = $region45
    $region44: #{tpu_custom_call.1} parent=1 // pred_region
      %97 = dma.done [#allocation10], 65536
    $region45: #{tpu_custom_call.1} parent=1 // pred_fallthru
      _
    // Predicated region
    $region46: #{tpu_custom_call.1} parent=1 // pred_check
      _
    $region47: #{tpu_custom_call.1} parent=1 // pred_check_branch
      %99 = sbr.rel (0) target = $region49
    $region48: #{tpu_custom_call.1} parent=1 // pred_region
      %100 = dma.done [#allocation10], 128
    $region49: #{tpu_custom_call.1} parent=1 // pred_fallthru
      _
    // Predicated region
    $region50: #{tpu_custom_call.1} parent=1 // pred_check
      _
    $region51: #{tpu_custom_call.1} parent=1 // pred_check_branch
      %102 = sbr.rel (0) target = $region53
    $region52: #{tpu_custom_call.1} parent=1 // pred_region
      %103 = dma.done [#allocation13], 16
    $region53: #{tpu_custom_call.1} parent=1 // pred_fallthru
      _
    %v105 = vld [vmem:[#allocation2] sm:$0xff]
    %v106 = vld [vmem:[#allocation2 + $0x8] sm:$0x3f]
    %v109 = vcombine.high %v105, %v105
    %v111 = vunpack.c.l.s4 1983009808
    %v112 = vunpack.c.0.s8 %v111
    %v113 = vlaneseq
    %v114 = vshrl.u32 %v113, 7
    %v115 = vsub.s32 %v112, %v114
    %v116 = vrot.slane %v105, %v115
    %v118 = vunpack.c.l.s4 1983009808
    %v119 = vunpack.c.0.s8 %v118
    %v120 = vlaneseq
    %v121 = vshrl.u32 %v120, 7
    %v122 = vsub.s32 %v119, %v121
    %v123 = vrot.slane %v109, %v122
    %v124 = vcombine.high %v116, %v116
    %v125 = vcombine.high %v123, %v123
    %v126 = vcombine.high %v106, %v106
    %v128 = vunpack.c.l.s4 1983009808
    %v129 = vunpack.c.0.s8 %v128
    %v130 = vlaneseq
    %v131 = vshrl.u32 %v130, 7
    %v132 = vsub.s32 %v129, %v131
    %v133 = vrot.slane %v106, %v132
    %v135 = vunpack.c.l.s4 1983009808
    %v136 = vunpack.c.0.s8 %v135
    %v137 = vlaneseq
    %v138 = vshrl.u32 %v137, 7
    %v139 = vsub.s32 %v136, %v138
    %v140 = vrot.slane %v126, %v139
    %v141 = vcombine.high %v133, %v133
    %v149 = vpack.c.bf16 %v116, %v116
    %v150 = vpack.c.bf16 %v124, %v124
    %v151 = vpack.c.bf16 %v123, %v123
    %v152 = vpack.c.bf16 %v125, %v125
    %v153 = vpack.c.bf16 %v133, %v133
    %v154 = vpack.c.bf16 %v141, %v141
    %v155 = vpack.c.bf16 %v140, %v140
    %v156 = vlaneseq
    %v157 = vand.u32 %v156, 127
    %v158 = vadd.s32 %v157, 128
    %v159 = vadd.s32 %v157, 256
    %v160 = vadd.s32 %v157, 384
    %v161 = vadd.s32 %v157, 512
    %v162 = vadd.s32 %v157, 640
    %v163 = vadd.s32 %v157, 768
    %v164 = vadd.s32 %v157, 896
    %vm165 = vcmp.lt.s32.totalorder %v157, 1000
    %vm166 = vcmp.lt.s32.totalorder %v158, 1000
    %vm167 = vcmp.lt.s32.totalorder %v159, 1000
    %vm168 = vcmp.lt.s32.totalorder %v160, 1000
    %vm169 = vcmp.lt.s32.totalorder %v161, 1000
    %vm170 = vcmp.lt.s32.totalorder %v162, 1000
    %vm171 = vcmp.lt.s32.totalorder %v163, 1000
    %vm172 = vcmp.lt.s32.totalorder %v164, 1000
    %v173 = vld [vmem:[#allocation6] sm:$0xff]
    %v174 = vld [vmem:[#allocation6 + $0x8] sm:$0xff]
    %v175 = vld [vmem:[#allocation6 + $0x10] sm:$0xff]
    %v176 = vld [vmem:[#allocation6 + $0x18] sm:$0xff]
    %v177 = vld [vmem:[#allocation6 + $0x20] sm:$0xff]
    %v178 = vld [vmem:[#allocation6 + $0x28] sm:$0xff]
    %v179 = vld [vmem:[#allocation6 + $0x30] sm:$0xff]
    %v180 = vld [vmem:[#allocation6 + $0x38] sm:$0xff]
    %v181 = vld [vmem:[#allocation6 + $0x40] sm:$0xff]
    %v182 = vld [vmem:[#allocation6 + $0x48] sm:$0xff]
    %v183 = vld [vmem:[#allocation6 + $0x50] sm:$0xff]
    %v184 = vld [vmem:[#allocation6 + $0x58] sm:$0xff]
    %v185 = vld [vmem:[#allocation6 + $0x60] sm:$0xff]
    %v186 = vld [vmem:[#allocation6 + $0x68] sm:$0xff]
    %v187 = vld [vmem:[#allocation6 + $0x70] sm:$0xff]
    %v188 = vld [vmem:[#allocation6 + $0x78] sm:$0xff]
    %v189 = vld [vmem:[#allocation6 + $0x80] sm:$0xff]
    %v190 = vld [vmem:[#allocation6 + $0x88] sm:$0xff]
    %v191 = vld [vmem:[#allocation6 + $0x90] sm:$0xff]
    %v192 = vld [vmem:[#allocation6 + $0x98] sm:$0xff]
    %v193 = vld [vmem:[#allocation6 + $0xa0] sm:$0xff]
    %v194 = vld [vmem:[#allocation6 + $0xa8] sm:$0xff]
    %v195 = vld [vmem:[#allocation6 + $0xb0] sm:$0xff]
    %v196 = vld [vmem:[#allocation6 + $0xb8] sm:$0xff]
    %v197 = vld [vmem:[#allocation6 + $0xc0] sm:$0xff]
    %v198 = vld [vmem:[#allocation6 + $0xc8] sm:$0xff]
    %v199 = vld [vmem:[#allocation6 + $0xd0] sm:$0xff]
    %v200 = vld [vmem:[#allocation6 + $0xd8] sm:$0xff]
    %v201 = vld [vmem:[#allocation6 + $0xe0] sm:$0xff]
    %v202 = vld [vmem:[#allocation6 + $0xe8] sm:$0xff]
    %v203 = vld [vmem:[#allocation6 + $0xf0] sm:$0xff]
    %v204 = vld [vmem:[#allocation6 + $0xf8] sm:$0xff]
    %v205 = vld [vmem:[#allocation6 + $0x100] sm:$0xff]
    %v206 = vld [vmem:[#allocation6 + $0x108] sm:$0xff]
    %v207 = vld [vmem:[#allocation6 + $0x110] sm:$0xff]
    %v208 = vld [vmem:[#allocation6 + $0x118] sm:$0xff]
    %v209 = vld [vmem:[#allocation6 + $0x120] sm:$0xff]
    %v210 = vld [vmem:[#allocation6 + $0x128] sm:$0xff]
    %v211 = vld [vmem:[#allocation6 + $0x130] sm:$0xff]
    %v212 = vld [vmem:[#allocation6 + $0x138] sm:$0xff]
    %v213 = vld [vmem:[#allocation6 + $0x140] sm:$0xff]
    %v214 = vld [vmem:[#allocation6 + $0x148] sm:$0xff]
    %v215 = vld [vmem:[#allocation6 + $0x150] sm:$0xff]
    %v216 = vld [vmem:[#allocation6 + $0x158] sm:$0xff]
    %v217 = vld [vmem:[#allocation6 + $0x160] sm:$0xff]
    %v218 = vld [vmem:[#allocation6 + $0x168] sm:$0xff]
    %v219 = vld [vmem:[#allocation6 + $0x170] sm:$0xff]
    %v220 = vld [vmem:[#allocation6 + $0x178] sm:$0xff]
    %v221 = vld [vmem:[#allocation6 + $0x180] sm:$0xff]
    %v222 = vld [vmem:[#allocation6 + $0x188] sm:$0xff]
    %v223 = vld [vmem:[#allocation6 + $0x190] sm:$0xff]
    %v224 = vld [vmem:[#allocation6 + $0x198] sm:$0xff]
    %v225 = vld [vmem:[#allocation6 + $0x1a0] sm:$0xff]
    %v226 = vld [vmem:[#allocation6 + $0x1a8] sm:$0xff]
    %v227 = vld [vmem:[#allocation6 + $0x1b0] sm:$0xff]
    %v228 = vld [vmem:[#allocation6 + $0x1b8] sm:$0xff]
    %v229 = vld [vmem:[#allocation6 + $0x1c0] sm:$0xff]
    %v230 = vld [vmem:[#allocation6 + $0x1c8] sm:$0xff]
    %v231 = vld [vmem:[#allocation6 + $0x1d0] sm:$0xff]
    %v232 = vld [vmem:[#allocation6 + $0x1d8] sm:$0xff]
    %v233 = vld [vmem:[#allocation6 + $0x1e0] sm:$0xff]
    %v234 = vld [vmem:[#allocation6 + $0x1e8] sm:$0xff]
    %v235 = vld [vmem:[#allocation6 + $0x1f0] sm:$0xff]
    %v236 = vld [vmem:[#allocation6 + $0x1f8] sm:$0xff]
    %v237 = vld [vmem:[#allocation6 + $0x200] sm:$0xff]
    %v238 = vld [vmem:[#allocation6 + $0x208] sm:$0xff]
    %v239 = vld [vmem:[#allocation6 + $0x210] sm:$0xff]
    %v240 = vld [vmem:[#allocation6 + $0x218] sm:$0xff]
    %v241 = vld [vmem:[#allocation6 + $0x220] sm:$0xff]
    %v242 = vld [vmem:[#allocation6 + $0x228] sm:$0xff]
    %v243 = vld [vmem:[#allocation6 + $0x230] sm:$0xff]
    %v244 = vld [vmem:[#allocation6 + $0x238] sm:$0xff]
    %v245 = vld [vmem:[#allocation6 + $0x240] sm:$0xff]
    %v246 = vld [vmem:[#allocation6 + $0x248] sm:$0xff]
    %v247 = vld [vmem:[#allocation6 + $0x250] sm:$0xff]
    %v248 = vld [vmem:[#allocation6 + $0x258] sm:$0xff]
    %v249 = vld [vmem:[#allocation6 + $0x260] sm:$0xff]
    %v250 = vld [vmem:[#allocation6 + $0x268] sm:$0xff]
    %v251 = vld [vmem:[#allocation6 + $0x270] sm:$0xff]
    %v252 = vld [vmem:[#allocation6 + $0x278] sm:$0xff]
    %v253 = vld [vmem:[#allocation6 + $0x280] sm:$0xff]
    %v254 = vld [vmem:[#allocation6 + $0x288] sm:$0xff]
    %v255 = vld [vmem:[#allocation6 + $0x290] sm:$0xff]
    %v256 = vld [vmem:[#allocation6 + $0x298] sm:$0xff]
    %v257 = vld [vmem:[#allocation6 + $0x2a0] sm:$0xff]
    %v258 = vld [vmem:[#allocation6 + $0x2a8] sm:$0xff]
    %v259 = vld [vmem:[#allocation6 + $0x2b0] sm:$0xff]
    %v260 = vld [vmem:[#allocation6 + $0x2b8] sm:$0xff]
    %v261 = vld [vmem:[#allocation6 + $0x2c0] sm:$0xff]
    %v262 = vld [vmem:[#allocation6 + $0x2c8] sm:$0xff]
    %v263 = vld [vmem:[#allocation6 + $0x2d0] sm:$0xff]
    %v264 = vld [vmem:[#allocation6 + $0x2d8] sm:$0xff]
    %v265 = vld [vmem:[#allocation6 + $0x2e0] sm:$0xff]
    %v266 = vld [vmem:[#allocation6 + $0x2e8] sm:$0xff]
    %v267 = vld [vmem:[#allocation6 + $0x2f0] sm:$0xff]
    %v268 = vld [vmem:[#allocation6 + $0x2f8] sm:$0xff]
    %v269 = vld [vmem:[#allocation6 + $0x300] sm:$0xff]
    %v270 = vld [vmem:[#allocation6 + $0x308] sm:$0xff]
    %v271 = vld [vmem:[#allocation6 + $0x310] sm:$0xff]
    %v272 = vld [vmem:[#allocation6 + $0x318] sm:$0xff]
    %v273 = vld [vmem:[#allocation6 + $0x320] sm:$0xff]
    %v274 = vld [vmem:[#allocation6 + $0x328] sm:$0xff]
    %v275 = vld [vmem:[#allocation6 + $0x330] sm:$0xff]
    %v276 = vld [vmem:[#allocation6 + $0x338] sm:$0xff]
    %v277 = vld [vmem:[#allocation6 + $0x340] sm:$0xff]
    %v278 = vld [vmem:[#allocation6 + $0x348] sm:$0xff]
    %v279 = vld [vmem:[#allocation6 + $0x350] sm:$0xff]
    %v280 = vld [vmem:[#allocation6 + $0x358] sm:$0xff]
    %v281 = vld [vmem:[#allocation6 + $0x360] sm:$0xff]
    %v282 = vld [vmem:[#allocation6 + $0x368] sm:$0xff]
    %v283 = vld [vmem:[#allocation6 + $0x370] sm:$0xff]
    %v284 = vld [vmem:[#allocation6 + $0x378] sm:$0xff]
    %v285 = vld [vmem:[#allocation6 + $0x380] sm:$0xff]
    %v286 = vld [vmem:[#allocation6 + $0x388] sm:$0xff]
    %v287 = vld [vmem:[#allocation6 + $0x390] sm:$0xff]
    %v288 = vld [vmem:[#allocation6 + $0x398] sm:$0xff]
    %v289 = vld [vmem:[#allocation6 + $0x3a0] sm:$0xff]
    %v290 = vld [vmem:[#allocation6 + $0x3a8] sm:$0xff]
    %v291 = vld [vmem:[#allocation6 + $0x3b0] sm:$0xff]
    %v292 = vld [vmem:[#allocation6 + $0x3b8] sm:$0xff]
    %v293 = vld [vmem:[#allocation6 + $0x3c0] sm:$0xff]
    %v294 = vld [vmem:[#allocation6 + $0x3c8] sm:$0xff]
    %v295 = vld [vmem:[#allocation6 + $0x3d0] sm:$0xff]
    %v296 = vld [vmem:[#allocation6 + $0x3d8] sm:$0xff]
    %v297 = vld [vmem:[#allocation6 + $0x3e0] sm:$0xff]
    %v298 = vld [vmem:[#allocation6 + $0x3e8] sm:$0xff]
    %v299 = vld [vmem:[#allocation6 + $0x3f0] sm:$0xff]
    %v300 = vld [vmem:[#allocation6 + $0x3f8] sm:$0xff]
    %v301 = vld [vmem:[#allocation6 + $0x400] sm:$0xff]
    %v302 = vld [vmem:[#allocation6 + $0x408] sm:$0xff]
    %v303 = vld [vmem:[#allocation6 + $0x410] sm:$0xff]
    %v304 = vld [vmem:[#allocation6 + $0x418] sm:$0xff]
    %v305 = vld [vmem:[#allocation6 + $0x420] sm:$0xff]
    %v306 = vld [vmem:[#allocation6 + $0x428] sm:$0xff]
    %v307 = vld [vmem:[#allocation6 + $0x430] sm:$0xff]
    %v308 = vld [vmem:[#allocation6 + $0x438] sm:$0xff]
    %v309 = vld [vmem:[#allocation6 + $0x440] sm:$0xff]
    %v310 = vld [vmem:[#allocation6 + $0x448] sm:$0xff]
    %v311 = vld [vmem:[#allocation6 + $0x450] sm:$0xff]
    %v312 = vld [vmem:[#allocation6 + $0x458] sm:$0xff]
    %v313 = vld [vmem:[#allocation6 + $0x460] sm:$0xff]
    %v314 = vld [vmem:[#allocation6 + $0x468] sm:$0xff]
    %v315 = vld [vmem:[#allocation6 + $0x470] sm:$0xff]
    %v316 = vld [vmem:[#allocation6 + $0x478] sm:$0xff]
    %v317 = vld [vmem:[#allocation6 + $0x480] sm:$0xff]
    %v318 = vld [vmem:[#allocation6 + $0x488] sm:$0xff]
    %v319 = vld [vmem:[#allocation6 + $0x490] sm:$0xff]
    %v320 = vld [vmem:[#allocation6 + $0x498] sm:$0xff]
    %v321 = vld [vmem:[#allocation6 + $0x4a0] sm:$0xff]
    %v322 = vld [vmem:[#allocation6 + $0x4a8] sm:$0xff]
    %v323 = vld [vmem:[#allocation6 + $0x4b0] sm:$0xff]
    %v324 = vld [vmem:[#allocation6 + $0x4b8] sm:$0xff]
    %v325 = vld [vmem:[#allocation6 + $0x4c0] sm:$0xff]
    %v326 = vld [vmem:[#allocation6 + $0x4c8] sm:$0xff]
    %v327 = vld [vmem:[#allocation6 + $0x4d0] sm:$0xff]
    %v328 = vld [vmem:[#allocation6 + $0x4d8] sm:$0xff]
    %v329 = vld [vmem:[#allocation6 + $0x4e0] sm:$0xff]
    %v330 = vld [vmem:[#allocation6 + $0x4e8] sm:$0xff]
    %v331 = vld [vmem:[#allocation6 + $0x4f0] sm:$0xff]
    %v332 = vld [vmem:[#allocation6 + $0x4f8] sm:$0xff]
    %v333 = vld [vmem:[#allocation6 + $0x500] sm:$0xff]
    %v334 = vld [vmem:[#allocation6 + $0x508] sm:$0xff]
    %v335 = vld [vmem:[#allocation6 + $0x510] sm:$0xff]
    %v336 = vld [vmem:[#allocation6 + $0x518] sm:$0xff]
    %v337 = vld [vmem:[#allocation6 + $0x520] sm:$0xff]
    %v338 = vld [vmem:[#allocation6 + $0x528] sm:$0xff]
    %v339 = vld [vmem:[#allocation6 + $0x530] sm:$0xff]
    %v340 = vld [vmem:[#allocation6 + $0x538] sm:$0xff]
    %v341 = vld [vmem:[#allocation6 + $0x540] sm:$0xff]
    %v342 = vld [vmem:[#allocation6 + $0x548] sm:$0xff]
    %v343 = vld [vmem:[#allocation6 + $0x550] sm:$0xff]
    %v344 = vld [vmem:[#allocation6 + $0x558] sm:$0xff]
    %v345 = vld [vmem:[#allocation6 + $0x560] sm:$0xff]
    %v346 = vld [vmem:[#allocation6 + $0x568] sm:$0xff]
    %v347 = vld [vmem:[#allocation6 + $0x570] sm:$0xff]
    %v348 = vld [vmem:[#allocation6 + $0x578] sm:$0xff]
    %v349 = vld [vmem:[#allocation6 + $0x580] sm:$0xff]
    %v350 = vld [vmem:[#allocation6 + $0x588] sm:$0xff]
    %v351 = vld [vmem:[#allocation6 + $0x590] sm:$0xff]
    %v352 = vld [vmem:[#allocation6 + $0x598] sm:$0xff]
    %v353 = vld [vmem:[#allocation6 + $0x5a0] sm:$0xff]
    %v354 = vld [vmem:[#allocation6 + $0x5a8] sm:$0xff]
    %v355 = vld [vmem:[#allocation6 + $0x5b0] sm:$0xff]
    %v356 = vld [vmem:[#allocation6 + $0x5b8] sm:$0xff]
    %v357 = vld [vmem:[#allocation6 + $0x5c0] sm:$0xff]
    %v358 = vld [vmem:[#allocation6 + $0x5c8] sm:$0xff]
    %v359 = vld [vmem:[#allocation6 + $0x5d0] sm:$0xff]
    %v360 = vld [vmem:[#allocation6 + $0x5d8] sm:$0xff]
    %v361 = vld [vmem:[#allocation6 + $0x5e0] sm:$0xff]
    %v362 = vld [vmem:[#allocation6 + $0x5e8] sm:$0xff]
    %v363 = vld [vmem:[#allocation6 + $0x5f0] sm:$0xff]
    %v364 = vld [vmem:[#allocation6 + $0x5f8] sm:$0xff]
    %v365 = vld [vmem:[#allocation6 + $0x600] sm:$0xff]
    %v366 = vld [vmem:[#allocation6 + $0x608] sm:$0xff]
    %v367 = vld [vmem:[#allocation6 + $0x610] sm:$0xff]
    %v368 = vld [vmem:[#allocation6 + $0x618] sm:$0xff]
    %v369 = vld [vmem:[#allocation6 + $0x620] sm:$0xff]
    %v370 = vld [vmem:[#allocation6 + $0x628] sm:$0xff]
    %v371 = vld [vmem:[#allocation6 + $0x630] sm:$0xff]
    %v372 = vld [vmem:[#allocation6 + $0x638] sm:$0xff]
    %v373 = vld [vmem:[#allocation6 + $0x640] sm:$0xff]
    %v374 = vld [vmem:[#allocation6 + $0x648] sm:$0xff]
    %v375 = vld [vmem:[#allocation6 + $0x650] sm:$0xff]
    %v376 = vld [vmem:[#allocation6 + $0x658] sm:$0xff]
    %v377 = vld [vmem:[#allocation6 + $0x660] sm:$0xff]
    %v378 = vld [vmem:[#allocation6 + $0x668] sm:$0xff]
    %v379 = vld [vmem:[#allocation6 + $0x670] sm:$0xff]
    %v380 = vld [vmem:[#allocation6 + $0x678] sm:$0xff]
    %v381 = vld [vmem:[#allocation6 + $0x680] sm:$0xff]
    %v382 = vld [vmem:[#allocation6 + $0x688] sm:$0xff]
    %v383 = vld [vmem:[#allocation6 + $0x690] sm:$0xff]
    %v384 = vld [vmem:[#allocation6 + $0x698] sm:$0xff]
    %v385 = vld [vmem:[#allocation6 + $0x6a0] sm:$0xff]
    %v386 = vld [vmem:[#allocation6 + $0x6a8] sm:$0xff]
    %v387 = vld [vmem:[#allocation6 + $0x6b0] sm:$0xff]
    %v388 = vld [vmem:[#allocation6 + $0x6b8] sm:$0xff]
    %v389 = vld [vmem:[#allocation6 + $0x6c0] sm:$0xff]
    %v390 = vld [vmem:[#allocation6 + $0x6c8] sm:$0xff]
    %v391 = vld [vmem:[#allocation6 + $0x6d0] sm:$0xff]
    %v392 = vld [vmem:[#allocation6 + $0x6d8] sm:$0xff]
    %v393 = vld [vmem:[#allocation6 + $0x6e0] sm:$0xff]
    %v394 = vld [vmem:[#allocation6 + $0x6e8] sm:$0xff]
    %v395 = vld [vmem:[#allocation6 + $0x6f0] sm:$0xff]
    %v396 = vld [vmem:[#allocation6 + $0x6f8] sm:$0xff]
    %v397 = vld [vmem:[#allocation6 + $0x700] sm:$0xff]
    %v398 = vld [vmem:[#allocation6 + $0x708] sm:$0xff]
    %v399 = vld [vmem:[#allocation6 + $0x710] sm:$0xff]
    %v400 = vld [vmem:[#allocation6 + $0x718] sm:$0xff]
    %v401 = vld [vmem:[#allocation6 + $0x720] sm:$0xff]
    %v402 = vld [vmem:[#allocation6 + $0x728] sm:$0xff]
    %v403 = vld [vmem:[#allocation6 + $0x730] sm:$0xff]
    %v404 = vld [vmem:[#allocation6 + $0x738] sm:$0xff]
    %v405 = vld [vmem:[#allocation6 + $0x740] sm:$0xff]
    %v406 = vld [vmem:[#allocation6 + $0x748] sm:$0xff]
    %v407 = vld [vmem:[#allocation6 + $0x750] sm:$0xff]
    %v408 = vld [vmem:[#allocation6 + $0x758] sm:$0xff]
    %v409 = vld [vmem:[#allocation6 + $0x760] sm:$0xff]
    %v410 = vld [vmem:[#allocation6 + $0x768] sm:$0xff]
    %v411 = vld [vmem:[#allocation6 + $0x770] sm:$0xff]
    %v412 = vld [vmem:[#allocation6 + $0x778] sm:$0xff]
    %v413 = vld [vmem:[#allocation6 + $0x780] sm:$0xff]
    %v414 = vld [vmem:[#allocation6 + $0x788] sm:$0xff]
    %v415 = vld [vmem:[#allocation6 + $0x790] sm:$0xff]
    %v416 = vld [vmem:[#allocation6 + $0x798] sm:$0xff]
    %v417 = vld [vmem:[#allocation6 + $0x7a0] sm:$0xff]
    %v418 = vld [vmem:[#allocation6 + $0x7a8] sm:$0xff]
    %v419 = vld [vmem:[#allocation6 + $0x7b0] sm:$0xff]
    %v420 = vld [vmem:[#allocation6 + $0x7b8] sm:$0xff]
    %v421 = vld [vmem:[#allocation6 + $0x7c0] sm:$0xff]
    %v422 = vld [vmem:[#allocation6 + $0x7c8] sm:$0xff]
    %v423 = vld [vmem:[#allocation6 + $0x7d0] sm:$0xff]
    %v424 = vld [vmem:[#allocation6 + $0x7d8] sm:$0xff]
    %v425 = vld [vmem:[#allocation6 + $0x7e0] sm:$0xff]
    %v426 = vld [vmem:[#allocation6 + $0x7e8] sm:$0xff]
    %v427 = vld [vmem:[#allocation6 + $0x7f0] sm:$0xff]
    %v428 = vld [vmem:[#allocation6 + $0x7f8] sm:$0xff]
    %v429 = vld [vmem:[#allocation6 + $0x800] sm:$0xff]
    %v430 = vld [vmem:[#allocation6 + $0x808] sm:$0xff]
    %v431 = vld [vmem:[#allocation6 + $0x810] sm:$0xff]
    %v432 = vld [vmem:[#allocation6 + $0x818] sm:$0xff]
    %v433 = vld [vmem:[#allocation6 + $0x820] sm:$0xff]
    %v434 = vld [vmem:[#allocation6 + $0x828] sm:$0xff]
    %v435 = vld [vmem:[#allocation6 + $0x830] sm:$0xff]
    %v436 = vld [vmem:[#allocation6 + $0x838] sm:$0xff]
    %v437 = vld [vmem:[#allocation6 + $0x840] sm:$0xff]
    %v438 = vld [vmem:[#allocation6 + $0x848] sm:$0xff]
    %v439 = vld [vmem:[#allocation6 + $0x850] sm:$0xff]
    %v440 = vld [vmem:[#allocation6 + $0x858] sm:$0xff]
    %v441 = vld [vmem:[#allocation6 + $0x860] sm:$0xff]
    %v442 = vld [vmem:[#allocation6 + $0x868] sm:$0xff]
    %v443 = vld [vmem:[#allocation6 + $0x870] sm:$0xff]
    %v444 = vld [vmem:[#allocation6 + $0x878] sm:$0xff]
    %v445 = vld [vmem:[#allocation6 + $0x880] sm:$0xff]
    %v446 = vld [vmem:[#allocation6 + $0x888] sm:$0xff]
    %v447 = vld [vmem:[#allocation6 + $0x890] sm:$0xff]
    %v448 = vld [vmem:[#allocation6 + $0x898] sm:$0xff]
    %v449 = vld [vmem:[#allocation6 + $0x8a0] sm:$0xff]
    %v450 = vld [vmem:[#allocation6 + $0x8a8] sm:$0xff]
    %v451 = vld [vmem:[#allocation6 + $0x8b0] sm:$0xff]
    %v452 = vld [vmem:[#allocation6 + $0x8b8] sm:$0xff]
    %v453 = vld [vmem:[#allocation6 + $0x8c0] sm:$0xff]
    %v454 = vld [vmem:[#allocation6 + $0x8c8] sm:$0xff]
    %v455 = vld [vmem:[#allocation6 + $0x8d0] sm:$0xff]
    %v456 = vld [vmem:[#allocation6 + $0x8d8] sm:$0xff]
    %v457 = vld [vmem:[#allocation6 + $0x8e0] sm:$0xff]
    %v458 = vld [vmem:[#allocation6 + $0x8e8] sm:$0xff]
    %v459 = vld [vmem:[#allocation6 + $0x8f0] sm:$0xff]
    %v460 = vld [vmem:[#allocation6 + $0x8f8] sm:$0xff]
    %v461 = vld [vmem:[#allocation6 + $0x900] sm:$0xff]
    %v462 = vld [vmem:[#allocation6 + $0x908] sm:$0xff]
    %v463 = vld [vmem:[#allocation6 + $0x910] sm:$0xff]
    %v464 = vld [vmem:[#allocation6 + $0x918] sm:$0xff]
    %v465 = vld [vmem:[#allocation6 + $0x920] sm:$0xff]
    %v466 = vld [vmem:[#allocation6 + $0x928] sm:$0xff]
    %v467 = vld [vmem:[#allocation6 + $0x930] sm:$0xff]
    %v468 = vld [vmem:[#allocation6 + $0x938] sm:$0xff]
    %v469 = vld [vmem:[#allocation6 + $0x940] sm:$0xff]
    %v470 = vld [vmem:[#allocation6 + $0x948] sm:$0xff]
    %v471 = vld [vmem:[#allocation6 + $0x950] sm:$0xff]
    %v472 = vld [vmem:[#allocation6 + $0x958] sm:$0xff]
    %v473 = vld [vmem:[#allocation6 + $0x960] sm:$0xff]
    %v474 = vld [vmem:[#allocation6 + $0x968] sm:$0xff]
    %v475 = vld [vmem:[#allocation6 + $0x970] sm:$0xff]
    %v476 = vld [vmem:[#allocation6 + $0x978] sm:$0xff]
    %v477 = vld [vmem:[#allocation6 + $0x980] sm:$0xff]
    %v478 = vld [vmem:[#allocation6 + $0x988] sm:$0xff]
    %v479 = vld [vmem:[#allocation6 + $0x990] sm:$0xff]
    %v480 = vld [vmem:[#allocation6 + $0x998] sm:$0xff]
    %v481 = vld [vmem:[#allocation6 + $0x9a0] sm:$0xff]
    %v482 = vld [vmem:[#allocation6 + $0x9a8] sm:$0xff]
    %v483 = vld [vmem:[#allocation6 + $0x9b0] sm:$0xff]
    %v484 = vld [vmem:[#allocation6 + $0x9b8] sm:$0xff]
    %v485 = vld [vmem:[#allocation6 + $0x9c0] sm:$0xff]
    %v486 = vld [vmem:[#allocation6 + $0x9c8] sm:$0xff]
    %v487 = vld [vmem:[#allocation6 + $0x9d0] sm:$0xff]
    %v488 = vld [vmem:[#allocation6 + $0x9d8] sm:$0xff]
    %v489 = vld [vmem:[#allocation6 + $0x9e0] sm:$0xff]
    %v490 = vld [vmem:[#allocation6 + $0x9e8] sm:$0xff]
    %v491 = vld [vmem:[#allocation6 + $0x9f0] sm:$0xff]
    %v492 = vld [vmem:[#allocation6 + $0x9f8] sm:$0xff]
    %v493 = vld [vmem:[#allocation6 + $0xa00] sm:$0xff]
    %v494 = vld [vmem:[#allocation6 + $0xa08] sm:$0xff]
    %v495 = vld [vmem:[#allocation6 + $0xa10] sm:$0xff]
    %v496 = vld [vmem:[#allocation6 + $0xa18] sm:$0xff]
    %v497 = vld [vmem:[#allocation6 + $0xa20] sm:$0xff]
    %v498 = vld [vmem:[#allocation6 + $0xa28] sm:$0xff]
    %v499 = vld [vmem:[#allocation6 + $0xa30] sm:$0xff]
    %v500 = vld [vmem:[#allocation6 + $0xa38] sm:$0xff]
    %v501 = vld [vmem:[#allocation6 + $0xa40] sm:$0xff]
    %v502 = vld [vmem:[#allocation6 + $0xa48] sm:$0xff]
    %v503 = vld [vmem:[#allocation6 + $0xa50] sm:$0xff]
    %v504 = vld [vmem:[#allocation6 + $0xa58] sm:$0xff]
    %v505 = vld [vmem:[#allocation6 + $0xa60] sm:$0xff]
    %v506 = vld [vmem:[#allocation6 + $0xa68] sm:$0xff]
    %v507 = vld [vmem:[#allocation6 + $0xa70] sm:$0xff]
    %v508 = vld [vmem:[#allocation6 + $0xa78] sm:$0xff]
    %v509 = vld [vmem:[#allocation6 + $0xa80] sm:$0xff]
    %v510 = vld [vmem:[#allocation6 + $0xa88] sm:$0xff]
    %v511 = vld [vmem:[#allocation6 + $0xa90] sm:$0xff]
    %v512 = vld [vmem:[#allocation6 + $0xa98] sm:$0xff]
    %v513 = vld [vmem:[#allocation6 + $0xaa0] sm:$0xff]
    %v514 = vld [vmem:[#allocation6 + $0xaa8] sm:$0xff]
    %v515 = vld [vmem:[#allocation6 + $0xab0] sm:$0xff]
    %v516 = vld [vmem:[#allocation6 + $0xab8] sm:$0xff]
    %v517 = vld [vmem:[#allocation6 + $0xac0] sm:$0xff]
    %v518 = vld [vmem:[#allocation6 + $0xac8] sm:$0xff]
    %v519 = vld [vmem:[#allocation6 + $0xad0] sm:$0xff]
    %v520 = vld [vmem:[#allocation6 + $0xad8] sm:$0xff]
    %v521 = vld [vmem:[#allocation6 + $0xae0] sm:$0xff]
    %v522 = vld [vmem:[#allocation6 + $0xae8] sm:$0xff]
    %v523 = vld [vmem:[#allocation6 + $0xaf0] sm:$0xff]
    %v524 = vld [vmem:[#allocation6 + $0xaf8] sm:$0xff]
    %v525 = vld [vmem:[#allocation6 + $0xb00] sm:$0xff]
    %v526 = vld [vmem:[#allocation6 + $0xb08] sm:$0xff]
    %v527 = vld [vmem:[#allocation6 + $0xb10] sm:$0xff]
    %v528 = vld [vmem:[#allocation6 + $0xb18] sm:$0xff]
    %v529 = vld [vmem:[#allocation6 + $0xb20] sm:$0xff]
    %v530 = vld [vmem:[#allocation6 + $0xb28] sm:$0xff]
    %v531 = vld [vmem:[#allocation6 + $0xb30] sm:$0xff]
    %v532 = vld [vmem:[#allocation6 + $0xb38] sm:$0xff]
    %v533 = vld [vmem:[#allocation6 + $0xb40] sm:$0xff]
    %v534 = vld [vmem:[#allocation6 + $0xb48] sm:$0xff]
    %v535 = vld [vmem:[#allocation6 + $0xb50] sm:$0xff]
    %v536 = vld [vmem:[#allocation6 + $0xb58] sm:$0xff]
    %v537 = vld [vmem:[#allocation6 + $0xb60] sm:$0xff]
    %v538 = vld [vmem:[#allocation6 + $0xb68] sm:$0xff]
    %v539 = vld [vmem:[#allocation6 + $0xb70] sm:$0xff]
    %v540 = vld [vmem:[#allocation6 + $0xb78] sm:$0xff]
    %v541 = vld [vmem:[#allocation6 + $0xb80] sm:$0xff]
    %v542 = vld [vmem:[#allocation6 + $0xb88] sm:$0xff]
    %v543 = vld [vmem:[#allocation6 + $0xb90] sm:$0xff]
    %v544 = vld [vmem:[#allocation6 + $0xb98] sm:$0xff]
    %v545 = vld [vmem:[#allocation6 + $0xba0] sm:$0xff]
    %v546 = vld [vmem:[#allocation6 + $0xba8] sm:$0xff]
    %v547 = vld [vmem:[#allocation6 + $0xbb0] sm:$0xff]
    %v548 = vld [vmem:[#allocation6 + $0xbb8] sm:$0xff]
    %v549 = vld [vmem:[#allocation6 + $0xbc0] sm:$0xff]
    %v550 = vld [vmem:[#allocation6 + $0xbc8] sm:$0xff]
    %v551 = vld [vmem:[#allocation6 + $0xbd0] sm:$0xff]
    %v552 = vld [vmem:[#allocation6 + $0xbd8] sm:$0xff]
    %v553 = vld [vmem:[#allocation6 + $0xbe0] sm:$0xff]
    %v554 = vld [vmem:[#allocation6 + $0xbe8] sm:$0xff]
    %v555 = vld [vmem:[#allocation6 + $0xbf0] sm:$0xff]
    %v556 = vld [vmem:[#allocation6 + $0xbf8] sm:$0xff]
    %v557 = vld [vmem:[#allocation6 + $0xc00] sm:$0xff]
    %v558 = vld [vmem:[#allocation6 + $0xc08] sm:$0xff]
    %v559 = vld [vmem:[#allocation6 + $0xc10] sm:$0xff]
    %v560 = vld [vmem:[#allocation6 + $0xc18] sm:$0xff]
    %v561 = vld [vmem:[#allocation6 + $0xc20] sm:$0xff]
    %v562 = vld [vmem:[#allocation6 + $0xc28] sm:$0xff]
    %v563 = vld [vmem:[#allocation6 + $0xc30] sm:$0xff]
    %v564 = vld [vmem:[#allocation6 + $0xc38] sm:$0xff]
    %v565 = vld [vmem:[#allocation6 + $0xc40] sm:$0xff]
    %v566 = vld [vmem:[#allocation6 + $0xc48] sm:$0xff]
    %v567 = vld [vmem:[#allocation6 + $0xc50] sm:$0xff]
    %v568 = vld [vmem:[#allocation6 + $0xc58] sm:$0xff]
    %v569 = vld [vmem:[#allocation6 + $0xc60] sm:$0xff]
    %v570 = vld [vmem:[#allocation6 + $0xc68] sm:$0xff]
    %v571 = vld [vmem:[#allocation6 + $0xc70] sm:$0xff]
    %v572 = vld [vmem:[#allocation6 + $0xc78] sm:$0xff]
    %v573 = vld [vmem:[#allocation6 + $0xc80] sm:$0xff]
    %v574 = vld [vmem:[#allocation6 + $0xc88] sm:$0xff]
    %v575 = vld [vmem:[#allocation6 + $0xc90] sm:$0xff]
    %v576 = vld [vmem:[#allocation6 + $0xc98] sm:$0xff]
    %v577 = vld [vmem:[#allocation6 + $0xca0] sm:$0xff]
    %v578 = vld [vmem:[#allocation6 + $0xca8] sm:$0xff]
    %v579 = vld [vmem:[#allocation6 + $0xcb0] sm:$0xff]
    %v580 = vld [vmem:[#allocation6 + $0xcb8] sm:$0xff]
    %v581 = vld [vmem:[#allocation6 + $0xcc0] sm:$0xff]
    %v582 = vld [vmem:[#allocation6 + $0xcc8] sm:$0xff]
    %v583 = vld [vmem:[#allocation6 + $0xcd0] sm:$0xff]
    %v584 = vld [vmem:[#allocation6 + $0xcd8] sm:$0xff]
    %v585 = vld [vmem:[#allocation6 + $0xce0] sm:$0xff]
    %v586 = vld [vmem:[#allocation6 + $0xce8] sm:$0xff]
    %v587 = vld [vmem:[#allocation6 + $0xcf0] sm:$0xff]
    %v588 = vld [vmem:[#allocation6 + $0xcf8] sm:$0xff]
    %v589 = vld [vmem:[#allocation6 + $0xd00] sm:$0xff]
    %v590 = vld [vmem:[#allocation6 + $0xd08] sm:$0xff]
    %v591 = vld [vmem:[#allocation6 + $0xd10] sm:$0xff]
    %v592 = vld [vmem:[#allocation6 + $0xd18] sm:$0xff]
    %v593 = vld [vmem:[#allocation6 + $0xd20] sm:$0xff]
    %v594 = vld [vmem:[#allocation6 + $0xd28] sm:$0xff]
    %v595 = vld [vmem:[#allocation6 + $0xd30] sm:$0xff]
    %v596 = vld [vmem:[#allocation6 + $0xd38] sm:$0xff]
    %v597 = vld [vmem:[#allocation6 + $0xd40] sm:$0xff]
    %v598 = vld [vmem:[#allocation6 + $0xd48] sm:$0xff]
    %v599 = vld [vmem:[#allocation6 + $0xd50] sm:$0xff]
    %v600 = vld [vmem:[#allocation6 + $0xd58] sm:$0xff]
    %v601 = vld [vmem:[#allocation6 + $0xd60] sm:$0xff]
    %v602 = vld [vmem:[#allocation6 + $0xd68] sm:$0xff]
    %v603 = vld [vmem:[#allocation6 + $0xd70] sm:$0xff]
    %v604 = vld [vmem:[#allocation6 + $0xd78] sm:$0xff]
    %v605 = vld [vmem:[#allocation6 + $0xd80] sm:$0xff]
    %v606 = vld [vmem:[#allocation6 + $0xd88] sm:$0xff]
    %v607 = vld [vmem:[#allocation6 + $0xd90] sm:$0xff]
    %v608 = vld [vmem:[#allocation6 + $0xd98] sm:$0xff]
    %v609 = vld [vmem:[#allocation6 + $0xda0] sm:$0xff]
    %v610 = vld [vmem:[#allocation6 + $0xda8] sm:$0xff]
    %v611 = vld [vmem:[#allocation6 + $0xdb0] sm:$0xff]
    %v612 = vld [vmem:[#allocation6 + $0xdb8] sm:$0xff]
    %v613 = vld [vmem:[#allocation6 + $0xdc0] sm:$0xff]
    %v614 = vld [vmem:[#allocation6 + $0xdc8] sm:$0xff]
    %v615 = vld [vmem:[#allocation6 + $0xdd0] sm:$0xff]
    %v616 = vld [vmem:[#allocation6 + $0xdd8] sm:$0xff]
    %v617 = vld [vmem:[#allocation6 + $0xde0] sm:$0xff]
    %v618 = vld [vmem:[#allocation6 + $0xde8] sm:$0xff]
    %v619 = vld [vmem:[#allocation6 + $0xdf0] sm:$0xff]
    %v620 = vld [vmem:[#allocation6 + $0xdf8] sm:$0xff]
    %v621 = vld [vmem:[#allocation8] sm:$0xff]
    %v623 = vlaneseq
    %v624 = vshrl.u32 %v623, 7
    %v625 = vsub.s32 0, %v624
    %v626 = vrot.slane %v621, %v625
    %v627 = vlaneseq
    %v628 = vshrl.u32 %v627, 7
    %v629 = vsub.s32 1, %v628
    %v630 = vrot.slane %v621, %v629
    %v631 = vlaneseq
    %v632 = vshrl.u32 %v631, 7
    %v633 = vsub.s32 2, %v632
    %v634 = vrot.slane %v621, %v633
    %v635 = vlaneseq
    %v636 = vshrl.u32 %v635, 7
    %v637 = vsub.s32 3, %v636
    %v638 = vrot.slane %v621, %v637
    %v639 = vlaneseq
    %v640 = vshrl.u32 %v639, 7
    %v641 = vsub.s32 4, %v640
    %v642 = vrot.slane %v621, %v641
    %v643 = vlaneseq
    %v644 = vshrl.u32 %v643, 7
    %v645 = vsub.s32 5, %v644
    %v646 = vrot.slane %v621, %v645
    %v647 = vlaneseq
    %v648 = vshrl.u32 %v647, 7
    %v649 = vsub.s32 6, %v648
    %v650 = vrot.slane %v621, %v649
    %v651 = vlaneseq
    %v652 = vshrl.u32 %v651, 7
    %v653 = vsub.s32 7, %v652
    %v654 = vrot.slane %v621, %v653
    %v1111 = vunpack.c.l.b16 %v173
    %v1112 = vunpack.c.h.b16 %v173
    %v1113 = vunpack.c.l.b16 %v174
    %v1114 = vunpack.c.h.b16 %v174
    %v1115 = vunpack.c.l.b16 %v175
    %v1116 = vunpack.c.h.b16 %v175
    %v1117 = vunpack.c.l.b16 %v176
    %v1118 = vunpack.c.h.b16 %v176
    %v1119 = vunpack.c.l.b16 %v177
    %v1120 = vunpack.c.h.b16 %v177
    %v1121 = vunpack.c.l.b16 %v178
    %v1122 = vunpack.c.h.b16 %v178
    %v1123 = vunpack.c.l.b16 %v179
    %v1124 = vunpack.c.h.b16 %v179
    %v1125 = vunpack.c.l.b16 %v180
    %v1126 = vunpack.c.h.b16 %v180
    %v1127 = vunpack.c.l.b16 %v181
    %v1128 = vunpack.c.h.b16 %v181
    %v1129 = vunpack.c.l.b16 %v182
    %v1130 = vunpack.c.h.b16 %v182
    %v1131 = vunpack.c.l.b16 %v183
    %v1132 = vunpack.c.h.b16 %v183
    %v1133 = vunpack.c.l.b16 %v184
    %v1134 = vunpack.c.h.b16 %v184
    %v1135 = vunpack.c.l.b16 %v185
    %v1136 = vunpack.c.h.b16 %v185
    %v1137 = vunpack.c.l.b16 %v186
    %v1138 = vunpack.c.h.b16 %v186
    %v1139 = vunpack.c.l.b16 %v187
    %v1140 = vunpack.c.h.b16 %v187
    %v1141 = vunpack.c.l.b16 %v188
    %v1142 = vunpack.c.h.b16 %v188
    %v1143 = vunpack.c.l.b16 %v189
    %v1144 = vunpack.c.h.b16 %v189
    %v1145 = vunpack.c.l.b16 %v190
    %v1146 = vunpack.c.h.b16 %v190
    %v1147 = vunpack.c.l.b16 %v191
    %v1148 = vunpack.c.h.b16 %v191
    %v1149 = vunpack.c.l.b16 %v192
    %v1150 = vunpack.c.h.b16 %v192
    %v1151 = vunpack.c.l.b16 %v193
    %v1152 = vunpack.c.h.b16 %v193
    %v1153 = vunpack.c.l.b16 %v194
    %v1154 = vunpack.c.h.b16 %v194
    %v1155 = vunpack.c.l.b16 %v195
    %v1156 = vunpack.c.h.b16 %v195
    %v1157 = vunpack.c.l.b16 %v196
    %v1158 = vunpack.c.h.b16 %v196
    %v1159 = vunpack.c.l.b16 %v197
    %v1160 = vunpack.c.h.b16 %v197
    %v1161 = vunpack.c.l.b16 %v198
    %v1162 = vunpack.c.h.b16 %v198
    %v1163 = vunpack.c.l.b16 %v199
    %v1164 = vunpack.c.h.b16 %v199
    %v1165 = vunpack.c.l.b16 %v200
    %v1166 = vunpack.c.h.b16 %v200
    %v1167 = vunpack.c.l.b16 %v201
    %v1168 = vunpack.c.h.b16 %v201
    %v1169 = vunpack.c.l.b16 %v202
    %v1170 = vunpack.c.h.b16 %v202
    %v1171 = vunpack.c.l.b16 %v203
    %v1172 = vunpack.c.h.b16 %v203
    %v1173 = vunpack.c.l.b16 %v204
    %v1174 = vunpack.c.h.b16 %v204
    %v1175 = vunpack.c.l.b16 %v205
    %v1176 = vunpack.c.h.b16 %v205
    %v1177 = vunpack.c.l.b16 %v206
    %v1178 = vunpack.c.h.b16 %v206
    %v1179 = vunpack.c.l.b16 %v207
    %v1180 = vunpack.c.h.b16 %v207
    %v1181 = vunpack.c.l.b16 %v208
    %v1182 = vunpack.c.h.b16 %v208
    %v1183 = vunpack.c.l.b16 %v209
    %v1184 = vunpack.c.h.b16 %v209
    %v1185 = vunpack.c.l.b16 %v210
    %v1186 = vunpack.c.h.b16 %v210
    %v1187 = vunpack.c.l.b16 %v211
    %v1188 = vunpack.c.h.b16 %v211
    %v1189 = vunpack.c.l.b16 %v212
    %v1190 = vunpack.c.h.b16 %v212
    %v1191 = vunpack.c.l.b16 %v213
    %v1192 = vunpack.c.h.b16 %v213
    %v1193 = vunpack.c.l.b16 %v214
    %v1194 = vunpack.c.h.b16 %v214
    %v1195 = vunpack.c.l.b16 %v215
    %v1196 = vunpack.c.h.b16 %v215
    %v1197 = vunpack.c.l.b16 %v216
    %v1198 = vunpack.c.h.b16 %v216
    %v1199 = vunpack.c.l.b16 %v217
    %v1200 = vunpack.c.h.b16 %v217
    %v1201 = vunpack.c.l.b16 %v218
    %v1202 = vunpack.c.h.b16 %v218
    %v1203 = vunpack.c.l.b16 %v219
    %v1204 = vunpack.c.h.b16 %v219
    %v1205 = vunpack.c.l.b16 %v220
    %v1206 = vunpack.c.h.b16 %v220
    %v1207 = vunpack.c.l.b16 %v221
    %v1208 = vunpack.c.h.b16 %v221
    %v1209 = vunpack.c.l.b16 %v222
    %v1210 = vunpack.c.h.b16 %v222
    %v1211 = vunpack.c.l.b16 %v223
    %v1212 = vunpack.c.h.b16 %v223
    %v1213 = vunpack.c.l.b16 %v224
    %v1214 = vunpack.c.h.b16 %v224
    %v1215 = vunpack.c.l.b16 %v225
    %v1216 = vunpack.c.h.b16 %v225
    %v1217 = vunpack.c.l.b16 %v226
    %v1218 = vunpack.c.h.b16 %v226
    %v1219 = vunpack.c.l.b16 %v227
    %v1220 = vunpack.c.h.b16 %v227
    %v1221 = vunpack.c.l.b16 %v228
    %v1222 = vunpack.c.h.b16 %v228
    %v1223 = vunpack.c.l.b16 %v229
    %v1224 = vunpack.c.h.b16 %v229
    %v1225 = vunpack.c.l.b16 %v230
    %v1226 = vunpack.c.h.b16 %v230
    %v1227 = vunpack.c.l.b16 %v231
    %v1228 = vunpack.c.h.b16 %v231
    %v1229 = vunpack.c.l.b16 %v232
    %v1230 = vunpack.c.h.b16 %v232
    %v1231 = vunpack.c.l.b16 %v233
    %v1232 = vunpack.c.h.b16 %v233
    %v1233 = vunpack.c.l.b16 %v234
    %v1234 = vunpack.c.h.b16 %v234
    %v1235 = vunpack.c.l.b16 %v235
    %v1236 = vunpack.c.h.b16 %v235
    %v1237 = vunpack.c.l.b16 %v236
    %v1238 = vunpack.c.h.b16 %v236
    %v1239 = vunpack.c.l.b16 %v237
    %v1240 = vunpack.c.h.b16 %v237
    %v1241 = vunpack.c.l.b16 %v238
    %v1242 = vunpack.c.h.b16 %v238
    %v1243 = vunpack.c.l.b16 %v239
    %v1244 = vunpack.c.h.b16 %v239
    %v1245 = vunpack.c.l.b16 %v240
    %v1246 = vunpack.c.h.b16 %v240
    %v1247 = vunpack.c.l.b16 %v241
    %v1248 = vunpack.c.h.b16 %v241
    %v1249 = vunpack.c.l.b16 %v242
    %v1250 = vunpack.c.h.b16 %v242
    %v1251 = vunpack.c.l.b16 %v243
    %v1252 = vunpack.c.h.b16 %v243
    %v1253 = vunpack.c.l.b16 %v244
    %v1254 = vunpack.c.h.b16 %v244
    %v1255 = vunpack.c.l.b16 %v245
    %v1256 = vunpack.c.h.b16 %v245
    %v1257 = vunpack.c.l.b16 %v246
    %v1258 = vunpack.c.h.b16 %v246
    %v1259 = vunpack.c.l.b16 %v247
    %v1260 = vunpack.c.h.b16 %v247
    %v1261 = vunpack.c.l.b16 %v248
    %v1262 = vunpack.c.h.b16 %v248
    %v1263 = vunpack.c.l.b16 %v249
    %v1264 = vunpack.c.h.b16 %v249
    %v1265 = vunpack.c.l.b16 %v250
    %v1266 = vunpack.c.h.b16 %v250
    %v1267 = vunpack.c.l.b16 %v251
    %v1268 = vunpack.c.h.b16 %v251
    %v1269 = vunpack.c.l.b16 %v252
    %v1270 = vunpack.c.h.b16 %v252
    %v1271 = vunpack.c.l.b16 %v253
    %v1272 = vunpack.c.h.b16 %v253
    %v1273 = vunpack.c.l.b16 %v254
    %v1274 = vunpack.c.h.b16 %v254
    %v1275 = vunpack.c.l.b16 %v255
    %v1276 = vunpack.c.h.b16 %v255
    %v1277 = vunpack.c.l.b16 %v256
    %v1278 = vunpack.c.h.b16 %v256
    %v1279 = vunpack.c.l.b16 %v257
    %v1280 = vunpack.c.h.b16 %v257
    %v1281 = vunpack.c.l.b16 %v258
    %v1282 = vunpack.c.h.b16 %v258
    %v1283 = vunpack.c.l.b16 %v259
    %v1284 = vunpack.c.h.b16 %v259
    %v1285 = vunpack.c.l.b16 %v260
    %v1286 = vunpack.c.h.b16 %v260
    %v1287 = vunpack.c.l.b16 %v261
    %v1288 = vunpack.c.h.b16 %v261
    %v1289 = vunpack.c.l.b16 %v262
    %v1290 = vunpack.c.h.b16 %v262
    %v1291 = vunpack.c.l.b16 %v263
    %v1292 = vunpack.c.h.b16 %v263
    %v1293 = vunpack.c.l.b16 %v264
    %v1294 = vunpack.c.h.b16 %v264
    %v1295 = vunpack.c.l.b16 %v265
    %v1296 = vunpack.c.h.b16 %v265
    %v1297 = vunpack.c.l.b16 %v266
    %v1298 = vunpack.c.h.b16 %v266
    %v1299 = vunpack.c.l.b16 %v267
    %v1300 = vunpack.c.h.b16 %v267
    %v1301 = vunpack.c.l.b16 %v268
    %v1302 = vunpack.c.h.b16 %v268
    %v1303 = vunpack.c.l.b16 %v269
    %v1304 = vunpack.c.h.b16 %v269
    %v1305 = vunpack.c.l.b16 %v270
    %v1306 = vunpack.c.h.b16 %v270
    %v1307 = vunpack.c.l.b16 %v271
    %v1308 = vunpack.c.h.b16 %v271
    %v1309 = vunpack.c.l.b16 %v272
    %v1310 = vunpack.c.h.b16 %v272
    %v1311 = vunpack.c.l.b16 %v273
    %v1312 = vunpack.c.h.b16 %v273
    %v1313 = vunpack.c.l.b16 %v274
    %v1314 = vunpack.c.h.b16 %v274
    %v1315 = vunpack.c.l.b16 %v275
    %v1316 = vunpack.c.h.b16 %v275
    %v1317 = vunpack.c.l.b16 %v276
    %v1318 = vunpack.c.h.b16 %v276
    %v1319 = vunpack.c.l.b16 %v277
    %v1320 = vunpack.c.h.b16 %v277
    %v1321 = vunpack.c.l.b16 %v278
    %v1322 = vunpack.c.h.b16 %v278
    %v1323 = vunpack.c.l.b16 %v279
    %v1324 = vunpack.c.h.b16 %v279
    %v1325 = vunpack.c.l.b16 %v280
    %v1326 = vunpack.c.h.b16 %v280
    %v1327 = vunpack.c.l.b16 %v281
    %v1328 = vunpack.c.h.b16 %v281
    %v1329 = vunpack.c.l.b16 %v282
    %v1330 = vunpack.c.h.b16 %v282
    %v1331 = vunpack.c.l.b16 %v283
    %v1332 = vunpack.c.h.b16 %v283
    %v1333 = vunpack.c.l.b16 %v284
    %v1334 = vunpack.c.h.b16 %v284
    %v1335 = vunpack.c.l.b16 %v285
    %v1336 = vunpack.c.h.b16 %v285
    %v1337 = vunpack.c.l.b16 %v286
    %v1338 = vunpack.c.h.b16 %v286
    %v1339 = vunpack.c.l.b16 %v287
    %v1340 = vunpack.c.h.b16 %v287
    %v1341 = vunpack.c.l.b16 %v288
    %v1342 = vunpack.c.h.b16 %v288
    %v1343 = vunpack.c.l.b16 %v289
    %v1344 = vunpack.c.h.b16 %v289
    %v1345 = vunpack.c.l.b16 %v290
    %v1346 = vunpack.c.h.b16 %v290
    %v1347 = vunpack.c.l.b16 %v291
    %v1348 = vunpack.c.h.b16 %v291
    %v1349 = vunpack.c.l.b16 %v292
    %v1350 = vunpack.c.h.b16 %v292
    %v1351 = vunpack.c.l.b16 %v293
    %v1352 = vunpack.c.h.b16 %v293
    %v1353 = vunpack.c.l.b16 %v294
    %v1354 = vunpack.c.h.b16 %v294
    %v1355 = vunpack.c.l.b16 %v295
    %v1356 = vunpack.c.h.b16 %v295
    %v1357 = vunpack.c.l.b16 %v296
    %v1358 = vunpack.c.h.b16 %v296
    %v1359 = vunpack.c.l.b16 %v297
    %v1360 = vunpack.c.h.b16 %v297
    %v1361 = vunpack.c.l.b16 %v298
    %v1362 = vunpack.c.h.b16 %v298
    %v1363 = vunpack.c.l.b16 %v299
    %v1364 = vunpack.c.h.b16 %v299
    %v1365 = vunpack.c.l.b16 %v300
    %v1366 = vunpack.c.h.b16 %v300
    %v1367 = vunpack.c.l.b16 %v301
    %v1368 = vunpack.c.h.b16 %v301
    %v1369 = vunpack.c.l.b16 %v302
    %v1370 = vunpack.c.h.b16 %v302
    %v1371 = vunpack.c.l.b16 %v303
    %v1372 = vunpack.c.h.b16 %v303
    %v1373 = vunpack.c.l.b16 %v304
    %v1374 = vunpack.c.h.b16 %v304
    %v1375 = vunpack.c.l.b16 %v305
    %v1376 = vunpack.c.h.b16 %v305
    %v1377 = vunpack.c.l.b16 %v306
    %v1378 = vunpack.c.h.b16 %v306
    %v1379 = vunpack.c.l.b16 %v307
    %v1380 = vunpack.c.h.b16 %v307
    %v1381 = vunpack.c.l.b16 %v308
    %v1382 = vunpack.c.h.b16 %v308
    %v1383 = vunpack.c.l.b16 %v309
    %v1384 = vunpack.c.h.b16 %v309
    %v1385 = vunpack.c.l.b16 %v310
    %v1386 = vunpack.c.h.b16 %v310
    %v1387 = vunpack.c.l.b16 %v311
    %v1388 = vunpack.c.h.b16 %v311
    %v1389 = vunpack.c.l.b16 %v312
    %v1390 = vunpack.c.h.b16 %v312
    %v1391 = vunpack.c.l.b16 %v313
    %v1392 = vunpack.c.h.b16 %v313
    %v1393 = vunpack.c.l.b16 %v314
    %v1394 = vunpack.c.h.b16 %v314
    %v1395 = vunpack.c.l.b16 %v315
    %v1396 = vunpack.c.h.b16 %v315
    %v1397 = vunpack.c.l.b16 %v316
    %v1398 = vunpack.c.h.b16 %v316
    %v1399 = vunpack.c.l.b16 %v317
    %v1400 = vunpack.c.h.b16 %v317
    %v1401 = vunpack.c.l.b16 %v318
    %v1402 = vunpack.c.h.b16 %v318
    %v1403 = vunpack.c.l.b16 %v319
    %v1404 = vunpack.c.h.b16 %v319
    %v1405 = vunpack.c.l.b16 %v320
    %v1406 = vunpack.c.h.b16 %v320
    %v1407 = vunpack.c.l.b16 %v321
    %v1408 = vunpack.c.h.b16 %v321
    %v1409 = vunpack.c.l.b16 %v322
    %v1410 = vunpack.c.h.b16 %v322
    %v1411 = vunpack.c.l.b16 %v323
    %v1412 = vunpack.c.h.b16 %v323
    %v1413 = vunpack.c.l.b16 %v324
    %v1414 = vunpack.c.h.b16 %v324
    %v1415 = vunpack.c.l.b16 %v325
    %v1416 = vunpack.c.h.b16 %v325
    %v1417 = vunpack.c.l.b16 %v326
    %v1418 = vunpack.c.h.b16 %v326
    %v1419 = vunpack.c.l.b16 %v327
    %v1420 = vunpack.c.h.b16 %v327
    %v1421 = vunpack.c.l.b16 %v328
    %v1422 = vunpack.c.h.b16 %v328
    %v1423 = vunpack.c.l.b16 %v329
    %v1424 = vunpack.c.h.b16 %v329
    %v1425 = vunpack.c.l.b16 %v330
    %v1426 = vunpack.c.h.b16 %v330
    %v1427 = vunpack.c.l.b16 %v331
    %v1428 = vunpack.c.h.b16 %v331
    %v1429 = vunpack.c.l.b16 %v332
    %v1430 = vunpack.c.h.b16 %v332
    %v1431 = vunpack.c.l.b16 %v333
    %v1432 = vunpack.c.h.b16 %v333
    %v1433 = vunpack.c.l.b16 %v334
    %v1434 = vunpack.c.h.b16 %v334
    %v1435 = vunpack.c.l.b16 %v335
    %v1436 = vunpack.c.h.b16 %v335
    %v1437 = vunpack.c.l.b16 %v336
    %v1438 = vunpack.c.h.b16 %v336
    %v1439 = vunpack.c.l.b16 %v337
    %v1440 = vunpack.c.h.b16 %v337
    %v1441 = vunpack.c.l.b16 %v338
    %v1442 = vunpack.c.h.b16 %v338
    %v1443 = vunpack.c.l.b16 %v339
    %v1444 = vunpack.c.h.b16 %v339
    %v1445 = vunpack.c.l.b16 %v340
    %v1446 = vunpack.c.h.b16 %v340
    %v1447 = vunpack.c.l.b16 %v341
    %v1448 = vunpack.c.h.b16 %v341
    %v1449 = vunpack.c.l.b16 %v342
    %v1450 = vunpack.c.h.b16 %v342
    %v1451 = vunpack.c.l.b16 %v343
    %v1452 = vunpack.c.h.b16 %v343
    %v1453 = vunpack.c.l.b16 %v344
    %v1454 = vunpack.c.h.b16 %v344
    %v1455 = vunpack.c.l.b16 %v345
    %v1456 = vunpack.c.h.b16 %v345
    %v1457 = vunpack.c.l.b16 %v346
    %v1458 = vunpack.c.h.b16 %v346
    %v1459 = vunpack.c.l.b16 %v347
    %v1460 = vunpack.c.h.b16 %v347
    %v1461 = vunpack.c.l.b16 %v348
    %v1462 = vunpack.c.h.b16 %v348
    %v1463 = vunpack.c.l.b16 %v349
    %v1464 = vunpack.c.h.b16 %v349
    %v1465 = vunpack.c.l.b16 %v350
    %v1466 = vunpack.c.h.b16 %v350
    %v1467 = vunpack.c.l.b16 %v351
    %v1468 = vunpack.c.h.b16 %v351
    %v1469 = vunpack.c.l.b16 %v352
    %v1470 = vunpack.c.h.b16 %v352
    %v1471 = vunpack.c.l.b16 %v353
    %v1472 = vunpack.c.h.b16 %v353
    %v1473 = vunpack.c.l.b16 %v354
    %v1474 = vunpack.c.h.b16 %v354
    %v1475 = vunpack.c.l.b16 %v355
    %v1476 = vunpack.c.h.b16 %v355
    %v1477 = vunpack.c.l.b16 %v356
    %v1478 = vunpack.c.h.b16 %v356
    %v1479 = vunpack.c.l.b16 %v357
    %v1480 = vunpack.c.h.b16 %v357
    %v1481 = vunpack.c.l.b16 %v358
    %v1482 = vunpack.c.h.b16 %v358
    %v1483 = vunpack.c.l.b16 %v359
    %v1484 = vunpack.c.h.b16 %v359
    %v1485 = vunpack.c.l.b16 %v360
    %v1486 = vunpack.c.h.b16 %v360
    %v1487 = vunpack.c.l.b16 %v361
    %v1488 = vunpack.c.h.b16 %v361
    %v1489 = vunpack.c.l.b16 %v362
    %v1490 = vunpack.c.h.b16 %v362
    %v1491 = vunpack.c.l.b16 %v363
    %v1492 = vunpack.c.h.b16 %v363
    %v1493 = vunpack.c.l.b16 %v364
    %v1494 = vunpack.c.h.b16 %v364
    %v1495 = vunpack.c.l.b16 %v365
    %v1496 = vunpack.c.h.b16 %v365
    %v1497 = vunpack.c.l.b16 %v366
    %v1498 = vunpack.c.h.b16 %v366
    %v1499 = vunpack.c.l.b16 %v367
    %v1500 = vunpack.c.h.b16 %v367
    %v1501 = vunpack.c.l.b16 %v368
    %v1502 = vunpack.c.h.b16 %v368
    %v1503 = vunpack.c.l.b16 %v369
    %v1504 = vunpack.c.h.b16 %v369
    %v1505 = vunpack.c.l.b16 %v370
    %v1506 = vunpack.c.h.b16 %v370
    %v1507 = vunpack.c.l.b16 %v371
    %v1508 = vunpack.c.h.b16 %v371
    %v1509 = vunpack.c.l.b16 %v372
    %v1510 = vunpack.c.h.b16 %v372
    %v1511 = vunpack.c.l.b16 %v373
    %v1512 = vunpack.c.h.b16 %v373
    %v1513 = vunpack.c.l.b16 %v374
    %v1514 = vunpack.c.h.b16 %v374
    %v1515 = vunpack.c.l.b16 %v375
    %v1516 = vunpack.c.h.b16 %v375
    %v1517 = vunpack.c.l.b16 %v376
    %v1518 = vunpack.c.h.b16 %v376
    %v1519 = vunpack.c.l.b16 %v377
    %v1520 = vunpack.c.h.b16 %v377
    %v1521 = vunpack.c.l.b16 %v378
    %v1522 = vunpack.c.h.b16 %v378
    %v1523 = vunpack.c.l.b16 %v379
    %v1524 = vunpack.c.h.b16 %v379
    %v1525 = vunpack.c.l.b16 %v380
    %v1526 = vunpack.c.h.b16 %v380
    %v1527 = vunpack.c.l.b16 %v381
    %v1528 = vunpack.c.h.b16 %v381
    %v1529 = vunpack.c.l.b16 %v382
    %v1530 = vunpack.c.h.b16 %v382
    %v1531 = vunpack.c.l.b16 %v383
    %v1532 = vunpack.c.h.b16 %v383
    %v1533 = vunpack.c.l.b16 %v384
    %v1534 = vunpack.c.h.b16 %v384
    %v1535 = vunpack.c.l.b16 %v385
    %v1536 = vunpack.c.h.b16 %v385
    %v1537 = vunpack.c.l.b16 %v386
    %v1538 = vunpack.c.h.b16 %v386
    %v1539 = vunpack.c.l.b16 %v387
    %v1540 = vunpack.c.h.b16 %v387
    %v1541 = vunpack.c.l.b16 %v388
    %v1542 = vunpack.c.h.b16 %v388
    %v1543 = vunpack.c.l.b16 %v389
    %v1544 = vunpack.c.h.b16 %v389
    %v1545 = vunpack.c.l.b16 %v390
    %v1546 = vunpack.c.h.b16 %v390
    %v1547 = vunpack.c.l.b16 %v391
    %v1548 = vunpack.c.h.b16 %v391
    %v1549 = vunpack.c.l.b16 %v392
    %v1550 = vunpack.c.h.b16 %v392
    %v1551 = vunpack.c.l.b16 %v393
    %v1552 = vunpack.c.h.b16 %v393
    %v1553 = vunpack.c.l.b16 %v394
    %v1554 = vunpack.c.h.b16 %v394
    %v1555 = vunpack.c.l.b16 %v395
    %v1556 = vunpack.c.h.b16 %v395
    %v1557 = vunpack.c.l.b16 %v396
    %v1558 = vunpack.c.h.b16 %v396
    %v1559 = vunpack.c.l.b16 %v397
    %v1560 = vunpack.c.h.b16 %v397
    %v1561 = vunpack.c.l.b16 %v398
    %v1562 = vunpack.c.h.b16 %v398
    %v1563 = vunpack.c.l.b16 %v399
    %v1564 = vunpack.c.h.b16 %v399
    %v1565 = vunpack.c.l.b16 %v400
    %v1566 = vunpack.c.h.b16 %v400
    %v1567 = vunpack.c.l.b16 %v401
    %v1568 = vunpack.c.h.b16 %v401
    %v1569 = vunpack.c.l.b16 %v402
    %v1570 = vunpack.c.h.b16 %v402
    %v1571 = vunpack.c.l.b16 %v403
    %v1572 = vunpack.c.h.b16 %v403
    %v1573 = vunpack.c.l.b16 %v404
    %v1574 = vunpack.c.h.b16 %v404
    %v1575 = vunpack.c.l.b16 %v405
    %v1576 = vunpack.c.h.b16 %v405
    %v1577 = vunpack.c.l.b16 %v406
    %v1578 = vunpack.c.h.b16 %v406
    %v1579 = vunpack.c.l.b16 %v407
    %v1580 = vunpack.c.h.b16 %v407
    %v1581 = vunpack.c.l.b16 %v408
    %v1582 = vunpack.c.h.b16 %v408
    %v1583 = vunpack.c.l.b16 %v409
    %v1584 = vunpack.c.h.b16 %v409
    %v1585 = vunpack.c.l.b16 %v410
    %v1586 = vunpack.c.h.b16 %v410
    %v1587 = vunpack.c.l.b16 %v411
    %v1588 = vunpack.c.h.b16 %v411
    %v1589 = vunpack.c.l.b16 %v412
    %v1590 = vunpack.c.h.b16 %v412
    %v1591 = vunpack.c.l.b16 %v413
    %v1592 = vunpack.c.h.b16 %v413
    %v1593 = vunpack.c.l.b16 %v414
    %v1594 = vunpack.c.h.b16 %v414
    %v1595 = vunpack.c.l.b16 %v415
    %v1596 = vunpack.c.h.b16 %v415
    %v1597 = vunpack.c.l.b16 %v416
    %v1598 = vunpack.c.h.b16 %v416
    %v1599 = vunpack.c.l.b16 %v417
    %v1600 = vunpack.c.h.b16 %v417
    %v1601 = vunpack.c.l.b16 %v418
    %v1602 = vunpack.c.h.b16 %v418
    %v1603 = vunpack.c.l.b16 %v419
    %v1604 = vunpack.c.h.b16 %v419
    %v1605 = vunpack.c.l.b16 %v420
    %v1606 = vunpack.c.h.b16 %v420
    %v1607 = vunpack.c.l.b16 %v421
    %v1608 = vunpack.c.h.b16 %v421
    %v1609 = vunpack.c.l.b16 %v422
    %v1610 = vunpack.c.h.b16 %v422
    %v1611 = vunpack.c.l.b16 %v423
    %v1612 = vunpack.c.h.b16 %v423
    %v1613 = vunpack.c.l.b16 %v424
    %v1614 = vunpack.c.h.b16 %v424
    %v1615 = vunpack.c.l.b16 %v425
    %v1616 = vunpack.c.h.b16 %v425
    %v1617 = vunpack.c.l.b16 %v426
    %v1618 = vunpack.c.h.b16 %v426
    %v1619 = vunpack.c.l.b16 %v427
    %v1620 = vunpack.c.h.b16 %v427
    %v1621 = vunpack.c.l.b16 %v428
    %v1622 = vunpack.c.h.b16 %v428
    %v1623 = vunpack.c.l.b16 %v429
    %v1624 = vunpack.c.h.b16 %v429
    %v1625 = vunpack.c.l.b16 %v430
    %v1626 = vunpack.c.h.b16 %v430
    %v1627 = vunpack.c.l.b16 %v431
    %v1628 = vunpack.c.h.b16 %v431
    %v1629 = vunpack.c.l.b16 %v432
    %v1630 = vunpack.c.h.b16 %v432
    %v1631 = vunpack.c.l.b16 %v433
    %v1632 = vunpack.c.h.b16 %v433
    %v1633 = vunpack.c.l.b16 %v434
    %v1634 = vunpack.c.h.b16 %v434
    %v1635 = vunpack.c.l.b16 %v435
    %v1636 = vunpack.c.h.b16 %v435
    %v1637 = vunpack.c.l.b16 %v436
    %v1638 = vunpack.c.h.b16 %v436
    %v1639 = vunpack.c.l.b16 %v437
    %v1640 = vunpack.c.h.b16 %v437
    %v1641 = vunpack.c.l.b16 %v438
    %v1642 = vunpack.c.h.b16 %v438
    %v1643 = vunpack.c.l.b16 %v439
    %v1644 = vunpack.c.h.b16 %v439
    %v1645 = vunpack.c.l.b16 %v440
    %v1646 = vunpack.c.h.b16 %v440
    %v1647 = vunpack.c.l.b16 %v441
    %v1648 = vunpack.c.h.b16 %v441
    %v1649 = vunpack.c.l.b16 %v442
    %v1650 = vunpack.c.h.b16 %v442
    %v1651 = vunpack.c.l.b16 %v443
    %v1652 = vunpack.c.h.b16 %v443
    %v1653 = vunpack.c.l.b16 %v444
    %v1654 = vunpack.c.h.b16 %v444
    %v1655 = vunpack.c.l.b16 %v445
    %v1656 = vunpack.c.h.b16 %v445
    %v1657 = vunpack.c.l.b16 %v446
    %v1658 = vunpack.c.h.b16 %v446
    %v1659 = vunpack.c.l.b16 %v447
    %v1660 = vunpack.c.h.b16 %v447
    %v1661 = vunpack.c.l.b16 %v448
    %v1662 = vunpack.c.h.b16 %v448
    %v1663 = vunpack.c.l.b16 %v449
    %v1664 = vunpack.c.h.b16 %v449
    %v1665 = vunpack.c.l.b16 %v450
    %v1666 = vunpack.c.h.b16 %v450
    %v1667 = vunpack.c.l.b16 %v451
    %v1668 = vunpack.c.h.b16 %v451
    %v1669 = vunpack.c.l.b16 %v452
    %v1670 = vunpack.c.h.b16 %v452
    %v1671 = vunpack.c.l.b16 %v453
    %v1672 = vunpack.c.h.b16 %v453
    %v1673 = vunpack.c.l.b16 %v454
    %v1674 = vunpack.c.h.b16 %v454
    %v1675 = vunpack.c.l.b16 %v455
    %v1676 = vunpack.c.h.b16 %v455
    %v1677 = vunpack.c.l.b16 %v456
    %v1678 = vunpack.c.h.b16 %v456
    %v1679 = vunpack.c.l.b16 %v457
    %v1680 = vunpack.c.h.b16 %v457
    %v1681 = vunpack.c.l.b16 %v458
    %v1682 = vunpack.c.h.b16 %v458
    %v1683 = vunpack.c.l.b16 %v459
    %v1684 = vunpack.c.h.b16 %v459
    %v1685 = vunpack.c.l.b16 %v460
    %v1686 = vunpack.c.h.b16 %v460
    %v1687 = vunpack.c.l.b16 %v461
    %v1688 = vunpack.c.h.b16 %v461
    %v1689 = vunpack.c.l.b16 %v462
    %v1690 = vunpack.c.h.b16 %v462
    %v1691 = vunpack.c.l.b16 %v463
    %v1692 = vunpack.c.h.b16 %v463
    %v1693 = vunpack.c.l.b16 %v464
    %v1694 = vunpack.c.h.b16 %v464
    %v1695 = vunpack.c.l.b16 %v465
    %v1696 = vunpack.c.h.b16 %v465
    %v1697 = vunpack.c.l.b16 %v466
    %v1698 = vunpack.c.h.b16 %v466
    %v1699 = vunpack.c.l.b16 %v467
    %v1700 = vunpack.c.h.b16 %v467
    %v1701 = vunpack.c.l.b16 %v468
    %v1702 = vunpack.c.h.b16 %v468
    %v1703 = vunpack.c.l.b16 %v469
    %v1704 = vunpack.c.h.b16 %v469
    %v1705 = vunpack.c.l.b16 %v470
    %v1706 = vunpack.c.h.b16 %v470
    %v1707 = vunpack.c.l.b16 %v471
    %v1708 = vunpack.c.h.b16 %v471
    %v1709 = vunpack.c.l.b16 %v472
    %v1710 = vunpack.c.h.b16 %v472
    %v1711 = vunpack.c.l.b16 %v473
    %v1712 = vunpack.c.h.b16 %v473
    %v1713 = vunpack.c.l.b16 %v474
    %v1714 = vunpack.c.h.b16 %v474
    %v1715 = vunpack.c.l.b16 %v475
    %v1716 = vunpack.c.h.b16 %v475
    %v1717 = vunpack.c.l.b16 %v476
    %v1718 = vunpack.c.h.b16 %v476
    %v1719 = vunpack.c.l.b16 %v477
    %v1720 = vunpack.c.h.b16 %v477
    %v1721 = vunpack.c.l.b16 %v478
    %v1722 = vunpack.c.h.b16 %v478
    %v1723 = vunpack.c.l.b16 %v479
    %v1724 = vunpack.c.h.b16 %v479
    %v1725 = vunpack.c.l.b16 %v480
    %v1726 = vunpack.c.h.b16 %v480
    %v1727 = vunpack.c.l.b16 %v481
    %v1728 = vunpack.c.h.b16 %v481
    %v1729 = vunpack.c.l.b16 %v482
    %v1730 = vunpack.c.h.b16 %v482
    %v1731 = vunpack.c.l.b16 %v483
    %v1732 = vunpack.c.h.b16 %v483
    %v1733 = vunpack.c.l.b16 %v484
    %v1734 = vunpack.c.h.b16 %v484
    %v1735 = vunpack.c.l.b16 %v485
    %v1736 = vunpack.c.h.b16 %v485
    %v1737 = vunpack.c.l.b16 %v486
    %v1738 = vunpack.c.h.b16 %v486
    %v1739 = vunpack.c.l.b16 %v487
    %v1740 = vunpack.c.h.b16 %v487
    %v1741 = vunpack.c.l.b16 %v488
    %v1742 = vunpack.c.h.b16 %v488
    %v1743 = vunpack.c.l.b16 %v489
    %v1744 = vunpack.c.h.b16 %v489
    %v1745 = vunpack.c.l.b16 %v490
    %v1746 = vunpack.c.h.b16 %v490
    %v1747 = vunpack.c.l.b16 %v491
    %v1748 = vunpack.c.h.b16 %v491
    %v1749 = vunpack.c.l.b16 %v492
    %v1750 = vunpack.c.h.b16 %v492
    %v1751 = vunpack.c.l.b16 %v493
    %v1752 = vunpack.c.h.b16 %v493
    %v1753 = vunpack.c.l.b16 %v494
    %v1754 = vunpack.c.h.b16 %v494
    %v1755 = vunpack.c.l.b16 %v495
    %v1756 = vunpack.c.h.b16 %v495
    %v1757 = vunpack.c.l.b16 %v496
    %v1758 = vunpack.c.h.b16 %v496
    %v1759 = vunpack.c.l.b16 %v497
    %v1760 = vunpack.c.h.b16 %v497
    %v1761 = vunpack.c.l.b16 %v498
    %v1762 = vunpack.c.h.b16 %v498
    %v1763 = vunpack.c.l.b16 %v499
    %v1764 = vunpack.c.h.b16 %v499
    %v1765 = vunpack.c.l.b16 %v500
    %v1766 = vunpack.c.h.b16 %v500
    %v1767 = vunpack.c.l.b16 %v501
    %v1768 = vunpack.c.h.b16 %v501
    %v1769 = vunpack.c.l.b16 %v502
    %v1770 = vunpack.c.h.b16 %v502
    %v1771 = vunpack.c.l.b16 %v503
    %v1772 = vunpack.c.h.b16 %v503
    %v1773 = vunpack.c.l.b16 %v504
    %v1774 = vunpack.c.h.b16 %v504
    %v1775 = vunpack.c.l.b16 %v505
    %v1776 = vunpack.c.h.b16 %v505
    %v1777 = vunpack.c.l.b16 %v506
    %v1778 = vunpack.c.h.b16 %v506
    %v1779 = vunpack.c.l.b16 %v507
    %v1780 = vunpack.c.h.b16 %v507
    %v1781 = vunpack.c.l.b16 %v508
    %v1782 = vunpack.c.h.b16 %v508
    %v1783 = vunpack.c.l.b16 %v509
    %v1784 = vunpack.c.h.b16 %v509
    %v1785 = vunpack.c.l.b16 %v510
    %v1786 = vunpack.c.h.b16 %v510
    %v1787 = vunpack.c.l.b16 %v511
    %v1788 = vunpack.c.h.b16 %v511
    %v1789 = vunpack.c.l.b16 %v512
    %v1790 = vunpack.c.h.b16 %v512
    %v1791 = vunpack.c.l.b16 %v513
    %v1792 = vunpack.c.h.b16 %v513
    %v1793 = vunpack.c.l.b16 %v514
    %v1794 = vunpack.c.h.b16 %v514
    %v1795 = vunpack.c.l.b16 %v515
    %v1796 = vunpack.c.h.b16 %v515
    %v1797 = vunpack.c.l.b16 %v516
    %v1798 = vunpack.c.h.b16 %v516
    %v1799 = vunpack.c.l.b16 %v517
    %v1800 = vunpack.c.h.b16 %v517
    %v1801 = vunpack.c.l.b16 %v518
    %v1802 = vunpack.c.h.b16 %v518
    %v1803 = vunpack.c.l.b16 %v519
    %v1804 = vunpack.c.h.b16 %v519
    %v1805 = vunpack.c.l.b16 %v520
    %v1806 = vunpack.c.h.b16 %v520
    %v1807 = vunpack.c.l.b16 %v521
    %v1808 = vunpack.c.h.b16 %v521
    %v1809 = vunpack.c.l.b16 %v522
    %v1810 = vunpack.c.h.b16 %v522
    %v1811 = vunpack.c.l.b16 %v523
    %v1812 = vunpack.c.h.b16 %v523
    %v1813 = vunpack.c.l.b16 %v524
    %v1814 = vunpack.c.h.b16 %v524
    %v1815 = vunpack.c.l.b16 %v525
    %v1816 = vunpack.c.h.b16 %v525
    %v1817 = vunpack.c.l.b16 %v526
    %v1818 = vunpack.c.h.b16 %v526
    %v1819 = vunpack.c.l.b16 %v527
    %v1820 = vunpack.c.h.b16 %v527
    %v1821 = vunpack.c.l.b16 %v528
    %v1822 = vunpack.c.h.b16 %v528
    %v1823 = vunpack.c.l.b16 %v529
    %v1824 = vunpack.c.h.b16 %v529
    %v1825 = vunpack.c.l.b16 %v530
    %v1826 = vunpack.c.h.b16 %v530
    %v1827 = vunpack.c.l.b16 %v531
    %v1828 = vunpack.c.h.b16 %v531
    %v1829 = vunpack.c.l.b16 %v532
    %v1830 = vunpack.c.h.b16 %v532
    %v1831 = vunpack.c.l.b16 %v533
    %v1832 = vunpack.c.h.b16 %v533
    %v1833 = vunpack.c.l.b16 %v534
    %v1834 = vunpack.c.h.b16 %v534
    %v1835 = vunpack.c.l.b16 %v535
    %v1836 = vunpack.c.h.b16 %v535
    %v1837 = vunpack.c.l.b16 %v536
    %v1838 = vunpack.c.h.b16 %v536
    %v1839 = vunpack.c.l.b16 %v537
    %v1840 = vunpack.c.h.b16 %v537
    %v1841 = vunpack.c.l.b16 %v538
    %v1842 = vunpack.c.h.b16 %v538
    %v1843 = vunpack.c.l.b16 %v539
    %v1844 = vunpack.c.h.b16 %v539
    %v1845 = vunpack.c.l.b16 %v540
    %v1846 = vunpack.c.h.b16 %v540
    %v1847 = vunpack.c.l.b16 %v541
    %v1848 = vunpack.c.h.b16 %v541
    %v1849 = vunpack.c.l.b16 %v542
    %v1850 = vunpack.c.h.b16 %v542
    %v1851 = vunpack.c.l.b16 %v543
    %v1852 = vunpack.c.h.b16 %v543
    %v1853 = vunpack.c.l.b16 %v544
    %v1854 = vunpack.c.h.b16 %v544
    %v1855 = vunpack.c.l.b16 %v545
    %v1856 = vunpack.c.h.b16 %v545
    %v1857 = vunpack.c.l.b16 %v546
    %v1858 = vunpack.c.h.b16 %v546
    %v1859 = vunpack.c.l.b16 %v547
    %v1860 = vunpack.c.h.b16 %v547
    %v1861 = vunpack.c.l.b16 %v548
    %v1862 = vunpack.c.h.b16 %v548
    %v1863 = vunpack.c.l.b16 %v549
    %v1864 = vunpack.c.h.b16 %v549
    %v1865 = vunpack.c.l.b16 %v550
    %v1866 = vunpack.c.h.b16 %v550
    %v1867 = vunpack.c.l.b16 %v551
    %v1868 = vunpack.c.h.b16 %v551
    %v1869 = vunpack.c.l.b16 %v552
    %v1870 = vunpack.c.h.b16 %v552
    %v1871 = vunpack.c.l.b16 %v553
    %v1872 = vunpack.c.h.b16 %v553
    %v1873 = vunpack.c.l.b16 %v554
    %v1874 = vunpack.c.h.b16 %v554
    %v1875 = vunpack.c.l.b16 %v555
    %v1876 = vunpack.c.h.b16 %v555
    %v1877 = vunpack.c.l.b16 %v556
    %v1878 = vunpack.c.h.b16 %v556
    %v1879 = vunpack.c.l.b16 %v557
    %v1880 = vunpack.c.h.b16 %v557
    %v1881 = vunpack.c.l.b16 %v558
    %v1882 = vunpack.c.h.b16 %v558
    %v1883 = vunpack.c.l.b16 %v559
    %v1884 = vunpack.c.h.b16 %v559
    %v1885 = vunpack.c.l.b16 %v560
    %v1886 = vunpack.c.h.b16 %v560
    %v1887 = vunpack.c.l.b16 %v561
    %v1888 = vunpack.c.h.b16 %v561
    %v1889 = vunpack.c.l.b16 %v562
    %v1890 = vunpack.c.h.b16 %v562
    %v1891 = vunpack.c.l.b16 %v563
    %v1892 = vunpack.c.h.b16 %v563
    %v1893 = vunpack.c.l.b16 %v564
    %v1894 = vunpack.c.h.b16 %v564
    %v1895 = vunpack.c.l.b16 %v565
    %v1896 = vunpack.c.h.b16 %v565
    %v1897 = vunpack.c.l.b16 %v566
    %v1898 = vunpack.c.h.b16 %v566
    %v1899 = vunpack.c.l.b16 %v567
    %v1900 = vunpack.c.h.b16 %v567
    %v1901 = vunpack.c.l.b16 %v568
    %v1902 = vunpack.c.h.b16 %v568
    %v1903 = vunpack.c.l.b16 %v569
    %v1904 = vunpack.c.h.b16 %v569
    %v1905 = vunpack.c.l.b16 %v570
    %v1906 = vunpack.c.h.b16 %v570
    %v1907 = vunpack.c.l.b16 %v571
    %v1908 = vunpack.c.h.b16 %v571
    %v1909 = vunpack.c.l.b16 %v572
    %v1910 = vunpack.c.h.b16 %v572
    %v1911 = vunpack.c.l.b16 %v573
    %v1912 = vunpack.c.h.b16 %v573
    %v1913 = vunpack.c.l.b16 %v574
    %v1914 = vunpack.c.h.b16 %v574
    %v1915 = vunpack.c.l.b16 %v575
    %v1916 = vunpack.c.h.b16 %v575
    %v1917 = vunpack.c.l.b16 %v576
    %v1918 = vunpack.c.h.b16 %v576
    %v1919 = vunpack.c.l.b16 %v577
    %v1920 = vunpack.c.h.b16 %v577
    %v1921 = vunpack.c.l.b16 %v578
    %v1922 = vunpack.c.h.b16 %v578
    %v1923 = vunpack.c.l.b16 %v579
    %v1924 = vunpack.c.h.b16 %v579
    %v1925 = vunpack.c.l.b16 %v580
    %v1926 = vunpack.c.h.b16 %v580
    %v1927 = vunpack.c.l.b16 %v581
    %v1928 = vunpack.c.h.b16 %v581
    %v1929 = vunpack.c.l.b16 %v582
    %v1930 = vunpack.c.h.b16 %v582
    %v1931 = vunpack.c.l.b16 %v583
    %v1932 = vunpack.c.h.b16 %v583
    %v1933 = vunpack.c.l.b16 %v584
    %v1934 = vunpack.c.h.b16 %v584
    %v1935 = vunpack.c.l.b16 %v585
    %v1936 = vunpack.c.h.b16 %v585
    %v1937 = vunpack.c.l.b16 %v586
    %v1938 = vunpack.c.h.b16 %v586
    %v1939 = vunpack.c.l.b16 %v587
    %v1940 = vunpack.c.h.b16 %v587
    %v1941 = vunpack.c.l.b16 %v588
    %v1942 = vunpack.c.h.b16 %v588
    %v1943 = vunpack.c.l.b16 %v589
    %v1944 = vunpack.c.h.b16 %v589
    %v1945 = vunpack.c.l.b16 %v590
    %v1946 = vunpack.c.h.b16 %v590
    %v1947 = vunpack.c.l.b16 %v591
    %v1948 = vunpack.c.h.b16 %v591
    %v1949 = vunpack.c.l.b16 %v592
    %v1950 = vunpack.c.h.b16 %v592
    %v1951 = vunpack.c.l.b16 %v593
    %v1952 = vunpack.c.h.b16 %v593
    %v1953 = vunpack.c.l.b16 %v594
    %v1954 = vunpack.c.h.b16 %v594
    %v1955 = vunpack.c.l.b16 %v595
    %v1956 = vunpack.c.h.b16 %v595
    %v1957 = vunpack.c.l.b16 %v596
    %v1958 = vunpack.c.h.b16 %v596
    %v1959 = vunpack.c.l.b16 %v597
    %v1960 = vunpack.c.h.b16 %v597
    %v1961 = vunpack.c.l.b16 %v598
    %v1962 = vunpack.c.h.b16 %v598
    %v1963 = vunpack.c.l.b16 %v599
    %v1964 = vunpack.c.h.b16 %v599
    %v1965 = vunpack.c.l.b16 %v600
    %v1966 = vunpack.c.h.b16 %v600
    %v1967 = vunpack.c.l.b16 %v601
    %v1968 = vunpack.c.h.b16 %v601
    %v1969 = vunpack.c.l.b16 %v602
    %v1970 = vunpack.c.h.b16 %v602
    %v1971 = vunpack.c.l.b16 %v603
    %v1972 = vunpack.c.h.b16 %v603
    %v1973 = vunpack.c.l.b16 %v604
    %v1974 = vunpack.c.h.b16 %v604
    %v1975 = vunpack.c.l.b16 %v605
    %v1976 = vunpack.c.h.b16 %v605
    %v1977 = vunpack.c.l.b16 %v606
    %v1978 = vunpack.c.h.b16 %v606
    %v1979 = vunpack.c.l.b16 %v607
    %v1980 = vunpack.c.h.b16 %v607
    %v1981 = vunpack.c.l.b16 %v608
    %v1982 = vunpack.c.h.b16 %v608
    %v1983 = vunpack.c.l.b16 %v609
    %v1984 = vunpack.c.h.b16 %v609
    %v1985 = vunpack.c.l.b16 %v610
    %v1986 = vunpack.c.h.b16 %v610
    %v1987 = vunpack.c.l.b16 %v611
    %v1988 = vunpack.c.h.b16 %v611
    %v1989 = vunpack.c.l.b16 %v612
    %v1990 = vunpack.c.h.b16 %v612
    %v1991 = vunpack.c.l.b16 %v613
    %v1992 = vunpack.c.h.b16 %v613
    %v1993 = vunpack.c.l.b16 %v614
    %v1994 = vunpack.c.h.b16 %v614
    %v1995 = vunpack.c.l.b16 %v615
    %v1996 = vunpack.c.h.b16 %v615
    %v1997 = vunpack.c.l.b16 %v616
    %v1998 = vunpack.c.h.b16 %v616
    %v1999 = vunpack.c.l.b16 %v617
    %v2000 = vunpack.c.h.b16 %v617
    %v2001 = vunpack.c.l.b16 %v618
    %v2002 = vunpack.c.h.b16 %v618
    %v2003 = vunpack.c.l.b16 %v619
    %v2004 = vunpack.c.h.b16 %v619
    %v2005 = vunpack.c.l.b16 %v620
    %v2006 = vunpack.c.h.b16 %v620
    %v2007 = vpack.c.b16 %v1119, %v1111
    %v2008 = vpack.c.b16 %v1120, %v1112
    %v2009 = vpack.c.b16 %v1121, %v1113
    %v2010 = vpack.c.b16 %v1122, %v1114
    %v2011 = vpack.c.b16 %v1123, %v1115
    %v2012 = vpack.c.b16 %v1124, %v1116
    %v2013 = vpack.c.b16 %v1125, %v1117
    %v2014 = vpack.c.b16 %v1126, %v1118
    %v2015 = vpack.c.b16 %v1135, %v1127
    %v2016 = vpack.c.b16 %v1136, %v1128
    %v2017 = vpack.c.b16 %v1137, %v1129
    %v2018 = vpack.c.b16 %v1138, %v1130
    %v2019 = vpack.c.b16 %v1139, %v1131
    %v2020 = vpack.c.b16 %v1140, %v1132
    %v2021 = vpack.c.b16 %v1141, %v1133
    %v2022 = vpack.c.b16 %v1142, %v1134
    %v2023 = vpack.c.b16 %v1151, %v1143
    %v2024 = vpack.c.b16 %v1152, %v1144
    %v2025 = vpack.c.b16 %v1153, %v1145
    %v2026 = vpack.c.b16 %v1154, %v1146
    %v2027 = vpack.c.b16 %v1155, %v1147
    %v2028 = vpack.c.b16 %v1156, %v1148
    %v2029 = vpack.c.b16 %v1157, %v1149
    %v2030 = vpack.c.b16 %v1158, %v1150
    %v2031 = vpack.c.b16 %v1167, %v1159
    %v2032 = vpack.c.b16 %v1168, %v1160
    %v2033 = vpack.c.b16 %v1169, %v1161
    %v2034 = vpack.c.b16 %v1170, %v1162
    %v2035 = vpack.c.b16 %v1171, %v1163
    %v2036 = vpack.c.b16 %v1172, %v1164
    %v2037 = vpack.c.b16 %v1173, %v1165
    %v2038 = vpack.c.b16 %v1174, %v1166
    %v2039 = vpack.c.b16 %v1183, %v1175
    %v2040 = vpack.c.b16 %v1184, %v1176
    %v2041 = vpack.c.b16 %v1185, %v1177
    %v2042 = vpack.c.b16 %v1186, %v1178
    %v2043 = vpack.c.b16 %v1187, %v1179
    %v2044 = vpack.c.b16 %v1188, %v1180
    %v2045 = vpack.c.b16 %v1189, %v1181
    %v2046 = vpack.c.b16 %v1190, %v1182
    %v2047 = vpack.c.b16 %v1199, %v1191
    %v2048 = vpack.c.b16 %v1200, %v1192
    %v2049 = vpack.c.b16 %v1201, %v1193
    %v2050 = vpack.c.b16 %v1202, %v1194
    %v2051 = vpack.c.b16 %v1203, %v1195
    %v2052 = vpack.c.b16 %v1204, %v1196
    %v2053 = vpack.c.b16 %v1205, %v1197
    %v2054 = vpack.c.b16 %v1206, %v1198
    %v2055 = vpack.c.b16 %v1215, %v1207
    %v2056 = vpack.c.b16 %v1216, %v1208
    %v2057 = vpack.c.b16 %v1217, %v1209
    %v2058 = vpack.c.b16 %v1218, %v1210
    %v2059 = vpack.c.b16 %v1219, %v1211
    %v2060 = vpack.c.b16 %v1220, %v1212
    %v2061 = vpack.c.b16 %v1221, %v1213
    %v2062 = vpack.c.b16 %v1222, %v1214
    %v2063 = vpack.c.b16 %v1231, %v1223
    %v2064 = vpack.c.b16 %v1232, %v1224
    %v2065 = vpack.c.b16 %v1233, %v1225
    %v2066 = vpack.c.b16 %v1234, %v1226
    %v2067 = vpack.c.b16 %v1235, %v1227
    %v2068 = vpack.c.b16 %v1236, %v1228
    %v2069 = vpack.c.b16 %v1237, %v1229
    %v2070 = vpack.c.b16 %v1238, %v1230
    %v2071 = vpack.c.b16 %v1247, %v1239
    %v2072 = vpack.c.b16 %v1248, %v1240
    %v2073 = vpack.c.b16 %v1249, %v1241
    %v2074 = vpack.c.b16 %v1250, %v1242
    %v2075 = vpack.c.b16 %v1251, %v1243
    %v2076 = vpack.c.b16 %v1252, %v1244
    %v2077 = vpack.c.b16 %v1253, %v1245
    %v2078 = vpack.c.b16 %v1254, %v1246
    %v2079 = vpack.c.b16 %v1263, %v1255
    %v2080 = vpack.c.b16 %v1264, %v1256
    %v2081 = vpack.c.b16 %v1265, %v1257
    %v2082 = vpack.c.b16 %v1266, %v1258
    %v2083 = vpack.c.b16 %v1267, %v1259
    %v2084 = vpack.c.b16 %v1268, %v1260
    %v2085 = vpack.c.b16 %v1269, %v1261
    %v2086 = vpack.c.b16 %v1270, %v1262
    %v2087 = vpack.c.b16 %v1279, %v1271
    %v2088 = vpack.c.b16 %v1280, %v1272
    %v2089 = vpack.c.b16 %v1281, %v1273
    %v2090 = vpack.c.b16 %v1282, %v1274
    %v2091 = vpack.c.b16 %v1283, %v1275
    %v2092 = vpack.c.b16 %v1284, %v1276
    %v2093 = vpack.c.b16 %v1285, %v1277
    %v2094 = vpack.c.b16 %v1286, %v1278
    %v2095 = vpack.c.b16 %v1295, %v1287
    %v2096 = vpack.c.b16 %v1296, %v1288
    %v2097 = vpack.c.b16 %v1297, %v1289
    %v2098 = vpack.c.b16 %v1298, %v1290
    %v2099 = vpack.c.b16 %v1299, %v1291
    %v2100 = vpack.c.b16 %v1300, %v1292
    %v2101 = vpack.c.b16 %v1301, %v1293
    %v2102 = vpack.c.b16 %v1302, %v1294
    %v2103 = vpack.c.b16 %v1311, %v1303
    %v2104 = vpack.c.b16 %v1312, %v1304
    %v2105 = vpack.c.b16 %v1313, %v1305
    %v2106 = vpack.c.b16 %v1314, %v1306
    %v2107 = vpack.c.b16 %v1315, %v1307
    %v2108 = vpack.c.b16 %v1316, %v1308
    %v2109 = vpack.c.b16 %v1317, %v1309
    %v2110 = vpack.c.b16 %v1318, %v1310
    %v2111 = vpack.c.b16 %v1327, %v1319
    %v2112 = vpack.c.b16 %v1328, %v1320
    %v2113 = vpack.c.b16 %v1329, %v1321
    %v2114 = vpack.c.b16 %v1330, %v1322
    %v2115 = vpack.c.b16 %v1331, %v1323
    %v2116 = vpack.c.b16 %v1332, %v1324
    %v2117 = vpack.c.b16 %v1333, %v1325
    %v2118 = vpack.c.b16 %v1334, %v1326
    %v2119 = vpack.c.b16 %v1343, %v1335
    %v2120 = vpack.c.b16 %v1344, %v1336
    %v2121 = vpack.c.b16 %v1345, %v1337
    %v2122 = vpack.c.b16 %v1346, %v1338
    %v2123 = vpack.c.b16 %v1347, %v1339
    %v2124 = vpack.c.b16 %v1348, %v1340
    %v2125 = vpack.c.b16 %v1349, %v1341
    %v2126 = vpack.c.b16 %v1350, %v1342
    %v2127 = vpack.c.b16 %v1359, %v1351
    %v2128 = vpack.c.b16 %v1360, %v1352
    %v2129 = vpack.c.b16 %v1361, %v1353
    %v2130 = vpack.c.b16 %v1362, %v1354
    %v2131 = vpack.c.b16 %v1363, %v1355
    %v2132 = vpack.c.b16 %v1364, %v1356
    %v2133 = vpack.c.b16 %v1365, %v1357
    %v2134 = vpack.c.b16 %v1366, %v1358
    %v2135 = vpack.c.b16 %v1375, %v1367
    %v2136 = vpack.c.b16 %v1376, %v1368
    %v2137 = vpack.c.b16 %v1377, %v1369
    %v2138 = vpack.c.b16 %v1378, %v1370
    %v2139 = vpack.c.b16 %v1379, %v1371
    %v2140 = vpack.c.b16 %v1380, %v1372
    %v2141 = vpack.c.b16 %v1381, %v1373
    %v2142 = vpack.c.b16 %v1382, %v1374
    %v2143 = vpack.c.b16 %v1391, %v1383
    %v2144 = vpack.c.b16 %v1392, %v1384
    %v2145 = vpack.c.b16 %v1393, %v1385
    %v2146 = vpack.c.b16 %v1394, %v1386
    %v2147 = vpack.c.b16 %v1395, %v1387
    %v2148 = vpack.c.b16 %v1396, %v1388
    %v2149 = vpack.c.b16 %v1397, %v1389
    %v2150 = vpack.c.b16 %v1398, %v1390
    %v2151 = vpack.c.b16 %v1407, %v1399
    %v2152 = vpack.c.b16 %v1408, %v1400
    %v2153 = vpack.c.b16 %v1409, %v1401
    %v2154 = vpack.c.b16 %v1410, %v1402
    %v2155 = vpack.c.b16 %v1411, %v1403
    %v2156 = vpack.c.b16 %v1412, %v1404
    %v2157 = vpack.c.b16 %v1413, %v1405
    %v2158 = vpack.c.b16 %v1414, %v1406
    %v2159 = vpack.c.b16 %v1423, %v1415
    %v2160 = vpack.c.b16 %v1424, %v1416
    %v2161 = vpack.c.b16 %v1425, %v1417
    %v2162 = vpack.c.b16 %v1426, %v1418
    %v2163 = vpack.c.b16 %v1427, %v1419
    %v2164 = vpack.c.b16 %v1428, %v1420
    %v2165 = vpack.c.b16 %v1429, %v1421
    %v2166 = vpack.c.b16 %v1430, %v1422
    %v2167 = vpack.c.b16 %v1439, %v1431
    %v2168 = vpack.c.b16 %v1440, %v1432
    %v2169 = vpack.c.b16 %v1441, %v1433
    %v2170 = vpack.c.b16 %v1442, %v1434
    %v2171 = vpack.c.b16 %v1443, %v1435
    %v2172 = vpack.c.b16 %v1444, %v1436
    %v2173 = vpack.c.b16 %v1445, %v1437
    %v2174 = vpack.c.b16 %v1446, %v1438
    %v2175 = vpack.c.b16 %v1455, %v1447
    %v2176 = vpack.c.b16 %v1456, %v1448
    %v2177 = vpack.c.b16 %v1457, %v1449
    %v2178 = vpack.c.b16 %v1458, %v1450
    %v2179 = vpack.c.b16 %v1459, %v1451
    %v2180 = vpack.c.b16 %v1460, %v1452
    %v2181 = vpack.c.b16 %v1461, %v1453
    %v2182 = vpack.c.b16 %v1462, %v1454
    %v2183 = vpack.c.b16 %v1471, %v1463
    %v2184 = vpack.c.b16 %v1472, %v1464
    %v2185 = vpack.c.b16 %v1473, %v1465
    %v2186 = vpack.c.b16 %v1474, %v1466
    %v2187 = vpack.c.b16 %v1475, %v1467
    %v2188 = vpack.c.b16 %v1476, %v1468
    %v2189 = vpack.c.b16 %v1477, %v1469
    %v2190 = vpack.c.b16 %v1478, %v1470
    %v2191 = vpack.c.b16 %v1487, %v1479
    %v2192 = vpack.c.b16 %v1488, %v1480
    %v2193 = vpack.c.b16 %v1489, %v1481
    %v2194 = vpack.c.b16 %v1490, %v1482
    %v2195 = vpack.c.b16 %v1491, %v1483
    %v2196 = vpack.c.b16 %v1492, %v1484
    %v2197 = vpack.c.b16 %v1493, %v1485
    %v2198 = vpack.c.b16 %v1494, %v1486
    %v2199 = vpack.c.b16 %v1503, %v1495
    %v2200 = vpack.c.b16 %v1504, %v1496
    %v2201 = vpack.c.b16 %v1505, %v1497
    %v2202 = vpack.c.b16 %v1506, %v1498
    %v2203 = vpack.c.b16 %v1507, %v1499
    %v2204 = vpack.c.b16 %v1508, %v1500
    %v2205 = vpack.c.b16 %v1509, %v1501
    %v2206 = vpack.c.b16 %v1510, %v1502
    %v2207 = vpack.c.b16 %v1519, %v1511
    %v2208 = vpack.c.b16 %v1520, %v1512
    %v2209 = vpack.c.b16 %v1521, %v1513
    %v2210 = vpack.c.b16 %v1522, %v1514
    %v2211 = vpack.c.b16 %v1523, %v1515
    %v2212 = vpack.c.b16 %v1524, %v1516
    %v2213 = vpack.c.b16 %v1525, %v1517
    %v2214 = vpack.c.b16 %v1526, %v1518
    %v2215 = vpack.c.b16 %v1535, %v1527
    %v2216 = vpack.c.b16 %v1536, %v1528
    %v2217 = vpack.c.b16 %v1537, %v1529
    %v2218 = vpack.c.b16 %v1538, %v1530
    %v2219 = vpack.c.b16 %v1539, %v1531
    %v2220 = vpack.c.b16 %v1540, %v1532
    %v2221 = vpack.c.b16 %v1541, %v1533
    %v2222 = vpack.c.b16 %v1542, %v1534
    %v2223 = vpack.c.b16 %v1551, %v1543
    %v2224 = vpack.c.b16 %v1552, %v1544
    %v2225 = vpack.c.b16 %v1553, %v1545
    %v2226 = vpack.c.b16 %v1554, %v1546
    %v2227 = vpack.c.b16 %v1555, %v1547
    %v2228 = vpack.c.b16 %v1556, %v1548
    %v2229 = vpack.c.b16 %v1557, %v1549
    %v2230 = vpack.c.b16 %v1558, %v1550
    %v2231 = vpack.c.b16 %v1567, %v1559
    %v2232 = vpack.c.b16 %v1568, %v1560
    %v2233 = vpack.c.b16 %v1569, %v1561
    %v2234 = vpack.c.b16 %v1570, %v1562
    %v2235 = vpack.c.b16 %v1571, %v1563
    %v2236 = vpack.c.b16 %v1572, %v1564
    %v2237 = vpack.c.b16 %v1573, %v1565
    %v2238 = vpack.c.b16 %v1574, %v1566
    %v2239 = vpack.c.b16 %v1583, %v1575
    %v2240 = vpack.c.b16 %v1584, %v1576
    %v2241 = vpack.c.b16 %v1585, %v1577
    %v2242 = vpack.c.b16 %v1586, %v1578
    %v2243 = vpack.c.b16 %v1587, %v1579
    %v2244 = vpack.c.b16 %v1588, %v1580
    %v2245 = vpack.c.b16 %v1589, %v1581
    %v2246 = vpack.c.b16 %v1590, %v1582
    %v2247 = vpack.c.b16 %v1599, %v1591
    %v2248 = vpack.c.b16 %v1600, %v1592
    %v2249 = vpack.c.b16 %v1601, %v1593
    %v2250 = vpack.c.b16 %v1602, %v1594
    %v2251 = vpack.c.b16 %v1603, %v1595
    %v2252 = vpack.c.b16 %v1604, %v1596
    %v2253 = vpack.c.b16 %v1605, %v1597
    %v2254 = vpack.c.b16 %v1606, %v1598
    %v2255 = vpack.c.b16 %v1615, %v1607
    %v2256 = vpack.c.b16 %v1616, %v1608
    %v2257 = vpack.c.b16 %v1617, %v1609
    %v2258 = vpack.c.b16 %v1618, %v1610
    %v2259 = vpack.c.b16 %v1619, %v1611
    %v2260 = vpack.c.b16 %v1620, %v1612
    %v2261 = vpack.c.b16 %v1621, %v1613
    %v2262 = vpack.c.b16 %v1622, %v1614
    %v2263 = vpack.c.b16 %v1631, %v1623
    %v2264 = vpack.c.b16 %v1632, %v1624
    %v2265 = vpack.c.b16 %v1633, %v1625
    %v2266 = vpack.c.b16 %v1634, %v1626
    %v2267 = vpack.c.b16 %v1635, %v1627
    %v2268 = vpack.c.b16 %v1636, %v1628
    %v2269 = vpack.c.b16 %v1637, %v1629
    %v2270 = vpack.c.b16 %v1638, %v1630
    %v2271 = vpack.c.b16 %v1647, %v1639
    %v2272 = vpack.c.b16 %v1648, %v1640
    %v2273 = vpack.c.b16 %v1649, %v1641
    %v2274 = vpack.c.b16 %v1650, %v1642
    %v2275 = vpack.c.b16 %v1651, %v1643
    %v2276 = vpack.c.b16 %v1652, %v1644
    %v2277 = vpack.c.b16 %v1653, %v1645
    %v2278 = vpack.c.b16 %v1654, %v1646
    %v2279 = vpack.c.b16 %v1663, %v1655
    %v2280 = vpack.c.b16 %v1664, %v1656
    %v2281 = vpack.c.b16 %v1665, %v1657
    %v2282 = vpack.c.b16 %v1666, %v1658
    %v2283 = vpack.c.b16 %v1667, %v1659
    %v2284 = vpack.c.b16 %v1668, %v1660
    %v2285 = vpack.c.b16 %v1669, %v1661
    %v2286 = vpack.c.b16 %v1670, %v1662
    %v2287 = vpack.c.b16 %v1679, %v1671
    %v2288 = vpack.c.b16 %v1680, %v1672
    %v2289 = vpack.c.b16 %v1681, %v1673
    %v2290 = vpack.c.b16 %v1682, %v1674
    %v2291 = vpack.c.b16 %v1683, %v1675
    %v2292 = vpack.c.b16 %v1684, %v1676
    %v2293 = vpack.c.b16 %v1685, %v1677
    %v2294 = vpack.c.b16 %v1686, %v1678
    %v2295 = vpack.c.b16 %v1695, %v1687
    %v2296 = vpack.c.b16 %v1696, %v1688
    %v2297 = vpack.c.b16 %v1697, %v1689
    %v2298 = vpack.c.b16 %v1698, %v1690
    %v2299 = vpack.c.b16 %v1699, %v1691
    %v2300 = vpack.c.b16 %v1700, %v1692
    %v2301 = vpack.c.b16 %v1701, %v1693
    %v2302 = vpack.c.b16 %v1702, %v1694
    %v2303 = vpack.c.b16 %v1711, %v1703
    %v2304 = vpack.c.b16 %v1712, %v1704
    %v2305 = vpack.c.b16 %v1713, %v1705
    %v2306 = vpack.c.b16 %v1714, %v1706
    %v2307 = vpack.c.b16 %v1715, %v1707
    %v2308 = vpack.c.b16 %v1716, %v1708
    %v2309 = vpack.c.b16 %v1717, %v1709
    %v2310 = vpack.c.b16 %v1718, %v1710
    %v2311 = vpack.c.b16 %v1727, %v1719
    %v2312 = vpack.c.b16 %v1728, %v1720
    %v2313 = vpack.c.b16 %v1729, %v1721
    %v2314 = vpack.c.b16 %v1730, %v1722
    %v2315 = vpack.c.b16 %v1731, %v1723
    %v2316 = vpack.c.b16 %v1732, %v1724
    %v2317 = vpack.c.b16 %v1733, %v1725
    %v2318 = vpack.c.b16 %v1734, %v1726
    %v2319 = vpack.c.b16 %v1743, %v1735
    %v2320 = vpack.c.b16 %v1744, %v1736
    %v2321 = vpack.c.b16 %v1745, %v1737
    %v2322 = vpack.c.b16 %v1746, %v1738
    %v2323 = vpack.c.b16 %v1747, %v1739
    %v2324 = vpack.c.b16 %v1748, %v1740
    %v2325 = vpack.c.b16 %v1749, %v1741
    %v2326 = vpack.c.b16 %v1750, %v1742
    %v2327 = vpack.c.b16 %v1759, %v1751
    %v2328 = vpack.c.b16 %v1760, %v1752
    %v2329 = vpack.c.b16 %v1761, %v1753
    %v2330 = vpack.c.b16 %v1762, %v1754
    %v2331 = vpack.c.b16 %v1763, %v1755
    %v2332 = vpack.c.b16 %v1764, %v1756
    %v2333 = vpack.c.b16 %v1765, %v1757
    %v2334 = vpack.c.b16 %v1766, %v1758
    %v2335 = vpack.c.b16 %v1775, %v1767
    %v2336 = vpack.c.b16 %v1776, %v1768
    %v2337 = vpack.c.b16 %v1777, %v1769
    %v2338 = vpack.c.b16 %v1778, %v1770
    %v2339 = vpack.c.b16 %v1779, %v1771
    %v2340 = vpack.c.b16 %v1780, %v1772
    %v2341 = vpack.c.b16 %v1781, %v1773
    %v2342 = vpack.c.b16 %v1782, %v1774
    %v2343 = vpack.c.b16 %v1791, %v1783
    %v2344 = vpack.c.b16 %v1792, %v1784
    %v2345 = vpack.c.b16 %v1793, %v1785
    %v2346 = vpack.c.b16 %v1794, %v1786
    %v2347 = vpack.c.b16 %v1795, %v1787
    %v2348 = vpack.c.b16 %v1796, %v1788
    %v2349 = vpack.c.b16 %v1797, %v1789
    %v2350 = vpack.c.b16 %v1798, %v1790
    %v2351 = vpack.c.b16 %v1807, %v1799
    %v2352 = vpack.c.b16 %v1808, %v1800
    %v2353 = vpack.c.b16 %v1809, %v1801
    %v2354 = vpack.c.b16 %v1810, %v1802
    %v2355 = vpack.c.b16 %v1811, %v1803
    %v2356 = vpack.c.b16 %v1812, %v1804
    %v2357 = vpack.c.b16 %v1813, %v1805
    %v2358 = vpack.c.b16 %v1814, %v1806
    %v2359 = vpack.c.b16 %v1823, %v1815
    %v2360 = vpack.c.b16 %v1824, %v1816
    %v2361 = vpack.c.b16 %v1825, %v1817
    %v2362 = vpack.c.b16 %v1826, %v1818
    %v2363 = vpack.c.b16 %v1827, %v1819
    %v2364 = vpack.c.b16 %v1828, %v1820
    %v2365 = vpack.c.b16 %v1829, %v1821
    %v2366 = vpack.c.b16 %v1830, %v1822
    %v2367 = vpack.c.b16 %v1839, %v1831
    %v2368 = vpack.c.b16 %v1840, %v1832
    %v2369 = vpack.c.b16 %v1841, %v1833
    %v2370 = vpack.c.b16 %v1842, %v1834
    %v2371 = vpack.c.b16 %v1843, %v1835
    %v2372 = vpack.c.b16 %v1844, %v1836
    %v2373 = vpack.c.b16 %v1845, %v1837
    %v2374 = vpack.c.b16 %v1846, %v1838
    %v2375 = vpack.c.b16 %v1855, %v1847
    %v2376 = vpack.c.b16 %v1856, %v1848
    %v2377 = vpack.c.b16 %v1857, %v1849
    %v2378 = vpack.c.b16 %v1858, %v1850
    %v2379 = vpack.c.b16 %v1859, %v1851
    %v2380 = vpack.c.b16 %v1860, %v1852
    %v2381 = vpack.c.b16 %v1861, %v1853
    %v2382 = vpack.c.b16 %v1862, %v1854
    %v2383 = vpack.c.b16 %v1871, %v1863
    %v2384 = vpack.c.b16 %v1872, %v1864
    %v2385 = vpack.c.b16 %v1873, %v1865
    %v2386 = vpack.c.b16 %v1874, %v1866
    %v2387 = vpack.c.b16 %v1875, %v1867
    %v2388 = vpack.c.b16 %v1876, %v1868
    %v2389 = vpack.c.b16 %v1877, %v1869
    %v2390 = vpack.c.b16 %v1878, %v1870
    %v2391 = vpack.c.b16 %v1887, %v1879
    %v2392 = vpack.c.b16 %v1888, %v1880
    %v2393 = vpack.c.b16 %v1889, %v1881
    %v2394 = vpack.c.b16 %v1890, %v1882
    %v2395 = vpack.c.b16 %v1891, %v1883
    %v2396 = vpack.c.b16 %v1892, %v1884
    %v2397 = vpack.c.b16 %v1893, %v1885
    %v2398 = vpack.c.b16 %v1894, %v1886
    %v2399 = vpack.c.b16 %v1903, %v1895
    %v2400 = vpack.c.b16 %v1904, %v1896
    %v2401 = vpack.c.b16 %v1905, %v1897
    %v2402 = vpack.c.b16 %v1906, %v1898
    %v2403 = vpack.c.b16 %v1907, %v1899
    %v2404 = vpack.c.b16 %v1908, %v1900
    %v2405 = vpack.c.b16 %v1909, %v1901
    %v2406 = vpack.c.b16 %v1910, %v1902
    %v2407 = vpack.c.b16 %v1919, %v1911
    %v2408 = vpack.c.b16 %v1920, %v1912
    %v2409 = vpack.c.b16 %v1921, %v1913
    %v2410 = vpack.c.b16 %v1922, %v1914
    %v2411 = vpack.c.b16 %v1923, %v1915
    %v2412 = vpack.c.b16 %v1924, %v1916
    %v2413 = vpack.c.b16 %v1925, %v1917
    %v2414 = vpack.c.b16 %v1926, %v1918
    %v2415 = vpack.c.b16 %v1935, %v1927
    %v2416 = vpack.c.b16 %v1936, %v1928
    %v2417 = vpack.c.b16 %v1937, %v1929
    %v2418 = vpack.c.b16 %v1938, %v1930
    %v2419 = vpack.c.b16 %v1939, %v1931
    %v2420 = vpack.c.b16 %v1940, %v1932
    %v2421 = vpack.c.b16 %v1941, %v1933
    %v2422 = vpack.c.b16 %v1942, %v1934
    %v2423 = vpack.c.b16 %v1951, %v1943
    %v2424 = vpack.c.b16 %v1952, %v1944
    %v2425 = vpack.c.b16 %v1953, %v1945
    %v2426 = vpack.c.b16 %v1954, %v1946
    %v2427 = vpack.c.b16 %v1955, %v1947
    %v2428 = vpack.c.b16 %v1956, %v1948
    %v2429 = vpack.c.b16 %v1957, %v1949
    %v2430 = vpack.c.b16 %v1958, %v1950
    %v2431 = vpack.c.b16 %v1967, %v1959
    %v2432 = vpack.c.b16 %v1968, %v1960
    %v2433 = vpack.c.b16 %v1969, %v1961
    %v2434 = vpack.c.b16 %v1970, %v1962
    %v2435 = vpack.c.b16 %v1971, %v1963
    %v2436 = vpack.c.b16 %v1972, %v1964
    %v2437 = vpack.c.b16 %v1973, %v1965
    %v2438 = vpack.c.b16 %v1974, %v1966
    %v2439 = vpack.c.b16 %v1983, %v1975
    %v2440 = vpack.c.b16 %v1984, %v1976
    %v2441 = vpack.c.b16 %v1985, %v1977
    %v2442 = vpack.c.b16 %v1986, %v1978
    %v2443 = vpack.c.b16 %v1987, %v1979
    %v2444 = vpack.c.b16 %v1988, %v1980
    %v2445 = vpack.c.b16 %v1989, %v1981
    %v2446 = vpack.c.b16 %v1990, %v1982
    %v2447 = vpack.c.b16 %v1999, %v1991
    %v2448 = vpack.c.b16 %v2000, %v1992
    %v2449 = vpack.c.b16 %v2001, %v1993
    %v2450 = vpack.c.b16 %v2002, %v1994
    %v2451 = vpack.c.b16 %v2003, %v1995
    %v2452 = vpack.c.b16 %v2004, %v1996
    %v2453 = vpack.c.b16 %v2005, %v1997
    %v2454 = vpack.c.b16 %v2006, %v1998
    %2903 = vmatprep.subr.bf16.mxu0 %v2008
    %2904 = vmatpush1.bf16.msra.mxu0 %v2007
    %2905 = vmatprep.subr.bf16.mxu0 %v2016
    %2906 = vmatpush1.bf16.msra.mxu0 %v2015
    %2907 = vmatprep.subr.bf16.mxu0 %v2024
    %2908 = vmatpush1.bf16.msra.mxu0 %v2023
    %2909 = vmatprep.subr.bf16.mxu0 %v2032
    %2910 = vmatpush1.bf16.msra.mxu0 %v2031
    %2911 = vmatprep.subr.bf16.mxu0 %v2040
    %2912 = vmatpush1.bf16.msra.mxu0 %v2039
    %2913 = vmatprep.subr.bf16.mxu0 %v2048
    %2914 = vmatpush1.bf16.msra.mxu0 %v2047
    %2915 = vmatprep.subr.bf16.mxu0 %v2056
    %2916 = vmatpush1.bf16.msra.mxu0 %v2055
    %2917 = vmatprep.subr.bf16.mxu0 %v2064
    %2918 = vmatpush1.bf16.msra.mxu0 %v2063
    %2919 = vmatprep.subr.bf16.mxu0 %v2072
    %2920 = vmatpush1.bf16.msra.mxu0 %v2071
    %2921 = vmatprep.subr.bf16.mxu0 %v2080
    %2922 = vmatpush1.bf16.msra.mxu0 %v2079
    %2923 = vmatprep.subr.bf16.mxu0 %v2088
    %2924 = vmatpush1.bf16.msra.mxu0 %v2087
    %2925 = vmatprep.subr.bf16.mxu0 %v2096
    %2926 = vmatpush1.bf16.msra.mxu0 %v2095
    %2927 = vmatprep.subr.bf16.mxu0 %v2104
    %2928 = vmatpush1.bf16.msra.mxu0 %v2103
    %2929 = vmatprep.subr.bf16.mxu0 %v2112
    %2930 = vmatpush1.bf16.msra.mxu0 %v2111
    %2931 = vmatprep.subr.bf16.mxu0 %v2120
    %2932 = vmatpush1.bf16.msra.mxu0 %v2119
    %2933 = vmatprep.subr.bf16.mxu0 %v2128
    %2934 = vmatpush1.bf16.msra.mxu0 %v2127
    %2935 = vmatprep.mubr.bf16.mxu0 %v150
    %2936 = vmatmul.mubr.bf16.gmra.mrb[0].mxu0 %v149
    %v2937 = vpop.f32.mrb[0].mxu0
    %v2938 = vadd.f32 %v626, %v2937
    %v2939 = vpop.f32.mrb[0].mxu0
    %v2940 = vadd.f32 %v630, %v2939
    %v2941 = vpop.f32.mrb[0].mxu0
    %v2942 = vpop.f32.mrb[0].mxu0
    %2943 = vdwg.mxu0
    %2944 = vmatprep.subr.bf16.mxu0 %v2136
    %2945 = vmatpush1.bf16.msra.mxu0 %v2135
    %2946 = vmatprep.subr.bf16.mxu0 %v2144
    %2947 = vmatpush1.bf16.msra.mxu0 %v2143
    %2948 = vmatprep.subr.bf16.mxu0 %v2152
    %2949 = vmatpush1.bf16.msra.mxu0 %v2151
    %2950 = vmatprep.subr.bf16.mxu0 %v2160
    %2951 = vmatpush1.bf16.msra.mxu0 %v2159
    %2952 = vmatprep.subr.bf16.mxu0 %v2168
    %2953 = vmatpush1.bf16.msra.mxu0 %v2167
    %2954 = vmatprep.subr.bf16.mxu0 %v2176
    %2955 = vmatpush1.bf16.msra.mxu0 %v2175
    %2956 = vmatprep.subr.bf16.mxu0 %v2184
    %2957 = vmatpush1.bf16.msra.mxu0 %v2183
    %2958 = vmatprep.subr.bf16.mxu0 %v2192
    %2959 = vmatpush1.bf16.msra.mxu0 %v2191
    %2960 = vmatprep.subr.bf16.mxu0 %v2200
    %2961 = vmatpush1.bf16.msra.mxu0 %v2199
    %2962 = vmatprep.subr.bf16.mxu0 %v2208
    %2963 = vmatpush1.bf16.msra.mxu0 %v2207
    %2964 = vmatprep.subr.bf16.mxu0 %v2216
    %2965 = vmatpush1.bf16.msra.mxu0 %v2215
    %2966 = vmatprep.subr.bf16.mxu0 %v2224
    %2967 = vmatpush1.bf16.msra.mxu0 %v2223
    %2968 = vmatprep.subr.bf16.mxu0 %v2232
    %2969 = vmatpush1.bf16.msra.mxu0 %v2231
    %2970 = vmatprep.subr.bf16.mxu0 %v2240
    %2971 = vmatpush1.bf16.msra.mxu0 %v2239
    %2972 = vmatprep.subr.bf16.mxu0 %v2248
    %2973 = vmatpush1.bf16.msra.mxu0 %v2247
    %2974 = vmatprep.subr.bf16.mxu0 %v2256
    %2975 = vmatpush1.bf16.msra.mxu0 %v2255
    %2976 = vmatprep.mubr.bf16.mxu0 %v152
    %2977 = vmatmul.mubr.bf16.gmra.mrb[0].mxu0 %v151
    %v2978 = vpop.f32.mrb[0].mxu0
    %v2979 = vadd.f32 %v2938, %v2978
    %v2980 = vpop.f32.mrb[0].mxu0
    %v2981 = vadd.f32 %v2940, %v2980
    %v2982 = vpop.f32.mrb[0].mxu0
    %v2983 = vpop.f32.mrb[0].mxu0
    %2984 = vdwg.mxu0
    %2985 = vmatprep.subr.bf16.mxu0 %v2264
    %2986 = vmatpush1.bf16.msra.mxu0 %v2263
    %2987 = vmatprep.subr.bf16.mxu0 %v2272
    %2988 = vmatpush1.bf16.msra.mxu0 %v2271
    %2989 = vmatprep.subr.bf16.mxu0 %v2280
    %2990 = vmatpush1.bf16.msra.mxu0 %v2279
    %2991 = vmatprep.subr.bf16.mxu0 %v2288
    %2992 = vmatpush1.bf16.msra.mxu0 %v2287
    %2993 = vmatprep.subr.bf16.mxu0 %v2296
    %2994 = vmatpush1.bf16.msra.mxu0 %v2295
    %2995 = vmatprep.subr.bf16.mxu0 %v2304
    %2996 = vmatpush1.bf16.msra.mxu0 %v2303
    %2997 = vmatprep.subr.bf16.mxu0 %v2312
    %2998 = vmatpush1.bf16.msra.mxu0 %v2311
    %2999 = vmatprep.subr.bf16.mxu0 %v2320
    %3000 = vmatpush1.bf16.msra.mxu0 %v2319
    %3001 = vmatprep.subr.bf16.mxu0 %v2328
    %3002 = vmatpush1.bf16.msra.mxu0 %v2327
    %3003 = vmatprep.subr.bf16.mxu0 %v2336
    %3004 = vmatpush1.bf16.msra.mxu0 %v2335
    %3005 = vmatprep.subr.bf16.mxu0 %v2344
    %3006 = vmatpush1.bf16.msra.mxu0 %v2343
    %3007 = vmatprep.subr.bf16.mxu0 %v2352
    %3008 = vmatpush1.bf16.msra.mxu0 %v2351
    %3009 = vmatprep.subr.bf16.mxu0 %v2360
    %3010 = vmatpush1.bf16.msra.mxu0 %v2359
    %3011 = vmatprep.subr.bf16.mxu0 %v2368
    %3012 = vmatpush1.bf16.msra.mxu0 %v2367
    %3013 = vmatprep.subr.bf16.mxu0 %v2376
    %3014 = vmatpush1.bf16.msra.mxu0 %v2375
    %3015 = vmatprep.subr.bf16.mxu0 %v2384
    %3016 = vmatpush1.bf16.msra.mxu0 %v2383
    %3017 = vmatprep.mubr.bf16.mxu0 %v154
    %3018 = vmatmul.mubr.bf16.gmra.mrb[0].mxu0 %v153
    %v3019 = vpop.f32.mrb[0].mxu0
    %v3020 = vadd.f32 %v2979, %v3019
    %v3021 = vpop.f32.mrb[0].mxu0
    %v3022 = vadd.f32 %v2981, %v3021
    %v3023 = vpop.f32.mrb[0].mxu0
    %v3024 = vpop.f32.mrb[0].mxu0
    %3025 = vdwg.mxu0
    %3026 = vmatprep.subr.bf16.mxu0 %v2392
    %3027 = vmatpush1.bf16.msra.mxu0 %v2391
    %3028 = vmatprep.subr.bf16.mxu0 %v2400
    %3029 = vmatpush1.bf16.msra.mxu0 %v2399
    %3030 = vmatprep.subr.bf16.mxu0 %v2408
    %3031 = vmatpush1.bf16.msra.mxu0 %v2407
    %3032 = vmatprep.subr.bf16.mxu0 %v2416
    %3033 = vmatpush1.bf16.msra.mxu0 %v2415
    %3034 = vmatprep.subr.bf16.mxu0 %v2424
    %3035 = vmatpush1.bf16.msra.mxu0 %v2423
    %3036 = vmatprep.subr.bf16.mxu0 %v2432
    %3037 = vmatpush1.bf16.msra.mxu0 %v2431
    %3038 = vmatprep.subr.bf16.mxu0 %v2440
    %3039 = vmatpush1.bf16.msra.mxu0 %v2439
    %3040 = vmatprep.subr.bf16.mxu0 %v2448
    %3041 = vmatpush1.bf16.msra.mxu0 %v2447
    %3042 = vmatprep.subr.bf16.mxu0 0
    %3043 = vmatpush1.bf16.msra.mxu0 0
    %3044 = vmatprep.subr.bf16.mxu0 0
    %3045 = vmatpush1.bf16.msra.mxu0 0
    %3046 = vmatprep.subr.bf16.mxu0 0
    %3047 = vmatpush1.bf16.msra.mxu0 0
    %3048 = vmatprep.subr.bf16.mxu0 0
    %3049 = vmatpush1.bf16.msra.mxu0 0
    %3050 = vmatprep.subr.bf16.mxu0 0
    %3051 = vmatpush1.bf16.msra.mxu0 0
    %3052 = vmatprep.subr.bf16.mxu0 0
    %3053 = vmatpush1.bf16.msra.mxu0 0
    %3054 = vmatprep.subr.bf16.mxu0 0
    %3055 = vmatpush1.bf16.msra.mxu0 0
    %3056 = vmatprep.subr.bf16.mxu0 0
    %3057 = vmatpush1.bf16.msra.mxu0 0
    %3058 = vmatprep.mubr.bf16.mxu0 0
    %3059 = vmatmul.mubr.bf16.gmra.mrb[0].mxu0 %v155
    %v3060 = vpop.f32.mrb[0].mxu0
    %v3061 = vadd.f32 %v3020, %v3060
    %v3062 = vpop.f32.mrb[0].mxu0
    %v3063 = vadd.f32 %v3022, %v3062
    %v3064 = vpop.f32.mrb[0].mxu0
    %v3065 = vpop.f32.mrb[0].mxu0
    %3066 = vdwg.mxu0
    %3067 = vmatprep.subr.bf16.mxu0 %v2010
    %3068 = vmatpush1.bf16.msra.mxu0 %v2009
    %3069 = vmatprep.subr.bf16.mxu0 %v2018
    %3070 = vmatpush1.bf16.msra.mxu0 %v2017
    %3071 = vmatprep.subr.bf16.mxu0 %v2026
    %3072 = vmatpush1.bf16.msra.mxu0 %v2025
    %3073 = vmatprep.subr.bf16.mxu0 %v2034
    %3074 = vmatpush1.bf16.msra.mxu0 %v2033
    %3075 = vmatprep.subr.bf16.mxu0 %v2042
    %3076 = vmatpush1.bf16.msra.mxu0 %v2041
    %3077 = vmatprep.subr.bf16.mxu0 %v2050
    %3078 = vmatpush1.bf16.msra.mxu0 %v2049
    %3079 = vmatprep.subr.bf16.mxu0 %v2058
    %3080 = vmatpush1.bf16.msra.mxu0 %v2057
    %3081 = vmatprep.subr.bf16.mxu0 %v2066
    %3082 = vmatpush1.bf16.msra.mxu0 %v2065
    %3083 = vmatprep.subr.bf16.mxu0 %v2074
    %3084 = vmatpush1.bf16.msra.mxu0 %v2073
    %3085 = vmatprep.subr.bf16.mxu0 %v2082
    %3086 = vmatpush1.bf16.msra.mxu0 %v2081
    %3087 = vmatprep.subr.bf16.mxu0 %v2090
    %3088 = vmatpush1.bf16.msra.mxu0 %v2089
    %3089 = vmatprep.subr.bf16.mxu0 %v2098
    %3090 = vmatpush1.bf16.msra.mxu0 %v2097
    %3091 = vmatprep.subr.bf16.mxu0 %v2106
    %3092 = vmatpush1.bf16.msra.mxu0 %v2105
    %3093 = vmatprep.subr.bf16.mxu0 %v2114
    %3094 = vmatpush1.bf16.msra.mxu0 %v2113
    %3095 = vmatprep.subr.bf16.mxu0 %v2122
    %3096 = vmatpush1.bf16.msra.mxu0 %v2121
    %3097 = vmatprep.subr.bf16.mxu0 %v2130
    %3098 = vmatpush1.bf16.msra.mxu0 %v2129
    %3099 = vmatprep.mubr.bf16.mxu0 %v150
    %3100 = vmatmul.mubr.bf16.gmra.mrb[0].mxu0 %v149
    %v3101 = vpop.f32.mrb[0].mxu0
    %v3102 = vadd.f32 %v634, %v3101
    %v3103 = vpop.f32.mrb[0].mxu0
    %v3104 = vadd.f32 %v638, %v3103
    %v3105 = vpop.f32.mrb[0].mxu0
    %v3106 = vpop.f32.mrb[0].mxu0
    %3107 = vdwg.mxu0
    %3108 = vmatprep.subr.bf16.mxu0 %v2138
    %3109 = vmatpush1.bf16.msra.mxu0 %v2137
    %3110 = vmatprep.subr.bf16.mxu0 %v2146
    %3111 = vmatpush1.bf16.msra.mxu0 %v2145
    %3112 = vmatprep.subr.bf16.mxu0 %v2154
    %3113 = vmatpush1.bf16.msra.mxu0 %v2153
    %3114 = vmatprep.subr.bf16.mxu0 %v2162
    %3115 = vmatpush1.bf16.msra.mxu0 %v2161
    %3116 = vmatprep.subr.bf16.mxu0 %v2170
    %3117 = vmatpush1.bf16.msra.mxu0 %v2169
    %3118 = vmatprep.subr.bf16.mxu0 %v2178
    %3119 = vmatpush1.bf16.msra.mxu0 %v2177
    %3120 = vmatprep.subr.bf16.mxu0 %v2186
    %3121 = vmatpush1.bf16.msra.mxu0 %v2185
    %3122 = vmatprep.subr.bf16.mxu0 %v2194
    %3123 = vmatpush1.bf16.msra.mxu0 %v2193
    %3124 = vmatprep.subr.bf16.mxu0 %v2202
    %3125 = vmatpush1.bf16.msra.mxu0 %v2201
    %3126 = vmatprep.subr.bf16.mxu0 %v2210
    %3127 = vmatpush1.bf16.msra.mxu0 %v2209
    %3128 = vmatprep.subr.bf16.mxu0 %v2218
    %3129 = vmatpush1.bf16.msra.mxu0 %v2217
    %3130 = vmatprep.subr.bf16.mxu0 %v2226
    %3131 = vmatpush1.bf16.msra.mxu0 %v2225
    %3132 = vmatprep.subr.bf16.mxu0 %v2234
    %3133 = vmatpush1.bf16.msra.mxu0 %v2233
    %3134 = vmatprep.subr.bf16.mxu0 %v2242
    %3135 = vmatpush1.bf16.msra.mxu0 %v2241
    %3136 = vmatprep.subr.bf16.mxu0 %v2250
    %3137 = vmatpush1.bf16.msra.mxu0 %v2249
    %3138 = vmatprep.subr.bf16.mxu0 %v2258
    %3139 = vmatpush1.bf16.msra.mxu0 %v2257
    %3140 = vmatprep.mubr.bf16.mxu0 %v152
    %3141 = vmatmul.mubr.bf16.gmra.mrb[0].mxu0 %v151
    %v3142 = vpop.f32.mrb[0].mxu0
    %v3143 = vadd.f32 %v3102, %v3142
    %v3144 = vpop.f32.mrb[0].mxu0
    %v3145 = vadd.f32 %v3104, %v3144
    %v3146 = vpop.f32.mrb[0].mxu0
    %v3147 = vpop.f32.mrb[0].mxu0
    %3148 = vdwg.mxu0
    %3149 = vmatprep.subr.bf16.mxu0 %v2266
    %3150 = vmatpush1.bf16.msra.mxu0 %v2265
    %3151 = vmatprep.subr.bf16.mxu0 %v2274
    %3152 = vmatpush1.bf16.msra.mxu0 %v2273
    %3153 = vmatprep.subr.bf16.mxu0 %v2282
    %3154 = vmatpush1.bf16.msra.mxu0 %v2281
    %3155 = vmatprep.subr.bf16.mxu0 %v2290
    %3156 = vmatpush1.bf16.msra.mxu0 %v2289
    %3157 = vmatprep.subr.bf16.mxu0 %v2298
    %3158 = vmatpush1.bf16.msra.mxu0 %v2297
    %3159 = vmatprep.subr.bf16.mxu0 %v2306
    %3160 = vmatpush1.bf16.msra.mxu0 %v2305
    %3161 = vmatprep.subr.bf16.mxu0 %v2314
    %3162 = vmatpush1.bf16.msra.mxu0 %v2313
    %3163 = vmatprep.subr.bf16.mxu0 %v2322
    %3164 = vmatpush1.bf16.msra.mxu0 %v2321
    %3165 = vmatprep.subr.bf16.mxu0 %v2330
    %3166 = vmatpush1.bf16.msra.mxu0 %v2329
    %3167 = vmatprep.subr.bf16.mxu0 %v2338
    %3168 = vmatpush1.bf16.msra.mxu0 %v2337
    %3169 = vmatprep.subr.bf16.mxu0 %v2346
    %3170 = vmatpush1.bf16.msra.mxu0 %v2345
    %3171 = vmatprep.subr.bf16.mxu0 %v2354
    %3172 = vmatpush1.bf16.msra.mxu0 %v2353
    %3173 = vmatprep.subr.bf16.mxu0 %v2362
    %3174 = vmatpush1.bf16.msra.mxu0 %v2361
    %3175 = vmatprep.subr.bf16.mxu0 %v2370
    %3176 = vmatpush1.bf16.msra.mxu0 %v2369
    %3177 = vmatprep.subr.bf16.mxu0 %v2378
    %3178 = vmatpush1.bf16.msra.mxu0 %v2377
    %3179 = vmatprep.subr.bf16.mxu0 %v2386
    %3180 = vmatpush1.bf16.msra.mxu0 %v2385
    %3181 = vmatprep.mubr.bf16.mxu0 %v154
    %3182 = vmatmul.mubr.bf16.gmra.mrb[0].mxu0 %v153
    %v3183 = vpop.f32.mrb[0].mxu0
    %v3184 = vadd.f32 %v3143, %v3183
    %v3185 = vpop.f32.mrb[0].mxu0
    %v3186 = vadd.f32 %v3145, %v3185
    %v3187 = vpop.f32.mrb[0].mxu0
    %v3188 = vpop.f32.mrb[0].mxu0
    %3189 = vdwg.mxu0
    %3190 = vmatprep.subr.bf16.mxu0 %v2394
    %3191 = vmatpush1.bf16.msra.mxu0 %v2393
    %3192 = vmatprep.subr.bf16.mxu0 %v2402
    %3193 = vmatpush1.bf16.msra.mxu0 %v2401
    %3194 = vmatprep.subr.bf16.mxu0 %v2410
    %3195 = vmatpush1.bf16.msra.mxu0 %v2409
    %3196 = vmatprep.subr.bf16.mxu0 %v2418
    %3197 = vmatpush1.bf16.msra.mxu0 %v2417
    %3198 = vmatprep.subr.bf16.mxu0 %v2426
    %3199 = vmatpush1.bf16.msra.mxu0 %v2425
    %3200 = vmatprep.subr.bf16.mxu0 %v2434
    %3201 = vmatpush1.bf16.msra.mxu0 %v2433
    %3202 = vmatprep.subr.bf16.mxu0 %v2442
    %3203 = vmatpush1.bf16.msra.mxu0 %v2441
    %3204 = vmatprep.subr.bf16.mxu0 %v2450
    %3205 = vmatpush1.bf16.msra.mxu0 %v2449
    %3206 = vmatprep.subr.bf16.mxu0 0
    %3207 = vmatpush1.bf16.msra.mxu0 0
    %3208 = vmatprep.subr.bf16.mxu0 0
    %3209 = vmatpush1.bf16.msra.mxu0 0
    %3210 = vmatprep.subr.bf16.mxu0 0
    %3211 = vmatpush1.bf16.msra.mxu0 0
    %3212 = vmatprep.subr.bf16.mxu0 0
    %3213 = vmatpush1.bf16.msra.mxu0 0
    %3214 = vmatprep.subr.bf16.mxu0 0
    %3215 = vmatpush1.bf16.msra.mxu0 0
    %3216 = vmatprep.subr.bf16.mxu0 0
    %3217 = vmatpush1.bf16.msra.mxu0 0
    %3218 = vmatprep.subr.bf16.mxu0 0
    %3219 = vmatpush1.bf16.msra.mxu0 0
    %3220 = vmatprep.subr.bf16.mxu0 0
    %3221 = vmatpush1.bf16.msra.mxu0 0
    %3222 = vmatprep.mubr.bf16.mxu0 0
    %3223 = vmatmul.mubr.bf16.gmra.mrb[0].mxu0 %v155
    %v3224 = vpop.f32.mrb[0].mxu0
    %v3225 = vadd.f32 %v3184, %v3224
    %v3226 = vpop.f32.mrb[0].mxu0
    %v3227 = vadd.f32 %v3186, %v3226
    %v3228 = vpop.f32.mrb[0].mxu0
    %v3229 = vpop.f32.mrb[0].mxu0
    %3230 = vdwg.mxu0
    %3231 = vmatprep.subr.bf16.mxu0 %v2012
    %3232 = vmatpush1.bf16.msra.mxu0 %v2011
    %3233 = vmatprep.subr.bf16.mxu0 %v2020
    %3234 = vmatpush1.bf16.msra.mxu0 %v2019
    %3235 = vmatprep.subr.bf16.mxu0 %v2028
    %3236 = vmatpush1.bf16.msra.mxu0 %v2027
    %3237 = vmatprep.subr.bf16.mxu0 %v2036
    %3238 = vmatpush1.bf16.msra.mxu0 %v2035
    %3239 = vmatprep.subr.bf16.mxu0 %v2044
    %3240 = vmatpush1.bf16.msra.mxu0 %v2043
    %3241 = vmatprep.subr.bf16.mxu0 %v2052
    %3242 = vmatpush1.bf16.msra.mxu0 %v2051
    %3243 = vmatprep.subr.bf16.mxu0 %v2060
    %3244 = vmatpush1.bf16.msra.mxu0 %v2059
    %3245 = vmatprep.subr.bf16.mxu0 %v2068
    %3246 = vmatpush1.bf16.msra.mxu0 %v2067
    %3247 = vmatprep.subr.bf16.mxu0 %v2076
    %3248 = vmatpush1.bf16.msra.mxu0 %v2075
    %3249 = vmatprep.subr.bf16.mxu0 %v2084
    %3250 = vmatpush1.bf16.msra.mxu0 %v2083
    %3251 = vmatprep.subr.bf16.mxu0 %v2092
    %3252 = vmatpush1.bf16.msra.mxu0 %v2091
    %3253 = vmatprep.subr.bf16.mxu0 %v2100
    %3254 = vmatpush1.bf16.msra.mxu0 %v2099
    %3255 = vmatprep.subr.bf16.mxu0 %v2108
    %3256 = vmatpush1.bf16.msra.mxu0 %v2107
    %3257 = vmatprep.subr.bf16.mxu0 %v2116
    %3258 = vmatpush1.bf16.msra.mxu0 %v2115
    %3259 = vmatprep.subr.bf16.mxu0 %v2124
    %3260 = vmatpush1.bf16.msra.mxu0 %v2123
    %3261 = vmatprep.subr.bf16.mxu0 %v2132
    %3262 = vmatpush1.bf16.msra.mxu0 %v2131
    %3263 = vmatprep.mubr.bf16.mxu0 %v150
    %3264 = vmatmul.mubr.bf16.gmra.mrb[0].mxu0 %v149
    %v3265 = vpop.f32.mrb[0].mxu0
    %v3266 = vadd.f32 %v642, %v3265
    %v3267 = vpop.f32.mrb[0].mxu0
    %v3268 = vadd.f32 %v646, %v3267
    %v3269 = vpop.f32.mrb[0].mxu0
    %v3270 = vpop.f32.mrb[0].mxu0
    %3271 = vdwg.mxu0
    %3272 = vmatprep.subr.bf16.mxu0 %v2140
    %3273 = vmatpush1.bf16.msra.mxu0 %v2139
    %3274 = vmatprep.subr.bf16.mxu0 %v2148
    %3275 = vmatpush1.bf16.msra.mxu0 %v2147
    %3276 = vmatprep.subr.bf16.mxu0 %v2156
    %3277 = vmatpush1.bf16.msra.mxu0 %v2155
    %3278 = vmatprep.subr.bf16.mxu0 %v2164
    %3279 = vmatpush1.bf16.msra.mxu0 %v2163
    %3280 = vmatprep.subr.bf16.mxu0 %v2172
    %3281 = vmatpush1.bf16.msra.mxu0 %v2171
    %3282 = vmatprep.subr.bf16.mxu0 %v2180
    %3283 = vmatpush1.bf16.msra.mxu0 %v2179
    %3284 = vmatprep.subr.bf16.mxu0 %v2188
    %3285 = vmatpush1.bf16.msra.mxu0 %v2187
    %3286 = vmatprep.subr.bf16.mxu0 %v2196
    %3287 = vmatpush1.bf16.msra.mxu0 %v2195
    %3288 = vmatprep.subr.bf16.mxu0 %v2204
    %3289 = vmatpush1.bf16.msra.mxu0 %v2203
    %3290 = vmatprep.subr.bf16.mxu0 %v2212
    %3291 = vmatpush1.bf16.msra.mxu0 %v2211
    %3292 = vmatprep.subr.bf16.mxu0 %v2220
    %3293 = vmatpush1.bf16.msra.mxu0 %v2219
    %3294 = vmatprep.subr.bf16.mxu0 %v2228
    %3295 = vmatpush1.bf16.msra.mxu0 %v2227
    %3296 = vmatprep.subr.bf16.mxu0 %v2236
    %3297 = vmatpush1.bf16.msra.mxu0 %v2235
    %3298 = vmatprep.subr.bf16.mxu0 %v2244
    %3299 = vmatpush1.bf16.msra.mxu0 %v2243
    %3300 = vmatprep.subr.bf16.mxu0 %v2252
    %3301 = vmatpush1.bf16.msra.mxu0 %v2251
    %3302 = vmatprep.subr.bf16.mxu0 %v2260
    %3303 = vmatpush1.bf16.msra.mxu0 %v2259
    %3304 = vmatprep.mubr.bf16.mxu0 %v152
    %3305 = vmatmul.mubr.bf16.gmra.mrb[0].mxu0 %v151
    %v3306 = vpop.f32.mrb[0].mxu0
    %v3307 = vadd.f32 %v3266, %v3306
    %v3308 = vpop.f32.mrb[0].mxu0
    %v3309 = vadd.f32 %v3268, %v3308
    %v3310 = vpop.f32.mrb[0].mxu0
    %v3311 = vpop.f32.mrb[0].mxu0
    %3312 = vdwg.mxu0
    %3313 = vmatprep.subr.bf16.mxu0 %v2268
    %3314 = vmatpush1.bf16.msra.mxu0 %v2267
    %3315 = vmatprep.subr.bf16.mxu0 %v2276
    %3316 = vmatpush1.bf16.msra.mxu0 %v2275
    %3317 = vmatprep.subr.bf16.mxu0 %v2284
    %3318 = vmatpush1.bf16.msra.mxu0 %v2283
    %3319 = vmatprep.subr.bf16.mxu0 %v2292
    %3320 = vmatpush1.bf16.msra.mxu0 %v2291
    %3321 = vmatprep.subr.bf16.mxu0 %v2300
    %3322 = vmatpush1.bf16.msra.mxu0 %v2299
    %3323 = vmatprep.subr.bf16.mxu0 %v2308
    %3324 = vmatpush1.bf16.msra.mxu0 %v2307
    %3325 = vmatprep.subr.bf16.mxu0 %v2316
    %3326 = vmatpush1.bf16.msra.mxu0 %v2315
    %3327 = vmatprep.subr.bf16.mxu0 %v2324
    %3328 = vmatpush1.bf16.msra.mxu0 %v2323
    %3329 = vmatprep.subr.bf16.mxu0 %v2332
    %3330 = vmatpush1.bf16.msra.mxu0 %v2331
    %3331 = vmatprep.subr.bf16.mxu0 %v2340
    %3332 = vmatpush1.bf16.msra.mxu0 %v2339
    %3333 = vmatprep.subr.bf16.mxu0 %v2348
    %3334 = vmatpush1.bf16.msra.mxu0 %v2347
    %3335 = vmatprep.subr.bf16.mxu0 %v2356
    %3336 = vmatpush1.bf16.msra.mxu0 %v2355
    %3337 = vmatprep.subr.bf16.mxu0 %v2364
    %3338 = vmatpush1.bf16.msra.mxu0 %v2363
    %3339 = vmatprep.subr.bf16.mxu0 %v2372
    %3340 = vmatpush1.bf16.msra.mxu0 %v2371
    %3341 = vmatprep.subr.bf16.mxu0 %v2380
    %3342 = vmatpush1.bf16.msra.mxu0 %v2379
    %3343 = vmatprep.subr.bf16.mxu0 %v2388
    %3344 = vmatpush1.bf16.msra.mxu0 %v2387
    %3345 = vmatprep.mubr.bf16.mxu0 %v154
    %3346 = vmatmul.mubr.bf16.gmra.mrb[0].mxu0 %v153
    %v3347 = vpop.f32.mrb[0].mxu0
    %v3348 = vadd.f32 %v3307, %v3347
    %v3349 = vpop.f32.mrb[0].mxu0
    %v3350 = vadd.f32 %v3309, %v3349
    %v3351 = vpop.f32.mrb[0].mxu0
    %v3352 = vpop.f32.mrb[0].mxu0
    %3353 = vdwg.mxu0
    %3354 = vmatprep.subr.bf16.mxu0 %v2396
    %3355 = vmatpush1.bf16.msra.mxu0 %v2395
    %3356 = vmatprep.subr.bf16.mxu0 %v2404
    %3357 = vmatpush1.bf16.msra.mxu0 %v2403
    %3358 = vmatprep.subr.bf16.mxu0 %v2412
    %3359 = vmatpush1.bf16.msra.mxu0 %v2411
    %3360 = vmatprep.subr.bf16.mxu0 %v2420
    %3361 = vmatpush1.bf16.msra.mxu0 %v2419
    %3362 = vmatprep.subr.bf16.mxu0 %v2428
    %3363 = vmatpush1.bf16.msra.mxu0 %v2427
    %3364 = vmatprep.subr.bf16.mxu0 %v2436
    %3365 = vmatpush1.bf16.msra.mxu0 %v2435
    %3366 = vmatprep.subr.bf16.mxu0 %v2444
    %3367 = vmatpush1.bf16.msra.mxu0 %v2443
    %3368 = vmatprep.subr.bf16.mxu0 %v2452
    %3369 = vmatpush1.bf16.msra.mxu0 %v2451
    %3370 = vmatprep.subr.bf16.mxu0 0
    %3371 = vmatpush1.bf16.msra.mxu0 0
    %3372 = vmatprep.subr.bf16.mxu0 0
    %3373 = vmatpush1.bf16.msra.mxu0 0
    %3374 = vmatprep.subr.bf16.mxu0 0
    %3375 = vmatpush1.bf16.msra.mxu0 0
    %3376 = vmatprep.subr.bf16.mxu0 0
    %3377 = vmatpush1.bf16.msra.mxu0 0
    %3378 = vmatprep.subr.bf16.mxu0 0
    %3379 = vmatpush1.bf16.msra.mxu0 0
    %3380 = vmatprep.subr.bf16.mxu0 0
    %3381 = vmatpush1.bf16.msra.mxu0 0
    %3382 = vmatprep.subr.bf16.mxu0 0
    %3383 = vmatpush1.bf16.msra.mxu0 0
    %3384 = vmatprep.subr.bf16.mxu0 0
    %3385 = vmatpush1.bf16.msra.mxu0 0
    %3386 = vmatprep.mubr.bf16.mxu0 0
    %3387 = vmatmul.mubr.bf16.gmra.mrb[0].mxu0 %v155
    %v3388 = vpop.f32.mrb[0].mxu0
    %v3389 = vadd.f32 %v3348, %v3388
    %v3390 = vpop.f32.mrb[0].mxu0
    %v3391 = vadd.f32 %v3350, %v3390
    %v3392 = vpop.f32.mrb[0].mxu0
    %v3393 = vpop.f32.mrb[0].mxu0
    %3394 = vdwg.mxu0
    %3395 = vmatprep.subr.bf16.mxu0 %v2014
    %3396 = vmatpush1.bf16.msra.mxu0 %v2013
    %3397 = vmatprep.subr.bf16.mxu0 %v2022
    %3398 = vmatpush1.bf16.msra.mxu0 %v2021
    %3399 = vmatprep.subr.bf16.mxu0 %v2030
    %3400 = vmatpush1.bf16.msra.mxu0 %v2029
    %3401 = vmatprep.subr.bf16.mxu0 %v2038
    %3402 = vmatpush1.bf16.msra.mxu0 %v2037
    %3403 = vmatprep.subr.bf16.mxu0 %v2046
    %3404 = vmatpush1.bf16.msra.mxu0 %v2045
    %3405 = vmatprep.subr.bf16.mxu0 %v2054
    %3406 = vmatpush1.bf16.msra.mxu0 %v2053
    %3407 = vmatprep.subr.bf16.mxu0 %v2062
    %3408 = vmatpush1.bf16.msra.mxu0 %v2061
    %3409 = vmatprep.subr.bf16.mxu0 %v2070
    %3410 = vmatpush1.bf16.msra.mxu0 %v2069
    %3411 = vmatprep.subr.bf16.mxu0 %v2078
    %3412 = vmatpush1.bf16.msra.mxu0 %v2077
    %3413 = vmatprep.subr.bf16.mxu0 %v2086
    %3414 = vmatpush1.bf16.msra.mxu0 %v2085
    %3415 = vmatprep.subr.bf16.mxu0 %v2094
    %3416 = vmatpush1.bf16.msra.mxu0 %v2093
    %3417 = vmatprep.subr.bf16.mxu0 %v2102
    %3418 = vmatpush1.bf16.msra.mxu0 %v2101
    %3419 = vmatprep.subr.bf16.mxu0 %v2110
    %3420 = vmatpush1.bf16.msra.mxu0 %v2109
    %3421 = vmatprep.subr.bf16.mxu0 %v2118
    %3422 = vmatpush1.bf16.msra.mxu0 %v2117
    %3423 = vmatprep.subr.bf16.mxu0 %v2126
    %3424 = vmatpush1.bf16.msra.mxu0 %v2125
    %3425 = vmatprep.subr.bf16.mxu0 %v2134
    %3426 = vmatpush1.bf16.msra.mxu0 %v2133
    %3427 = vmatprep.mubr.bf16.mxu0 %v150
    %3428 = vmatmul.mubr.bf16.gmra.mrb[0].mxu0 %v149
    %v3429 = vpop.f32.mrb[0].mxu0
    %v3430 = vadd.f32 %v650, %v3429
    %v3431 = vpop.f32.mrb[0].mxu0
    %v3432 = vadd.f32 %v654, %v3431
    %v3433 = vpop.f32.mrb[0].mxu0
    %v3434 = vpop.f32.mrb[0].mxu0
    %3435 = vdwg.mxu0
    %3436 = vmatprep.subr.bf16.mxu0 %v2142
    %3437 = vmatpush1.bf16.msra.mxu0 %v2141
    %3438 = vmatprep.subr.bf16.mxu0 %v2150
    %3439 = vmatpush1.bf16.msra.mxu0 %v2149
    %3440 = vmatprep.subr.bf16.mxu0 %v2158
    %3441 = vmatpush1.bf16.msra.mxu0 %v2157
    %3442 = vmatprep.subr.bf16.mxu0 %v2166
    %3443 = vmatpush1.bf16.msra.mxu0 %v2165
    %3444 = vmatprep.subr.bf16.mxu0 %v2174
    %3445 = vmatpush1.bf16.msra.mxu0 %v2173
    %3446 = vmatprep.subr.bf16.mxu0 %v2182
    %3447 = vmatpush1.bf16.msra.mxu0 %v2181
    %3448 = vmatprep.subr.bf16.mxu0 %v2190
    %3449 = vmatpush1.bf16.msra.mxu0 %v2189
    %3450 = vmatprep.subr.bf16.mxu0 %v2198
    %3451 = vmatpush1.bf16.msra.mxu0 %v2197
    %3452 = vmatprep.subr.bf16.mxu0 %v2206
    %3453 = vmatpush1.bf16.msra.mxu0 %v2205
    %3454 = vmatprep.subr.bf16.mxu0 %v2214
    %3455 = vmatpush1.bf16.msra.mxu0 %v2213
    %3456 = vmatprep.subr.bf16.mxu0 %v2222
    %3457 = vmatpush1.bf16.msra.mxu0 %v2221
    %3458 = vmatprep.subr.bf16.mxu0 %v2230
    %3459 = vmatpush1.bf16.msra.mxu0 %v2229
    %3460 = vmatprep.subr.bf16.mxu0 %v2238
    %3461 = vmatpush1.bf16.msra.mxu0 %v2237
    %3462 = vmatprep.subr.bf16.mxu0 %v2246
    %3463 = vmatpush1.bf16.msra.mxu0 %v2245
    %3464 = vmatprep.subr.bf16.mxu0 %v2254
    %3465 = vmatpush1.bf16.msra.mxu0 %v2253
    %3466 = vmatprep.subr.bf16.mxu0 %v2262
    %3467 = vmatpush1.bf16.msra.mxu0 %v2261
    %3468 = vmatprep.mubr.bf16.mxu0 %v152
    %3469 = vmatmul.mubr.bf16.gmra.mrb[0].mxu0 %v151
    %v3470 = vpop.f32.mrb[0].mxu0
    %v3471 = vadd.f32 %v3430, %v3470
    %v3472 = vpop.f32.mrb[0].mxu0
    %v3473 = vadd.f32 %v3432, %v3472
    %v3474 = vpop.f32.mrb[0].mxu0
    %v3475 = vpop.f32.mrb[0].mxu0
    %3476 = vdwg.mxu0
    %3477 = vmatprep.subr.bf16.mxu0 %v2270
    %3478 = vmatpush1.bf16.msra.mxu0 %v2269
    %3479 = vmatprep.subr.bf16.mxu0 %v2278
    %3480 = vmatpush1.bf16.msra.mxu0 %v2277
    %3481 = vmatprep.subr.bf16.mxu0 %v2286
    %3482 = vmatpush1.bf16.msra.mxu0 %v2285
    %3483 = vmatprep.subr.bf16.mxu0 %v2294
    %3484 = vmatpush1.bf16.msra.mxu0 %v2293
    %3485 = vmatprep.subr.bf16.mxu0 %v2302
    %3486 = vmatpush1.bf16.msra.mxu0 %v2301
    %3487 = vmatprep.subr.bf16.mxu0 %v2310
    %3488 = vmatpush1.bf16.msra.mxu0 %v2309
    %3489 = vmatprep.subr.bf16.mxu0 %v2318
    %3490 = vmatpush1.bf16.msra.mxu0 %v2317
    %3491 = vmatprep.subr.bf16.mxu0 %v2326
    %3492 = vmatpush1.bf16.msra.mxu0 %v2325
    %3493 = vmatprep.subr.bf16.mxu0 %v2334
    %3494 = vmatpush1.bf16.msra.mxu0 %v2333
    %3495 = vmatprep.subr.bf16.mxu0 %v2342
    %3496 = vmatpush1.bf16.msra.mxu0 %v2341
    %3497 = vmatprep.subr.bf16.mxu0 %v2350
    %3498 = vmatpush1.bf16.msra.mxu0 %v2349
    %3499 = vmatprep.subr.bf16.mxu0 %v2358
    %3500 = vmatpush1.bf16.msra.mxu0 %v2357
    %3501 = vmatprep.subr.bf16.mxu0 %v2366
    %3502 = vmatpush1.bf16.msra.mxu0 %v2365
    %3503 = vmatprep.subr.bf16.mxu0 %v2374
    %3504 = vmatpush1.bf16.msra.mxu0 %v2373
    %3505 = vmatprep.subr.bf16.mxu0 %v2382
    %3506 = vmatpush1.bf16.msra.mxu0 %v2381
    %3507 = vmatprep.subr.bf16.mxu0 %v2390
    %3508 = vmatpush1.bf16.msra.mxu0 %v2389
    %3509 = vmatprep.mubr.bf16.mxu0 %v154
    %3510 = vmatmul.mubr.bf16.gmra.mrb[0].mxu0 %v153
    %v3511 = vpop.f32.mrb[0].mxu0
    %v3512 = vadd.f32 %v3471, %v3511
    %v3513 = vpop.f32.mrb[0].mxu0
    %v3514 = vadd.f32 %v3473, %v3513
    %v3515 = vpop.f32.mrb[0].mxu0
    %v3516 = vpop.f32.mrb[0].mxu0
    %3517 = vdwg.mxu0
    %3518 = vmatprep.subr.bf16.mxu0 %v2398
    %3519 = vmatpush1.bf16.msra.mxu0 %v2397
    %3520 = vmatprep.subr.bf16.mxu0 %v2406
    %3521 = vmatpush1.bf16.msra.mxu0 %v2405
    %3522 = vmatprep.subr.bf16.mxu0 %v2414
    %3523 = vmatpush1.bf16.msra.mxu0 %v2413
    %3524 = vmatprep.subr.bf16.mxu0 %v2422
    %3525 = vmatpush1.bf16.msra.mxu0 %v2421
    %3526 = vmatprep.subr.bf16.mxu0 %v2430
    %3527 = vmatpush1.bf16.msra.mxu0 %v2429
    %3528 = vmatprep.subr.bf16.mxu0 %v2438
    %3529 = vmatpush1.bf16.msra.mxu0 %v2437
    %3530 = vmatprep.subr.bf16.mxu0 %v2446
    %3531 = vmatpush1.bf16.msra.mxu0 %v2445
    %3532 = vmatprep.subr.bf16.mxu0 %v2454
    %3533 = vmatpush1.bf16.msra.mxu0 %v2453
    %3534 = vmatprep.subr.bf16.mxu0 0
    %3535 = vmatpush1.bf16.msra.mxu0 0
    %3536 = vmatprep.subr.bf16.mxu0 0
    %3537 = vmatpush1.bf16.msra.mxu0 0
    %3538 = vmatprep.subr.bf16.mxu0 0
    %3539 = vmatpush1.bf16.msra.mxu0 0
    %3540 = vmatprep.subr.bf16.mxu0 0
    %3541 = vmatpush1.bf16.msra.mxu0 0
    %3542 = vmatprep.subr.bf16.mxu0 0
    %3543 = vmatpush1.bf16.msra.mxu0 0
    %3544 = vmatprep.subr.bf16.mxu0 0
    %3545 = vmatpush1.bf16.msra.mxu0 0
    %3546 = vmatprep.subr.bf16.mxu0 0
    %3547 = vmatpush1.bf16.msra.mxu0 0
    %3548 = vmatprep.subr.bf16.mxu0 0
    %3549 = vmatpush1.bf16.msra.mxu0 0
    %3550 = vmatprep.mubr.bf16.mxu0 0
    %3551 = vmatmul.mubr.bf16.gmra.mrb[0].mxu0 %v155
    %v3552 = vpop.f32.mrb[0].mxu0
    %v3553 = vadd.f32 %v3512, %v3552
    %v3554 = vpop.f32.mrb[0].mxu0
    %v3555 = vadd.f32 %v3514, %v3554
    %v3556 = vpop.f32.mrb[0].mxu0
    %v3557 = vpop.f32.mrb[0].mxu0
    %3558 = vdwg.mxu0
    %vm3559 = vcmask 1041408
    %v3560 = vsel %vm3559, %v3061, 0.0
    %v3561 = vsel %vm3559, %v3063, 0.0
    %v3562 = vadd.f32 %v3560, %v3561
    %v3563 = vsel %vm3559, %v3225, 0.0
    %v3564 = vadd.f32 %v3562, %v3563
    %v3565 = vsel %vm3559, %v3227, 0.0
    %v3566 = vadd.f32 %v3564, %v3565
    %v3567 = vsel %vm3559, %v3389, 0.0
    %v3568 = vadd.f32 %v3566, %v3567
    %v3569 = vsel %vm3559, %v3391, 0.0
    %v3570 = vadd.f32 %v3568, %v3569
    %v3571 = vsel %vm3559, %v3553, 0.0
    %v3572 = vadd.f32 %v3570, %v3571
    %v3573 = vsel %vm3559, %v3555, 0.0
    %v3574 = vadd.f32 %v3572, %v3573
    %3575 = vadd.xlane.f32.xlu0 %v3574
    %v3576 = vpop.xlane.xlu0 %3575
    %v3577 = vrot.slane %v3576, 4
    %v3578 = vadd.f32 %v3576, %v3577
    %v3579 = vrot.slane %v3578, 2
    %v3580 = vadd.f32 %v3578, %v3579
    %v3581 = vrot.slane %v3580, 1
    %v3582 = vadd.f32 %v3580, %v3581
    %s3583 = vtos %v3582
    %s3584 = smul.f32 %s3583, 0.0005
    %v3585 = vstv %s3584
    %v3586 = vsub.f32 %v3061, %v3585
    %v3587 = vsub.f32 %v3063, %v3585
    %v3588 = vsub.f32 %v3225, %v3585
    %v3589 = vsub.f32 %v3227, %v3585
    %v3590 = vsub.f32 %v3389, %v3585
    %v3591 = vsub.f32 %v3391, %v3585
    %v3592 = vsub.f32 %v3553, %v3585
    %v3593 = vsub.f32 %v3555, %v3585
    %v3594 = vsel %vm165, %v3586, 0.0
    %v3595 = vsel %vm166, %v3587, 0.0
    %v3596 = vsel %vm167, %v3588, 0.0
    %v3597 = vsel %vm168, %v3589, 0.0
    %v3598 = vsel %vm169, %v3590, 0.0
    %v3599 = vsel %vm170, %v3591, 0.0
    %v3600 = vsel %vm171, %v3592, 0.0
    %v3601 = vsel %vm172, %v3593, 0.0
    %v3602 = vmul.f32 %v3594, %v3594
    %v3603 = vmul.f32 %v3595, %v3595
    %v3604 = vmul.f32 %v3596, %v3596
    %v3605 = vmul.f32 %v3597, %v3597
    %v3606 = vmul.f32 %v3598, %v3598
    %v3607 = vmul.f32 %v3599, %v3599
    %v3608 = vmul.f32 %v3600, %v3600
    %v3609 = vmul.f32 %v3601, %v3601
    %v3610 = vsel %vm3559, %v3602, 0.0
    %v3611 = vsel %vm3559, %v3603, 0.0
    %v3612 = vadd.f32 %v3610, %v3611
    %v3613 = vsel %vm3559, %v3604, 0.0
    %v3614 = vadd.f32 %v3612, %v3613
    %v3615 = vsel %vm3559, %v3605, 0.0
    %v3616 = vadd.f32 %v3614, %v3615
    %v3617 = vsel %vm3559, %v3606, 0.0
    %v3618 = vadd.f32 %v3616, %v3617
    %v3619 = vsel %vm3559, %v3607, 0.0
    %v3620 = vadd.f32 %v3618, %v3619
    %v3621 = vsel %vm3559, %v3608, 0.0
    %v3622 = vadd.f32 %v3620, %v3621
    %v3623 = vsel %vm3559, %v3609, 0.0
    %v3624 = vadd.f32 %v3622, %v3623
    %3625 = vadd.xlane.f32.xlu0 %v3624
    %v3626 = vpop.xlane.xlu0 %3625
    %v3627 = vrot.slane %v3626, 4
    %v3628 = vadd.f32 %v3626, %v3627
    %v3629 = vrot.slane %v3628, 2
    %v3630 = vadd.f32 %v3628, %v3629
    %v3631 = vrot.slane %v3630, 1
    %v3632 = vadd.f32 %v3630, %v3631
    %s3633 = vtos %v3632
    %s3634 = smul.f32 %s3633, 0.00050025014
    %v3635 = vstv %s3634
    %v3636 = vrsqrt.pop %v3635
    %v3637 = vmul.f32 %v3635, %v3636
    %vm3638 = vcmp.eq.f32.partialorder %v3635, inf
    %v3639 = vsel %vm3638, %v3635, %v3637
    %vm3640 = vcmp.eq.f32.partialorder %v3635, 0.0
    %v3641 = vand.u32 %v3635, 2147483648
    %v3642 = vsel %vm3640, %v3641, %v3639
    %s3643 = vtos %v3642
    %v3644 = vstv %s3643
    %v3645 = vlog2.pop %v3644
    %v3646 = vmul.f32 %v3645, 0.6931472
    %s3647 = vtos %v3646
    %v3648 = vstv %s3634
    %v3649 = vrcp.pop %v3648
    %s3650 = vtos %v3649
    %s3651 = smul.f32 0.5, %s3650
    %v3652 = vsub.f32 0.0, %v3602
    %v3653 = vsub.f32 0.0, %v3603
    %v3654 = vsub.f32 0.0, %v3604
    %v3655 = vsub.f32 0.0, %v3605
    %v3656 = vsub.f32 0.0, %v3606
    %v3657 = vsub.f32 0.0, %v3607
    %v3658 = vsub.f32 0.0, %v3608
    %v3659 = vsub.f32 0.0, %v3609
    %v3660 = vstv %s3651
    %v3661 = vmul.f32 %v3652, %v3660
    %v3662 = vmul.f32 %v3653, %v3660
    %v3663 = vmul.f32 %v3654, %v3660
    %v3664 = vmul.f32 %v3655, %v3660
    %v3665 = vmul.f32 %v3656, %v3660
    %v3666 = vmul.f32 %v3657, %v3660
    %v3667 = vmul.f32 %v3658, %v3660
    %v3668 = vmul.f32 %v3659, %v3660
    %v3669 = vstv %s3647
    %v3670 = vsub.f32 %v3661, %v3669
    %v3671 = vsub.f32 %v3662, %v3669
    %v3672 = vsub.f32 %v3663, %v3669
    %v3673 = vsub.f32 %v3664, %v3669
    %v3674 = vsub.f32 %v3665, %v3669
    %v3675 = vsub.f32 %v3666, %v3669
    %v3676 = vsub.f32 %v3667, %v3669
    %v3677 = vsub.f32 %v3668, %v3669
    %v3678 = vsub.f32 %v3670, 0.9189385
    %v3679 = vsub.f32 %v3671, 0.9189385
    %v3680 = vsub.f32 %v3672, 0.9189385
    %v3681 = vsub.f32 %v3673, 0.9189385
    %v3682 = vsub.f32 %v3674, 0.9189385
    %v3683 = vsub.f32 %v3675, 0.9189385
    %v3684 = vsub.f32 %v3676, 0.9189385
    %v3685 = vsub.f32 %v3677, 0.9189385
    %v3686 = vsel %vm165, %v3678, -inf
    %v3687 = vsel %vm166, %v3679, -inf
    %v3688 = vsel %vm167, %v3680, -inf
    %v3689 = vsel %vm168, %v3681, -inf
    %v3690 = vsel %vm169, %v3682, -inf
    %v3691 = vsel %vm170, %v3683, -inf
    %v3692 = vsel %vm171, %v3684, -inf
    %v3693 = vsel %vm172, %v3685, -inf
    %v3694 = vsel %vm3559, %v3686, -inf
    %v3695 = vsel %vm3559, %v3687, -inf
    %v3696 = vsel %vm3559, %v3688, -inf
    %v3697 = vsel %vm3559, %v3689, -inf
    %v3698 = vsel %vm3559, %v3690, -inf
    %v3699 = vmax.f32 %v3694, %v3698
    %v3700 = vsel %vm3559, %v3691, -inf
    %v3701 = vmax.f32 %v3695, %v3700
    %v3702 = vsel %vm3559, %v3692, -inf
    %v3703 = vmax.f32 %v3696, %v3702
    %v3704 = vsel %vm3559, %v3693, -inf
    %v3705 = vmax.f32 %v3697, %v3704
    %v3706 = vmax.f32 %v3699, %v3701
    %v3707 = vmax.f32 %v3703, %v3705
    %v3708 = vmax.f32 %v3706, %v3707
    %3709 = vmax.xlane.f32.xlu0 %v3708
    %v3710 = vpop.xlane.xlu0 %3709
    %v3711 = vrot.slane %v3710, 4
    %v3712 = vmax.f32 %v3710, %v3711
    %v3713 = vrot.slane %v3712, 2
    %v3714 = vmax.f32 %v3712, %v3713
    %v3715 = vrot.slane %v3714, 1
    %v3716 = vmax.f32 %v3714, %v3715
    %s3717 = vtos %v3716
    %v3718 = vstv %s3717
    %v3719 = vsub.f32 %v3686, %v3718
    %v3720 = vsub.f32 %v3687, %v3718
    %v3721 = vsub.f32 %v3688, %v3718
    %v3722 = vsub.f32 %v3689, %v3718
    %v3723 = vsub.f32 %v3690, %v3718
    %v3724 = vsub.f32 %v3691, %v3718
    %v3725 = vsub.f32 %v3692, %v3718
    %v3726 = vsub.f32 %v3693, %v3718
    %v3727 = vmul.f32 %v3719, 1.442695
    %v3728 = vpow.pop %v3727
    %v3729 = vmul.f32 %v3720, 1.442695
    %v3730 = vpow.pop %v3729
    %v3731 = vmul.f32 %v3721, 1.442695
    %v3732 = vpow.pop %v3731
    %v3733 = vmul.f32 %v3722, 1.442695
    %v3734 = vpow.pop %v3733
    %v3735 = vmul.f32 %v3723, 1.442695
    %v3736 = vpow.pop %v3735
    %v3737 = vmul.f32 %v3724, 1.442695
    %v3738 = vpow.pop %v3737
    %v3739 = vmul.f32 %v3725, 1.442695
    %v3740 = vpow.pop %v3739
    %v3741 = vmul.f32 %v3726, 1.442695
    %v3742 = vpow.pop %v3741
    %v3743 = vsel %vm3559, %v3728, 0.0
    %v3744 = vsel %vm3559, %v3730, 0.0
    %v3745 = vadd.f32 %v3743, %v3744
    %v3746 = vsel %vm3559, %v3732, 0.0
    %v3747 = vadd.f32 %v3745, %v3746
    %v3748 = vsel %vm3559, %v3734, 0.0
    %v3749 = vadd.f32 %v3747, %v3748
    %v3750 = vsel %vm3559, %v3736, 0.0
    %v3751 = vadd.f32 %v3749, %v3750
    %v3752 = vsel %vm3559, %v3738, 0.0
    %v3753 = vadd.f32 %v3751, %v3752
    %v3754 = vsel %vm3559, %v3740, 0.0
    %v3755 = vadd.f32 %v3753, %v3754
    %v3756 = vsel %vm3559, %v3742, 0.0
    %v3757 = vadd.f32 %v3755, %v3756
    %3758 = vadd.xlane.f32.xlu0 %v3757
    %v3759 = vpop.xlane.xlu0 %3758
    %v3760 = vrot.slane %v3759, 4
    %v3761 = vadd.f32 %v3759, %v3760
    %v3762 = vrot.slane %v3761, 2
    %v3763 = vadd.f32 %v3761, %v3762
    %v3764 = vrot.slane %v3763, 1
    %v3765 = vadd.f32 %v3763, %v3764
    %s3766 = vtos %v3765
    %v3767 = vstv %s3766
    %v3768 = vlog2.pop %v3767
    %v3769 = vmul.f32 %v3768, 0.6931472
    %s3770 = vtos %v3769
    %s3771 = sadd.f32 %s3717, %s3770
    %s3772 = smax.f32 %s3771, 0.0
    %s3773 = ssub.f32 0.0, %s3772
    %v3774 = vstv %s3773
    %v3775 = vmul.f32 %v3774, 1.442695
    %v3776 = vpow.pop %v3775
    %s3777 = vtos %v3776
    %s3778 = ssub.f32 %s3771, %s3772
    %v3779 = vstv %s3778
    %v3780 = vmul.f32 %v3779, 1.442695
    %v3781 = vpow.pop %v3780
    %s3782 = vtos %v3781
    %s3783 = sadd.f32 %s3777, %s3782
    %v3784 = vstv %s3783
    %v3785 = vlog2.pop %v3784
    %v3786 = vmul.f32 %v3785, 0.6931472
    %s3787 = vtos %v3786
    %s3788 = sadd.f32 %s3772, %s3787
    %s3789 = ssub.f32 %s3788, %s3771
    %s3790 = scalar_lea.smem [#allocation15], 0
    %3791 = sst [smem:[%s3790]] %s3584
    %s3792 = scalar_lea.smem [#allocation15], 1
    %3793 = sst [smem:[%s3792]] %s3643
    %s3794 = scalar_lea.smem [#allocation15], 2
    %3795 = sst [smem:[%s3794]] %s3788
    %v3796 = vstv %s3789
    %v3797 = vmul.f32 %v3796, %v3061
    %v3798 = vmul.f32 %v3796, %v3063
    %v3799 = vmul.f32 %v3796, %v3225
    %v3800 = vmul.f32 %v3796, %v3227
    %v3801 = vmul.f32 %v3796, %v3389
    %v3802 = vmul.f32 %v3796, %v3391
    %v3803 = vmul.f32 %v3796, %v3553
    %v3804 = vmul.f32 %v3796, %v3555
    %v3805 = vmax.f32 %v3797, 0.0
    %v3806 = vmax.f32 %v3798, 0.0
    %v3807 = vmax.f32 %v3799, 0.0
    %v3808 = vmax.f32 %v3800, 0.0
    %v3809 = vmax.f32 %v3801, 0.0
    %v3810 = vmax.f32 %v3802, 0.0
    %v3811 = vmax.f32 %v3803, 0.0
    %v3812 = vmax.f32 %v3804, 0.0
    %v3813 = vpack.c.bf16 %v3805, %v3805
    %v3814 = vpack.c.bf16 %v3806, %v3806
    %v3815 = vpack.c.bf16 %v3807, %v3807
    %v3816 = vpack.c.bf16 %v3808, %v3808
    %v3817 = vpack.c.bf16 %v3809, %v3809
    %v3818 = vpack.c.bf16 %v3810, %v3810
    %v3819 = vpack.c.bf16 %v3811, %v3811
    %v3820 = vpack.c.bf16 %v3812, %v3812
    %v3821 = vld [vmem:[#allocation9] sm:$0xff]
    %v3822 = vld [vmem:[#allocation9 + $0x8] sm:$0xff]
    %v3823 = vld [vmem:[#allocation9 + $0x10] sm:$0xff]
    %v3824 = vld [vmem:[#allocation9 + $0x18] sm:$0xff]
    %v3825 = vld [vmem:[#allocation9 + $0x20] sm:$0xff]
    %v3826 = vld [vmem:[#allocation9 + $0x28] sm:$0xff]
    %v3827 = vld [vmem:[#allocation9 + $0x30] sm:$0xff]
    %v3828 = vld [vmem:[#allocation9 + $0x38] sm:$0xff]
    %v3829 = vld [vmem:[#allocation9 + $0x40] sm:$0xff]
    %v3830 = vld [vmem:[#allocation9 + $0x48] sm:$0xff]
    %v3831 = vld [vmem:[#allocation9 + $0x50] sm:$0xff]
    %v3832 = vld [vmem:[#allocation9 + $0x58] sm:$0xff]
    %v3833 = vld [vmem:[#allocation9 + $0x60] sm:$0xff]
    %v3834 = vld [vmem:[#allocation9 + $0x68] sm:$0xff]
    %v3835 = vld [vmem:[#allocation9 + $0x70] sm:$0xff]
    %v3836 = vld [vmem:[#allocation9 + $0x78] sm:$0xff]
    %v3837 = vld [vmem:[#allocation9 + $0x80] sm:$0xff]
    %v3838 = vld [vmem:[#allocation9 + $0x88] sm:$0xff]
    %v3839 = vld [vmem:[#allocation9 + $0x90] sm:$0xff]
    %v3840 = vld [vmem:[#allocation9 + $0x98] sm:$0xff]
    %v3841 = vld [vmem:[#allocation9 + $0xa0] sm:$0xff]
    %v3842 = vld [vmem:[#allocation9 + $0xa8] sm:$0xff]
    %v3843 = vld [vmem:[#allocation9 + $0xb0] sm:$0xff]
    %v3844 = vld [vmem:[#allocation9 + $0xb8] sm:$0xff]
    %v3845 = vld [vmem:[#allocation9 + $0xc0] sm:$0xff]
    %v3846 = vld [vmem:[#allocation9 + $0xc8] sm:$0xff]
    %v3847 = vld [vmem:[#allocation9 + $0xd0] sm:$0xff]
    %v3848 = vld [vmem:[#allocation9 + $0xd8] sm:$0xff]
    %v3849 = vld [vmem:[#allocation9 + $0xe0] sm:$0xff]
    %v3850 = vld [vmem:[#allocation9 + $0xe8] sm:$0xff]
    %v3851 = vld [vmem:[#allocation9 + $0xf0] sm:$0xff]
    %v3852 = vld [vmem:[#allocation9 + $0xf8] sm:$0xff]
    %v3853 = vld [vmem:[#allocation9 + $0x100] sm:$0xff]
    %v3854 = vld [vmem:[#allocation9 + $0x108] sm:$0xff]
    %v3855 = vld [vmem:[#allocation9 + $0x110] sm:$0xff]
    %v3856 = vld [vmem:[#allocation9 + $0x118] sm:$0xff]
    %v3857 = vld [vmem:[#allocation9 + $0x120] sm:$0xff]
    %v3858 = vld [vmem:[#allocation9 + $0x128] sm:$0xff]
    %v3859 = vld [vmem:[#allocation9 + $0x130] sm:$0xff]
    %v3860 = vld [vmem:[#allocation9 + $0x138] sm:$0xff]
    %v3861 = vld [vmem:[#allocation9 + $0x140] sm:$0xff]
    %v3862 = vld [vmem:[#allocation9 + $0x148] sm:$0xff]
    %v3863 = vld [vmem:[#allocation9 + $0x150] sm:$0xff]
    %v3864 = vld [vmem:[#allocation9 + $0x158] sm:$0xff]
    %v3865 = vld [vmem:[#allocation9 + $0x160] sm:$0xff]
    %v3866 = vld [vmem:[#allocation9 + $0x168] sm:$0xff]
    %v3867 = vld [vmem:[#allocation9 + $0x170] sm:$0xff]
    %v3868 = vld [vmem:[#allocation9 + $0x178] sm:$0xff]
    %v3869 = vld [vmem:[#allocation9 + $0x180] sm:$0xff]
    %v3870 = vld [vmem:[#allocation9 + $0x188] sm:$0xff]
    %v3871 = vld [vmem:[#allocation9 + $0x190] sm:$0xff]
    %v3872 = vld [vmem:[#allocation9 + $0x198] sm:$0xff]
    %v3873 = vld [vmem:[#allocation9 + $0x1a0] sm:$0xff]
    %v3874 = vld [vmem:[#allocation9 + $0x1a8] sm:$0xff]
    %v3875 = vld [vmem:[#allocation9 + $0x1b0] sm:$0xff]
    %v3876 = vld [vmem:[#allocation9 + $0x1b8] sm:$0xff]
    %v3877 = vld [vmem:[#allocation9 + $0x1c0] sm:$0xff]
    %v3878 = vld [vmem:[#allocation9 + $0x1c8] sm:$0xff]
    %v3879 = vld [vmem:[#allocation9 + $0x1d0] sm:$0xff]
    %v3880 = vld [vmem:[#allocation9 + $0x1d8] sm:$0xff]
    %v3881 = vld [vmem:[#allocation9 + $0x1e0] sm:$0xff]
    %v3882 = vld [vmem:[#allocation9 + $0x1e8] sm:$0xff]
    %v3883 = vld [vmem:[#allocation9 + $0x1f0] sm:$0xff]
    %v3884 = vld [vmem:[#allocation9 + $0x1f8] sm:$0xff]
    %v3885 = vld [vmem:[#allocation9 + $0x200] sm:$0xff]
    %v3886 = vld [vmem:[#allocation9 + $0x208] sm:$0xff]
    %v3887 = vld [vmem:[#allocation9 + $0x210] sm:$0xff]
    %v3888 = vld [vmem:[#allocation9 + $0x218] sm:$0xff]
    %v3889 = vld [vmem:[#allocation9 + $0x220] sm:$0xff]
    %v3890 = vld [vmem:[#allocation9 + $0x228] sm:$0xff]
    %v3891 = vld [vmem:[#allocation9 + $0x230] sm:$0xff]
    %v3892 = vld [vmem:[#allocation9 + $0x238] sm:$0xff]
    %v3893 = vld [vmem:[#allocation9 + $0x240] sm:$0xff]
    %v3894 = vld [vmem:[#allocation9 + $0x248] sm:$0xff]
    %v3895 = vld [vmem:[#allocation9 + $0x250] sm:$0xff]
    %v3896 = vld [vmem:[#allocation9 + $0x258] sm:$0xff]
    %v3897 = vld [vmem:[#allocation9 + $0x260] sm:$0xff]
    %v3898 = vld [vmem:[#allocation9 + $0x268] sm:$0xff]
    %v3899 = vld [vmem:[#allocation9 + $0x270] sm:$0xff]
    %v3900 = vld [vmem:[#allocation9 + $0x278] sm:$0xff]
    %v3901 = vld [vmem:[#allocation9 + $0x280] sm:$0xff]
    %v3902 = vld [vmem:[#allocation9 + $0x288] sm:$0xff]
    %v3903 = vld [vmem:[#allocation9 + $0x290] sm:$0xff]
    %v3904 = vld [vmem:[#allocation9 + $0x298] sm:$0xff]
    %v3905 = vld [vmem:[#allocation9 + $0x2a0] sm:$0xff]
    %v3906 = vld [vmem:[#allocation9 + $0x2a8] sm:$0xff]
    %v3907 = vld [vmem:[#allocation9 + $0x2b0] sm:$0xff]
    %v3908 = vld [vmem:[#allocation9 + $0x2b8] sm:$0xff]
    %v3909 = vld [vmem:[#allocation9 + $0x2c0] sm:$0xff]
    %v3910 = vld [vmem:[#allocation9 + $0x2c8] sm:$0xff]
    %v3911 = vld [vmem:[#allocation9 + $0x2d0] sm:$0xff]
    %v3912 = vld [vmem:[#allocation9 + $0x2d8] sm:$0xff]
    %v3913 = vld [vmem:[#allocation9 + $0x2e0] sm:$0xff]
    %v3914 = vld [vmem:[#allocation9 + $0x2e8] sm:$0xff]
    %v3915 = vld [vmem:[#allocation9 + $0x2f0] sm:$0xff]
    %v3916 = vld [vmem:[#allocation9 + $0x2f8] sm:$0xff]
    %v3917 = vld [vmem:[#allocation9 + $0x300] sm:$0xff]
    %v3918 = vld [vmem:[#allocation9 + $0x308] sm:$0xff]
    %v3919 = vld [vmem:[#allocation9 + $0x310] sm:$0xff]
    %v3920 = vld [vmem:[#allocation9 + $0x318] sm:$0xff]
    %v3921 = vld [vmem:[#allocation9 + $0x320] sm:$0xff]
    %v3922 = vld [vmem:[#allocation9 + $0x328] sm:$0xff]
    %v3923 = vld [vmem:[#allocation9 + $0x330] sm:$0xff]
    %v3924 = vld [vmem:[#allocation9 + $0x338] sm:$0xff]
    %v3925 = vld [vmem:[#allocation9 + $0x340] sm:$0xff]
    %v3926 = vld [vmem:[#allocation9 + $0x348] sm:$0xff]
    %v3927 = vld [vmem:[#allocation9 + $0x350] sm:$0xff]
    %v3928 = vld [vmem:[#allocation9 + $0x358] sm:$0xff]
    %v3929 = vld [vmem:[#allocation9 + $0x360] sm:$0xff]
    %v3930 = vld [vmem:[#allocation9 + $0x368] sm:$0xff]
    %v3931 = vld [vmem:[#allocation9 + $0x370] sm:$0xff]
    %v3932 = vld [vmem:[#allocation9 + $0x378] sm:$0xff]
    %v3933 = vld [vmem:[#allocation9 + $0x380] sm:$0xff]
    %v3934 = vld [vmem:[#allocation9 + $0x388] sm:$0xff]
    %v3935 = vld [vmem:[#allocation9 + $0x390] sm:$0xff]
    %v3936 = vld [vmem:[#allocation9 + $0x398] sm:$0xff]
    %v3937 = vld [vmem:[#allocation9 + $0x3a0] sm:$0xff]
    %v3938 = vld [vmem:[#allocation9 + $0x3a8] sm:$0xff]
    %v3939 = vld [vmem:[#allocation9 + $0x3b0] sm:$0xff]
    %v3940 = vld [vmem:[#allocation9 + $0x3b8] sm:$0xff]
    %v3941 = vld [vmem:[#allocation9 + $0x3c0] sm:$0xff]
    %v3942 = vld [vmem:[#allocation9 + $0x3c8] sm:$0xff]
    %v3943 = vld [vmem:[#allocation9 + $0x3d0] sm:$0xff]
    %v3944 = vld [vmem:[#allocation9 + $0x3d8] sm:$0xff]
    %v3945 = vld [vmem:[#allocation9 + $0x3e0] sm:$0xff]
    %v3946 = vld [vmem:[#allocation9 + $0x3e8] sm:$0xff]
    %v3947 = vld [vmem:[#allocation9 + $0x3f0] sm:$0xff]
    %v3948 = vld [vmem:[#allocation9 + $0x3f8] sm:$0xff]
    %v3949 = vld [vmem:[#allocation9 + $0x400] sm:$0xff]
    %v3950 = vld [vmem:[#allocation9 + $0x408] sm:$0xff]
    %v3951 = vld [vmem:[#allocation9 + $0x410] sm:$0xff]
    %v3952 = vld [vmem:[#allocation9 + $0x418] sm:$0xff]
    %v3953 = vld [vmem:[#allocation9 + $0x420] sm:$0xff]
    %v3954 = vld [vmem:[#allocation9 + $0x428] sm:$0xff]
    %v3955 = vld [vmem:[#allocation9 + $0x430] sm:$0xff]
    %v3956 = vld [vmem:[#allocation9 + $0x438] sm:$0xff]
    %v3957 = vld [vmem:[#allocation9 + $0x440] sm:$0xff]
    %v3958 = vld [vmem:[#allocation9 + $0x448] sm:$0xff]
    %v3959 = vld [vmem:[#allocation9 + $0x450] sm:$0xff]
    %v3960 = vld [vmem:[#allocation9 + $0x458] sm:$0xff]
    %v3961 = vld [vmem:[#allocation9 + $0x460] sm:$0xff]
    %v3962 = vld [vmem:[#allocation9 + $0x468] sm:$0xff]
    %v3963 = vld [vmem:[#allocation9 + $0x470] sm:$0xff]
    %v3964 = vld [vmem:[#allocation9 + $0x478] sm:$0xff]
    %v3965 = vld [vmem:[#allocation9 + $0x480] sm:$0xff]
    %v3966 = vld [vmem:[#allocation9 + $0x488] sm:$0xff]
    %v3967 = vld [vmem:[#allocation9 + $0x490] sm:$0xff]
    %v3968 = vld [vmem:[#allocation9 + $0x498] sm:$0xff]
    %v3969 = vld [vmem:[#allocation9 + $0x4a0] sm:$0xff]
    %v3970 = vld [vmem:[#allocation9 + $0x4a8] sm:$0xff]
    %v3971 = vld [vmem:[#allocation9 + $0x4b0] sm:$0xff]
    %v3972 = vld [vmem:[#allocation9 + $0x4b8] sm:$0xff]
    %v3973 = vld [vmem:[#allocation9 + $0x4c0] sm:$0xff]
    %v3974 = vld [vmem:[#allocation9 + $0x4c8] sm:$0xff]
    %v3975 = vld [vmem:[#allocation9 + $0x4d0] sm:$0xff]
    %v3976 = vld [vmem:[#allocation9 + $0x4d8] sm:$0xff]
    %v3977 = vld [vmem:[#allocation9 + $0x4e0] sm:$0xff]
    %v3978 = vld [vmem:[#allocation9 + $0x4e8] sm:$0xff]
    %v3979 = vld [vmem:[#allocation9 + $0x4f0] sm:$0xff]
    %v3980 = vld [vmem:[#allocation9 + $0x4f8] sm:$0xff]
    %v3981 = vld [vmem:[#allocation9 + $0x500] sm:$0xff]
    %v3982 = vld [vmem:[#allocation9 + $0x508] sm:$0xff]
    %v3983 = vld [vmem:[#allocation9 + $0x510] sm:$0xff]
    %v3984 = vld [vmem:[#allocation9 + $0x518] sm:$0xff]
    %v3985 = vld [vmem:[#allocation9 + $0x520] sm:$0xff]
    %v3986 = vld [vmem:[#allocation9 + $0x528] sm:$0xff]
    %v3987 = vld [vmem:[#allocation9 + $0x530] sm:$0xff]
    %v3988 = vld [vmem:[#allocation9 + $0x538] sm:$0xff]
    %v3989 = vld [vmem:[#allocation9 + $0x540] sm:$0xff]
    %v3990 = vld [vmem:[#allocation9 + $0x548] sm:$0xff]
    %v3991 = vld [vmem:[#allocation9 + $0x550] sm:$0xff]
    %v3992 = vld [vmem:[#allocation9 + $0x558] sm:$0xff]
    %v3993 = vld [vmem:[#allocation9 + $0x560] sm:$0xff]
    %v3994 = vld [vmem:[#allocation9 + $0x568] sm:$0xff]
    %v3995 = vld [vmem:[#allocation9 + $0x570] sm:$0xff]
    %v3996 = vld [vmem:[#allocation9 + $0x578] sm:$0xff]
    %v3997 = vld [vmem:[#allocation9 + $0x580] sm:$0xff]
    %v3998 = vld [vmem:[#allocation9 + $0x588] sm:$0xff]
    %v3999 = vld [vmem:[#allocation9 + $0x590] sm:$0xff]
    %v4000 = vld [vmem:[#allocation9 + $0x598] sm:$0xff]
    %v4001 = vld [vmem:[#allocation9 + $0x5a0] sm:$0xff]
    %v4002 = vld [vmem:[#allocation9 + $0x5a8] sm:$0xff]
    %v4003 = vld [vmem:[#allocation9 + $0x5b0] sm:$0xff]
    %v4004 = vld [vmem:[#allocation9 + $0x5b8] sm:$0xff]
    %v4005 = vld [vmem:[#allocation9 + $0x5c0] sm:$0xff]
    %v4006 = vld [vmem:[#allocation9 + $0x5c8] sm:$0xff]
    %v4007 = vld [vmem:[#allocation9 + $0x5d0] sm:$0xff]
    %v4008 = vld [vmem:[#allocation9 + $0x5d8] sm:$0xff]
    %v4009 = vld [vmem:[#allocation9 + $0x5e0] sm:$0xff]
    %v4010 = vld [vmem:[#allocation9 + $0x5e8] sm:$0xff]
    %v4011 = vld [vmem:[#allocation9 + $0x5f0] sm:$0xff]
    %v4012 = vld [vmem:[#allocation9 + $0x5f8] sm:$0xff]
    %v4013 = vld [vmem:[#allocation9 + $0x600] sm:$0xff]
    %v4014 = vld [vmem:[#allocation9 + $0x608] sm:$0xff]
    %v4015 = vld [vmem:[#allocation9 + $0x610] sm:$0xff]
    %v4016 = vld [vmem:[#allocation9 + $0x618] sm:$0xff]
    %v4017 = vld [vmem:[#allocation9 + $0x620] sm:$0xff]
    %v4018 = vld [vmem:[#allocation9 + $0x628] sm:$0xff]
    %v4019 = vld [vmem:[#allocation9 + $0x630] sm:$0xff]
    %v4020 = vld [vmem:[#allocation9 + $0x638] sm:$0xff]
    %v4021 = vld [vmem:[#allocation9 + $0x640] sm:$0xff]
    %v4022 = vld [vmem:[#allocation9 + $0x648] sm:$0xff]
    %v4023 = vld [vmem:[#allocation9 + $0x650] sm:$0xff]
    %v4024 = vld [vmem:[#allocation9 + $0x658] sm:$0xff]
    %v4025 = vld [vmem:[#allocation9 + $0x660] sm:$0xff]
    %v4026 = vld [vmem:[#allocation9 + $0x668] sm:$0xff]
    %v4027 = vld [vmem:[#allocation9 + $0x670] sm:$0xff]
    %v4028 = vld [vmem:[#allocation9 + $0x678] sm:$0xff]
    %v4029 = vld [vmem:[#allocation9 + $0x680] sm:$0xff]
    %v4030 = vld [vmem:[#allocation9 + $0x688] sm:$0xff]
    %v4031 = vld [vmem:[#allocation9 + $0x690] sm:$0xff]
    %v4032 = vld [vmem:[#allocation9 + $0x698] sm:$0xff]
    %v4033 = vld [vmem:[#allocation9 + $0x6a0] sm:$0xff]
    %v4034 = vld [vmem:[#allocation9 + $0x6a8] sm:$0xff]
    %v4035 = vld [vmem:[#allocation9 + $0x6b0] sm:$0xff]
    %v4036 = vld [vmem:[#allocation9 + $0x6b8] sm:$0xff]
    %v4037 = vld [vmem:[#allocation9 + $0x6c0] sm:$0xff]
    %v4038 = vld [vmem:[#allocation9 + $0x6c8] sm:$0xff]
    %v4039 = vld [vmem:[#allocation9 + $0x6d0] sm:$0xff]
    %v4040 = vld [vmem:[#allocation9 + $0x6d8] sm:$0xff]
    %v4041 = vld [vmem:[#allocation9 + $0x6e0] sm:$0xff]
    %v4042 = vld [vmem:[#allocation9 + $0x6e8] sm:$0xff]
    %v4043 = vld [vmem:[#allocation9 + $0x6f0] sm:$0xff]
    %v4044 = vld [vmem:[#allocation9 + $0x6f8] sm:$0xff]
    %v4045 = vld [vmem:[#allocation9 + $0x700] sm:$0xff]
    %v4046 = vld [vmem:[#allocation9 + $0x708] sm:$0xff]
    %v4047 = vld [vmem:[#allocation9 + $0x710] sm:$0xff]
    %v4048 = vld [vmem:[#allocation9 + $0x718] sm:$0xff]
    %v4049 = vld [vmem:[#allocation9 + $0x720] sm:$0xff]
    %v4050 = vld [vmem:[#allocation9 + $0x728] sm:$0xff]
    %v4051 = vld [vmem:[#allocation9 + $0x730] sm:$0xff]
    %v4052 = vld [vmem:[#allocation9 + $0x738] sm:$0xff]
    %v4053 = vld [vmem:[#allocation9 + $0x740] sm:$0xff]
    %v4054 = vld [vmem:[#allocation9 + $0x748] sm:$0xff]
    %v4055 = vld [vmem:[#allocation9 + $0x750] sm:$0xff]
    %v4056 = vld [vmem:[#allocation9 + $0x758] sm:$0xff]
    %v4057 = vld [vmem:[#allocation9 + $0x760] sm:$0xff]
    %v4058 = vld [vmem:[#allocation9 + $0x768] sm:$0xff]
    %v4059 = vld [vmem:[#allocation9 + $0x770] sm:$0xff]
    %v4060 = vld [vmem:[#allocation9 + $0x778] sm:$0xff]
    %v4061 = vld [vmem:[#allocation9 + $0x780] sm:$0xff]
    %v4062 = vld [vmem:[#allocation9 + $0x788] sm:$0xff]
    %v4063 = vld [vmem:[#allocation9 + $0x790] sm:$0xff]
    %v4064 = vld [vmem:[#allocation9 + $0x798] sm:$0xff]
    %v4065 = vld [vmem:[#allocation9 + $0x7a0] sm:$0xff]
    %v4066 = vld [vmem:[#allocation9 + $0x7a8] sm:$0xff]
    %v4067 = vld [vmem:[#allocation9 + $0x7b0] sm:$0xff]
    %v4068 = vld [vmem:[#allocation9 + $0x7b8] sm:$0xff]
    %v4069 = vld [vmem:[#allocation9 + $0x7c0] sm:$0xff]
    %v4070 = vld [vmem:[#allocation9 + $0x7c8] sm:$0xff]
    %v4071 = vld [vmem:[#allocation9 + $0x7d0] sm:$0xff]
    %v4072 = vld [vmem:[#allocation9 + $0x7d8] sm:$0xff]
    %v4073 = vld [vmem:[#allocation9 + $0x7e0] sm:$0xff]
    %v4074 = vld [vmem:[#allocation9 + $0x7e8] sm:$0xff]
    %v4075 = vld [vmem:[#allocation9 + $0x7f0] sm:$0xff]
    %v4076 = vld [vmem:[#allocation9 + $0x7f8] sm:$0xff]
    %v4077 = vld [vmem:[#allocation9 + $0x800] sm:$0xff]
    %v4078 = vld [vmem:[#allocation9 + $0x808] sm:$0xff]
    %v4079 = vld [vmem:[#allocation9 + $0x810] sm:$0xff]
    %v4080 = vld [vmem:[#allocation9 + $0x818] sm:$0xff]
    %v4081 = vld [vmem:[#allocation9 + $0x820] sm:$0xff]
    %v4082 = vld [vmem:[#allocation9 + $0x828] sm:$0xff]
    %v4083 = vld [vmem:[#allocation9 + $0x830] sm:$0xff]
    %v4084 = vld [vmem:[#allocation9 + $0x838] sm:$0xff]
    %v4085 = vld [vmem:[#allocation9 + $0x840] sm:$0xff]
    %v4086 = vld [vmem:[#allocation9 + $0x848] sm:$0xff]
    %v4087 = vld [vmem:[#allocation9 + $0x850] sm:$0xff]
    %v4088 = vld [vmem:[#allocation9 + $0x858] sm:$0xff]
    %v4089 = vld [vmem:[#allocation9 + $0x860] sm:$0xff]
    %v4090 = vld [vmem:[#allocation9 + $0x868] sm:$0xff]
    %v4091 = vld [vmem:[#allocation9 + $0x870] sm:$0xff]
    %v4092 = vld [vmem:[#allocation9 + $0x878] sm:$0xff]
    %v4093 = vld [vmem:[#allocation9 + $0x880] sm:$0xff]
    %v4094 = vld [vmem:[#allocation9 + $0x888] sm:$0xff]
    %v4095 = vld [vmem:[#allocation9 + $0x890] sm:$0xff]
    %v4096 = vld [vmem:[#allocation9 + $0x898] sm:$0xff]
    %v4097 = vld [vmem:[#allocation9 + $0x8a0] sm:$0xff]
    %v4098 = vld [vmem:[#allocation9 + $0x8a8] sm:$0xff]
    %v4099 = vld [vmem:[#allocation9 + $0x8b0] sm:$0xff]
    %v4100 = vld [vmem:[#allocation9 + $0x8b8] sm:$0xff]
    %v4101 = vld [vmem:[#allocation9 + $0x8c0] sm:$0xff]
    %v4102 = vld [vmem:[#allocation9 + $0x8c8] sm:$0xff]
    %v4103 = vld [vmem:[#allocation9 + $0x8d0] sm:$0xff]
    %v4104 = vld [vmem:[#allocation9 + $0x8d8] sm:$0xff]
    %v4105 = vld [vmem:[#allocation9 + $0x8e0] sm:$0xff]
    %v4106 = vld [vmem:[#allocation9 + $0x8e8] sm:$0xff]
    %v4107 = vld [vmem:[#allocation9 + $0x8f0] sm:$0xff]
    %v4108 = vld [vmem:[#allocation9 + $0x8f8] sm:$0xff]
    %v4109 = vld [vmem:[#allocation9 + $0x900] sm:$0xff]
    %v4110 = vld [vmem:[#allocation9 + $0x908] sm:$0xff]
    %v4111 = vld [vmem:[#allocation9 + $0x910] sm:$0xff]
    %v4112 = vld [vmem:[#allocation9 + $0x918] sm:$0xff]
    %v4113 = vld [vmem:[#allocation9 + $0x920] sm:$0xff]
    %v4114 = vld [vmem:[#allocation9 + $0x928] sm:$0xff]
    %v4115 = vld [vmem:[#allocation9 + $0x930] sm:$0xff]
    %v4116 = vld [vmem:[#allocation9 + $0x938] sm:$0xff]
    %v4117 = vld [vmem:[#allocation9 + $0x940] sm:$0xff]
    %v4118 = vld [vmem:[#allocation9 + $0x948] sm:$0xff]
    %v4119 = vld [vmem:[#allocation9 + $0x950] sm:$0xff]
    %v4120 = vld [vmem:[#allocation9 + $0x958] sm:$0xff]
    %v4121 = vld [vmem:[#allocation9 + $0x960] sm:$0xff]
    %v4122 = vld [vmem:[#allocation9 + $0x968] sm:$0xff]
    %v4123 = vld [vmem:[#allocation9 + $0x970] sm:$0xff]
    %v4124 = vld [vmem:[#allocation9 + $0x978] sm:$0xff]
    %v4125 = vld [vmem:[#allocation9 + $0x980] sm:$0xff]
    %v4126 = vld [vmem:[#allocation9 + $0x988] sm:$0xff]
    %v4127 = vld [vmem:[#allocation9 + $0x990] sm:$0xff]
    %v4128 = vld [vmem:[#allocation9 + $0x998] sm:$0xff]
    %v4129 = vld [vmem:[#allocation9 + $0x9a0] sm:$0xff]
    %v4130 = vld [vmem:[#allocation9 + $0x9a8] sm:$0xff]
    %v4131 = vld [vmem:[#allocation9 + $0x9b0] sm:$0xff]
    %v4132 = vld [vmem:[#allocation9 + $0x9b8] sm:$0xff]
    %v4133 = vld [vmem:[#allocation9 + $0x9c0] sm:$0xff]
    %v4134 = vld [vmem:[#allocation9 + $0x9c8] sm:$0xff]
    %v4135 = vld [vmem:[#allocation9 + $0x9d0] sm:$0xff]
    %v4136 = vld [vmem:[#allocation9 + $0x9d8] sm:$0xff]
    %v4137 = vld [vmem:[#allocation9 + $0x9e0] sm:$0xff]
    %v4138 = vld [vmem:[#allocation9 + $0x9e8] sm:$0xff]
    %v4139 = vld [vmem:[#allocation9 + $0x9f0] sm:$0xff]
    %v4140 = vld [vmem:[#allocation9 + $0x9f8] sm:$0xff]
    %v4141 = vld [vmem:[#allocation9 + $0xa00] sm:$0xff]
    %v4142 = vld [vmem:[#allocation9 + $0xa08] sm:$0xff]
    %v4143 = vld [vmem:[#allocation9 + $0xa10] sm:$0xff]
    %v4144 = vld [vmem:[#allocation9 + $0xa18] sm:$0xff]
    %v4145 = vld [vmem:[#allocation9 + $0xa20] sm:$0xff]
    %v4146 = vld [vmem:[#allocation9 + $0xa28] sm:$0xff]
    %v4147 = vld [vmem:[#allocation9 + $0xa30] sm:$0xff]
    %v4148 = vld [vmem:[#allocation9 + $0xa38] sm:$0xff]
    %v4149 = vld [vmem:[#allocation9 + $0xa40] sm:$0xff]
    %v4150 = vld [vmem:[#allocation9 + $0xa48] sm:$0xff]
    %v4151 = vld [vmem:[#allocation9 + $0xa50] sm:$0xff]
    %v4152 = vld [vmem:[#allocation9 + $0xa58] sm:$0xff]
    %v4153 = vld [vmem:[#allocation9 + $0xa60] sm:$0xff]
    %v4154 = vld [vmem:[#allocation9 + $0xa68] sm:$0xff]
    %v4155 = vld [vmem:[#allocation9 + $0xa70] sm:$0xff]
    %v4156 = vld [vmem:[#allocation9 + $0xa78] sm:$0xff]
    %v4157 = vld [vmem:[#allocation9 + $0xa80] sm:$0xff]
    %v4158 = vld [vmem:[#allocation9 + $0xa88] sm:$0xff]
    %v4159 = vld [vmem:[#allocation9 + $0xa90] sm:$0xff]
    %v4160 = vld [vmem:[#allocation9 + $0xa98] sm:$0xff]
    %v4161 = vld [vmem:[#allocation9 + $0xaa0] sm:$0xff]
    %v4162 = vld [vmem:[#allocation9 + $0xaa8] sm:$0xff]
    %v4163 = vld [vmem:[#allocation9 + $0xab0] sm:$0xff]
    %v4164 = vld [vmem:[#allocation9 + $0xab8] sm:$0xff]
    %v4165 = vld [vmem:[#allocation9 + $0xac0] sm:$0xff]
    %v4166 = vld [vmem:[#allocation9 + $0xac8] sm:$0xff]
    %v4167 = vld [vmem:[#allocation9 + $0xad0] sm:$0xff]
    %v4168 = vld [vmem:[#allocation9 + $0xad8] sm:$0xff]
    %v4169 = vld [vmem:[#allocation9 + $0xae0] sm:$0xff]
    %v4170 = vld [vmem:[#allocation9 + $0xae8] sm:$0xff]
    %v4171 = vld [vmem:[#allocation9 + $0xaf0] sm:$0xff]
    %v4172 = vld [vmem:[#allocation9 + $0xaf8] sm:$0xff]
    %v4173 = vld [vmem:[#allocation9 + $0xb00] sm:$0xff]
    %v4174 = vld [vmem:[#allocation9 + $0xb08] sm:$0xff]
    %v4175 = vld [vmem:[#allocation9 + $0xb10] sm:$0xff]
    %v4176 = vld [vmem:[#allocation9 + $0xb18] sm:$0xff]
    %v4177 = vld [vmem:[#allocation9 + $0xb20] sm:$0xff]
    %v4178 = vld [vmem:[#allocation9 + $0xb28] sm:$0xff]
    %v4179 = vld [vmem:[#allocation9 + $0xb30] sm:$0xff]
    %v4180 = vld [vmem:[#allocation9 + $0xb38] sm:$0xff]
    %v4181 = vld [vmem:[#allocation9 + $0xb40] sm:$0xff]
    %v4182 = vld [vmem:[#allocation9 + $0xb48] sm:$0xff]
    %v4183 = vld [vmem:[#allocation9 + $0xb50] sm:$0xff]
    %v4184 = vld [vmem:[#allocation9 + $0xb58] sm:$0xff]
    %v4185 = vld [vmem:[#allocation9 + $0xb60] sm:$0xff]
    %v4186 = vld [vmem:[#allocation9 + $0xb68] sm:$0xff]
    %v4187 = vld [vmem:[#allocation9 + $0xb70] sm:$0xff]
    %v4188 = vld [vmem:[#allocation9 + $0xb78] sm:$0xff]
    %v4189 = vld [vmem:[#allocation9 + $0xb80] sm:$0xff]
    %v4190 = vld [vmem:[#allocation9 + $0xb88] sm:$0xff]
    %v4191 = vld [vmem:[#allocation9 + $0xb90] sm:$0xff]
    %v4192 = vld [vmem:[#allocation9 + $0xb98] sm:$0xff]
    %v4193 = vld [vmem:[#allocation9 + $0xba0] sm:$0xff]
    %v4194 = vld [vmem:[#allocation9 + $0xba8] sm:$0xff]
    %v4195 = vld [vmem:[#allocation9 + $0xbb0] sm:$0xff]
    %v4196 = vld [vmem:[#allocation9 + $0xbb8] sm:$0xff]
    %v4197 = vld [vmem:[#allocation9 + $0xbc0] sm:$0xff]
    %v4198 = vld [vmem:[#allocation9 + $0xbc8] sm:$0xff]
    %v4199 = vld [vmem:[#allocation9 + $0xbd0] sm:$0xff]
    %v4200 = vld [vmem:[#allocation9 + $0xbd8] sm:$0xff]
    %v4201 = vld [vmem:[#allocation9 + $0xbe0] sm:$0xff]
    %v4202 = vld [vmem:[#allocation9 + $0xbe8] sm:$0xff]
    %v4203 = vld [vmem:[#allocation9 + $0xbf0] sm:$0xff]
    %v4204 = vld [vmem:[#allocation9 + $0xbf8] sm:$0xff]
    %v4205 = vld [vmem:[#allocation9 + $0xc00] sm:$0xff]
    %v4206 = vld [vmem:[#allocation9 + $0xc08] sm:$0xff]
    %v4207 = vld [vmem:[#allocation9 + $0xc10] sm:$0xff]
    %v4208 = vld [vmem:[#allocation9 + $0xc18] sm:$0xff]
    %v4209 = vld [vmem:[#allocation9 + $0xc20] sm:$0xff]
    %v4210 = vld [vmem:[#allocation9 + $0xc28] sm:$0xff]
    %v4211 = vld [vmem:[#allocation9 + $0xc30] sm:$0xff]
    %v4212 = vld [vmem:[#allocation9 + $0xc38] sm:$0xff]
    %v4213 = vld [vmem:[#allocation9 + $0xc40] sm:$0xff]
    %v4214 = vld [vmem:[#allocation9 + $0xc48] sm:$0xff]
    %v4215 = vld [vmem:[#allocation9 + $0xc50] sm:$0xff]
    %v4216 = vld [vmem:[#allocation9 + $0xc58] sm:$0xff]
    %v4217 = vld [vmem:[#allocation9 + $0xc60] sm:$0xff]
    %v4218 = vld [vmem:[#allocation9 + $0xc68] sm:$0xff]
    %v4219 = vld [vmem:[#allocation9 + $0xc70] sm:$0xff]
    %v4220 = vld [vmem:[#allocation9 + $0xc78] sm:$0xff]
    %v4221 = vld [vmem:[#allocation9 + $0xc80] sm:$0xff]
    %v4222 = vld [vmem:[#allocation9 + $0xc88] sm:$0xff]
    %v4223 = vld [vmem:[#allocation9 + $0xc90] sm:$0xff]
    %v4224 = vld [vmem:[#allocation9 + $0xc98] sm:$0xff]
    %v4225 = vld [vmem:[#allocation9 + $0xca0] sm:$0xff]
    %v4226 = vld [vmem:[#allocation9 + $0xca8] sm:$0xff]
    %v4227 = vld [vmem:[#allocation9 + $0xcb0] sm:$0xff]
    %v4228 = vld [vmem:[#allocation9 + $0xcb8] sm:$0xff]
    %v4229 = vld [vmem:[#allocation9 + $0xcc0] sm:$0xff]
    %v4230 = vld [vmem:[#allocation9 + $0xcc8] sm:$0xff]
    %v4231 = vld [vmem:[#allocation9 + $0xcd0] sm:$0xff]
    %v4232 = vld [vmem:[#allocation9 + $0xcd8] sm:$0xff]
    %v4233 = vld [vmem:[#allocation9 + $0xce0] sm:$0xff]
    %v4234 = vld [vmem:[#allocation9 + $0xce8] sm:$0xff]
    %v4235 = vld [vmem:[#allocation9 + $0xcf0] sm:$0xff]
    %v4236 = vld [vmem:[#allocation9 + $0xcf8] sm:$0xff]
    %v4237 = vld [vmem:[#allocation9 + $0xd00] sm:$0xff]
    %v4238 = vld [vmem:[#allocation9 + $0xd08] sm:$0xff]
    %v4239 = vld [vmem:[#allocation9 + $0xd10] sm:$0xff]
    %v4240 = vld [vmem:[#allocation9 + $0xd18] sm:$0xff]
    %v4241 = vld [vmem:[#allocation9 + $0xd20] sm:$0xff]
    %v4242 = vld [vmem:[#allocation9 + $0xd28] sm:$0xff]
    %v4243 = vld [vmem:[#allocation9 + $0xd30] sm:$0xff]
    %v4244 = vld [vmem:[#allocation9 + $0xd38] sm:$0xff]
    %v4245 = vld [vmem:[#allocation9 + $0xd40] sm:$0xff]
    %v4246 = vld [vmem:[#allocation9 + $0xd48] sm:$0xff]
    %v4247 = vld [vmem:[#allocation9 + $0xd50] sm:$0xff]
    %v4248 = vld [vmem:[#allocation9 + $0xd58] sm:$0xff]
    %v4249 = vld [vmem:[#allocation9 + $0xd60] sm:$0xff]
    %v4250 = vld [vmem:[#allocation9 + $0xd68] sm:$0xff]
    %v4251 = vld [vmem:[#allocation9 + $0xd70] sm:$0xff]
    %v4252 = vld [vmem:[#allocation9 + $0xd78] sm:$0xff]
    %v4253 = vld [vmem:[#allocation9 + $0xd80] sm:$0xff]
    %v4254 = vld [vmem:[#allocation9 + $0xd88] sm:$0xff]
    %v4255 = vld [vmem:[#allocation9 + $0xd90] sm:$0xff]
    %v4256 = vld [vmem:[#allocation9 + $0xd98] sm:$0xff]
    %v4257 = vld [vmem:[#allocation9 + $0xda0] sm:$0xff]
    %v4258 = vld [vmem:[#allocation9 + $0xda8] sm:$0xff]
    %v4259 = vld [vmem:[#allocation9 + $0xdb0] sm:$0xff]
    %v4260 = vld [vmem:[#allocation9 + $0xdb8] sm:$0xff]
    %v4261 = vld [vmem:[#allocation9 + $0xdc0] sm:$0xff]
    %v4262 = vld [vmem:[#allocation9 + $0xdc8] sm:$0xff]
    %v4263 = vld [vmem:[#allocation9 + $0xdd0] sm:$0xff]
    %v4264 = vld [vmem:[#allocation9 + $0xdd8] sm:$0xff]
    %v4265 = vld [vmem:[#allocation9 + $0xde0] sm:$0xff]
    %v4266 = vld [vmem:[#allocation9 + $0xde8] sm:$0xff]
    %v4267 = vld [vmem:[#allocation9 + $0xdf0] sm:$0xff]
    %v4268 = vld [vmem:[#allocation9 + $0xdf8] sm:$0xff]
    %v4269 = vld [vmem:[#allocation9 + $0xe00] sm:$0xff]
    %v4270 = vld [vmem:[#allocation9 + $0xe08] sm:$0xff]
    %v4271 = vld [vmem:[#allocation9 + $0xe10] sm:$0xff]
    %v4272 = vld [vmem:[#allocation9 + $0xe18] sm:$0xff]
    %v4273 = vld [vmem:[#allocation9 + $0xe20] sm:$0xff]
    %v4274 = vld [vmem:[#allocation9 + $0xe28] sm:$0xff]
    %v4275 = vld [vmem:[#allocation9 + $0xe30] sm:$0xff]
    %v4276 = vld [vmem:[#allocation9 + $0xe38] sm:$0xff]
    %v4277 = vld [vmem:[#allocation9 + $0xe40] sm:$0xff]
    %v4278 = vld [vmem:[#allocation9 + $0xe48] sm:$0xff]
    %v4279 = vld [vmem:[#allocation9 + $0xe50] sm:$0xff]
    %v4280 = vld [vmem:[#allocation9 + $0xe58] sm:$0xff]
    %v4281 = vld [vmem:[#allocation9 + $0xe60] sm:$0xff]
    %v4282 = vld [vmem:[#allocation9 + $0xe68] sm:$0xff]
    %v4283 = vld [vmem:[#allocation9 + $0xe70] sm:$0xff]
    %v4284 = vld [vmem:[#allocation9 + $0xe78] sm:$0xff]
    %v4285 = vld [vmem:[#allocation9 + $0xe80] sm:$0xff]
    %v4286 = vld [vmem:[#allocation9 + $0xe88] sm:$0xff]
    %v4287 = vld [vmem:[#allocation9 + $0xe90] sm:$0xff]
    %v4288 = vld [vmem:[#allocation9 + $0xe98] sm:$0xff]
    %v4289 = vld [vmem:[#allocation9 + $0xea0] sm:$0xff]
    %v4290 = vld [vmem:[#allocation9 + $0xea8] sm:$0xff]
    %v4291 = vld [vmem:[#allocation9 + $0xeb0] sm:$0xff]
    %v4292 = vld [vmem:[#allocation9 + $0xeb8] sm:$0xff]
    %v4293 = vld [vmem:[#allocation9 + $0xec0] sm:$0xff]
    %v4294 = vld [vmem:[#allocation9 + $0xec8] sm:$0xff]
    %v4295 = vld [vmem:[#allocation9 + $0xed0] sm:$0xff]
    %v4296 = vld [vmem:[#allocation9 + $0xed8] sm:$0xff]
    %v4297 = vld [vmem:[#allocation9 + $0xee0] sm:$0xff]
    %v4298 = vld [vmem:[#allocation9 + $0xee8] sm:$0xff]
    %v4299 = vld [vmem:[#allocation9 + $0xef0] sm:$0xff]
    %v4300 = vld [vmem:[#allocation9 + $0xef8] sm:$0xff]
    %v4301 = vld [vmem:[#allocation9 + $0xf00] sm:$0xff]
    %v4302 = vld [vmem:[#allocation9 + $0xf08] sm:$0xff]
    %v4303 = vld [vmem:[#allocation9 + $0xf10] sm:$0xff]
    %v4304 = vld [vmem:[#allocation9 + $0xf18] sm:$0xff]
    %v4305 = vld [vmem:[#allocation9 + $0xf20] sm:$0xff]
    %v4306 = vld [vmem:[#allocation9 + $0xf28] sm:$0xff]
    %v4307 = vld [vmem:[#allocation9 + $0xf30] sm:$0xff]
    %v4308 = vld [vmem:[#allocation9 + $0xf38] sm:$0xff]
    %v4309 = vld [vmem:[#allocation9 + $0xf40] sm:$0xff]
    %v4310 = vld [vmem:[#allocation9 + $0xf48] sm:$0xff]
    %v4311 = vld [vmem:[#allocation9 + $0xf50] sm:$0xff]
    %v4312 = vld [vmem:[#allocation9 + $0xf58] sm:$0xff]
    %v4313 = vld [vmem:[#allocation9 + $0xf60] sm:$0xff]
    %v4314 = vld [vmem:[#allocation9 + $0xf68] sm:$0xff]
    %v4315 = vld [vmem:[#allocation9 + $0xf70] sm:$0xff]
    %v4316 = vld [vmem:[#allocation9 + $0xf78] sm:$0xff]
    %v4317 = vld [vmem:[#allocation9 + $0xf80] sm:$0xff]
    %v4318 = vld [vmem:[#allocation9 + $0xf88] sm:$0xff]
    %v4319 = vld [vmem:[#allocation9 + $0xf90] sm:$0xff]
    %v4320 = vld [vmem:[#allocation9 + $0xf98] sm:$0xff]
    %v4321 = vld [vmem:[#allocation9 + $0xfa0] sm:$0xff]
    %v4322 = vld [vmem:[#allocation9 + $0xfa8] sm:$0xff]
    %v4323 = vld [vmem:[#allocation9 + $0xfb0] sm:$0xff]
    %v4324 = vld [vmem:[#allocation9 + $0xfb8] sm:$0xff]
    %v4325 = vld [vmem:[#allocation9 + $0xfc0] sm:$0xff]
    %v4326 = vld [vmem:[#allocation9 + $0xfc8] sm:$0xff]
    %v4327 = vld [vmem:[#allocation9 + $0xfd0] sm:$0xff]
    %v4328 = vld [vmem:[#allocation9 + $0xfd8] sm:$0xff]
    %v4329 = vld [vmem:[#allocation9 + $0xfe0] sm:$0xff]
    %v4330 = vld [vmem:[#allocation9 + $0xfe8] sm:$0xff]
    %v4331 = vld [vmem:[#allocation9 + $0xff0] sm:$0xff]
    %v4332 = vld [vmem:[#allocation9 + $0xff8] sm:$0xff]
    %v4333 = vld [vmem:[#allocation11] sm:$0xff]
    %v4335 = vlaneseq
    %v4336 = vshrl.u32 %v4335, 7
    %v4337 = vsub.s32 0, %v4336
    %v4338 = vrot.slane %v4333, %v4337
    %v4339 = vlaneseq
    %v4340 = vshrl.u32 %v4339, 7
    %v4341 = vsub.s32 1, %v4340
    %v4342 = vrot.slane %v4333, %v4341
    %v4343 = vlaneseq
    %v4344 = vshrl.u32 %v4343, 7
    %v4345 = vsub.s32 2, %v4344
    %v4346 = vrot.slane %v4333, %v4345
    %v4347 = vlaneseq
    %v4348 = vshrl.u32 %v4347, 7
    %v4349 = vsub.s32 3, %v4348
    %v4350 = vrot.slane %v4333, %v4349
    %v4351 = vlaneseq
    %v4352 = vshrl.u32 %v4351, 7
    %v4353 = vsub.s32 4, %v4352
    %v4354 = vrot.slane %v4333, %v4353
    %v4355 = vlaneseq
    %v4356 = vshrl.u32 %v4355, 7
    %v4357 = vsub.s32 5, %v4356
    %v4358 = vrot.slane %v4333, %v4357
    %v4359 = vlaneseq
    %v4360 = vshrl.u32 %v4359, 7
    %v4361 = vsub.s32 6, %v4360
    %v4362 = vrot.slane %v4333, %v4361
    %v4363 = vlaneseq
    %v4364 = vshrl.u32 %v4363, 7
    %v4365 = vsub.s32 7, %v4364
    %v4366 = vrot.slane %v4333, %v4365
    %v4887 = vunpack.c.l.b16 %v3821
    %v4888 = vunpack.c.h.b16 %v3821
    %v4889 = vunpack.c.l.b16 %v3822
    %v4890 = vunpack.c.h.b16 %v3822
    %v4891 = vunpack.c.l.b16 %v3823
    %v4892 = vunpack.c.h.b16 %v3823
    %v4893 = vunpack.c.l.b16 %v3824
    %v4894 = vunpack.c.h.b16 %v3824
    %v4895 = vunpack.c.l.b16 %v3825
    %v4896 = vunpack.c.h.b16 %v3825
    %v4897 = vunpack.c.l.b16 %v3826
    %v4898 = vunpack.c.h.b16 %v3826
    %v4899 = vunpack.c.l.b16 %v3827
    %v4900 = vunpack.c.h.b16 %v3827
    %v4901 = vunpack.c.l.b16 %v3828
    %v4902 = vunpack.c.h.b16 %v3828
    %v4903 = vunpack.c.l.b16 %v3829
    %v4904 = vunpack.c.h.b16 %v3829
    %v4905 = vunpack.c.l.b16 %v3830
    %v4906 = vunpack.c.h.b16 %v3830
    %v4907 = vunpack.c.l.b16 %v3831
    %v4908 = vunpack.c.h.b16 %v3831
    %v4909 = vunpack.c.l.b16 %v3832
    %v4910 = vunpack.c.h.b16 %v3832
    %v4911 = vunpack.c.l.b16 %v3833
    %v4912 = vunpack.c.h.b16 %v3833
    %v4913 = vunpack.c.l.b16 %v3834
    %v4914 = vunpack.c.h.b16 %v3834
    %v4915 = vunpack.c.l.b16 %v3835
    %v4916 = vunpack.c.h.b16 %v3835
    %v4917 = vunpack.c.l.b16 %v3836
    %v4918 = vunpack.c.h.b16 %v3836
    %v4919 = vunpack.c.l.b16 %v3837
    %v4920 = vunpack.c.h.b16 %v3837
    %v4921 = vunpack.c.l.b16 %v3838
    %v4922 = vunpack.c.h.b16 %v3838
    %v4923 = vunpack.c.l.b16 %v3839
    %v4924 = vunpack.c.h.b16 %v3839
    %v4925 = vunpack.c.l.b16 %v3840
    %v4926 = vunpack.c.h.b16 %v3840
    %v4927 = vunpack.c.l.b16 %v3841
    %v4928 = vunpack.c.h.b16 %v3841
    %v4929 = vunpack.c.l.b16 %v3842
    %v4930 = vunpack.c.h.b16 %v3842
    %v4931 = vunpack.c.l.b16 %v3843
    %v4932 = vunpack.c.h.b16 %v3843
    %v4933 = vunpack.c.l.b16 %v3844
    %v4934 = vunpack.c.h.b16 %v3844
    %v4935 = vunpack.c.l.b16 %v3845
    %v4936 = vunpack.c.h.b16 %v3845
    %v4937 = vunpack.c.l.b16 %v3846
    %v4938 = vunpack.c.h.b16 %v3846
    %v4939 = vunpack.c.l.b16 %v3847
    %v4940 = vunpack.c.h.b16 %v3847
    %v4941 = vunpack.c.l.b16 %v3848
    %v4942 = vunpack.c.h.b16 %v3848
    %v4943 = vunpack.c.l.b16 %v3849
    %v4944 = vunpack.c.h.b16 %v3849
    %v4945 = vunpack.c.l.b16 %v3850
    %v4946 = vunpack.c.h.b16 %v3850
    %v4947 = vunpack.c.l.b16 %v3851
    %v4948 = vunpack.c.h.b16 %v3851
    %v4949 = vunpack.c.l.b16 %v3852
    %v4950 = vunpack.c.h.b16 %v3852
    %v4951 = vunpack.c.l.b16 %v3853
    %v4952 = vunpack.c.h.b16 %v3853
    %v4953 = vunpack.c.l.b16 %v3854
    %v4954 = vunpack.c.h.b16 %v3854
    %v4955 = vunpack.c.l.b16 %v3855
    %v4956 = vunpack.c.h.b16 %v3855
    %v4957 = vunpack.c.l.b16 %v3856
    %v4958 = vunpack.c.h.b16 %v3856
    %v4959 = vunpack.c.l.b16 %v3857
    %v4960 = vunpack.c.h.b16 %v3857
    %v4961 = vunpack.c.l.b16 %v3858
    %v4962 = vunpack.c.h.b16 %v3858
    %v4963 = vunpack.c.l.b16 %v3859
    %v4964 = vunpack.c.h.b16 %v3859
    %v4965 = vunpack.c.l.b16 %v3860
    %v4966 = vunpack.c.h.b16 %v3860
    %v4967 = vunpack.c.l.b16 %v3861
    %v4968 = vunpack.c.h.b16 %v3861
    %v4969 = vunpack.c.l.b16 %v3862
    %v4970 = vunpack.c.h.b16 %v3862
    %v4971 = vunpack.c.l.b16 %v3863
    %v4972 = vunpack.c.h.b16 %v3863
    %v4973 = vunpack.c.l.b16 %v3864
    %v4974 = vunpack.c.h.b16 %v3864
    %v4975 = vunpack.c.l.b16 %v3865
    %v4976 = vunpack.c.h.b16 %v3865
    %v4977 = vunpack.c.l.b16 %v3866
    %v4978 = vunpack.c.h.b16 %v3866
    %v4979 = vunpack.c.l.b16 %v3867
    %v4980 = vunpack.c.h.b16 %v3867
    %v4981 = vunpack.c.l.b16 %v3868
    %v4982 = vunpack.c.h.b16 %v3868
    %v4983 = vunpack.c.l.b16 %v3869
    %v4984 = vunpack.c.h.b16 %v3869
    %v4985 = vunpack.c.l.b16 %v3870
    %v4986 = vunpack.c.h.b16 %v3870
    %v4987 = vunpack.c.l.b16 %v3871
    %v4988 = vunpack.c.h.b16 %v3871
    %v4989 = vunpack.c.l.b16 %v3872
    %v4990 = vunpack.c.h.b16 %v3872
    %v4991 = vunpack.c.l.b16 %v3873
    %v4992 = vunpack.c.h.b16 %v3873
    %v4993 = vunpack.c.l.b16 %v3874
    %v4994 = vunpack.c.h.b16 %v3874
    %v4995 = vunpack.c.l.b16 %v3875
    %v4996 = vunpack.c.h.b16 %v3875
    %v4997 = vunpack.c.l.b16 %v3876
    %v4998 = vunpack.c.h.b16 %v3876
    %v4999 = vunpack.c.l.b16 %v3877
    %v5000 = vunpack.c.h.b16 %v3877
    %v5001 = vunpack.c.l.b16 %v3878
    %v5002 = vunpack.c.h.b16 %v3878
    %v5003 = vunpack.c.l.b16 %v3879
    %v5004 = vunpack.c.h.b16 %v3879
    %v5005 = vunpack.c.l.b16 %v3880
    %v5006 = vunpack.c.h.b16 %v3880
    %v5007 = vunpack.c.l.b16 %v3881
    %v5008 = vunpack.c.h.b16 %v3881
    %v5009 = vunpack.c.l.b16 %v3882
    %v5010 = vunpack.c.h.b16 %v3882
    %v5011 = vunpack.c.l.b16 %v3883
    %v5012 = vunpack.c.h.b16 %v3883
    %v5013 = vunpack.c.l.b16 %v3884
    %v5014 = vunpack.c.h.b16 %v3884
    %v5015 = vunpack.c.l.b16 %v3885
    %v5016 = vunpack.c.h.b16 %v3885
    %v5017 = vunpack.c.l.b16 %v3886
    %v5018 = vunpack.c.h.b16 %v3886
    %v5019 = vunpack.c.l.b16 %v3887
    %v5020 = vunpack.c.h.b16 %v3887
    %v5021 = vunpack.c.l.b16 %v3888
    %v5022 = vunpack.c.h.b16 %v3888
    %v5023 = vunpack.c.l.b16 %v3889
    %v5024 = vunpack.c.h.b16 %v3889
    %v5025 = vunpack.c.l.b16 %v3890
    %v5026 = vunpack.c.h.b16 %v3890
    %v5027 = vunpack.c.l.b16 %v3891
    %v5028 = vunpack.c.h.b16 %v3891
    %v5029 = vunpack.c.l.b16 %v3892
    %v5030 = vunpack.c.h.b16 %v3892
    %v5031 = vunpack.c.l.b16 %v3893
    %v5032 = vunpack.c.h.b16 %v3893
    %v5033 = vunpack.c.l.b16 %v3894
    %v5034 = vunpack.c.h.b16 %v3894
    %v5035 = vunpack.c.l.b16 %v3895
    %v5036 = vunpack.c.h.b16 %v3895
    %v5037 = vunpack.c.l.b16 %v3896
    %v5038 = vunpack.c.h.b16 %v3896
    %v5039 = vunpack.c.l.b16 %v3897
    %v5040 = vunpack.c.h.b16 %v3897
    %v5041 = vunpack.c.l.b16 %v3898
    %v5042 = vunpack.c.h.b16 %v3898
    %v5043 = vunpack.c.l.b16 %v3899
    %v5044 = vunpack.c.h.b16 %v3899
    %v5045 = vunpack.c.l.b16 %v3900
    %v5046 = vunpack.c.h.b16 %v3900
    %v5047 = vunpack.c.l.b16 %v3901
    %v5048 = vunpack.c.h.b16 %v3901
    %v5049 = vunpack.c.l.b16 %v3902
    %v5050 = vunpack.c.h.b16 %v3902
    %v5051 = vunpack.c.l.b16 %v3903
    %v5052 = vunpack.c.h.b16 %v3903
    %v5053 = vunpack.c.l.b16 %v3904
    %v5054 = vunpack.c.h.b16 %v3904
    %v5055 = vunpack.c.l.b16 %v3905
    %v5056 = vunpack.c.h.b16 %v3905
    %v5057 = vunpack.c.l.b16 %v3906
    %v5058 = vunpack.c.h.b16 %v3906
    %v5059 = vunpack.c.l.b16 %v3907
    %v5060 = vunpack.c.h.b16 %v3907
    %v5061 = vunpack.c.l.b16 %v3908
    %v5062 = vunpack.c.h.b16 %v3908
    %v5063 = vunpack.c.l.b16 %v3909
    %v5064 = vunpack.c.h.b16 %v3909
    %v5065 = vunpack.c.l.b16 %v3910
    %v5066 = vunpack.c.h.b16 %v3910
    %v5067 = vunpack.c.l.b16 %v3911
    %v5068 = vunpack.c.h.b16 %v3911
    %v5069 = vunpack.c.l.b16 %v3912
    %v5070 = vunpack.c.h.b16 %v3912
    %v5071 = vunpack.c.l.b16 %v3913
    %v5072 = vunpack.c.h.b16 %v3913
    %v5073 = vunpack.c.l.b16 %v3914
    %v5074 = vunpack.c.h.b16 %v3914
    %v5075 = vunpack.c.l.b16 %v3915
    %v5076 = vunpack.c.h.b16 %v3915
    %v5077 = vunpack.c.l.b16 %v3916
    %v5078 = vunpack.c.h.b16 %v3916
    %v5079 = vunpack.c.l.b16 %v3917
    %v5080 = vunpack.c.h.b16 %v3917
    %v5081 = vunpack.c.l.b16 %v3918
    %v5082 = vunpack.c.h.b16 %v3918
    %v5083 = vunpack.c.l.b16 %v3919
    %v5084 = vunpack.c.h.b16 %v3919
    %v5085 = vunpack.c.l.b16 %v3920
    %v5086 = vunpack.c.h.b16 %v3920
    %v5087 = vunpack.c.l.b16 %v3921
    %v5088 = vunpack.c.h.b16 %v3921
    %v5089 = vunpack.c.l.b16 %v3922
    %v5090 = vunpack.c.h.b16 %v3922
    %v5091 = vunpack.c.l.b16 %v3923
    %v5092 = vunpack.c.h.b16 %v3923
    %v5093 = vunpack.c.l.b16 %v3924
    %v5094 = vunpack.c.h.b16 %v3924
    %v5095 = vunpack.c.l.b16 %v3925
    %v5096 = vunpack.c.h.b16 %v3925
    %v5097 = vunpack.c.l.b16 %v3926
    %v5098 = vunpack.c.h.b16 %v3926
    %v5099 = vunpack.c.l.b16 %v3927
    %v5100 = vunpack.c.h.b16 %v3927
    %v5101 = vunpack.c.l.b16 %v3928
    %v5102 = vunpack.c.h.b16 %v3928
    %v5103 = vunpack.c.l.b16 %v3929
    %v5104 = vunpack.c.h.b16 %v3929
    %v5105 = vunpack.c.l.b16 %v3930
    %v5106 = vunpack.c.h.b16 %v3930
    %v5107 = vunpack.c.l.b16 %v3931
    %v5108 = vunpack.c.h.b16 %v3931
    %v5109 = vunpack.c.l.b16 %v3932
    %v5110 = vunpack.c.h.b16 %v3932
    %v5111 = vunpack.c.l.b16 %v3933
    %v5112 = vunpack.c.h.b16 %v3933
    %v5113 = vunpack.c.l.b16 %v3934
    %v5114 = vunpack.c.h.b16 %v3934
    %v5115 = vunpack.c.l.b16 %v3935
    %v5116 = vunpack.c.h.b16 %v3935
    %v5117 = vunpack.c.l.b16 %v3936
    %v5118 = vunpack.c.h.b16 %v3936
    %v5119 = vunpack.c.l.b16 %v3937
    %v5120 = vunpack.c.h.b16 %v3937
    %v5121 = vunpack.c.l.b16 %v3938
    %v5122 = vunpack.c.h.b16 %v3938
    %v5123 = vunpack.c.l.b16 %v3939
    %v5124 = vunpack.c.h.b16 %v3939
    %v5125 = vunpack.c.l.b16 %v3940
    %v5126 = vunpack.c.h.b16 %v3940
    %v5127 = vunpack.c.l.b16 %v3941
    %v5128 = vunpack.c.h.b16 %v3941
    %v5129 = vunpack.c.l.b16 %v3942
    %v5130 = vunpack.c.h.b16 %v3942
    %v5131 = vunpack.c.l.b16 %v3943
    %v5132 = vunpack.c.h.b16 %v3943
    %v5133 = vunpack.c.l.b16 %v3944
    %v5134 = vunpack.c.h.b16 %v3944
    %v5135 = vunpack.c.l.b16 %v3945
    %v5136 = vunpack.c.h.b16 %v3945
    %v5137 = vunpack.c.l.b16 %v3946
    %v5138 = vunpack.c.h.b16 %v3946
    %v5139 = vunpack.c.l.b16 %v3947
    %v5140 = vunpack.c.h.b16 %v3947
    %v5141 = vunpack.c.l.b16 %v3948
    %v5142 = vunpack.c.h.b16 %v3948
    %v5143 = vunpack.c.l.b16 %v3949
    %v5144 = vunpack.c.h.b16 %v3949
    %v5145 = vunpack.c.l.b16 %v3950
    %v5146 = vunpack.c.h.b16 %v3950
    %v5147 = vunpack.c.l.b16 %v3951
    %v5148 = vunpack.c.h.b16 %v3951
    %v5149 = vunpack.c.l.b16 %v3952
    %v5150 = vunpack.c.h.b16 %v3952
    %v5151 = vunpack.c.l.b16 %v3953
    %v5152 = vunpack.c.h.b16 %v3953
    %v5153 = vunpack.c.l.b16 %v3954
    %v5154 = vunpack.c.h.b16 %v3954
    %v5155 = vunpack.c.l.b16 %v3955
    %v5156 = vunpack.c.h.b16 %v3955
    %v5157 = vunpack.c.l.b16 %v3956
    %v5158 = vunpack.c.h.b16 %v3956
    %v5159 = vunpack.c.l.b16 %v3957
    %v5160 = vunpack.c.h.b16 %v3957
    %v5161 = vunpack.c.l.b16 %v3958
    %v5162 = vunpack.c.h.b16 %v3958
    %v5163 = vunpack.c.l.b16 %v3959
    %v5164 = vunpack.c.h.b16 %v3959
    %v5165 = vunpack.c.l.b16 %v3960
    %v5166 = vunpack.c.h.b16 %v3960
    %v5167 = vunpack.c.l.b16 %v3961
    %v5168 = vunpack.c.h.b16 %v3961
    %v5169 = vunpack.c.l.b16 %v3962
    %v5170 = vunpack.c.h.b16 %v3962
    %v5171 = vunpack.c.l.b16 %v3963
    %v5172 = vunpack.c.h.b16 %v3963
    %v5173 = vunpack.c.l.b16 %v3964
    %v5174 = vunpack.c.h.b16 %v3964
    %v5175 = vunpack.c.l.b16 %v3965
    %v5176 = vunpack.c.h.b16 %v3965
    %v5177 = vunpack.c.l.b16 %v3966
    %v5178 = vunpack.c.h.b16 %v3966
    %v5179 = vunpack.c.l.b16 %v3967
    %v5180 = vunpack.c.h.b16 %v3967
    %v5181 = vunpack.c.l.b16 %v3968
    %v5182 = vunpack.c.h.b16 %v3968
    %v5183 = vunpack.c.l.b16 %v3969
    %v5184 = vunpack.c.h.b16 %v3969
    %v5185 = vunpack.c.l.b16 %v3970
    %v5186 = vunpack.c.h.b16 %v3970
    %v5187 = vunpack.c.l.b16 %v3971
    %v5188 = vunpack.c.h.b16 %v3971
    %v5189 = vunpack.c.l.b16 %v3972
    %v5190 = vunpack.c.h.b16 %v3972
    %v5191 = vunpack.c.l.b16 %v3973
    %v5192 = vunpack.c.h.b16 %v3973
    %v5193 = vunpack.c.l.b16 %v3974
    %v5194 = vunpack.c.h.b16 %v3974
    %v5195 = vunpack.c.l.b16 %v3975
    %v5196 = vunpack.c.h.b16 %v3975
    %v5197 = vunpack.c.l.b16 %v3976
    %v5198 = vunpack.c.h.b16 %v3976
    %v5199 = vunpack.c.l.b16 %v3977
    %v5200 = vunpack.c.h.b16 %v3977
    %v5201 = vunpack.c.l.b16 %v3978
    %v5202 = vunpack.c.h.b16 %v3978
    %v5203 = vunpack.c.l.b16 %v3979
    %v5204 = vunpack.c.h.b16 %v3979
    %v5205 = vunpack.c.l.b16 %v3980
    %v5206 = vunpack.c.h.b16 %v3980
    %v5207 = vunpack.c.l.b16 %v3981
    %v5208 = vunpack.c.h.b16 %v3981
    %v5209 = vunpack.c.l.b16 %v3982
    %v5210 = vunpack.c.h.b16 %v3982
    %v5211 = vunpack.c.l.b16 %v3983
    %v5212 = vunpack.c.h.b16 %v3983
    %v5213 = vunpack.c.l.b16 %v3984
    %v5214 = vunpack.c.h.b16 %v3984
    %v5215 = vunpack.c.l.b16 %v3985
    %v5216 = vunpack.c.h.b16 %v3985
    %v5217 = vunpack.c.l.b16 %v3986
    %v5218 = vunpack.c.h.b16 %v3986
    %v5219 = vunpack.c.l.b16 %v3987
    %v5220 = vunpack.c.h.b16 %v3987
    %v5221 = vunpack.c.l.b16 %v3988
    %v5222 = vunpack.c.h.b16 %v3988
    %v5223 = vunpack.c.l.b16 %v3989
    %v5224 = vunpack.c.h.b16 %v3989
    %v5225 = vunpack.c.l.b16 %v3990
    %v5226 = vunpack.c.h.b16 %v3990
    %v5227 = vunpack.c.l.b16 %v3991
    %v5228 = vunpack.c.h.b16 %v3991
    %v5229 = vunpack.c.l.b16 %v3992
    %v5230 = vunpack.c.h.b16 %v3992
    %v5231 = vunpack.c.l.b16 %v3993
    %v5232 = vunpack.c.h.b16 %v3993
    %v5233 = vunpack.c.l.b16 %v3994
    %v5234 = vunpack.c.h.b16 %v3994
    %v5235 = vunpack.c.l.b16 %v3995
    %v5236 = vunpack.c.h.b16 %v3995
    %v5237 = vunpack.c.l.b16 %v3996
    %v5238 = vunpack.c.h.b16 %v3996
    %v5239 = vunpack.c.l.b16 %v3997
    %v5240 = vunpack.c.h.b16 %v3997
    %v5241 = vunpack.c.l.b16 %v3998
    %v5242 = vunpack.c.h.b16 %v3998
    %v5243 = vunpack.c.l.b16 %v3999
    %v5244 = vunpack.c.h.b16 %v3999
    %v5245 = vunpack.c.l.b16 %v4000
    %v5246 = vunpack.c.h.b16 %v4000
    %v5247 = vunpack.c.l.b16 %v4001
    %v5248 = vunpack.c.h.b16 %v4001
    %v5249 = vunpack.c.l.b16 %v4002
    %v5250 = vunpack.c.h.b16 %v4002
    %v5251 = vunpack.c.l.b16 %v4003
    %v5252 = vunpack.c.h.b16 %v4003
    %v5253 = vunpack.c.l.b16 %v4004
    %v5254 = vunpack.c.h.b16 %v4004
    %v5255 = vunpack.c.l.b16 %v4005
    %v5256 = vunpack.c.h.b16 %v4005
    %v5257 = vunpack.c.l.b16 %v4006
    %v5258 = vunpack.c.h.b16 %v4006
    %v5259 = vunpack.c.l.b16 %v4007
    %v5260 = vunpack.c.h.b16 %v4007
    %v5261 = vunpack.c.l.b16 %v4008
    %v5262 = vunpack.c.h.b16 %v4008
    %v5263 = vunpack.c.l.b16 %v4009
    %v5264 = vunpack.c.h.b16 %v4009
    %v5265 = vunpack.c.l.b16 %v4010
    %v5266 = vunpack.c.h.b16 %v4010
    %v5267 = vunpack.c.l.b16 %v4011
    %v5268 = vunpack.c.h.b16 %v4011
    %v5269 = vunpack.c.l.b16 %v4012
    %v5270 = vunpack.c.h.b16 %v4012
    %v5271 = vunpack.c.l.b16 %v4013
    %v5272 = vunpack.c.h.b16 %v4013
    %v5273 = vunpack.c.l.b16 %v4014
    %v5274 = vunpack.c.h.b16 %v4014
    %v5275 = vunpack.c.l.b16 %v4015
    %v5276 = vunpack.c.h.b16 %v4015
    %v5277 = vunpack.c.l.b16 %v4016
    %v5278 = vunpack.c.h.b16 %v4016
    %v5279 = vunpack.c.l.b16 %v4017
    %v5280 = vunpack.c.h.b16 %v4017
    %v5281 = vunpack.c.l.b16 %v4018
    %v5282 = vunpack.c.h.b16 %v4018
    %v5283 = vunpack.c.l.b16 %v4019
    %v5284 = vunpack.c.h.b16 %v4019
    %v5285 = vunpack.c.l.b16 %v4020
    %v5286 = vunpack.c.h.b16 %v4020
    %v5287 = vunpack.c.l.b16 %v4021
    %v5288 = vunpack.c.h.b16 %v4021
    %v5289 = vunpack.c.l.b16 %v4022
    %v5290 = vunpack.c.h.b16 %v4022
    %v5291 = vunpack.c.l.b16 %v4023
    %v5292 = vunpack.c.h.b16 %v4023
    %v5293 = vunpack.c.l.b16 %v4024
    %v5294 = vunpack.c.h.b16 %v4024
    %v5295 = vunpack.c.l.b16 %v4025
    %v5296 = vunpack.c.h.b16 %v4025
    %v5297 = vunpack.c.l.b16 %v4026
    %v5298 = vunpack.c.h.b16 %v4026
    %v5299 = vunpack.c.l.b16 %v4027
    %v5300 = vunpack.c.h.b16 %v4027
    %v5301 = vunpack.c.l.b16 %v4028
    %v5302 = vunpack.c.h.b16 %v4028
    %v5303 = vunpack.c.l.b16 %v4029
    %v5304 = vunpack.c.h.b16 %v4029
    %v5305 = vunpack.c.l.b16 %v4030
    %v5306 = vunpack.c.h.b16 %v4030
    %v5307 = vunpack.c.l.b16 %v4031
    %v5308 = vunpack.c.h.b16 %v4031
    %v5309 = vunpack.c.l.b16 %v4032
    %v5310 = vunpack.c.h.b16 %v4032
    %v5311 = vunpack.c.l.b16 %v4033
    %v5312 = vunpack.c.h.b16 %v4033
    %v5313 = vunpack.c.l.b16 %v4034
    %v5314 = vunpack.c.h.b16 %v4034
    %v5315 = vunpack.c.l.b16 %v4035
    %v5316 = vunpack.c.h.b16 %v4035
    %v5317 = vunpack.c.l.b16 %v4036
    %v5318 = vunpack.c.h.b16 %v4036
    %v5319 = vunpack.c.l.b16 %v4037
    %v5320 = vunpack.c.h.b16 %v4037
    %v5321 = vunpack.c.l.b16 %v4038
    %v5322 = vunpack.c.h.b16 %v4038
    %v5323 = vunpack.c.l.b16 %v4039
    %v5324 = vunpack.c.h.b16 %v4039
    %v5325 = vunpack.c.l.b16 %v4040
    %v5326 = vunpack.c.h.b16 %v4040
    %v5327 = vunpack.c.l.b16 %v4041
    %v5328 = vunpack.c.h.b16 %v4041
    %v5329 = vunpack.c.l.b16 %v4042
    %v5330 = vunpack.c.h.b16 %v4042
    %v5331 = vunpack.c.l.b16 %v4043
    %v5332 = vunpack.c.h.b16 %v4043
    %v5333 = vunpack.c.l.b16 %v4044
    %v5334 = vunpack.c.h.b16 %v4044
    %v5335 = vunpack.c.l.b16 %v4045
    %v5336 = vunpack.c.h.b16 %v4045
    %v5337 = vunpack.c.l.b16 %v4046
    %v5338 = vunpack.c.h.b16 %v4046
    %v5339 = vunpack.c.l.b16 %v4047
    %v5340 = vunpack.c.h.b16 %v4047
    %v5341 = vunpack.c.l.b16 %v4048
    %v5342 = vunpack.c.h.b16 %v4048
    %v5343 = vunpack.c.l.b16 %v4049
    %v5344 = vunpack.c.h.b16 %v4049
    %v5345 = vunpack.c.l.b16 %v4050
    %v5346 = vunpack.c.h.b16 %v4050
    %v5347 = vunpack.c.l.b16 %v4051
    %v5348 = vunpack.c.h.b16 %v4051
    %v5349 = vunpack.c.l.b16 %v4052
    %v5350 = vunpack.c.h.b16 %v4052
    %v5351 = vunpack.c.l.b16 %v4053
    %v5352 = vunpack.c.h.b16 %v4053
    %v5353 = vunpack.c.l.b16 %v4054
    %v5354 = vunpack.c.h.b16 %v4054
    %v5355 = vunpack.c.l.b16 %v4055
    %v5356 = vunpack.c.h.b16 %v4055
    %v5357 = vunpack.c.l.b16 %v4056
    %v5358 = vunpack.c.h.b16 %v4056
    %v5359 = vunpack.c.l.b16 %v4057
    %v5360 = vunpack.c.h.b16 %v4057
    %v5361 = vunpack.c.l.b16 %v4058
    %v5362 = vunpack.c.h.b16 %v4058
    %v5363 = vunpack.c.l.b16 %v4059
    %v5364 = vunpack.c.h.b16 %v4059
    %v5365 = vunpack.c.l.b16 %v4060
    %v5366 = vunpack.c.h.b16 %v4060
    %v5367 = vunpack.c.l.b16 %v4061
    %v5368 = vunpack.c.h.b16 %v4061
    %v5369 = vunpack.c.l.b16 %v4062
    %v5370 = vunpack.c.h.b16 %v4062
    %v5371 = vunpack.c.l.b16 %v4063
    %v5372 = vunpack.c.h.b16 %v4063
    %v5373 = vunpack.c.l.b16 %v4064
    %v5374 = vunpack.c.h.b16 %v4064
    %v5375 = vunpack.c.l.b16 %v4065
    %v5376 = vunpack.c.h.b16 %v4065
    %v5377 = vunpack.c.l.b16 %v4066
    %v5378 = vunpack.c.h.b16 %v4066
    %v5379 = vunpack.c.l.b16 %v4067
    %v5380 = vunpack.c.h.b16 %v4067
    %v5381 = vunpack.c.l.b16 %v4068
    %v5382 = vunpack.c.h.b16 %v4068
    %v5383 = vunpack.c.l.b16 %v4069
    %v5384 = vunpack.c.h.b16 %v4069
    %v5385 = vunpack.c.l.b16 %v4070
    %v5386 = vunpack.c.h.b16 %v4070
    %v5387 = vunpack.c.l.b16 %v4071
    %v5388 = vunpack.c.h.b16 %v4071
    %v5389 = vunpack.c.l.b16 %v4072
    %v5390 = vunpack.c.h.b16 %v4072
    %v5391 = vunpack.c.l.b16 %v4073
    %v5392 = vunpack.c.h.b16 %v4073
    %v5393 = vunpack.c.l.b16 %v4074
    %v5394 = vunpack.c.h.b16 %v4074
    %v5395 = vunpack.c.l.b16 %v4075
    %v5396 = vunpack.c.h.b16 %v4075
    %v5397 = vunpack.c.l.b16 %v4076
    %v5398 = vunpack.c.h.b16 %v4076
    %v5399 = vunpack.c.l.b16 %v4077
    %v5400 = vunpack.c.h.b16 %v4077
    %v5401 = vunpack.c.l.b16 %v4078
    %v5402 = vunpack.c.h.b16 %v4078
    %v5403 = vunpack.c.l.b16 %v4079
    %v5404 = vunpack.c.h.b16 %v4079
    %v5405 = vunpack.c.l.b16 %v4080
    %v5406 = vunpack.c.h.b16 %v4080
    %v5407 = vunpack.c.l.b16 %v4081
    %v5408 = vunpack.c.h.b16 %v4081
    %v5409 = vunpack.c.l.b16 %v4082
    %v5410 = vunpack.c.h.b16 %v4082
    %v5411 = vunpack.c.l.b16 %v4083
    %v5412 = vunpack.c.h.b16 %v4083
    %v5413 = vunpack.c.l.b16 %v4084
    %v5414 = vunpack.c.h.b16 %v4084
    %v5415 = vunpack.c.l.b16 %v4085
    %v5416 = vunpack.c.h.b16 %v4085
    %v5417 = vunpack.c.l.b16 %v4086
    %v5418 = vunpack.c.h.b16 %v4086
    %v5419 = vunpack.c.l.b16 %v4087
    %v5420 = vunpack.c.h.b16 %v4087
    %v5421 = vunpack.c.l.b16 %v4088
    %v5422 = vunpack.c.h.b16 %v4088
    %v5423 = vunpack.c.l.b16 %v4089
    %v5424 = vunpack.c.h.b16 %v4089
    %v5425 = vunpack.c.l.b16 %v4090
    %v5426 = vunpack.c.h.b16 %v4090
    %v5427 = vunpack.c.l.b16 %v4091
    %v5428 = vunpack.c.h.b16 %v4091
    %v5429 = vunpack.c.l.b16 %v4092
    %v5430 = vunpack.c.h.b16 %v4092
    %v5431 = vunpack.c.l.b16 %v4093
    %v5432 = vunpack.c.h.b16 %v4093
    %v5433 = vunpack.c.l.b16 %v4094
    %v5434 = vunpack.c.h.b16 %v4094
    %v5435 = vunpack.c.l.b16 %v4095
    %v5436 = vunpack.c.h.b16 %v4095
    %v5437 = vunpack.c.l.b16 %v4096
    %v5438 = vunpack.c.h.b16 %v4096
    %v5439 = vunpack.c.l.b16 %v4097
    %v5440 = vunpack.c.h.b16 %v4097
    %v5441 = vunpack.c.l.b16 %v4098
    %v5442 = vunpack.c.h.b16 %v4098
    %v5443 = vunpack.c.l.b16 %v4099
    %v5444 = vunpack.c.h.b16 %v4099
    %v5445 = vunpack.c.l.b16 %v4100
    %v5446 = vunpack.c.h.b16 %v4100
    %v5447 = vunpack.c.l.b16 %v4101
    %v5448 = vunpack.c.h.b16 %v4101
    %v5449 = vunpack.c.l.b16 %v4102
    %v5450 = vunpack.c.h.b16 %v4102
    %v5451 = vunpack.c.l.b16 %v4103
    %v5452 = vunpack.c.h.b16 %v4103
    %v5453 = vunpack.c.l.b16 %v4104
    %v5454 = vunpack.c.h.b16 %v4104
    %v5455 = vunpack.c.l.b16 %v4105
    %v5456 = vunpack.c.h.b16 %v4105
    %v5457 = vunpack.c.l.b16 %v4106
    %v5458 = vunpack.c.h.b16 %v4106
    %v5459 = vunpack.c.l.b16 %v4107
    %v5460 = vunpack.c.h.b16 %v4107
    %v5461 = vunpack.c.l.b16 %v4108
    %v5462 = vunpack.c.h.b16 %v4108
    %v5463 = vunpack.c.l.b16 %v4109
    %v5464 = vunpack.c.h.b16 %v4109
    %v5465 = vunpack.c.l.b16 %v4110
    %v5466 = vunpack.c.h.b16 %v4110
    %v5467 = vunpack.c.l.b16 %v4111
    %v5468 = vunpack.c.h.b16 %v4111
    %v5469 = vunpack.c.l.b16 %v4112
    %v5470 = vunpack.c.h.b16 %v4112
    %v5471 = vunpack.c.l.b16 %v4113
    %v5472 = vunpack.c.h.b16 %v4113
    %v5473 = vunpack.c.l.b16 %v4114
    %v5474 = vunpack.c.h.b16 %v4114
    %v5475 = vunpack.c.l.b16 %v4115
    %v5476 = vunpack.c.h.b16 %v4115
    %v5477 = vunpack.c.l.b16 %v4116
    %v5478 = vunpack.c.h.b16 %v4116
    %v5479 = vunpack.c.l.b16 %v4117
    %v5480 = vunpack.c.h.b16 %v4117
    %v5481 = vunpack.c.l.b16 %v4118
    %v5482 = vunpack.c.h.b16 %v4118
    %v5483 = vunpack.c.l.b16 %v4119
    %v5484 = vunpack.c.h.b16 %v4119
    %v5485 = vunpack.c.l.b16 %v4120
    %v5486 = vunpack.c.h.b16 %v4120
    %v5487 = vunpack.c.l.b16 %v4121
    %v5488 = vunpack.c.h.b16 %v4121
    %v5489 = vunpack.c.l.b16 %v4122
    %v5490 = vunpack.c.h.b16 %v4122
    %v5491 = vunpack.c.l.b16 %v4123
    %v5492 = vunpack.c.h.b16 %v4123
    %v5493 = vunpack.c.l.b16 %v4124
    %v5494 = vunpack.c.h.b16 %v4124
    %v5495 = vunpack.c.l.b16 %v4125
    %v5496 = vunpack.c.h.b16 %v4125
    %v5497 = vunpack.c.l.b16 %v4126
    %v5498 = vunpack.c.h.b16 %v4126
    %v5499 = vunpack.c.l.b16 %v4127
    %v5500 = vunpack.c.h.b16 %v4127
    %v5501 = vunpack.c.l.b16 %v4128
    %v5502 = vunpack.c.h.b16 %v4128
    %v5503 = vunpack.c.l.b16 %v4129
    %v5504 = vunpack.c.h.b16 %v4129
    %v5505 = vunpack.c.l.b16 %v4130
    %v5506 = vunpack.c.h.b16 %v4130
    %v5507 = vunpack.c.l.b16 %v4131
    %v5508 = vunpack.c.h.b16 %v4131
    %v5509 = vunpack.c.l.b16 %v4132
    %v5510 = vunpack.c.h.b16 %v4132
    %v5511 = vunpack.c.l.b16 %v4133
    %v5512 = vunpack.c.h.b16 %v4133
    %v5513 = vunpack.c.l.b16 %v4134
    %v5514 = vunpack.c.h.b16 %v4134
    %v5515 = vunpack.c.l.b16 %v4135
    %v5516 = vunpack.c.h.b16 %v4135
    %v5517 = vunpack.c.l.b16 %v4136
    %v5518 = vunpack.c.h.b16 %v4136
    %v5519 = vunpack.c.l.b16 %v4137
    %v5520 = vunpack.c.h.b16 %v4137
    %v5521 = vunpack.c.l.b16 %v4138
    %v5522 = vunpack.c.h.b16 %v4138
    %v5523 = vunpack.c.l.b16 %v4139
    %v5524 = vunpack.c.h.b16 %v4139
    %v5525 = vunpack.c.l.b16 %v4140
    %v5526 = vunpack.c.h.b16 %v4140
    %v5527 = vunpack.c.l.b16 %v4141
    %v5528 = vunpack.c.h.b16 %v4141
    %v5529 = vunpack.c.l.b16 %v4142
    %v5530 = vunpack.c.h.b16 %v4142
    %v5531 = vunpack.c.l.b16 %v4143
    %v5532 = vunpack.c.h.b16 %v4143
    %v5533 = vunpack.c.l.b16 %v4144
    %v5534 = vunpack.c.h.b16 %v4144
    %v5535 = vunpack.c.l.b16 %v4145
    %v5536 = vunpack.c.h.b16 %v4145
    %v5537 = vunpack.c.l.b16 %v4146
    %v5538 = vunpack.c.h.b16 %v4146
    %v5539 = vunpack.c.l.b16 %v4147
    %v5540 = vunpack.c.h.b16 %v4147
    %v5541 = vunpack.c.l.b16 %v4148
    %v5542 = vunpack.c.h.b16 %v4148
    %v5543 = vunpack.c.l.b16 %v4149
    %v5544 = vunpack.c.h.b16 %v4149
    %v5545 = vunpack.c.l.b16 %v4150
    %v5546 = vunpack.c.h.b16 %v4150
    %v5547 = vunpack.c.l.b16 %v4151
    %v5548 = vunpack.c.h.b16 %v4151
    %v5549 = vunpack.c.l.b16 %v4152
    %v5550 = vunpack.c.h.b16 %v4152
    %v5551 = vunpack.c.l.b16 %v4153
    %v5552 = vunpack.c.h.b16 %v4153
    %v5553 = vunpack.c.l.b16 %v4154
    %v5554 = vunpack.c.h.b16 %v4154
    %v5555 = vunpack.c.l.b16 %v4155
    %v5556 = vunpack.c.h.b16 %v4155
    %v5557 = vunpack.c.l.b16 %v4156
    %v5558 = vunpack.c.h.b16 %v4156
    %v5559 = vunpack.c.l.b16 %v4157
    %v5560 = vunpack.c.h.b16 %v4157
    %v5561 = vunpack.c.l.b16 %v4158
    %v5562 = vunpack.c.h.b16 %v4158
    %v5563 = vunpack.c.l.b16 %v4159
    %v5564 = vunpack.c.h.b16 %v4159
    %v5565 = vunpack.c.l.b16 %v4160
    %v5566 = vunpack.c.h.b16 %v4160
    %v5567 = vunpack.c.l.b16 %v4161
    %v5568 = vunpack.c.h.b16 %v4161
    %v5569 = vunpack.c.l.b16 %v4162
    %v5570 = vunpack.c.h.b16 %v4162
    %v5571 = vunpack.c.l.b16 %v4163
    %v5572 = vunpack.c.h.b16 %v4163
    %v5573 = vunpack.c.l.b16 %v4164
    %v5574 = vunpack.c.h.b16 %v4164
    %v5575 = vunpack.c.l.b16 %v4165
    %v5576 = vunpack.c.h.b16 %v4165
    %v5577 = vunpack.c.l.b16 %v4166
    %v5578 = vunpack.c.h.b16 %v4166
    %v5579 = vunpack.c.l.b16 %v4167
    %v5580 = vunpack.c.h.b16 %v4167
    %v5581 = vunpack.c.l.b16 %v4168
    %v5582 = vunpack.c.h.b16 %v4168
    %v5583 = vunpack.c.l.b16 %v4169
    %v5584 = vunpack.c.h.b16 %v4169
    %v5585 = vunpack.c.l.b16 %v4170
    %v5586 = vunpack.c.h.b16 %v4170
    %v5587 = vunpack.c.l.b16 %v4171
    %v5588 = vunpack.c.h.b16 %v4171
    %v5589 = vunpack.c.l.b16 %v4172
    %v5590 = vunpack.c.h.b16 %v4172
    %v5591 = vunpack.c.l.b16 %v4173
    %v5592 = vunpack.c.h.b16 %v4173
    %v5593 = vunpack.c.l.b16 %v4174
    %v5594 = vunpack.c.h.b16 %v4174
    %v5595 = vunpack.c.l.b16 %v4175
    %v5596 = vunpack.c.h.b16 %v4175
    %v5597 = vunpack.c.l.b16 %v4176
    %v5598 = vunpack.c.h.b16 %v4176
    %v5599 = vunpack.c.l.b16 %v4177
    %v5600 = vunpack.c.h.b16 %v4177
    %v5601 = vunpack.c.l.b16 %v4178
    %v5602 = vunpack.c.h.b16 %v4178
    %v5603 = vunpack.c.l.b16 %v4179
    %v5604 = vunpack.c.h.b16 %v4179
    %v5605 = vunpack.c.l.b16 %v4180
    %v5606 = vunpack.c.h.b16 %v4180
    %v5607 = vunpack.c.l.b16 %v4181
    %v5608 = vunpack.c.h.b16 %v4181
    %v5609 = vunpack.c.l.b16 %v4182
    %v5610 = vunpack.c.h.b16 %v4182
    %v5611 = vunpack.c.l.b16 %v4183
    %v5612 = vunpack.c.h.b16 %v4183
    %v5613 = vunpack.c.l.b16 %v4184
    %v5614 = vunpack.c.h.b16 %v4184
    %v5615 = vunpack.c.l.b16 %v4185
    %v5616 = vunpack.c.h.b16 %v4185
    %v5617 = vunpack.c.l.b16 %v4186
    %v5618 = vunpack.c.h.b16 %v4186
    %v5619 = vunpack.c.l.b16 %v4187
    %v5620 = vunpack.c.h.b16 %v4187
    %v5621 = vunpack.c.l.b16 %v4188
    %v5622 = vunpack.c.h.b16 %v4188
    %v5623 = vunpack.c.l.b16 %v4189
    %v5624 = vunpack.c.h.b16 %v4189
    %v5625 = vunpack.c.l.b16 %v4190
    %v5626 = vunpack.c.h.b16 %v4190
    %v5627 = vunpack.c.l.b16 %v4191
    %v5628 = vunpack.c.h.b16 %v4191
    %v5629 = vunpack.c.l.b16 %v4192
    %v5630 = vunpack.c.h.b16 %v4192
    %v5631 = vunpack.c.l.b16 %v4193
    %v5632 = vunpack.c.h.b16 %v4193
    %v5633 = vunpack.c.l.b16 %v4194
    %v5634 = vunpack.c.h.b16 %v4194
    %v5635 = vunpack.c.l.b16 %v4195
    %v5636 = vunpack.c.h.b16 %v4195
    %v5637 = vunpack.c.l.b16 %v4196
    %v5638 = vunpack.c.h.b16 %v4196
    %v5639 = vunpack.c.l.b16 %v4197
    %v5640 = vunpack.c.h.b16 %v4197
    %v5641 = vunpack.c.l.b16 %v4198
    %v5642 = vunpack.c.h.b16 %v4198
    %v5643 = vunpack.c.l.b16 %v4199
    %v5644 = vunpack.c.h.b16 %v4199
    %v5645 = vunpack.c.l.b16 %v4200
    %v5646 = vunpack.c.h.b16 %v4200
    %v5647 = vunpack.c.l.b16 %v4201
    %v5648 = vunpack.c.h.b16 %v4201
    %v5649 = vunpack.c.l.b16 %v4202
    %v5650 = vunpack.c.h.b16 %v4202
    %v5651 = vunpack.c.l.b16 %v4203
    %v5652 = vunpack.c.h.b16 %v4203
    %v5653 = vunpack.c.l.b16 %v4204
    %v5654 = vunpack.c.h.b16 %v4204
    %v5655 = vunpack.c.l.b16 %v4205
    %v5656 = vunpack.c.h.b16 %v4205
    %v5657 = vunpack.c.l.b16 %v4206
    %v5658 = vunpack.c.h.b16 %v4206
    %v5659 = vunpack.c.l.b16 %v4207
    %v5660 = vunpack.c.h.b16 %v4207
    %v5661 = vunpack.c.l.b16 %v4208
    %v5662 = vunpack.c.h.b16 %v4208
    %v5663 = vunpack.c.l.b16 %v4209
    %v5664 = vunpack.c.h.b16 %v4209
    %v5665 = vunpack.c.l.b16 %v4210
    %v5666 = vunpack.c.h.b16 %v4210
    %v5667 = vunpack.c.l.b16 %v4211
    %v5668 = vunpack.c.h.b16 %v4211
    %v5669 = vunpack.c.l.b16 %v4212
    %v5670 = vunpack.c.h.b16 %v4212
    %v5671 = vunpack.c.l.b16 %v4213
    %v5672 = vunpack.c.h.b16 %v4213
    %v5673 = vunpack.c.l.b16 %v4214
    %v5674 = vunpack.c.h.b16 %v4214
    %v5675 = vunpack.c.l.b16 %v4215
    %v5676 = vunpack.c.h.b16 %v4215
    %v5677 = vunpack.c.l.b16 %v4216
    %v5678 = vunpack.c.h.b16 %v4216
    %v5679 = vunpack.c.l.b16 %v4217
    %v5680 = vunpack.c.h.b16 %v4217
    %v5681 = vunpack.c.l.b16 %v4218
    %v5682 = vunpack.c.h.b16 %v4218
    %v5683 = vunpack.c.l.b16 %v4219
    %v5684 = vunpack.c.h.b16 %v4219
    %v5685 = vunpack.c.l.b16 %v4220
    %v5686 = vunpack.c.h.b16 %v4220
    %v5687 = vunpack.c.l.b16 %v4221
    %v5688 = vunpack.c.h.b16 %v4221
    %v5689 = vunpack.c.l.b16 %v4222
    %v5690 = vunpack.c.h.b16 %v4222
    %v5691 = vunpack.c.l.b16 %v4223
    %v5692 = vunpack.c.h.b16 %v4223
    %v5693 = vunpack.c.l.b16 %v4224
    %v5694 = vunpack.c.h.b16 %v4224
    %v5695 = vunpack.c.l.b16 %v4225
    %v5696 = vunpack.c.h.b16 %v4225
    %v5697 = vunpack.c.l.b16 %v4226
    %v5698 = vunpack.c.h.b16 %v4226
    %v5699 = vunpack.c.l.b16 %v4227
    %v5700 = vunpack.c.h.b16 %v4227
    %v5701 = vunpack.c.l.b16 %v4228
    %v5702 = vunpack.c.h.b16 %v4228
    %v5703 = vunpack.c.l.b16 %v4229
    %v5704 = vunpack.c.h.b16 %v4229
    %v5705 = vunpack.c.l.b16 %v4230
    %v5706 = vunpack.c.h.b16 %v4230
    %v5707 = vunpack.c.l.b16 %v4231
    %v5708 = vunpack.c.h.b16 %v4231
    %v5709 = vunpack.c.l.b16 %v4232
    %v5710 = vunpack.c.h.b16 %v4232
    %v5711 = vunpack.c.l.b16 %v4233
    %v5712 = vunpack.c.h.b16 %v4233
    %v5713 = vunpack.c.l.b16 %v4234
    %v5714 = vunpack.c.h.b16 %v4234
    %v5715 = vunpack.c.l.b16 %v4235
    %v5716 = vunpack.c.h.b16 %v4235
    %v5717 = vunpack.c.l.b16 %v4236
    %v5718 = vunpack.c.h.b16 %v4236
    %v5719 = vunpack.c.l.b16 %v4237
    %v5720 = vunpack.c.h.b16 %v4237
    %v5721 = vunpack.c.l.b16 %v4238
    %v5722 = vunpack.c.h.b16 %v4238
    %v5723 = vunpack.c.l.b16 %v4239
    %v5724 = vunpack.c.h.b16 %v4239
    %v5725 = vunpack.c.l.b16 %v4240
    %v5726 = vunpack.c.h.b16 %v4240
    %v5727 = vunpack.c.l.b16 %v4241
    %v5728 = vunpack.c.h.b16 %v4241
    %v5729 = vunpack.c.l.b16 %v4242
    %v5730 = vunpack.c.h.b16 %v4242
    %v5731 = vunpack.c.l.b16 %v4243
    %v5732 = vunpack.c.h.b16 %v4243
    %v5733 = vunpack.c.l.b16 %v4244
    %v5734 = vunpack.c.h.b16 %v4244
    %v5735 = vunpack.c.l.b16 %v4245
    %v5736 = vunpack.c.h.b16 %v4245
    %v5737 = vunpack.c.l.b16 %v4246
    %v5738 = vunpack.c.h.b16 %v4246
    %v5739 = vunpack.c.l.b16 %v4247
    %v5740 = vunpack.c.h.b16 %v4247
    %v5741 = vunpack.c.l.b16 %v4248
    %v5742 = vunpack.c.h.b16 %v4248
    %v5743 = vunpack.c.l.b16 %v4249
    %v5744 = vunpack.c.h.b16 %v4249
    %v5745 = vunpack.c.l.b16 %v4250
    %v5746 = vunpack.c.h.b16 %v4250
    %v5747 = vunpack.c.l.b16 %v4251
    %v5748 = vunpack.c.h.b16 %v4251
    %v5749 = vunpack.c.l.b16 %v4252
    %v5750 = vunpack.c.h.b16 %v4252
    %v5751 = vunpack.c.l.b16 %v4253
    %v5752 = vunpack.c.h.b16 %v4253
    %v5753 = vunpack.c.l.b16 %v4254
    %v5754 = vunpack.c.h.b16 %v4254
    %v5755 = vunpack.c.l.b16 %v4255
    %v5756 = vunpack.c.h.b16 %v4255
    %v5757 = vunpack.c.l.b16 %v4256
    %v5758 = vunpack.c.h.b16 %v4256
    %v5759 = vunpack.c.l.b16 %v4257
    %v5760 = vunpack.c.h.b16 %v4257
    %v5761 = vunpack.c.l.b16 %v4258
    %v5762 = vunpack.c.h.b16 %v4258
    %v5763 = vunpack.c.l.b16 %v4259
    %v5764 = vunpack.c.h.b16 %v4259
    %v5765 = vunpack.c.l.b16 %v4260
    %v5766 = vunpack.c.h.b16 %v4260
    %v5767 = vunpack.c.l.b16 %v4261
    %v5768 = vunpack.c.h.b16 %v4261
    %v5769 = vunpack.c.l.b16 %v4262
    %v5770 = vunpack.c.h.b16 %v4262
    %v5771 = vunpack.c.l.b16 %v4263
    %v5772 = vunpack.c.h.b16 %v4263
    %v5773 = vunpack.c.l.b16 %v4264
    %v5774 = vunpack.c.h.b16 %v4264
    %v5775 = vunpack.c.l.b16 %v4265
    %v5776 = vunpack.c.h.b16 %v4265
    %v5777 = vunpack.c.l.b16 %v4266
    %v5778 = vunpack.c.h.b16 %v4266
    %v5779 = vunpack.c.l.b16 %v4267
    %v5780 = vunpack.c.h.b16 %v4267
    %v5781 = vunpack.c.l.b16 %v4268
    %v5782 = vunpack.c.h.b16 %v4268
    %v5783 = vunpack.c.l.b16 %v4269
    %v5784 = vunpack.c.h.b16 %v4269
    %v5785 = vunpack.c.l.b16 %v4270
    %v5786 = vunpack.c.h.b16 %v4270
    %v5787 = vunpack.c.l.b16 %v4271
    %v5788 = vunpack.c.h.b16 %v4271
    %v5789 = vunpack.c.l.b16 %v4272
    %v5790 = vunpack.c.h.b16 %v4272
    %v5791 = vunpack.c.l.b16 %v4273
    %v5792 = vunpack.c.h.b16 %v4273
    %v5793 = vunpack.c.l.b16 %v4274
    %v5794 = vunpack.c.h.b16 %v4274
    %v5795 = vunpack.c.l.b16 %v4275
    %v5796 = vunpack.c.h.b16 %v4275
    %v5797 = vunpack.c.l.b16 %v4276
    %v5798 = vunpack.c.h.b16 %v4276
    %v5799 = vunpack.c.l.b16 %v4277
    %v5800 = vunpack.c.h.b16 %v4277
    %v5801 = vunpack.c.l.b16 %v4278
    %v5802 = vunpack.c.h.b16 %v4278
    %v5803 = vunpack.c.l.b16 %v4279
    %v5804 = vunpack.c.h.b16 %v4279
    %v5805 = vunpack.c.l.b16 %v4280
    %v5806 = vunpack.c.h.b16 %v4280
    %v5807 = vunpack.c.l.b16 %v4281
    %v5808 = vunpack.c.h.b16 %v4281
    %v5809 = vunpack.c.l.b16 %v4282
    %v5810 = vunpack.c.h.b16 %v4282
    %v5811 = vunpack.c.l.b16 %v4283
    %v5812 = vunpack.c.h.b16 %v4283
    %v5813 = vunpack.c.l.b16 %v4284
    %v5814 = vunpack.c.h.b16 %v4284
    %v5815 = vunpack.c.l.b16 %v4285
    %v5816 = vunpack.c.h.b16 %v4285
    %v5817 = vunpack.c.l.b16 %v4286
    %v5818 = vunpack.c.h.b16 %v4286
    %v5819 = vunpack.c.l.b16 %v4287
    %v5820 = vunpack.c.h.b16 %v4287
    %v5821 = vunpack.c.l.b16 %v4288
    %v5822 = vunpack.c.h.b16 %v4288
    %v5823 = vunpack.c.l.b16 %v4289
    %v5824 = vunpack.c.h.b16 %v4289
    %v5825 = vunpack.c.l.b16 %v4290
    %v5826 = vunpack.c.h.b16 %v4290
    %v5827 = vunpack.c.l.b16 %v4291
    %v5828 = vunpack.c.h.b16 %v4291
    %v5829 = vunpack.c.l.b16 %v4292
    %v5830 = vunpack.c.h.b16 %v4292
    %v5831 = vunpack.c.l.b16 %v4293
    %v5832 = vunpack.c.h.b16 %v4293
    %v5833 = vunpack.c.l.b16 %v4294
    %v5834 = vunpack.c.h.b16 %v4294
    %v5835 = vunpack.c.l.b16 %v4295
    %v5836 = vunpack.c.h.b16 %v4295
    %v5837 = vunpack.c.l.b16 %v4296
    %v5838 = vunpack.c.h.b16 %v4296
    %v5839 = vunpack.c.l.b16 %v4297
    %v5840 = vunpack.c.h.b16 %v4297
    %v5841 = vunpack.c.l.b16 %v4298
    %v5842 = vunpack.c.h.b16 %v4298
    %v5843 = vunpack.c.l.b16 %v4299
    %v5844 = vunpack.c.h.b16 %v4299
    %v5845 = vunpack.c.l.b16 %v4300
    %v5846 = vunpack.c.h.b16 %v4300
    %v5847 = vunpack.c.l.b16 %v4301
    %v5848 = vunpack.c.h.b16 %v4301
    %v5849 = vunpack.c.l.b16 %v4302
    %v5850 = vunpack.c.h.b16 %v4302
    %v5851 = vunpack.c.l.b16 %v4303
    %v5852 = vunpack.c.h.b16 %v4303
    %v5853 = vunpack.c.l.b16 %v4304
    %v5854 = vunpack.c.h.b16 %v4304
    %v5855 = vunpack.c.l.b16 %v4305
    %v5856 = vunpack.c.h.b16 %v4305
    %v5857 = vunpack.c.l.b16 %v4306
    %v5858 = vunpack.c.h.b16 %v4306
    %v5859 = vunpack.c.l.b16 %v4307
    %v5860 = vunpack.c.h.b16 %v4307
    %v5861 = vunpack.c.l.b16 %v4308
    %v5862 = vunpack.c.h.b16 %v4308
    %v5863 = vunpack.c.l.b16 %v4309
    %v5864 = vunpack.c.h.b16 %v4309
    %v5865 = vunpack.c.l.b16 %v4310
    %v5866 = vunpack.c.h.b16 %v4310
    %v5867 = vunpack.c.l.b16 %v4311
    %v5868 = vunpack.c.h.b16 %v4311
    %v5869 = vunpack.c.l.b16 %v4312
    %v5870 = vunpack.c.h.b16 %v4312
    %v5871 = vunpack.c.l.b16 %v4313
    %v5872 = vunpack.c.h.b16 %v4313
    %v5873 = vunpack.c.l.b16 %v4314
    %v5874 = vunpack.c.h.b16 %v4314
    %v5875 = vunpack.c.l.b16 %v4315
    %v5876 = vunpack.c.h.b16 %v4315
    %v5877 = vunpack.c.l.b16 %v4316
    %v5878 = vunpack.c.h.b16 %v4316
    %v5879 = vunpack.c.l.b16 %v4317
    %v5880 = vunpack.c.h.b16 %v4317
    %v5881 = vunpack.c.l.b16 %v4318
    %v5882 = vunpack.c.h.b16 %v4318
    %v5883 = vunpack.c.l.b16 %v4319
    %v5884 = vunpack.c.h.b16 %v4319
    %v5885 = vunpack.c.l.b16 %v4320
    %v5886 = vunpack.c.h.b16 %v4320
    %v5887 = vunpack.c.l.b16 %v4321
    %v5888 = vunpack.c.h.b16 %v4321
    %v5889 = vunpack.c.l.b16 %v4322
    %v5890 = vunpack.c.h.b16 %v4322
    %v5891 = vunpack.c.l.b16 %v4323
    %v5892 = vunpack.c.h.b16 %v4323
    %v5893 = vunpack.c.l.b16 %v4324
    %v5894 = vunpack.c.h.b16 %v4324
    %v5895 = vunpack.c.l.b16 %v4325
    %v5896 = vunpack.c.h.b16 %v4325
    %v5897 = vunpack.c.l.b16 %v4326
    %v5898 = vunpack.c.h.b16 %v4326
    %v5899 = vunpack.c.l.b16 %v4327
    %v5900 = vunpack.c.h.b16 %v4327
    %v5901 = vunpack.c.l.b16 %v4328
    %v5902 = vunpack.c.h.b16 %v4328
    %v5903 = vunpack.c.l.b16 %v4329
    %v5904 = vunpack.c.h.b16 %v4329
    %v5905 = vunpack.c.l.b16 %v4330
    %v5906 = vunpack.c.h.b16 %v4330
    %v5907 = vunpack.c.l.b16 %v4331
    %v5908 = vunpack.c.h.b16 %v4331
    %v5909 = vunpack.c.l.b16 %v4332
    %v5910 = vunpack.c.h.b16 %v4332
    %v5911 = vpack.c.b16 %v4895, %v4887
    %v5912 = vpack.c.b16 %v4896, %v4888
    %v5913 = vpack.c.b16 %v4897, %v4889
    %v5914 = vpack.c.b16 %v4898, %v4890
    %v5915 = vpack.c.b16 %v4899, %v4891
    %v5916 = vpack.c.b16 %v4900, %v4892
    %v5917 = vpack.c.b16 %v4901, %v4893
    %v5918 = vpack.c.b16 %v4902, %v4894
    %v5919 = vpack.c.b16 %v4911, %v4903
    %v5920 = vpack.c.b16 %v4912, %v4904
    %v5921 = vpack.c.b16 %v4913, %v4905
    %v5922 = vpack.c.b16 %v4914, %v4906
    %v5923 = vpack.c.b16 %v4915, %v4907
    %v5924 = vpack.c.b16 %v4916, %v4908
    %v5925 = vpack.c.b16 %v4917, %v4909
    %v5926 = vpack.c.b16 %v4918, %v4910
    %v5927 = vpack.c.b16 %v4927, %v4919
    %v5928 = vpack.c.b16 %v4928, %v4920
    %v5929 = vpack.c.b16 %v4929, %v4921
    %v5930 = vpack.c.b16 %v4930, %v4922
    %v5931 = vpack.c.b16 %v4931, %v4923
    %v5932 = vpack.c.b16 %v4932, %v4924
    %v5933 = vpack.c.b16 %v4933, %v4925
    %v5934 = vpack.c.b16 %v4934, %v4926
    %v5935 = vpack.c.b16 %v4943, %v4935
    %v5936 = vpack.c.b16 %v4944, %v4936
    %v5937 = vpack.c.b16 %v4945, %v4937
    %v5938 = vpack.c.b16 %v4946, %v4938
    %v5939 = vpack.c.b16 %v4947, %v4939
    %v5940 = vpack.c.b16 %v4948, %v4940
    %v5941 = vpack.c.b16 %v4949, %v4941
    %v5942 = vpack.c.b16 %v4950, %v4942
    %v5943 = vpack.c.b16 %v4959, %v4951
    %v5944 = vpack.c.b16 %v4960, %v4952
    %v5945 = vpack.c.b16 %v4961, %v4953
    %v5946 = vpack.c.b16 %v4962, %v4954
    %v5947 = vpack.c.b16 %v4963, %v4955
    %v5948 = vpack.c.b16 %v4964, %v4956
    %v5949 = vpack.c.b16 %v4965, %v4957
    %v5950 = vpack.c.b16 %v4966, %v4958
    %v5951 = vpack.c.b16 %v4975, %v4967
    %v5952 = vpack.c.b16 %v4976, %v4968
    %v5953 = vpack.c.b16 %v4977, %v4969
    %v5954 = vpack.c.b16 %v4978, %v4970
    %v5955 = vpack.c.b16 %v4979, %v4971
    %v5956 = vpack.c.b16 %v4980, %v4972
    %v5957 = vpack.c.b16 %v4981, %v4973
    %v5958 = vpack.c.b16 %v4982, %v4974
    %v5959 = vpack.c.b16 %v4991, %v4983
    %v5960 = vpack.c.b16 %v4992, %v4984
    %v5961 = vpack.c.b16 %v4993, %v4985
    %v5962 = vpack.c.b16 %v4994, %v4986
    %v5963 = vpack.c.b16 %v4995, %v4987
    %v5964 = vpack.c.b16 %v4996, %v4988
    %v5965 = vpack.c.b16 %v4997, %v4989
    %v5966 = vpack.c.b16 %v4998, %v4990
    %v5967 = vpack.c.b16 %v5007, %v4999
    %v5968 = vpack.c.b16 %v5008, %v5000
    %v5969 = vpack.c.b16 %v5009, %v5001
    %v5970 = vpack.c.b16 %v5010, %v5002
    %v5971 = vpack.c.b16 %v5011, %v5003
    %v5972 = vpack.c.b16 %v5012, %v5004
    %v5973 = vpack.c.b16 %v5013, %v5005
    %v5974 = vpack.c.b16 %v5014, %v5006
    %v5975 = vpack.c.b16 %v5023, %v5015
    %v5976 = vpack.c.b16 %v5024, %v5016
    %v5977 = vpack.c.b16 %v5025, %v5017
    %v5978 = vpack.c.b16 %v5026, %v5018
    %v5979 = vpack.c.b16 %v5027, %v5019
    %v5980 = vpack.c.b16 %v5028, %v5020
    %v5981 = vpack.c.b16 %v5029, %v5021
    %v5982 = vpack.c.b16 %v5030, %v5022
    %v5983 = vpack.c.b16 %v5039, %v5031
    %v5984 = vpack.c.b16 %v5040, %v5032
    %v5985 = vpack.c.b16 %v5041, %v5033
    %v5986 = vpack.c.b16 %v5042, %v5034
    %v5987 = vpack.c.b16 %v5043, %v5035
    %v5988 = vpack.c.b16 %v5044, %v5036
    %v5989 = vpack.c.b16 %v5045, %v5037
    %v5990 = vpack.c.b16 %v5046, %v5038
    %v5991 = vpack.c.b16 %v5055, %v5047
    %v5992 = vpack.c.b16 %v5056, %v5048
    %v5993 = vpack.c.b16 %v5057, %v5049
    %v5994 = vpack.c.b16 %v5058, %v5050
    %v5995 = vpack.c.b16 %v5059, %v5051
    %v5996 = vpack.c.b16 %v5060, %v5052
    %v5997 = vpack.c.b16 %v5061, %v5053
    %v5998 = vpack.c.b16 %v5062, %v5054
    %v5999 = vpack.c.b16 %v5071, %v5063
    %v6000 = vpack.c.b16 %v5072, %v5064
    %v6001 = vpack.c.b16 %v5073, %v5065
    %v6002 = vpack.c.b16 %v5074, %v5066
    %v6003 = vpack.c.b16 %v5075, %v5067
    %v6004 = vpack.c.b16 %v5076, %v5068
    %v6005 = vpack.c.b16 %v5077, %v5069
    %v6006 = vpack.c.b16 %v5078, %v5070
    %v6007 = vpack.c.b16 %v5087, %v5079
    %v6008 = vpack.c.b16 %v5088, %v5080
    %v6009 = vpack.c.b16 %v5089, %v5081
    %v6010 = vpack.c.b16 %v5090, %v5082
    %v6011 = vpack.c.b16 %v5091, %v5083
    %v6012 = vpack.c.b16 %v5092, %v5084
    %v6013 = vpack.c.b16 %v5093, %v5085
    %v6014 = vpack.c.b16 %v5094, %v5086
    %v6015 = vpack.c.b16 %v5103, %v5095
    %v6016 = vpack.c.b16 %v5104, %v5096
    %v6017 = vpack.c.b16 %v5105, %v5097
    %v6018 = vpack.c.b16 %v5106, %v5098
    %v6019 = vpack.c.b16 %v5107, %v5099
    %v6020 = vpack.c.b16 %v5108, %v5100
    %v6021 = vpack.c.b16 %v5109, %v5101
    %v6022 = vpack.c.b16 %v5110, %v5102
    %v6023 = vpack.c.b16 %v5119, %v5111
    %v6024 = vpack.c.b16 %v5120, %v5112
    %v6025 = vpack.c.b16 %v5121, %v5113
    %v6026 = vpack.c.b16 %v5122, %v5114
    %v6027 = vpack.c.b16 %v5123, %v5115
    %v6028 = vpack.c.b16 %v5124, %v5116
    %v6029 = vpack.c.b16 %v5125, %v5117
    %v6030 = vpack.c.b16 %v5126, %v5118
    %v6031 = vpack.c.b16 %v5135, %v5127
    %v6032 = vpack.c.b16 %v5136, %v5128
    %v6033 = vpack.c.b16 %v5137, %v5129
    %v6034 = vpack.c.b16 %v5138, %v5130
    %v6035 = vpack.c.b16 %v5139, %v5131
    %v6036 = vpack.c.b16 %v5140, %v5132
    %v6037 = vpack.c.b16 %v5141, %v5133
    %v6038 = vpack.c.b16 %v5142, %v5134
    %v6039 = vpack.c.b16 %v5151, %v5143
    %v6040 = vpack.c.b16 %v5152, %v5144
    %v6041 = vpack.c.b16 %v5153, %v5145
    %v6042 = vpack.c.b16 %v5154, %v5146
    %v6043 = vpack.c.b16 %v5155, %v5147
    %v6044 = vpack.c.b16 %v5156, %v5148
    %v6045 = vpack.c.b16 %v5157, %v5149
    %v6046 = vpack.c.b16 %v5158, %v5150
    %v6047 = vpack.c.b16 %v5167, %v5159
    %v6048 = vpack.c.b16 %v5168, %v5160
    %v6049 = vpack.c.b16 %v5169, %v5161
    %v6050 = vpack.c.b16 %v5170, %v5162
    %v6051 = vpack.c.b16 %v5171, %v5163
    %v6052 = vpack.c.b16 %v5172, %v5164
    %v6053 = vpack.c.b16 %v5173, %v5165
    %v6054 = vpack.c.b16 %v5174, %v5166
    %v6055 = vpack.c.b16 %v5183, %v5175
    %v6056 = vpack.c.b16 %v5184, %v5176
    %v6057 = vpack.c.b16 %v5185, %v5177
    %v6058 = vpack.c.b16 %v5186, %v5178
    %v6059 = vpack.c.b16 %v5187, %v5179
    %v6060 = vpack.c.b16 %v5188, %v5180
    %v6061 = vpack.c.b16 %v5189, %v5181
    %v6062 = vpack.c.b16 %v5190, %v5182
    %v6063 = vpack.c.b16 %v5199, %v5191
    %v6064 = vpack.c.b16 %v5200, %v5192
    %v6065 = vpack.c.b16 %v5201, %v5193
    %v6066 = vpack.c.b16 %v5202, %v5194
    %v6067 = vpack.c.b16 %v5203, %v5195
    %v6068 = vpack.c.b16 %v5204, %v5196
    %v6069 = vpack.c.b16 %v5205, %v5197
    %v6070 = vpack.c.b16 %v5206, %v5198
    %v6071 = vpack.c.b16 %v5215, %v5207
    %v6072 = vpack.c.b16 %v5216, %v5208
    %v6073 = vpack.c.b16 %v5217, %v5209
    %v6074 = vpack.c.b16 %v5218, %v5210
    %v6075 = vpack.c.b16 %v5219, %v5211
    %v6076 = vpack.c.b16 %v5220, %v5212
    %v6077 = vpack.c.b16 %v5221, %v5213
    %v6078 = vpack.c.b16 %v5222, %v5214
    %v6079 = vpack.c.b16 %v5231, %v5223
    %v6080 = vpack.c.b16 %v5232, %v5224
    %v6081 = vpack.c.b16 %v5233, %v5225
    %v6082 = vpack.c.b16 %v5234, %v5226
    %v6083 = vpack.c.b16 %v5235, %v5227
    %v6084 = vpack.c.b16 %v5236, %v5228
    %v6085 = vpack.c.b16 %v5237, %v5229
    %v6086 = vpack.c.b16 %v5238, %v5230
    %v6087 = vpack.c.b16 %v5247, %v5239
    %v6088 = vpack.c.b16 %v5248, %v5240
    %v6089 = vpack.c.b16 %v5249, %v5241
    %v6090 = vpack.c.b16 %v5250, %v5242
    %v6091 = vpack.c.b16 %v5251, %v5243
    %v6092 = vpack.c.b16 %v5252, %v5244
    %v6093 = vpack.c.b16 %v5253, %v5245
    %v6094 = vpack.c.b16 %v5254, %v5246
    %v6095 = vpack.c.b16 %v5263, %v5255
    %v6096 = vpack.c.b16 %v5264, %v5256
    %v6097 = vpack.c.b16 %v5265, %v5257
    %v6098 = vpack.c.b16 %v5266, %v5258
    %v6099 = vpack.c.b16 %v5267, %v5259
    %v6100 = vpack.c.b16 %v5268, %v5260
    %v6101 = vpack.c.b16 %v5269, %v5261
    %v6102 = vpack.c.b16 %v5270, %v5262
    %v6103 = vpack.c.b16 %v5279, %v5271
    %v6104 = vpack.c.b16 %v5280, %v5272
    %v6105 = vpack.c.b16 %v5281, %v5273
    %v6106 = vpack.c.b16 %v5282, %v5274
    %v6107 = vpack.c.b16 %v5283, %v5275
    %v6108 = vpack.c.b16 %v5284, %v5276
    %v6109 = vpack.c.b16 %v5285, %v5277
    %v6110 = vpack.c.b16 %v5286, %v5278
    %v6111 = vpack.c.b16 %v5295, %v5287
    %v6112 = vpack.c.b16 %v5296, %v5288
    %v6113 = vpack.c.b16 %v5297, %v5289
    %v6114 = vpack.c.b16 %v5298, %v5290
    %v6115 = vpack.c.b16 %v5299, %v5291
    %v6116 = vpack.c.b16 %v5300, %v5292
    %v6117 = vpack.c.b16 %v5301, %v5293
    %v6118 = vpack.c.b16 %v5302, %v5294
    %v6119 = vpack.c.b16 %v5311, %v5303
    %v6120 = vpack.c.b16 %v5312, %v5304
    %v6121 = vpack.c.b16 %v5313, %v5305
    %v6122 = vpack.c.b16 %v5314, %v5306
    %v6123 = vpack.c.b16 %v5315, %v5307
    %v6124 = vpack.c.b16 %v5316, %v5308
    %v6125 = vpack.c.b16 %v5317, %v5309
    %v6126 = vpack.c.b16 %v5318, %v5310
    %v6127 = vpack.c.b16 %v5327, %v5319
    %v6128 = vpack.c.b16 %v5328, %v5320
    %v6129 = vpack.c.b16 %v5329, %v5321
    %v6130 = vpack.c.b16 %v5330, %v5322
    %v6131 = vpack.c.b16 %v5331, %v5323
    %v6132 = vpack.c.b16 %v5332, %v5324
    %v6133 = vpack.c.b16 %v5333, %v5325
    %v6134 = vpack.c.b16 %v5334, %v5326
    %v6135 = vpack.c.b16 %v5343, %v5335
    %v6136 = vpack.c.b16 %v5344, %v5336
    %v6137 = vpack.c.b16 %v5345, %v5337
    %v6138 = vpack.c.b16 %v5346, %v5338
    %v6139 = vpack.c.b16 %v5347, %v5339
    %v6140 = vpack.c.b16 %v5348, %v5340
    %v6141 = vpack.c.b16 %v5349, %v5341
    %v6142 = vpack.c.b16 %v5350, %v5342
    %v6143 = vpack.c.b16 %v5359, %v5351
    %v6144 = vpack.c.b16 %v5360, %v5352
    %v6145 = vpack.c.b16 %v5361, %v5353
    %v6146 = vpack.c.b16 %v5362, %v5354
    %v6147 = vpack.c.b16 %v5363, %v5355
    %v6148 = vpack.c.b16 %v5364, %v5356
    %v6149 = vpack.c.b16 %v5365, %v5357
    %v6150 = vpack.c.b16 %v5366, %v5358
    %v6151 = vpack.c.b16 %v5375, %v5367
    %v6152 = vpack.c.b16 %v5376, %v5368
    %v6153 = vpack.c.b16 %v5377, %v5369
    %v6154 = vpack.c.b16 %v5378, %v5370
    %v6155 = vpack.c.b16 %v5379, %v5371
    %v6156 = vpack.c.b16 %v5380, %v5372
    %v6157 = vpack.c.b16 %v5381, %v5373
    %v6158 = vpack.c.b16 %v5382, %v5374
    %v6159 = vpack.c.b16 %v5391, %v5383
    %v6160 = vpack.c.b16 %v5392, %v5384
    %v6161 = vpack.c.b16 %v5393, %v5385
    %v6162 = vpack.c.b16 %v5394, %v5386
    %v6163 = vpack.c.b16 %v5395, %v5387
    %v6164 = vpack.c.b16 %v5396, %v5388
    %v6165 = vpack.c.b16 %v5397, %v5389
    %v6166 = vpack.c.b16 %v5398, %v5390
    %v6167 = vpack.c.b16 %v5407, %v5399
    %v6168 = vpack.c.b16 %v5408, %v5400
    %v6169 = vpack.c.b16 %v5409, %v5401
    %v6170 = vpack.c.b16 %v5410, %v5402
    %v6171 = vpack.c.b16 %v5411, %v5403
    %v6172 = vpack.c.b16 %v5412, %v5404
    %v6173 = vpack.c.b16 %v5413, %v5405
    %v6174 = vpack.c.b16 %v5414, %v5406
    %v6175 = vpack.c.b16 %v5423, %v5415
    %v6176 = vpack.c.b16 %v5424, %v5416
    %v6177 = vpack.c.b16 %v5425, %v5417
    %v6178 = vpack.c.b16 %v5426, %v5418
    %v6179 = vpack.c.b16 %v5427, %v5419
    %v6180 = vpack.c.b16 %v5428, %v5420
    %v6181 = vpack.c.b16 %v5429, %v5421
    %v6182 = vpack.c.b16 %v5430, %v5422
    %v6183 = vpack.c.b16 %v5439, %v5431
    %v6184 = vpack.c.b16 %v5440, %v5432
    %v6185 = vpack.c.b16 %v5441, %v5433
    %v6186 = vpack.c.b16 %v5442, %v5434
    %v6187 = vpack.c.b16 %v5443, %v5435
    %v6188 = vpack.c.b16 %v5444, %v5436
    %v6189 = vpack.c.b16 %v5445, %v5437
    %v6190 = vpack.c.b16 %v5446, %v5438
    %v6191 = vpack.c.b16 %v5455, %v5447
    %v6192 = vpack.c.b16 %v5456, %v5448
    %v6193 = vpack.c.b16 %v5457, %v5449
    %v6194 = vpack.c.b16 %v5458, %v5450
    %v6195 = vpack.c.b16 %v5459, %v5451
    %v6196 = vpack.c.b16 %v5460, %v5452
    %v6197 = vpack.c.b16 %v5461, %v5453
    %v6198 = vpack.c.b16 %v5462, %v5454
    %v6199 = vpack.c.b16 %v5471, %v5463
    %v6200 = vpack.c.b16 %v5472, %v5464
    %v6201 = vpack.c.b16 %v5473, %v5465
    %v6202 = vpack.c.b16 %v5474, %v5466
    %v6203 = vpack.c.b16 %v5475, %v5467
    %v6204 = vpack.c.b16 %v5476, %v5468
    %v6205 = vpack.c.b16 %v5477, %v5469
    %v6206 = vpack.c.b16 %v5478, %v5470
    %v6207 = vpack.c.b16 %v5487, %v5479
    %v6208 = vpack.c.b16 %v5488, %v5480
    %v6209 = vpack.c.b16 %v5489, %v5481
    %v6210 = vpack.c.b16 %v5490, %v5482
    %v6211 = vpack.c.b16 %v5491, %v5483
    %v6212 = vpack.c.b16 %v5492, %v5484
    %v6213 = vpack.c.b16 %v5493, %v5485
    %v6214 = vpack.c.b16 %v5494, %v5486
    %v6215 = vpack.c.b16 %v5503, %v5495
    %v6216 = vpack.c.b16 %v5504, %v5496
    %v6217 = vpack.c.b16 %v5505, %v5497
    %v6218 = vpack.c.b16 %v5506, %v5498
    %v6219 = vpack.c.b16 %v5507, %v5499
    %v6220 = vpack.c.b16 %v5508, %v5500
    %v6221 = vpack.c.b16 %v5509, %v5501
    %v6222 = vpack.c.b16 %v5510, %v5502
    %v6223 = vpack.c.b16 %v5519, %v5511
    %v6224 = vpack.c.b16 %v5520, %v5512
    %v6225 = vpack.c.b16 %v5521, %v5513
    %v6226 = vpack.c.b16 %v5522, %v5514
    %v6227 = vpack.c.b16 %v5523, %v5515
    %v6228 = vpack.c.b16 %v5524, %v5516
    %v6229 = vpack.c.b16 %v5525, %v5517
    %v6230 = vpack.c.b16 %v5526, %v5518
    %v6231 = vpack.c.b16 %v5535, %v5527
    %v6232 = vpack.c.b16 %v5536, %v5528
    %v6233 = vpack.c.b16 %v5537, %v5529
    %v6234 = vpack.c.b16 %v5538, %v5530
    %v6235 = vpack.c.b16 %v5539, %v5531
    %v6236 = vpack.c.b16 %v5540, %v5532
    %v6237 = vpack.c.b16 %v5541, %v5533
    %v6238 = vpack.c.b16 %v5542, %v5534
    %v6239 = vpack.c.b16 %v5551, %v5543
    %v6240 = vpack.c.b16 %v5552, %v5544
    %v6241 = vpack.c.b16 %v5553, %v5545
    %v6242 = vpack.c.b16 %v5554, %v5546
    %v6243 = vpack.c.b16 %v5555, %v5547
    %v6244 = vpack.c.b16 %v5556, %v5548
    %v6245 = vpack.c.b16 %v5557, %v5549
    %v6246 = vpack.c.b16 %v5558, %v5550
    %v6247 = vpack.c.b16 %v5567, %v5559
    %v6248 = vpack.c.b16 %v5568, %v5560
    %v6249 = vpack.c.b16 %v5569, %v5561
    %v6250 = vpack.c.b16 %v5570, %v5562
    %v6251 = vpack.c.b16 %v5571, %v5563
    %v6252 = vpack.c.b16 %v5572, %v5564
    %v6253 = vpack.c.b16 %v5573, %v5565
    %v6254 = vpack.c.b16 %v5574, %v5566
    %v6255 = vpack.c.b16 %v5583, %v5575
    %v6256 = vpack.c.b16 %v5584, %v5576
    %v6257 = vpack.c.b16 %v5585, %v5577
    %v6258 = vpack.c.b16 %v5586, %v5578
    %v6259 = vpack.c.b16 %v5587, %v5579
    %v6260 = vpack.c.b16 %v5588, %v5580
    %v6261 = vpack.c.b16 %v5589, %v5581
    %v6262 = vpack.c.b16 %v5590, %v5582
    %v6263 = vpack.c.b16 %v5599, %v5591
    %v6264 = vpack.c.b16 %v5600, %v5592
    %v6265 = vpack.c.b16 %v5601, %v5593
    %v6266 = vpack.c.b16 %v5602, %v5594
    %v6267 = vpack.c.b16 %v5603, %v5595
    %v6268 = vpack.c.b16 %v5604, %v5596
    %v6269 = vpack.c.b16 %v5605, %v5597
    %v6270 = vpack.c.b16 %v5606, %v5598
    %v6271 = vpack.c.b16 %v5615, %v5607
    %v6272 = vpack.c.b16 %v5616, %v5608
    %v6273 = vpack.c.b16 %v5617, %v5609
    %v6274 = vpack.c.b16 %v5618, %v5610
    %v6275 = vpack.c.b16 %v5619, %v5611
    %v6276 = vpack.c.b16 %v5620, %v5612
    %v6277 = vpack.c.b16 %v5621, %v5613
    %v6278 = vpack.c.b16 %v5622, %v5614
    %v6279 = vpack.c.b16 %v5631, %v5623
    %v6280 = vpack.c.b16 %v5632, %v5624
    %v6281 = vpack.c.b16 %v5633, %v5625
    %v6282 = vpack.c.b16 %v5634, %v5626
    %v6283 = vpack.c.b16 %v5635, %v5627
    %v6284 = vpack.c.b16 %v5636, %v5628
    %v6285 = vpack.c.b16 %v5637, %v5629
    %v6286 = vpack.c.b16 %v5638, %v5630
    %v6287 = vpack.c.b16 %v5647, %v5639
    %v6288 = vpack.c.b16 %v5648, %v5640
    %v6289 = vpack.c.b16 %v5649, %v5641
    %v6290 = vpack.c.b16 %v5650, %v5642
    %v6291 = vpack.c.b16 %v5651, %v5643
    %v6292 = vpack.c.b16 %v5652, %v5644
    %v6293 = vpack.c.b16 %v5653, %v5645
    %v6294 = vpack.c.b16 %v5654, %v5646
    %v6295 = vpack.c.b16 %v5663, %v5655
    %v6296 = vpack.c.b16 %v5664, %v5656
    %v6297 = vpack.c.b16 %v5665, %v5657
    %v6298 = vpack.c.b16 %v5666, %v5658
    %v6299 = vpack.c.b16 %v5667, %v5659
    %v6300 = vpack.c.b16 %v5668, %v5660
    %v6301 = vpack.c.b16 %v5669, %v5661
    %v6302 = vpack.c.b16 %v5670, %v5662
    %v6303 = vpack.c.b16 %v5679, %v5671
    %v6304 = vpack.c.b16 %v5680, %v5672
    %v6305 = vpack.c.b16 %v5681, %v5673
    %v6306 = vpack.c.b16 %v5682, %v5674
    %v6307 = vpack.c.b16 %v5683, %v5675
    %v6308 = vpack.c.b16 %v5684, %v5676
    %v6309 = vpack.c.b16 %v5685, %v5677
    %v6310 = vpack.c.b16 %v5686, %v5678
    %v6311 = vpack.c.b16 %v5695, %v5687
    %v6312 = vpack.c.b16 %v5696, %v5688
    %v6313 = vpack.c.b16 %v5697, %v5689
    %v6314 = vpack.c.b16 %v5698, %v5690
    %v6315 = vpack.c.b16 %v5699, %v5691
    %v6316 = vpack.c.b16 %v5700, %v5692
    %v6317 = vpack.c.b16 %v5701, %v5693
    %v6318 = vpack.c.b16 %v5702, %v5694
    %v6319 = vpack.c.b16 %v5711, %v5703
    %v6320 = vpack.c.b16 %v5712, %v5704
    %v6321 = vpack.c.b16 %v5713, %v5705
    %v6322 = vpack.c.b16 %v5714, %v5706
    %v6323 = vpack.c.b16 %v5715, %v5707
    %v6324 = vpack.c.b16 %v5716, %v5708
    %v6325 = vpack.c.b16 %v5717, %v5709
    %v6326 = vpack.c.b16 %v5718, %v5710
    %v6327 = vpack.c.b16 %v5727, %v5719
    %v6328 = vpack.c.b16 %v5728, %v5720
    %v6329 = vpack.c.b16 %v5729, %v5721
    %v6330 = vpack.c.b16 %v5730, %v5722
    %v6331 = vpack.c.b16 %v5731, %v5723
    %v6332 = vpack.c.b16 %v5732, %v5724
    %v6333 = vpack.c.b16 %v5733, %v5725
    %v6334 = vpack.c.b16 %v5734, %v5726
    %v6335 = vpack.c.b16 %v5743, %v5735
    %v6336 = vpack.c.b16 %v5744, %v5736
    %v6337 = vpack.c.b16 %v5745, %v5737
    %v6338 = vpack.c.b16 %v5746, %v5738
    %v6339 = vpack.c.b16 %v5747, %v5739
    %v6340 = vpack.c.b16 %v5748, %v5740
    %v6341 = vpack.c.b16 %v5749, %v5741
    %v6342 = vpack.c.b16 %v5750, %v5742
    %v6343 = vpack.c.b16 %v5759, %v5751
    %v6344 = vpack.c.b16 %v5760, %v5752
    %v6345 = vpack.c.b16 %v5761, %v5753
    %v6346 = vpack.c.b16 %v5762, %v5754
    %v6347 = vpack.c.b16 %v5763, %v5755
    %v6348 = vpack.c.b16 %v5764, %v5756
    %v6349 = vpack.c.b16 %v5765, %v5757
    %v6350 = vpack.c.b16 %v5766, %v5758
    %v6351 = vpack.c.b16 %v5775, %v5767
    %v6352 = vpack.c.b16 %v5776, %v5768
    %v6353 = vpack.c.b16 %v5777, %v5769
    %v6354 = vpack.c.b16 %v5778, %v5770
    %v6355 = vpack.c.b16 %v5779, %v5771
    %v6356 = vpack.c.b16 %v5780, %v5772
    %v6357 = vpack.c.b16 %v5781, %v5773
    %v6358 = vpack.c.b16 %v5782, %v5774
    %v6359 = vpack.c.b16 %v5791, %v5783
    %v6360 = vpack.c.b16 %v5792, %v5784
    %v6361 = vpack.c.b16 %v5793, %v5785
    %v6362 = vpack.c.b16 %v5794, %v5786
    %v6363 = vpack.c.b16 %v5795, %v5787
    %v6364 = vpack.c.b16 %v5796, %v5788
    %v6365 = vpack.c.b16 %v5797, %v5789
    %v6366 = vpack.c.b16 %v5798, %v5790
    %v6367 = vpack.c.b16 %v5807, %v5799
    %v6368 = vpack.c.b16 %v5808, %v5800
    %v6369 = vpack.c.b16 %v5809, %v5801
    %v6370 = vpack.c.b16 %v5810, %v5802
    %v6371 = vpack.c.b16 %v5811, %v5803
    %v6372 = vpack.c.b16 %v5812, %v5804
    %v6373 = vpack.c.b16 %v5813, %v5805
    %v6374 = vpack.c.b16 %v5814, %v5806
    %v6375 = vpack.c.b16 %v5823, %v5815
    %v6376 = vpack.c.b16 %v5824, %v5816
    %v6377 = vpack.c.b16 %v5825, %v5817
    %v6378 = vpack.c.b16 %v5826, %v5818
    %v6379 = vpack.c.b16 %v5827, %v5819
    %v6380 = vpack.c.b16 %v5828, %v5820
    %v6381 = vpack.c.b16 %v5829, %v5821
    %v6382 = vpack.c.b16 %v5830, %v5822
    %v6383 = vpack.c.b16 %v5839, %v5831
    %v6384 = vpack.c.b16 %v5840, %v5832
    %v6385 = vpack.c.b16 %v5841, %v5833
    %v6386 = vpack.c.b16 %v5842, %v5834
    %v6387 = vpack.c.b16 %v5843, %v5835
    %v6388 = vpack.c.b16 %v5844, %v5836
    %v6389 = vpack.c.b16 %v5845, %v5837
    %v6390 = vpack.c.b16 %v5846, %v5838
    %v6391 = vpack.c.b16 %v5855, %v5847
    %v6392 = vpack.c.b16 %v5856, %v5848
    %v6393 = vpack.c.b16 %v5857, %v5849
    %v6394 = vpack.c.b16 %v5858, %v5850
    %v6395 = vpack.c.b16 %v5859, %v5851
    %v6396 = vpack.c.b16 %v5860, %v5852
    %v6397 = vpack.c.b16 %v5861, %v5853
    %v6398 = vpack.c.b16 %v5862, %v5854
    %v6399 = vpack.c.b16 %v5871, %v5863
    %v6400 = vpack.c.b16 %v5872, %v5864
    %v6401 = vpack.c.b16 %v5873, %v5865
    %v6402 = vpack.c.b16 %v5874, %v5866
    %v6403 = vpack.c.b16 %v5875, %v5867
    %v6404 = vpack.c.b16 %v5876, %v5868
    %v6405 = vpack.c.b16 %v5877, %v5869
    %v6406 = vpack.c.b16 %v5878, %v5870
    %v6407 = vpack.c.b16 %v5887, %v5879
    %v6408 = vpack.c.b16 %v5888, %v5880
    %v6409 = vpack.c.b16 %v5889, %v5881
    %v6410 = vpack.c.b16 %v5890, %v5882
    %v6411 = vpack.c.b16 %v5891, %v5883
    %v6412 = vpack.c.b16 %v5892, %v5884
    %v6413 = vpack.c.b16 %v5893, %v5885
    %v6414 = vpack.c.b16 %v5894, %v5886
    %v6415 = vpack.c.b16 %v5903, %v5895
    %v6416 = vpack.c.b16 %v5904, %v5896
    %v6417 = vpack.c.b16 %v5905, %v5897
    %v6418 = vpack.c.b16 %v5906, %v5898
    %v6419 = vpack.c.b16 %v5907, %v5899
    %v6420 = vpack.c.b16 %v5908, %v5900
    %v6421 = vpack.c.b16 %v5909, %v5901
    %v6422 = vpack.c.b16 %v5910, %v5902
    %6935 = vmatprep.subr.bf16.mxu0 %v5912
    %6936 = vmatpush1.bf16.msra.mxu0 %v5911
    %6937 = vmatprep.subr.bf16.mxu0 %v5920
    %6938 = vmatpush1.bf16.msra.mxu0 %v5919
    %6939 = vmatprep.subr.bf16.mxu0 %v5928
    %6940 = vmatpush1.bf16.msra.mxu0 %v5927
    %6941 = vmatprep.subr.bf16.mxu0 %v5936
    %6942 = vmatpush1.bf16.msra.mxu0 %v5935
    %6943 = vmatprep.subr.bf16.mxu0 %v5944
    %6944 = vmatpush1.bf16.msra.mxu0 %v5943
    %6945 = vmatprep.subr.bf16.mxu0 %v5952
    %6946 = vmatpush1.bf16.msra.mxu0 %v5951
    %6947 = vmatprep.subr.bf16.mxu0 %v5960
    %6948 = vmatpush1.bf16.msra.mxu0 %v5959
    %6949 = vmatprep.subr.bf16.mxu0 %v5968
    %6950 = vmatpush1.bf16.msra.mxu0 %v5967
    %6951 = vmatprep.subr.bf16.mxu0 %v5976
    %6952 = vmatpush1.bf16.msra.mxu0 %v5975
    %6953 = vmatprep.subr.bf16.mxu0 %v5984
    %6954 = vmatpush1.bf16.msra.mxu0 %v5983
    %6955 = vmatprep.subr.bf16.mxu0 %v5992
    %6956 = vmatpush1.bf16.msra.mxu0 %v5991
    %6957 = vmatprep.subr.bf16.mxu0 %v6000
    %6958 = vmatpush1.bf16.msra.mxu0 %v5999
    %6959 = vmatprep.subr.bf16.mxu0 %v6008
    %6960 = vmatpush1.bf16.msra.mxu0 %v6007
    %6961 = vmatprep.subr.bf16.mxu0 %v6016
    %6962 = vmatpush1.bf16.msra.mxu0 %v6015
    %6963 = vmatprep.subr.bf16.mxu0 %v6024
    %6964 = vmatpush1.bf16.msra.mxu0 %v6023
    %6965 = vmatprep.subr.bf16.mxu0 %v6032
    %6966 = vmatpush1.bf16.msra.mxu0 %v6031
    %6967 = vmatprep.mubr.bf16.mxu0 %v3814
    %6968 = vmatmul.mubr.bf16.gmra.mrb[0].mxu0 %v3813
    %v6969 = vpop.f32.mrb[0].mxu0
    %v6970 = vadd.f32 %v4338, %v6969
    %v6971 = vpop.f32.mrb[0].mxu0
    %v6972 = vadd.f32 %v4342, %v6971
    %v6973 = vpop.f32.mrb[0].mxu0
    %v6974 = vpop.f32.mrb[0].mxu0
    %6975 = vdwg.mxu0
    %6976 = vmatprep.subr.bf16.mxu0 %v6040
    %6977 = vmatpush1.bf16.msra.mxu0 %v6039
    %6978 = vmatprep.subr.bf16.mxu0 %v6048
    %6979 = vmatpush1.bf16.msra.mxu0 %v6047
    %6980 = vmatprep.subr.bf16.mxu0 %v6056
    %6981 = vmatpush1.bf16.msra.mxu0 %v6055
    %6982 = vmatprep.subr.bf16.mxu0 %v6064
    %6983 = vmatpush1.bf16.msra.mxu0 %v6063
    %6984 = vmatprep.subr.bf16.mxu0 %v6072
    %6985 = vmatpush1.bf16.msra.mxu0 %v6071
    %6986 = vmatprep.subr.bf16.mxu0 %v6080
    %6987 = vmatpush1.bf16.msra.mxu0 %v6079
    %6988 = vmatprep.subr.bf16.mxu0 %v6088
    %6989 = vmatpush1.bf16.msra.mxu0 %v6087
    %6990 = vmatprep.subr.bf16.mxu0 %v6096
    %6991 = vmatpush1.bf16.msra.mxu0 %v6095
    %6992 = vmatprep.subr.bf16.mxu0 %v6104
    %6993 = vmatpush1.bf16.msra.mxu0 %v6103
    %6994 = vmatprep.subr.bf16.mxu0 %v6112
    %6995 = vmatpush1.bf16.msra.mxu0 %v6111
    %6996 = vmatprep.subr.bf16.mxu0 %v6120
    %6997 = vmatpush1.bf16.msra.mxu0 %v6119
    %6998 = vmatprep.subr.bf16.mxu0 %v6128
    %6999 = vmatpush1.bf16.msra.mxu0 %v6127
    %7000 = vmatprep.subr.bf16.mxu0 %v6136
    %7001 = vmatpush1.bf16.msra.mxu0 %v6135
    %7002 = vmatprep.subr.bf16.mxu0 %v6144
    %7003 = vmatpush1.bf16.msra.mxu0 %v6143
    %7004 = vmatprep.subr.bf16.mxu0 %v6152
    %7005 = vmatpush1.bf16.msra.mxu0 %v6151
    %7006 = vmatprep.subr.bf16.mxu0 %v6160
    %7007 = vmatpush1.bf16.msra.mxu0 %v6159
    %7008 = vmatprep.mubr.bf16.mxu0 %v3816
    %7009 = vmatmul.mubr.bf16.gmra.mrb[0].mxu0 %v3815
    %v7010 = vpop.f32.mrb[0].mxu0
    %v7011 = vadd.f32 %v6970, %v7010
    %v7012 = vpop.f32.mrb[0].mxu0
    %v7013 = vadd.f32 %v6972, %v7012
    %v7014 = vpop.f32.mrb[0].mxu0
    %v7015 = vpop.f32.mrb[0].mxu0
    %7016 = vdwg.mxu0
    %7017 = vmatprep.subr.bf16.mxu0 %v6168
    %7018 = vmatpush1.bf16.msra.mxu0 %v6167
    %7019 = vmatprep.subr.bf16.mxu0 %v6176
    %7020 = vmatpush1.bf16.msra.mxu0 %v6175
    %7021 = vmatprep.subr.bf16.mxu0 %v6184
    %7022 = vmatpush1.bf16.msra.mxu0 %v6183
    %7023 = vmatprep.subr.bf16.mxu0 %v6192
    %7024 = vmatpush1.bf16.msra.mxu0 %v6191
    %7025 = vmatprep.subr.bf16.mxu0 %v6200
    %7026 = vmatpush1.bf16.msra.mxu0 %v6199
    %7027 = vmatprep.subr.bf16.mxu0 %v6208
    %7028 = vmatpush1.bf16.msra.mxu0 %v6207
    %7029 = vmatprep.subr.bf16.mxu0 %v6216
    %7030 = vmatpush1.bf16.msra.mxu0 %v6215
    %7031 = vmatprep.subr.bf16.mxu0 %v6224
    %7032 = vmatpush1.bf16.msra.mxu0 %v6223
    %7033 = vmatprep.subr.bf16.mxu0 %v6232
    %7034 = vmatpush1.bf16.msra.mxu0 %v6231
    %7035 = vmatprep.subr.bf16.mxu0 %v6240
    %7036 = vmatpush1.bf16.msra.mxu0 %v6239
    %7037 = vmatprep.subr.bf16.mxu0 %v6248
    %7038 = vmatpush1.bf16.msra.mxu0 %v6247
    %7039 = vmatprep.subr.bf16.mxu0 %v6256
    %7040 = vmatpush1.bf16.msra.mxu0 %v6255
    %7041 = vmatprep.subr.bf16.mxu0 %v6264
    %7042 = vmatpush1.bf16.msra.mxu0 %v6263
    %7043 = vmatprep.subr.bf16.mxu0 %v6272
    %7044 = vmatpush1.bf16.msra.mxu0 %v6271
    %7045 = vmatprep.subr.bf16.mxu0 %v6280
    %7046 = vmatpush1.bf16.msra.mxu0 %v6279
    %7047 = vmatprep.subr.bf16.mxu0 %v6288
    %7048 = vmatpush1.bf16.msra.mxu0 %v6287
    %7049 = vmatprep.mubr.bf16.mxu0 %v3818
    %7050 = vmatmul.mubr.bf16.gmra.mrb[0].mxu0 %v3817
    %v7051 = vpop.f32.mrb[0].mxu0
    %v7052 = vadd.f32 %v7011, %v7051
    %v7053 = vpop.f32.mrb[0].mxu0
    %v7054 = vadd.f32 %v7013, %v7053
    %v7055 = vpop.f32.mrb[0].mxu0
    %v7056 = vpop.f32.mrb[0].mxu0
    %7057 = vdwg.mxu0
    %7058 = vmatprep.subr.bf16.mxu0 %v6296
    %7059 = vmatpush1.bf16.msra.mxu0 %v6295
    %7060 = vmatprep.subr.bf16.mxu0 %v6304
    %7061 = vmatpush1.bf16.msra.mxu0 %v6303
    %7062 = vmatprep.subr.bf16.mxu0 %v6312
    %7063 = vmatpush1.bf16.msra.mxu0 %v6311
    %7064 = vmatprep.subr.bf16.mxu0 %v6320
    %7065 = vmatpush1.bf16.msra.mxu0 %v6319
    %7066 = vmatprep.subr.bf16.mxu0 %v6328
    %7067 = vmatpush1.bf16.msra.mxu0 %v6327
    %7068 = vmatprep.subr.bf16.mxu0 %v6336
    %7069 = vmatpush1.bf16.msra.mxu0 %v6335
    %7070 = vmatprep.subr.bf16.mxu0 %v6344
    %7071 = vmatpush1.bf16.msra.mxu0 %v6343
    %7072 = vmatprep.subr.bf16.mxu0 %v6352
    %7073 = vmatpush1.bf16.msra.mxu0 %v6351
    %7074 = vmatprep.subr.bf16.mxu0 %v6360
    %7075 = vmatpush1.bf16.msra.mxu0 %v6359
    %7076 = vmatprep.subr.bf16.mxu0 %v6368
    %7077 = vmatpush1.bf16.msra.mxu0 %v6367
    %7078 = vmatprep.subr.bf16.mxu0 %v6376
    %7079 = vmatpush1.bf16.msra.mxu0 %v6375
    %7080 = vmatprep.subr.bf16.mxu0 %v6384
    %7081 = vmatpush1.bf16.msra.mxu0 %v6383
    %7082 = vmatprep.subr.bf16.mxu0 %v6392
    %7083 = vmatpush1.bf16.msra.mxu0 %v6391
    %7084 = vmatprep.subr.bf16.mxu0 %v6400
    %7085 = vmatpush1.bf16.msra.mxu0 %v6399
    %7086 = vmatprep.subr.bf16.mxu0 %v6408
    %7087 = vmatpush1.bf16.msra.mxu0 %v6407
    %7088 = vmatprep.subr.bf16.mxu0 %v6416
    %7089 = vmatpush1.bf16.msra.mxu0 %v6415
    %7090 = vmatprep.mubr.bf16.mxu0 %v3820
    %7091 = vmatmul.mubr.bf16.gmra.mrb[0].mxu0 %v3819
    %v7092 = vpop.f32.mrb[0].mxu0
    %v7093 = vadd.f32 %v7052, %v7092
    %v7094 = vpop.f32.mrb[0].mxu0
    %v7095 = vadd.f32 %v7054, %v7094
    %v7096 = vpop.f32.mrb[0].mxu0
    %v7097 = vpop.f32.mrb[0].mxu0
    %7098 = vdwg.mxu0
    %7099 = vmatprep.subr.bf16.mxu0 %v5914
    %7100 = vmatpush1.bf16.msra.mxu0 %v5913
    %7101 = vmatprep.subr.bf16.mxu0 %v5922
    %7102 = vmatpush1.bf16.msra.mxu0 %v5921
    %7103 = vmatprep.subr.bf16.mxu0 %v5930
    %7104 = vmatpush1.bf16.msra.mxu0 %v5929
    %7105 = vmatprep.subr.bf16.mxu0 %v5938
    %7106 = vmatpush1.bf16.msra.mxu0 %v5937
    %7107 = vmatprep.subr.bf16.mxu0 %v5946
    %7108 = vmatpush1.bf16.msra.mxu0 %v5945
    %7109 = vmatprep.subr.bf16.mxu0 %v5954
    %7110 = vmatpush1.bf16.msra.mxu0 %v5953
    %7111 = vmatprep.subr.bf16.mxu0 %v5962
    %7112 = vmatpush1.bf16.msra.mxu0 %v5961
    %7113 = vmatprep.subr.bf16.mxu0 %v5970
    %7114 = vmatpush1.bf16.msra.mxu0 %v5969
    %7115 = vmatprep.subr.bf16.mxu0 %v5978
    %7116 = vmatpush1.bf16.msra.mxu0 %v5977
    %7117 = vmatprep.subr.bf16.mxu0 %v5986
    %7118 = vmatpush1.bf16.msra.mxu0 %v5985
    %7119 = vmatprep.subr.bf16.mxu0 %v5994
    %7120 = vmatpush1.bf16.msra.mxu0 %v5993
    %7121 = vmatprep.subr.bf16.mxu0 %v6002
    %7122 = vmatpush1.bf16.msra.mxu0 %v6001
    %7123 = vmatprep.subr.bf16.mxu0 %v6010
    %7124 = vmatpush1.bf16.msra.mxu0 %v6009
    %7125 = vmatprep.subr.bf16.mxu0 %v6018
    %7126 = vmatpush1.bf16.msra.mxu0 %v6017
    %7127 = vmatprep.subr.bf16.mxu0 %v6026
    %7128 = vmatpush1.bf16.msra.mxu0 %v6025
    %7129 = vmatprep.subr.bf16.mxu0 %v6034
    %7130 = vmatpush1.bf16.msra.mxu0 %v6033
    %7131 = vmatprep.mubr.bf16.mxu0 %v3814
    %7132 = vmatmul.mubr.bf16.gmra.mrb[0].mxu0 %v3813
    %v7133 = vpop.f32.mrb[0].mxu0
    %v7134 = vadd.f32 %v4346, %v7133
    %v7135 = vpop.f32.mrb[0].mxu0
    %v7136 = vadd.f32 %v4350, %v7135
    %v7137 = vpop.f32.mrb[0].mxu0
    %v7138 = vpop.f32.mrb[0].mxu0
    %7139 = vdwg.mxu0
    %7140 = vmatprep.subr.bf16.mxu0 %v6042
    %7141 = vmatpush1.bf16.msra.mxu0 %v6041
    %7142 = vmatprep.subr.bf16.mxu0 %v6050
    %7143 = vmatpush1.bf16.msra.mxu0 %v6049
    %7144 = vmatprep.subr.bf16.mxu0 %v6058
    %7145 = vmatpush1.bf16.msra.mxu0 %v6057
    %7146 = vmatprep.subr.bf16.mxu0 %v6066
    %7147 = vmatpush1.bf16.msra.mxu0 %v6065
    %7148 = vmatprep.subr.bf16.mxu0 %v6074
    %7149 = vmatpush1.bf16.msra.mxu0 %v6073
    %7150 = vmatprep.subr.bf16.mxu0 %v6082
    %7151 = vmatpush1.bf16.msra.mxu0 %v6081
    %7152 = vmatprep.subr.bf16.mxu0 %v6090
    %7153 = vmatpush1.bf16.msra.mxu0 %v6089
    %7154 = vmatprep.subr.bf16.mxu0 %v6098
    %7155 = vmatpush1.bf16.msra.mxu0 %v6097
    %7156 = vmatprep.subr.bf16.mxu0 %v6106
    %7157 = vmatpush1.bf16.msra.mxu0 %v6105
    %7158 = vmatprep.subr.bf16.mxu0 %v6114
    %7159 = vmatpush1.bf16.msra.mxu0 %v6113
    %7160 = vmatprep.subr.bf16.mxu0 %v6122
    %7161 = vmatpush1.bf16.msra.mxu0 %v6121
    %7162 = vmatprep.subr.bf16.mxu0 %v6130
    %7163 = vmatpush1.bf16.msra.mxu0 %v6129
    %7164 = vmatprep.subr.bf16.mxu0 %v6138
    %7165 = vmatpush1.bf16.msra.mxu0 %v6137
    %7166 = vmatprep.subr.bf16.mxu0 %v6146
    %7167 = vmatpush1.bf16.msra.mxu0 %v6145
    %7168 = vmatprep.subr.bf16.mxu0 %v6154
    %7169 = vmatpush1.bf16.msra.mxu0 %v6153
    %7170 = vmatprep.subr.bf16.mxu0 %v6162
    %7171 = vmatpush1.bf16.msra.mxu0 %v6161
    %7172 = vmatprep.mubr.bf16.mxu0 %v3816
    %7173 = vmatmul.mubr.bf16.gmra.mrb[0].mxu0 %v3815
    %v7174 = vpop.f32.mrb[0].mxu0
    %v7175 = vadd.f32 %v7134, %v7174
    %v7176 = vpop.f32.mrb[0].mxu0
    %v7177 = vadd.f32 %v7136, %v7176
    %v7178 = vpop.f32.mrb[0].mxu0
    %v7179 = vpop.f32.mrb[0].mxu0
    %7180 = vdwg.mxu0
    %7181 = vmatprep.subr.bf16.mxu0 %v6170
    %7182 = vmatpush1.bf16.msra.mxu0 %v6169
    %7183 = vmatprep.subr.bf16.mxu0 %v6178
    %7184 = vmatpush1.bf16.msra.mxu0 %v6177
    %7185 = vmatprep.subr.bf16.mxu0 %v6186
    %7186 = vmatpush1.bf16.msra.mxu0 %v6185
    %7187 = vmatprep.subr.bf16.mxu0 %v6194
    %7188 = vmatpush1.bf16.msra.mxu0 %v6193
    %7189 = vmatprep.subr.bf16.mxu0 %v6202
    %7190 = vmatpush1.bf16.msra.mxu0 %v6201
    %7191 = vmatprep.subr.bf16.mxu0 %v6210
    %7192 = vmatpush1.bf16.msra.mxu0 %v6209
    %7193 = vmatprep.subr.bf16.mxu0 %v6218
    %7194 = vmatpush1.bf16.msra.mxu0 %v6217
    %7195 = vmatprep.subr.bf16.mxu0 %v6226
    %7196 = vmatpush1.bf16.msra.mxu0 %v6225
    %7197 = vmatprep.subr.bf16.mxu0 %v6234
    %7198 = vmatpush1.bf16.msra.mxu0 %v6233
    %7199 = vmatprep.subr.bf16.mxu0 %v6242
    %7200 = vmatpush1.bf16.msra.mxu0 %v6241
    %7201 = vmatprep.subr.bf16.mxu0 %v6250
    %7202 = vmatpush1.bf16.msra.mxu0 %v6249
    %7203 = vmatprep.subr.bf16.mxu0 %v6258
    %7204 = vmatpush1.bf16.msra.mxu0 %v6257
    %7205 = vmatprep.subr.bf16.mxu0 %v6266
    %7206 = vmatpush1.bf16.msra.mxu0 %v6265
    %7207 = vmatprep.subr.bf16.mxu0 %v6274
    %7208 = vmatpush1.bf16.msra.mxu0 %v6273
    %7209 = vmatprep.subr.bf16.mxu0 %v6282
    %7210 = vmatpush1.bf16.msra.mxu0 %v6281
    %7211 = vmatprep.subr.bf16.mxu0 %v6290
    %7212 = vmatpush1.bf16.msra.mxu0 %v6289
    %7213 = vmatprep.mubr.bf16.mxu0 %v3818
    %7214 = vmatmul.mubr.bf16.gmra.mrb[0].mxu0 %v3817
    %v7215 = vpop.f32.mrb[0].mxu0
    %v7216 = vadd.f32 %v7175, %v7215
    %v7217 = vpop.f32.mrb[0].mxu0
    %v7218 = vadd.f32 %v7177, %v7217
    %v7219 = vpop.f32.mrb[0].mxu0
    %v7220 = vpop.f32.mrb[0].mxu0
    %7221 = vdwg.mxu0
    %7222 = vmatprep.subr.bf16.mxu0 %v6298
    %7223 = vmatpush1.bf16.msra.mxu0 %v6297
    %7224 = vmatprep.subr.bf16.mxu0 %v6306
    %7225 = vmatpush1.bf16.msra.mxu0 %v6305
    %7226 = vmatprep.subr.bf16.mxu0 %v6314
    %7227 = vmatpush1.bf16.msra.mxu0 %v6313
    %7228 = vmatprep.subr.bf16.mxu0 %v6322
    %7229 = vmatpush1.bf16.msra.mxu0 %v6321
    %7230 = vmatprep.subr.bf16.mxu0 %v6330
    %7231 = vmatpush1.bf16.msra.mxu0 %v6329
    %7232 = vmatprep.subr.bf16.mxu0 %v6338
    %7233 = vmatpush1.bf16.msra.mxu0 %v6337
    %7234 = vmatprep.subr.bf16.mxu0 %v6346
    %7235 = vmatpush1.bf16.msra.mxu0 %v6345
    %7236 = vmatprep.subr.bf16.mxu0 %v6354
    %7237 = vmatpush1.bf16.msra.mxu0 %v6353
    %7238 = vmatprep.subr.bf16.mxu0 %v6362
    %7239 = vmatpush1.bf16.msra.mxu0 %v6361
    %7240 = vmatprep.subr.bf16.mxu0 %v6370
    %7241 = vmatpush1.bf16.msra.mxu0 %v6369
    %7242 = vmatprep.subr.bf16.mxu0 %v6378
    %7243 = vmatpush1.bf16.msra.mxu0 %v6377
    %7244 = vmatprep.subr.bf16.mxu0 %v6386
    %7245 = vmatpush1.bf16.msra.mxu0 %v6385
    %7246 = vmatprep.subr.bf16.mxu0 %v6394
    %7247 = vmatpush1.bf16.msra.mxu0 %v6393
    %7248 = vmatprep.subr.bf16.mxu0 %v6402
    %7249 = vmatpush1.bf16.msra.mxu0 %v6401
    %7250 = vmatprep.subr.bf16.mxu0 %v6410
    %7251 = vmatpush1.bf16.msra.mxu0 %v6409
    %7252 = vmatprep.subr.bf16.mxu0 %v6418
    %7253 = vmatpush1.bf16.msra.mxu0 %v6417
    %7254 = vmatprep.mubr.bf16.mxu0 %v3820
    %7255 = vmatmul.mubr.bf16.gmra.mrb[0].mxu0 %v3819
    %v7256 = vpop.f32.mrb[0].mxu0
    %v7257 = vadd.f32 %v7216, %v7256
    %v7258 = vpop.f32.mrb[0].mxu0
    %v7259 = vadd.f32 %v7218, %v7258
    %v7260 = vpop.f32.mrb[0].mxu0
    %v7261 = vpop.f32.mrb[0].mxu0
    %7262 = vdwg.mxu0
    %7263 = vmatprep.subr.bf16.mxu0 %v5916
    %7264 = vmatpush1.bf16.msra.mxu0 %v5915
    %7265 = vmatprep.subr.bf16.mxu0 %v5924
    %7266 = vmatpush1.bf16.msra.mxu0 %v5923
    %7267 = vmatprep.subr.bf16.mxu0 %v5932
    %7268 = vmatpush1.bf16.msra.mxu0 %v5931
    %7269 = vmatprep.subr.bf16.mxu0 %v5940
    %7270 = vmatpush1.bf16.msra.mxu0 %v5939
    %7271 = vmatprep.subr.bf16.mxu0 %v5948
    %7272 = vmatpush1.bf16.msra.mxu0 %v5947
    %7273 = vmatprep.subr.bf16.mxu0 %v5956
    %7274 = vmatpush1.bf16.msra.mxu0 %v5955
    %7275 = vmatprep.subr.bf16.mxu0 %v5964
    %7276 = vmatpush1.bf16.msra.mxu0 %v5963
    %7277 = vmatprep.subr.bf16.mxu0 %v5972
    %7278 = vmatpush1.bf16.msra.mxu0 %v5971
    %7279 = vmatprep.subr.bf16.mxu0 %v5980
    %7280 = vmatpush1.bf16.msra.mxu0 %v5979
    %7281 = vmatprep.subr.bf16.mxu0 %v5988
    %7282 = vmatpush1.bf16.msra.mxu0 %v5987
    %7283 = vmatprep.subr.bf16.mxu0 %v5996
    %7284 = vmatpush1.bf16.msra.mxu0 %v5995
    %7285 = vmatprep.subr.bf16.mxu0 %v6004
    %7286 = vmatpush1.bf16.msra.mxu0 %v6003
    %7287 = vmatprep.subr.bf16.mxu0 %v6012
    %7288 = vmatpush1.bf16.msra.mxu0 %v6011
    %7289 = vmatprep.subr.bf16.mxu0 %v6020
    %7290 = vmatpush1.bf16.msra.mxu0 %v6019
    %7291 = vmatprep.subr.bf16.mxu0 %v6028
    %7292 = vmatpush1.bf16.msra.mxu0 %v6027
    %7293 = vmatprep.subr.bf16.mxu0 %v6036
    %7294 = vmatpush1.bf16.msra.mxu0 %v6035
    %7295 = vmatprep.mubr.bf16.mxu0 %v3814
    %7296 = vmatmul.mubr.bf16.gmra.mrb[0].mxu0 %v3813
    %v7297 = vpop.f32.mrb[0].mxu0
    %v7298 = vadd.f32 %v4354, %v7297
    %v7299 = vpop.f32.mrb[0].mxu0
    %v7300 = vadd.f32 %v4358, %v7299
    %v7301 = vpop.f32.mrb[0].mxu0
    %v7302 = vpop.f32.mrb[0].mxu0
    %7303 = vdwg.mxu0
    %7304 = vmatprep.subr.bf16.mxu0 %v6044
    %7305 = vmatpush1.bf16.msra.mxu0 %v6043
    %7306 = vmatprep.subr.bf16.mxu0 %v6052
    %7307 = vmatpush1.bf16.msra.mxu0 %v6051
    %7308 = vmatprep.subr.bf16.mxu0 %v6060
    %7309 = vmatpush1.bf16.msra.mxu0 %v6059
    %7310 = vmatprep.subr.bf16.mxu0 %v6068
    %7311 = vmatpush1.bf16.msra.mxu0 %v6067
    %7312 = vmatprep.subr.bf16.mxu0 %v6076
    %7313 = vmatpush1.bf16.msra.mxu0 %v6075
    %7314 = vmatprep.subr.bf16.mxu0 %v6084
    %7315 = vmatpush1.bf16.msra.mxu0 %v6083
    %7316 = vmatprep.subr.bf16.mxu0 %v6092
    %7317 = vmatpush1.bf16.msra.mxu0 %v6091
    %7318 = vmatprep.subr.bf16.mxu0 %v6100
    %7319 = vmatpush1.bf16.msra.mxu0 %v6099
    %7320 = vmatprep.subr.bf16.mxu0 %v6108
    %7321 = vmatpush1.bf16.msra.mxu0 %v6107
    %7322 = vmatprep.subr.bf16.mxu0 %v6116
    %7323 = vmatpush1.bf16.msra.mxu0 %v6115
    %7324 = vmatprep.subr.bf16.mxu0 %v6124
    %7325 = vmatpush1.bf16.msra.mxu0 %v6123
    %7326 = vmatprep.subr.bf16.mxu0 %v6132
    %7327 = vmatpush1.bf16.msra.mxu0 %v6131
    %7328 = vmatprep.subr.bf16.mxu0 %v6140
    %7329 = vmatpush1.bf16.msra.mxu0 %v6139
    %7330 = vmatprep.subr.bf16.mxu0 %v6148
    %7331 = vmatpush1.bf16.msra.mxu0 %v6147
    %7332 = vmatprep.subr.bf16.mxu0 %v6156
    %7333 = vmatpush1.bf16.msra.mxu0 %v6155
    %7334 = vmatprep.subr.bf16.mxu0 %v6164
    %7335 = vmatpush1.bf16.msra.mxu0 %v6163
    %7336 = vmatprep.mubr.bf16.mxu0 %v3816
    %7337 = vmatmul.mubr.bf16.gmra.mrb[0].mxu0 %v3815
    %v7338 = vpop.f32.mrb[0].mxu0
    %v7339 = vadd.f32 %v7298, %v7338
    %v7340 = vpop.f32.mrb[0].mxu0
    %v7341 = vadd.f32 %v7300, %v7340
    %v7342 = vpop.f32.mrb[0].mxu0
    %v7343 = vpop.f32.mrb[0].mxu0
    %7344 = vdwg.mxu0
    %7345 = vmatprep.subr.bf16.mxu0 %v6172
    %7346 = vmatpush1.bf16.msra.mxu0 %v6171
    %7347 = vmatprep.subr.bf16.mxu0 %v6180
    %7348 = vmatpush1.bf16.msra.mxu0 %v6179
    %7349 = vmatprep.subr.bf16.mxu0 %v6188
    %7350 = vmatpush1.bf16.msra.mxu0 %v6187
    %7351 = vmatprep.subr.bf16.mxu0 %v6196
    %7352 = vmatpush1.bf16.msra.mxu0 %v6195
    %7353 = vmatprep.subr.bf16.mxu0 %v6204
    %7354 = vmatpush1.bf16.msra.mxu0 %v6203
    %7355 = vmatprep.subr.bf16.mxu0 %v6212
    %7356 = vmatpush1.bf16.msra.mxu0 %v6211
    %7357 = vmatprep.subr.bf16.mxu0 %v6220
    %7358 = vmatpush1.bf16.msra.mxu0 %v6219
    %7359 = vmatprep.subr.bf16.mxu0 %v6228
    %7360 = vmatpush1.bf16.msra.mxu0 %v6227
    %7361 = vmatprep.subr.bf16.mxu0 %v6236
    %7362 = vmatpush1.bf16.msra.mxu0 %v6235
    %7363 = vmatprep.subr.bf16.mxu0 %v6244
    %7364 = vmatpush1.bf16.msra.mxu0 %v6243
    %7365 = vmatprep.subr.bf16.mxu0 %v6252
    %7366 = vmatpush1.bf16.msra.mxu0 %v6251
    %7367 = vmatprep.subr.bf16.mxu0 %v6260
    %7368 = vmatpush1.bf16.msra.mxu0 %v6259
    %7369 = vmatprep.subr.bf16.mxu0 %v6268
    %7370 = vmatpush1.bf16.msra.mxu0 %v6267
    %7371 = vmatprep.subr.bf16.mxu0 %v6276
    %7372 = vmatpush1.bf16.msra.mxu0 %v6275
    %7373 = vmatprep.subr.bf16.mxu0 %v6284
    %7374 = vmatpush1.bf16.msra.mxu0 %v6283
    %7375 = vmatprep.subr.bf16.mxu0 %v6292
    %7376 = vmatpush1.bf16.msra.mxu0 %v6291
    %7377 = vmatprep.mubr.bf16.mxu0 %v3818
    %7378 = vmatmul.mubr.bf16.gmra.mrb[0].mxu0 %v3817
    %v7379 = vpop.f32.mrb[0].mxu0
    %v7380 = vadd.f32 %v7339, %v7379
    %v7381 = vpop.f32.mrb[0].mxu0
    %v7382 = vadd.f32 %v7341, %v7381
    %v7383 = vpop.f32.mrb[0].mxu0
    %v7384 = vpop.f32.mrb[0].mxu0
    %7385 = vdwg.mxu0
    %7386 = vmatprep.subr.bf16.mxu0 %v6300
    %7387 = vmatpush1.bf16.msra.mxu0 %v6299
    %7388 = vmatprep.subr.bf16.mxu0 %v6308
    %7389 = vmatpush1.bf16.msra.mxu0 %v6307
    %7390 = vmatprep.subr.bf16.mxu0 %v6316
    %7391 = vmatpush1.bf16.msra.mxu0 %v6315
    %7392 = vmatprep.subr.bf16.mxu0 %v6324
    %7393 = vmatpush1.bf16.msra.mxu0 %v6323
    %7394 = vmatprep.subr.bf16.mxu0 %v6332
    %7395 = vmatpush1.bf16.msra.mxu0 %v6331
    %7396 = vmatprep.subr.bf16.mxu0 %v6340
    %7397 = vmatpush1.bf16.msra.mxu0 %v6339
    %7398 = vmatprep.subr.bf16.mxu0 %v6348
    %7399 = vmatpush1.bf16.msra.mxu0 %v6347
    %7400 = vmatprep.subr.bf16.mxu0 %v6356
    %7401 = vmatpush1.bf16.msra.mxu0 %v6355
    %7402 = vmatprep.subr.bf16.mxu0 %v6364
    %7403 = vmatpush1.bf16.msra.mxu0 %v6363
    %7404 = vmatprep.subr.bf16.mxu0 %v6372
    %7405 = vmatpush1.bf16.msra.mxu0 %v6371
    %7406 = vmatprep.subr.bf16.mxu0 %v6380
    %7407 = vmatpush1.bf16.msra.mxu0 %v6379
    %7408 = vmatprep.subr.bf16.mxu0 %v6388
    %7409 = vmatpush1.bf16.msra.mxu0 %v6387
    %7410 = vmatprep.subr.bf16.mxu0 %v6396
    %7411 = vmatpush1.bf16.msra.mxu0 %v6395
    %7412 = vmatprep.subr.bf16.mxu0 %v6404
    %7413 = vmatpush1.bf16.msra.mxu0 %v6403
    %7414 = vmatprep.subr.bf16.mxu0 %v6412
    %7415 = vmatpush1.bf16.msra.mxu0 %v6411
    %7416 = vmatprep.subr.bf16.mxu0 %v6420
    %7417 = vmatpush1.bf16.msra.mxu0 %v6419
    %7418 = vmatprep.mubr.bf16.mxu0 %v3820
    %7419 = vmatmul.mubr.bf16.gmra.mrb[0].mxu0 %v3819
    %v7420 = vpop.f32.mrb[0].mxu0
    %v7421 = vadd.f32 %v7380, %v7420
    %v7422 = vpop.f32.mrb[0].mxu0
    %v7423 = vadd.f32 %v7382, %v7422
    %v7424 = vpop.f32.mrb[0].mxu0
    %v7425 = vpop.f32.mrb[0].mxu0
    %7426 = vdwg.mxu0
    %7427 = vmatprep.subr.bf16.mxu0 %v5918
    %7428 = vmatpush1.bf16.msra.mxu0 %v5917
    %7429 = vmatprep.subr.bf16.mxu0 %v5926
    %7430 = vmatpush1.bf16.msra.mxu0 %v5925
    %7431 = vmatprep.subr.bf16.mxu0 %v5934
    %7432 = vmatpush1.bf16.msra.mxu0 %v5933
    %7433 = vmatprep.subr.bf16.mxu0 %v5942
    %7434 = vmatpush1.bf16.msra.mxu0 %v5941
    %7435 = vmatprep.subr.bf16.mxu0 %v5950
    %7436 = vmatpush1.bf16.msra.mxu0 %v5949
    %7437 = vmatprep.subr.bf16.mxu0 %v5958
    %7438 = vmatpush1.bf16.msra.mxu0 %v5957
    %7439 = vmatprep.subr.bf16.mxu0 %v5966
    %7440 = vmatpush1.bf16.msra.mxu0 %v5965
    %7441 = vmatprep.subr.bf16.mxu0 %v5974
    %7442 = vmatpush1.bf16.msra.mxu0 %v5973
    %7443 = vmatprep.subr.bf16.mxu0 %v5982
    %7444 = vmatpush1.bf16.msra.mxu0 %v5981
    %7445 = vmatprep.subr.bf16.mxu0 %v5990
    %7446 = vmatpush1.bf16.msra.mxu0 %v5989
    %7447 = vmatprep.subr.bf16.mxu0 %v5998
    %7448 = vmatpush1.bf16.msra.mxu0 %v5997
    %7449 = vmatprep.subr.bf16.mxu0 %v6006
    %7450 = vmatpush1.bf16.msra.mxu0 %v6005
    %7451 = vmatprep.subr.bf16.mxu0 %v6014
    %7452 = vmatpush1.bf16.msra.mxu0 %v6013
    %7453 = vmatprep.subr.bf16.mxu0 %v6022
    %7454 = vmatpush1.bf16.msra.mxu0 %v6021
    %7455 = vmatprep.subr.bf16.mxu0 %v6030
    %7456 = vmatpush1.bf16.msra.mxu0 %v6029
    %7457 = vmatprep.subr.bf16.mxu0 %v6038
    %7458 = vmatpush1.bf16.msra.mxu0 %v6037
    %7459 = vmatprep.mubr.bf16.mxu0 %v3814
    %7460 = vmatmul.mubr.bf16.gmra.mrb[0].mxu0 %v3813
    %v7461 = vpop.f32.mrb[0].mxu0
    %v7462 = vadd.f32 %v4362, %v7461
    %v7463 = vpop.f32.mrb[0].mxu0
    %v7464 = vadd.f32 %v4366, %v7463
    %v7465 = vpop.f32.mrb[0].mxu0
    %v7466 = vpop.f32.mrb[0].mxu0
    %7467 = vdwg.mxu0
    %7468 = vmatprep.subr.bf16.mxu0 %v6046
    %7469 = vmatpush1.bf16.msra.mxu0 %v6045
    %7470 = vmatprep.subr.bf16.mxu0 %v6054
    %7471 = vmatpush1.bf16.msra.mxu0 %v6053
    %7472 = vmatprep.subr.bf16.mxu0 %v6062
    %7473 = vmatpush1.bf16.msra.mxu0 %v6061
    %7474 = vmatprep.subr.bf16.mxu0 %v6070
    %7475 = vmatpush1.bf16.msra.mxu0 %v6069
    %7476 = vmatprep.subr.bf16.mxu0 %v6078
    %7477 = vmatpush1.bf16.msra.mxu0 %v6077
    %7478 = vmatprep.subr.bf16.mxu0 %v6086
    %7479 = vmatpush1.bf16.msra.mxu0 %v6085
    %7480 = vmatprep.subr.bf16.mxu0 %v6094
    %7481 = vmatpush1.bf16.msra.mxu0 %v6093
    %7482 = vmatprep.subr.bf16.mxu0 %v6102
    %7483 = vmatpush1.bf16.msra.mxu0 %v6101
    %7484 = vmatprep.subr.bf16.mxu0 %v6110
    %7485 = vmatpush1.bf16.msra.mxu0 %v6109
    %7486 = vmatprep.subr.bf16.mxu0 %v6118
    %7487 = vmatpush1.bf16.msra.mxu0 %v6117
    %7488 = vmatprep.subr.bf16.mxu0 %v6126
    %7489 = vmatpush1.bf16.msra.mxu0 %v6125
    %7490 = vmatprep.subr.bf16.mxu0 %v6134
    %7491 = vmatpush1.bf16.msra.mxu0 %v6133
    %7492 = vmatprep.subr.bf16.mxu0 %v6142
    %7493 = vmatpush1.bf16.msra.mxu0 %v6141
    %7494 = vmatprep.subr.bf16.mxu0 %v6150
    %7495 = vmatpush1.bf16.msra.mxu0 %v6149
    %7496 = vmatprep.subr.bf16.mxu0 %v6158
    %7497 = vmatpush1.bf16.msra.mxu0 %v6157
    %7498 = vmatprep.subr.bf16.mxu0 %v6166
    %7499 = vmatpush1.bf16.msra.mxu0 %v6165
    %7500 = vmatprep.mubr.bf16.mxu0 %v3816
    %7501 = vmatmul.mubr.bf16.gmra.mrb[0].mxu0 %v3815
    %v7502 = vpop.f32.mrb[0].mxu0
    %v7503 = vadd.f32 %v7462, %v7502
    %v7504 = vpop.f32.mrb[0].mxu0
    %v7505 = vadd.f32 %v7464, %v7504
    %v7506 = vpop.f32.mrb[0].mxu0
    %v7507 = vpop.f32.mrb[0].mxu0
    %7508 = vdwg.mxu0
    %7509 = vmatprep.subr.bf16.mxu0 %v6174
    %7510 = vmatpush1.bf16.msra.mxu0 %v6173
    %7511 = vmatprep.subr.bf16.mxu0 %v6182
    %7512 = vmatpush1.bf16.msra.mxu0 %v6181
    %7513 = vmatprep.subr.bf16.mxu0 %v6190
    %7514 = vmatpush1.bf16.msra.mxu0 %v6189
    %7515 = vmatprep.subr.bf16.mxu0 %v6198
    %7516 = vmatpush1.bf16.msra.mxu0 %v6197
    %7517 = vmatprep.subr.bf16.mxu0 %v6206
    %7518 = vmatpush1.bf16.msra.mxu0 %v6205
    %7519 = vmatprep.subr.bf16.mxu0 %v6214
    %7520 = vmatpush1.bf16.msra.mxu0 %v6213
    %7521 = vmatprep.subr.bf16.mxu0 %v6222
    %7522 = vmatpush1.bf16.msra.mxu0 %v6221
    %7523 = vmatprep.subr.bf16.mxu0 %v6230
    %7524 = vmatpush1.bf16.msra.mxu0 %v6229
    %7525 = vmatprep.subr.bf16.mxu0 %v6238
    %7526 = vmatpush1.bf16.msra.mxu0 %v6237
    %7527 = vmatprep.subr.bf16.mxu0 %v6246
    %7528 = vmatpush1.bf16.msra.mxu0 %v6245
    %7529 = vmatprep.subr.bf16.mxu0 %v6254
    %7530 = vmatpush1.bf16.msra.mxu0 %v6253
    %7531 = vmatprep.subr.bf16.mxu0 %v6262
    %7532 = vmatpush1.bf16.msra.mxu0 %v6261
    %7533 = vmatprep.subr.bf16.mxu0 %v6270
    %7534 = vmatpush1.bf16.msra.mxu0 %v6269
    %7535 = vmatprep.subr.bf16.mxu0 %v6278
    %7536 = vmatpush1.bf16.msra.mxu0 %v6277
    %7537 = vmatprep.subr.bf16.mxu0 %v6286
    %7538 = vmatpush1.bf16.msra.mxu0 %v6285
    %7539 = vmatprep.subr.bf16.mxu0 %v6294
    %7540 = vmatpush1.bf16.msra.mxu0 %v6293
    %7541 = vmatprep.mubr.bf16.mxu0 %v3818
    %7542 = vmatmul.mubr.bf16.gmra.mrb[0].mxu0 %v3817
    %v7543 = vpop.f32.mrb[0].mxu0
    %v7544 = vadd.f32 %v7503, %v7543
    %v7545 = vpop.f32.mrb[0].mxu0
    %v7546 = vadd.f32 %v7505, %v7545
    %v7547 = vpop.f32.mrb[0].mxu0
    %v7548 = vpop.f32.mrb[0].mxu0
    %7549 = vdwg.mxu0
    %7550 = vmatprep.subr.bf16.mxu0 %v6302
    %7551 = vmatpush1.bf16.msra.mxu0 %v6301
    %7552 = vmatprep.subr.bf16.mxu0 %v6310
    %7553 = vmatpush1.bf16.msra.mxu0 %v6309
    %7554 = vmatprep.subr.bf16.mxu0 %v6318
    %7555 = vmatpush1.bf16.msra.mxu0 %v6317
    %7556 = vmatprep.subr.bf16.mxu0 %v6326
    %7557 = vmatpush1.bf16.msra.mxu0 %v6325
    %7558 = vmatprep.subr.bf16.mxu0 %v6334
    %7559 = vmatpush1.bf16.msra.mxu0 %v6333
    %7560 = vmatprep.subr.bf16.mxu0 %v6342
    %7561 = vmatpush1.bf16.msra.mxu0 %v6341
    %7562 = vmatprep.subr.bf16.mxu0 %v6350
    %7563 = vmatpush1.bf16.msra.mxu0 %v6349
    %7564 = vmatprep.subr.bf16.mxu0 %v6358
    %7565 = vmatpush1.bf16.msra.mxu0 %v6357
    %7566 = vmatprep.subr.bf16.mxu0 %v6366
    %7567 = vmatpush1.bf16.msra.mxu0 %v6365
    %7568 = vmatprep.subr.bf16.mxu0 %v6374
    %7569 = vmatpush1.bf16.msra.mxu0 %v6373
    %7570 = vmatprep.subr.bf16.mxu0 %v6382
    %7571 = vmatpush1.bf16.msra.mxu0 %v6381
    %7572 = vmatprep.subr.bf16.mxu0 %v6390
    %7573 = vmatpush1.bf16.msra.mxu0 %v6389
    %7574 = vmatprep.subr.bf16.mxu0 %v6398
    %7575 = vmatpush1.bf16.msra.mxu0 %v6397
    %7576 = vmatprep.subr.bf16.mxu0 %v6406
    %7577 = vmatpush1.bf16.msra.mxu0 %v6405
    %7578 = vmatprep.subr.bf16.mxu0 %v6414
    %7579 = vmatpush1.bf16.msra.mxu0 %v6413
    %7580 = vmatprep.subr.bf16.mxu0 %v6422
    %7581 = vmatpush1.bf16.msra.mxu0 %v6421
    %7582 = vmatprep.mubr.bf16.mxu0 %v3820
    %7583 = vmatmul.mubr.bf16.gmra.mrb[0].mxu0 %v3819
    %v7584 = vpop.f32.mrb[0].mxu0
    %v7585 = vadd.f32 %v7544, %v7584
    %v7586 = vpop.f32.mrb[0].mxu0
    %v7587 = vadd.f32 %v7546, %v7586
    %v7588 = vpop.f32.mrb[0].mxu0
    %v7589 = vpop.f32.mrb[0].mxu0
    %7590 = vdwg.mxu0
    %v7591 = vsel %vm3559, %v7093, 0.0
    %v7592 = vsel %vm3559, %v7095, 0.0
    %v7593 = vadd.f32 %v7591, %v7592
    %v7594 = vsel %vm3559, %v7257, 0.0
    %v7595 = vadd.f32 %v7593, %v7594
    %v7596 = vsel %vm3559, %v7259, 0.0
    %v7597 = vadd.f32 %v7595, %v7596
    %v7598 = vsel %vm3559, %v7421, 0.0
    %v7599 = vadd.f32 %v7597, %v7598
    %v7600 = vsel %vm3559, %v7423, 0.0
    %v7601 = vadd.f32 %v7599, %v7600
    %v7602 = vsel %vm3559, %v7585, 0.0
    %v7603 = vadd.f32 %v7601, %v7602
    %v7604 = vsel %vm3559, %v7587, 0.0
    %v7605 = vadd.f32 %v7603, %v7604
    %7606 = vadd.xlane.f32.xlu0 %v7605
    %v7607 = vpop.xlane.xlu0 %7606
    %v7608 = vrot.slane %v7607, 4
    %v7609 = vadd.f32 %v7607, %v7608
    %v7610 = vrot.slane %v7609, 2
    %v7611 = vadd.f32 %v7609, %v7610
    %v7612 = vrot.slane %v7611, 1
    %v7613 = vadd.f32 %v7611, %v7612
    %s7614 = vtos %v7613
    %s7615 = smul.f32 %s7614, 0.0005
    %v7616 = vstv %s7615
    %v7617 = vsub.f32 %v7093, %v7616
    %v7618 = vsub.f32 %v7095, %v7616
    %v7619 = vsub.f32 %v7257, %v7616
    %v7620 = vsub.f32 %v7259, %v7616
    %v7621 = vsub.f32 %v7421, %v7616
    %v7622 = vsub.f32 %v7423, %v7616
    %v7623 = vsub.f32 %v7585, %v7616
    %v7624 = vsub.f32 %v7587, %v7616
    %v7625 = vsel %vm165, %v7617, 0.0
    %v7626 = vsel %vm166, %v7618, 0.0
    %v7627 = vsel %vm167, %v7619, 0.0
    %v7628 = vsel %vm168, %v7620, 0.0
    %v7629 = vsel %vm169, %v7621, 0.0
    %v7630 = vsel %vm170, %v7622, 0.0
    %v7631 = vsel %vm171, %v7623, 0.0
    %v7632 = vsel %vm172, %v7624, 0.0
    %v7633 = vmul.f32 %v7625, %v7625
    %v7634 = vmul.f32 %v7626, %v7626
    %v7635 = vmul.f32 %v7627, %v7627
    %v7636 = vmul.f32 %v7628, %v7628
    %v7637 = vmul.f32 %v7629, %v7629
    %v7638 = vmul.f32 %v7630, %v7630
    %v7639 = vmul.f32 %v7631, %v7631
    %v7640 = vmul.f32 %v7632, %v7632
    %v7641 = vsel %vm3559, %v7633, 0.0
    %v7642 = vsel %vm3559, %v7634, 0.0
    %v7643 = vadd.f32 %v7641, %v7642
    %v7644 = vsel %vm3559, %v7635, 0.0
    %v7645 = vadd.f32 %v7643, %v7644
    %v7646 = vsel %vm3559, %v7636, 0.0
    %v7647 = vadd.f32 %v7645, %v7646
    %v7648 = vsel %vm3559, %v7637, 0.0
    %v7649 = vadd.f32 %v7647, %v7648
    %v7650 = vsel %vm3559, %v7638, 0.0
    %v7651 = vadd.f32 %v7649, %v7650
    %v7652 = vsel %vm3559, %v7639, 0.0
    %v7653 = vadd.f32 %v7651, %v7652
    %v7654 = vsel %vm3559, %v7640, 0.0
    %v7655 = vadd.f32 %v7653, %v7654
    %7656 = vadd.xlane.f32.xlu0 %v7655
    %v7657 = vpop.xlane.xlu0 %7656
    %v7658 = vrot.slane %v7657, 4
    %v7659 = vadd.f32 %v7657, %v7658
    %v7660 = vrot.slane %v7659, 2
    %v7661 = vadd.f32 %v7659, %v7660
    %v7662 = vrot.slane %v7661, 1
    %v7663 = vadd.f32 %v7661, %v7662
    %s7664 = vtos %v7663
    %s7665 = smul.f32 %s7664, 0.00050025014
    %v7666 = vstv %s7665
    %v7667 = vrsqrt.pop %v7666
    %v7668 = vmul.f32 %v7666, %v7667
    %vm7669 = vcmp.eq.f32.partialorder %v7666, inf
    %v7670 = vsel %vm7669, %v7666, %v7668
    %vm7671 = vcmp.eq.f32.partialorder %v7666, 0.0
    %v7672 = vand.u32 %v7666, 2147483648
    %v7673 = vsel %vm7671, %v7672, %v7670
    %s7674 = vtos %v7673
    %v7675 = vstv %s7674
    %v7676 = vlog2.pop %v7675
    %v7677 = vmul.f32 %v7676, 0.6931472
    %s7678 = vtos %v7677
    %v7679 = vstv %s7665
    %v7680 = vrcp.pop %v7679
    %s7681 = vtos %v7680
    %s7682 = smul.f32 0.5, %s7681
    %v7683 = vsub.f32 0.0, %v7633
    %v7684 = vsub.f32 0.0, %v7634
    %v7685 = vsub.f32 0.0, %v7635
    %v7686 = vsub.f32 0.0, %v7636
    %v7687 = vsub.f32 0.0, %v7637
    %v7688 = vsub.f32 0.0, %v7638
    %v7689 = vsub.f32 0.0, %v7639
    %v7690 = vsub.f32 0.0, %v7640
    %v7691 = vstv %s7682
    %v7692 = vmul.f32 %v7683, %v7691
    %v7693 = vmul.f32 %v7684, %v7691
    %v7694 = vmul.f32 %v7685, %v7691
    %v7695 = vmul.f32 %v7686, %v7691
    %v7696 = vmul.f32 %v7687, %v7691
    %v7697 = vmul.f32 %v7688, %v7691
    %v7698 = vmul.f32 %v7689, %v7691
    %v7699 = vmul.f32 %v7690, %v7691
    %v7700 = vstv %s7678
    %v7701 = vsub.f32 %v7692, %v7700
    %v7702 = vsub.f32 %v7693, %v7700
    %v7703 = vsub.f32 %v7694, %v7700
    %v7704 = vsub.f32 %v7695, %v7700
    %v7705 = vsub.f32 %v7696, %v7700
    %v7706 = vsub.f32 %v7697, %v7700
    %v7707 = vsub.f32 %v7698, %v7700
    %v7708 = vsub.f32 %v7699, %v7700
    %v7709 = vsub.f32 %v7701, 0.9189385
    %v7710 = vsub.f32 %v7702, 0.9189385
    %v7711 = vsub.f32 %v7703, 0.9189385
    %v7712 = vsub.f32 %v7704, 0.9189385
    %v7713 = vsub.f32 %v7705, 0.9189385
    %v7714 = vsub.f32 %v7706, 0.9189385
    %v7715 = vsub.f32 %v7707, 0.9189385
    %v7716 = vsub.f32 %v7708, 0.9189385
    %v7717 = vsel %vm165, %v7709, -inf
    %v7718 = vsel %vm166, %v7710, -inf
    %v7719 = vsel %vm167, %v7711, -inf
    %v7720 = vsel %vm168, %v7712, -inf
    %v7721 = vsel %vm169, %v7713, -inf
    %v7722 = vsel %vm170, %v7714, -inf
    %v7723 = vsel %vm171, %v7715, -inf
    %v7724 = vsel %vm172, %v7716, -inf
    %v7725 = vsel %vm3559, %v7717, -inf
    %v7726 = vsel %vm3559, %v7718, -inf
    %v7727 = vsel %vm3559, %v7719, -inf
    %v7728 = vsel %vm3559, %v7720, -inf
    %v7729 = vsel %vm3559, %v7721, -inf
    %v7730 = vmax.f32 %v7725, %v7729
    %v7731 = vsel %vm3559, %v7722, -inf
    %v7732 = vmax.f32 %v7726, %v7731
    %v7733 = vsel %vm3559, %v7723, -inf
    %v7734 = vmax.f32 %v7727, %v7733
    %v7735 = vsel %vm3559, %v7724, -inf
    %v7736 = vmax.f32 %v7728, %v7735
    %v7737 = vmax.f32 %v7730, %v7732
    %v7738 = vmax.f32 %v7734, %v7736
    %v7739 = vmax.f32 %v7737, %v7738
    %7740 = vmax.xlane.f32.xlu0 %v7739
    %v7741 = vpop.xlane.xlu0 %7740
    %v7742 = vrot.slane %v7741, 4
    %v7743 = vmax.f32 %v7741, %v7742
    %v7744 = vrot.slane %v7743, 2
    %v7745 = vmax.f32 %v7743, %v7744
    %v7746 = vrot.slane %v7745, 1
    %v7747 = vmax.f32 %v7745, %v7746
    %s7748 = vtos %v7747
    %v7749 = vstv %s7748
    %v7750 = vsub.f32 %v7717, %v7749
    %v7751 = vsub.f32 %v7718, %v7749
    %v7752 = vsub.f32 %v7719, %v7749
    %v7753 = vsub.f32 %v7720, %v7749
    %v7754 = vsub.f32 %v7721, %v7749
    %v7755 = vsub.f32 %v7722, %v7749
    %v7756 = vsub.f32 %v7723, %v7749
    %v7757 = vsub.f32 %v7724, %v7749
    %v7758 = vmul.f32 %v7750, 1.442695
    %v7759 = vpow.pop %v7758
    %v7760 = vmul.f32 %v7751, 1.442695
    %v7761 = vpow.pop %v7760
    %v7762 = vmul.f32 %v7752, 1.442695
    %v7763 = vpow.pop %v7762
    %v7764 = vmul.f32 %v7753, 1.442695
    %v7765 = vpow.pop %v7764
    %v7766 = vmul.f32 %v7754, 1.442695
    %v7767 = vpow.pop %v7766
    %v7768 = vmul.f32 %v7755, 1.442695
    %v7769 = vpow.pop %v7768
    %v7770 = vmul.f32 %v7756, 1.442695
    %v7771 = vpow.pop %v7770
    %v7772 = vmul.f32 %v7757, 1.442695
    %v7773 = vpow.pop %v7772
    %v7774 = vsel %vm3559, %v7759, 0.0
    %v7775 = vsel %vm3559, %v7761, 0.0
    %v7776 = vadd.f32 %v7774, %v7775
    %v7777 = vsel %vm3559, %v7763, 0.0
    %v7778 = vadd.f32 %v7776, %v7777
    %v7779 = vsel %vm3559, %v7765, 0.0
    %v7780 = vadd.f32 %v7778, %v7779
    %v7781 = vsel %vm3559, %v7767, 0.0
    %v7782 = vadd.f32 %v7780, %v7781
    %v7783 = vsel %vm3559, %v7769, 0.0
    %v7784 = vadd.f32 %v7782, %v7783
    %v7785 = vsel %vm3559, %v7771, 0.0
    %v7786 = vadd.f32 %v7784, %v7785
    %v7787 = vsel %vm3559, %v7773, 0.0
    %v7788 = vadd.f32 %v7786, %v7787
    %7789 = vadd.xlane.f32.xlu0 %v7788
    %v7790 = vpop.xlane.xlu0 %7789
    %v7791 = vrot.slane %v7790, 4
    %v7792 = vadd.f32 %v7790, %v7791
    %v7793 = vrot.slane %v7792, 2
    %v7794 = vadd.f32 %v7792, %v7793
    %v7795 = vrot.slane %v7794, 1
    %v7796 = vadd.f32 %v7794, %v7795
    %s7797 = vtos %v7796
    %v7798 = vstv %s7797
    %v7799 = vlog2.pop %v7798
    %v7800 = vmul.f32 %v7799, 0.6931472
    %s7801 = vtos %v7800
    %s7802 = sadd.f32 %s7748, %s7801
    %s7803 = smax.f32 %s7802, 0.0
    %s7804 = ssub.f32 0.0, %s7803
    %v7805 = vstv %s7804
    %v7806 = vmul.f32 %v7805, 1.442695
    %v7807 = vpow.pop %v7806
    %s7808 = vtos %v7807
    %s7809 = ssub.f32 %s7802, %s7803
    %v7810 = vstv %s7809
    %v7811 = vmul.f32 %v7810, 1.442695
    %v7812 = vpow.pop %v7811
    %s7813 = vtos %v7812
    %s7814 = sadd.f32 %s7808, %s7813
    %v7815 = vstv %s7814
    %v7816 = vlog2.pop %v7815
    %v7817 = vmul.f32 %v7816, 0.6931472
    %s7818 = vtos %v7817
    %s7819 = sadd.f32 %s7803, %s7818
    %s7820 = ssub.f32 %s7819, %s7802
    %s7821 = scalar_lea.smem [#allocation15], 3
    %7822 = sst [smem:[%s7821]] %s7615
    %s7823 = scalar_lea.smem [#allocation15], 4
    %7824 = sst [smem:[%s7823]] %s7674
    %s7825 = scalar_lea.smem [#allocation15], 5
    %7826 = sst [smem:[%s7825]] %s7819
    %v7827 = vstv %s7820
    %v7828 = vmul.f32 %v7827, %v7093
    %v7829 = vmul.f32 %v7827, %v7095
    %v7830 = vmul.f32 %v7827, %v7257
    %v7831 = vmul.f32 %v7827, %v7259
    %v7832 = vmul.f32 %v7827, %v7421
    %v7833 = vmul.f32 %v7827, %v7423
    %v7834 = vmul.f32 %v7827, %v7585
    %v7835 = vmul.f32 %v7827, %v7587
    %v7836 = vmax.f32 %v7828, 0.0
    %v7837 = vmax.f32 %v7829, 0.0
    %v7838 = vmax.f32 %v7830, 0.0
    %v7839 = vmax.f32 %v7831, 0.0
    %v7840 = vmax.f32 %v7832, 0.0
    %v7841 = vmax.f32 %v7833, 0.0
    %v7842 = vmax.f32 %v7834, 0.0
    %v7843 = vmax.f32 %v7835, 0.0
    %v7844 = vpack.c.bf16 %v7836, %v7836
    %v7845 = vpack.c.bf16 %v7837, %v7837
    %v7846 = vpack.c.bf16 %v7838, %v7838
    %v7847 = vpack.c.bf16 %v7839, %v7839
    %v7848 = vpack.c.bf16 %v7840, %v7840
    %v7849 = vpack.c.bf16 %v7841, %v7841
    %v7850 = vpack.c.bf16 %v7842, %v7842
    %v7851 = vpack.c.bf16 %v7843, %v7843
    %v7852 = vld [vmem:[%s5] sm:$0xf]
    %v7853 = vld [vmem:[%s5 + $0x4] sm:$0xf]
    %v7854 = vld [vmem:[%s5 + $0x8] sm:$0xf]
    %v7855 = vld [vmem:[%s5 + $0xc] sm:$0xf]
    %v7856 = vld [vmem:[%s5 + $0x10] sm:$0xf]
    %v7857 = vld [vmem:[%s5 + $0x14] sm:$0xf]
    %v7858 = vld [vmem:[%s5 + $0x18] sm:$0xf]
    %v7859 = vld [vmem:[%s5 + $0x1c] sm:$0xf]
    %v7860 = vld [vmem:[%s5 + $0x20] sm:$0xf]
    %v7861 = vld [vmem:[%s5 + $0x24] sm:$0xf]
    %v7862 = vld [vmem:[%s5 + $0x28] sm:$0xf]
    %v7863 = vld [vmem:[%s5 + $0x2c] sm:$0xf]
    %v7864 = vld [vmem:[%s5 + $0x30] sm:$0xf]
    %v7865 = vld [vmem:[%s5 + $0x34] sm:$0xf]
    %v7866 = vld [vmem:[%s5 + $0x38] sm:$0xf]
    %v7867 = vld [vmem:[%s5 + $0x3c] sm:$0xf]
    %v7868 = vld [vmem:[%s5 + $0x40] sm:$0xf]
    %v7869 = vld [vmem:[%s5 + $0x44] sm:$0xf]
    %v7870 = vld [vmem:[%s5 + $0x48] sm:$0xf]
    %v7871 = vld [vmem:[%s5 + $0x4c] sm:$0xf]
    %v7872 = vld [vmem:[%s5 + $0x50] sm:$0xf]
    %v7873 = vld [vmem:[%s5 + $0x54] sm:$0xf]
    %v7874 = vld [vmem:[%s5 + $0x58] sm:$0xf]
    %v7875 = vld [vmem:[%s5 + $0x5c] sm:$0xf]
    %v7876 = vld [vmem:[%s5 + $0x60] sm:$0xf]
    %v7877 = vld [vmem:[%s5 + $0x64] sm:$0xf]
    %v7878 = vld [vmem:[%s5 + $0x68] sm:$0xf]
    %v7879 = vld [vmem:[%s5 + $0x6c] sm:$0xf]
    %v7880 = vld [vmem:[%s5 + $0x70] sm:$0xf]
    %v7881 = vld [vmem:[%s5 + $0x74] sm:$0xf]
    %v7882 = vld [vmem:[%s5 + $0x78] sm:$0xf]
    %v7883 = vld [vmem:[%s5 + $0x7c] sm:$0xf]
    %v7884 = vld [vmem:[%s5 + $0x80] sm:$0xf]
    %v7885 = vld [vmem:[%s5 + $0x84] sm:$0xf]
    %v7886 = vld [vmem:[%s5 + $0x88] sm:$0xf]
    %v7887 = vld [vmem:[%s5 + $0x8c] sm:$0xf]
    %v7888 = vld [vmem:[%s5 + $0x90] sm:$0xf]
    %v7889 = vld [vmem:[%s5 + $0x94] sm:$0xf]
    %v7890 = vld [vmem:[%s5 + $0x98] sm:$0xf]
    %v7891 = vld [vmem:[%s5 + $0x9c] sm:$0xf]
    %v7892 = vld [vmem:[%s5 + $0xa0] sm:$0xf]
    %v7893 = vld [vmem:[%s5 + $0xa4] sm:$0xf]
    %v7894 = vld [vmem:[%s5 + $0xa8] sm:$0xf]
    %v7895 = vld [vmem:[%s5 + $0xac] sm:$0xf]
    %v7896 = vld [vmem:[%s5 + $0xb0] sm:$0xf]
    %v7897 = vld [vmem:[%s5 + $0xb4] sm:$0xf]
    %v7898 = vld [vmem:[%s5 + $0xb8] sm:$0xf]
    %v7899 = vld [vmem:[%s5 + $0xbc] sm:$0xf]
    %v7900 = vld [vmem:[%s5 + $0xc0] sm:$0xf]
    %v7901 = vld [vmem:[%s5 + $0xc4] sm:$0xf]
    %v7902 = vld [vmem:[%s5 + $0xc8] sm:$0xf]
    %v7903 = vld [vmem:[%s5 + $0xcc] sm:$0xf]
    %v7904 = vld [vmem:[%s5 + $0xd0] sm:$0xf]
    %v7905 = vld [vmem:[%s5 + $0xd4] sm:$0xf]
    %v7906 = vld [vmem:[%s5 + $0xd8] sm:$0xf]
    %v7907 = vld [vmem:[%s5 + $0xdc] sm:$0xf]
    %v7908 = vld [vmem:[%s5 + $0xe0] sm:$0xf]
    %v7909 = vld [vmem:[%s5 + $0xe4] sm:$0xf]
    %v7910 = vld [vmem:[%s5 + $0xe8] sm:$0xf]
    %v7911 = vld [vmem:[%s5 + $0xec] sm:$0xf]
    %v7912 = vld [vmem:[%s5 + $0xf0] sm:$0xf]
    %v7913 = vld [vmem:[%s5 + $0xf4] sm:$0xf]
    %v7914 = vld [vmem:[%s5 + $0xf8] sm:$0xf]
    %v7915 = vld [vmem:[%s5 + $0xfc] sm:$0xf]
    %v7916 = vld [vmem:[%s5 + $0x100] sm:$0xf]
    %v7917 = vld [vmem:[%s5 + $0x104] sm:$0xf]
    %v7918 = vld [vmem:[%s5 + $0x108] sm:$0xf]
    %v7919 = vld [vmem:[%s5 + $0x10c] sm:$0xf]
    %v7920 = vld [vmem:[%s5 + $0x110] sm:$0xf]
    %v7921 = vld [vmem:[%s5 + $0x114] sm:$0xf]
    %v7922 = vld [vmem:[%s5 + $0x118] sm:$0xf]
    %v7923 = vld [vmem:[%s5 + $0x11c] sm:$0xf]
    %v7924 = vld [vmem:[%s5 + $0x120] sm:$0xf]
    %v7925 = vld [vmem:[%s5 + $0x124] sm:$0xf]
    %v7926 = vld [vmem:[%s5 + $0x128] sm:$0xf]
    %v7927 = vld [vmem:[%s5 + $0x12c] sm:$0xf]
    %v7928 = vld [vmem:[%s5 + $0x130] sm:$0xf]
    %v7929 = vld [vmem:[%s5 + $0x134] sm:$0xf]
    %v7930 = vld [vmem:[%s5 + $0x138] sm:$0xf]
    %v7931 = vld [vmem:[%s5 + $0x13c] sm:$0xf]
    %v7932 = vld [vmem:[%s5 + $0x140] sm:$0xf]
    %v7933 = vld [vmem:[%s5 + $0x144] sm:$0xf]
    %v7934 = vld [vmem:[%s5 + $0x148] sm:$0xf]
    %v7935 = vld [vmem:[%s5 + $0x14c] sm:$0xf]
    %v7936 = vld [vmem:[%s5 + $0x150] sm:$0xf]
    %v7937 = vld [vmem:[%s5 + $0x154] sm:$0xf]
    %v7938 = vld [vmem:[%s5 + $0x158] sm:$0xf]
    %v7939 = vld [vmem:[%s5 + $0x15c] sm:$0xf]
    %v7940 = vld [vmem:[%s5 + $0x160] sm:$0xf]
    %v7941 = vld [vmem:[%s5 + $0x164] sm:$0xf]
    %v7942 = vld [vmem:[%s5 + $0x168] sm:$0xf]
    %v7943 = vld [vmem:[%s5 + $0x16c] sm:$0xf]
    %v7944 = vld [vmem:[%s5 + $0x170] sm:$0xf]
    %v7945 = vld [vmem:[%s5 + $0x174] sm:$0xf]
    %v7946 = vld [vmem:[%s5 + $0x178] sm:$0xf]
    %v7947 = vld [vmem:[%s5 + $0x17c] sm:$0xf]
    %v7948 = vld [vmem:[%s5 + $0x180] sm:$0xf]
    %v7949 = vld [vmem:[%s5 + $0x184] sm:$0xf]
    %v7950 = vld [vmem:[%s5 + $0x188] sm:$0xf]
    %v7951 = vld [vmem:[%s5 + $0x18c] sm:$0xf]
    %v7952 = vld [vmem:[%s5 + $0x190] sm:$0xf]
    %v7953 = vld [vmem:[%s5 + $0x194] sm:$0xf]
    %v7954 = vld [vmem:[%s5 + $0x198] sm:$0xf]
    %v7955 = vld [vmem:[%s5 + $0x19c] sm:$0xf]
    %v7956 = vld [vmem:[%s5 + $0x1a0] sm:$0xf]
    %v7957 = vld [vmem:[%s5 + $0x1a4] sm:$0xf]
    %v7958 = vld [vmem:[%s5 + $0x1a8] sm:$0xf]
    %v7959 = vld [vmem:[%s5 + $0x1ac] sm:$0xf]
    %v7960 = vld [vmem:[%s5 + $0x1b0] sm:$0xf]
    %v7961 = vld [vmem:[%s5 + $0x1b4] sm:$0xf]
    %v7962 = vld [vmem:[%s5 + $0x1b8] sm:$0xf]
    %v7963 = vld [vmem:[%s5 + $0x1bc] sm:$0xf]
    %v7964 = vld [vmem:[%s5 + $0x1c0] sm:$0xf]
    %v7965 = vld [vmem:[%s5 + $0x1c4] sm:$0xf]
    %v7966 = vld [vmem:[%s5 + $0x1c8] sm:$0xf]
    %v7967 = vld [vmem:[%s5 + $0x1cc] sm:$0xf]
    %v7968 = vld [vmem:[%s5 + $0x1d0] sm:$0xf]
    %v7969 = vld [vmem:[%s5 + $0x1d4] sm:$0xf]
    %v7970 = vld [vmem:[%s5 + $0x1d8] sm:$0xf]
    %v7971 = vld [vmem:[%s5 + $0x1dc] sm:$0xf]
    %v7972 = vld [vmem:[%s5 + $0x1e0] sm:$0xf]
    %v7973 = vld [vmem:[%s5 + $0x1e4] sm:$0xf]
    %v7974 = vld [vmem:[%s5 + $0x1e8] sm:$0xf]
    %v7975 = vld [vmem:[%s5 + $0x1ec] sm:$0xf]
    %v7976 = vld [vmem:[%s5 + $0x1f0] sm:$0xf]
    %v7977 = vld [vmem:[%s5 + $0x1f4] sm:$0xf]
    %v7978 = vld [vmem:[%s5 + $0x1f8] sm:$0xf]
    %v7979 = vld [vmem:[%s5 + $0x1fc] sm:$0xf]
    %v7980 = vld [vmem:[#allocation12] sm:$0x1]
    %v7982 = vlaneseq
    %v7983 = vshrl.u32 %v7982, 7
    %v7984 = vsub.s32 0, %v7983
    %v7985 = vrot.slane %v7980, %v7984
    %v8115 = vunpack.c.l.b16 %v7852
    %v8116 = vunpack.c.l.b16 %v7853
    %v8117 = vunpack.c.l.b16 %v7854
    %v8118 = vunpack.c.l.b16 %v7855
    %v8119 = vunpack.c.l.b16 %v7856
    %v8120 = vunpack.c.l.b16 %v7857
    %v8121 = vunpack.c.l.b16 %v7858
    %v8122 = vunpack.c.l.b16 %v7859
    %v8123 = vunpack.c.l.b16 %v7860
    %v8124 = vunpack.c.l.b16 %v7861
    %v8125 = vunpack.c.l.b16 %v7862
    %v8126 = vunpack.c.l.b16 %v7863
    %v8127 = vunpack.c.l.b16 %v7864
    %v8128 = vunpack.c.l.b16 %v7865
    %v8129 = vunpack.c.l.b16 %v7866
    %v8130 = vunpack.c.l.b16 %v7867
    %v8131 = vunpack.c.l.b16 %v7868
    %v8132 = vunpack.c.l.b16 %v7869
    %v8133 = vunpack.c.l.b16 %v7870
    %v8134 = vunpack.c.l.b16 %v7871
    %v8135 = vunpack.c.l.b16 %v7872
    %v8136 = vunpack.c.l.b16 %v7873
    %v8137 = vunpack.c.l.b16 %v7874
    %v8138 = vunpack.c.l.b16 %v7875
    %v8139 = vunpack.c.l.b16 %v7876
    %v8140 = vunpack.c.l.b16 %v7877
    %v8141 = vunpack.c.l.b16 %v7878
    %v8142 = vunpack.c.l.b16 %v7879
    %v8143 = vunpack.c.l.b16 %v7880
    %v8144 = vunpack.c.l.b16 %v7881
    %v8145 = vunpack.c.l.b16 %v7882
    %v8146 = vunpack.c.l.b16 %v7883
    %v8147 = vunpack.c.l.b16 %v7884
    %v8148 = vunpack.c.l.b16 %v7885
    %v8149 = vunpack.c.l.b16 %v7886
    %v8150 = vunpack.c.l.b16 %v7887
    %v8151 = vunpack.c.l.b16 %v7888
    %v8152 = vunpack.c.l.b16 %v7889
    %v8153 = vunpack.c.l.b16 %v7890
    %v8154 = vunpack.c.l.b16 %v7891
    %v8155 = vunpack.c.l.b16 %v7892
    %v8156 = vunpack.c.l.b16 %v7893
    %v8157 = vunpack.c.l.b16 %v7894
    %v8158 = vunpack.c.l.b16 %v7895
    %v8159 = vunpack.c.l.b16 %v7896
    %v8160 = vunpack.c.l.b16 %v7897
    %v8161 = vunpack.c.l.b16 %v7898
    %v8162 = vunpack.c.l.b16 %v7899
    %v8163 = vunpack.c.l.b16 %v7900
    %v8164 = vunpack.c.l.b16 %v7901
    %v8165 = vunpack.c.l.b16 %v7902
    %v8166 = vunpack.c.l.b16 %v7903
    %v8167 = vunpack.c.l.b16 %v7904
    %v8168 = vunpack.c.l.b16 %v7905
    %v8169 = vunpack.c.l.b16 %v7906
    %v8170 = vunpack.c.l.b16 %v7907
    %v8171 = vunpack.c.l.b16 %v7908
    %v8172 = vunpack.c.l.b16 %v7909
    %v8173 = vunpack.c.l.b16 %v7910
    %v8174 = vunpack.c.l.b16 %v7911
    %v8175 = vunpack.c.l.b16 %v7912
    %v8176 = vunpack.c.l.b16 %v7913
    %v8177 = vunpack.c.l.b16 %v7914
    %v8178 = vunpack.c.l.b16 %v7915
    %v8179 = vunpack.c.l.b16 %v7916
    %v8180 = vunpack.c.l.b16 %v7917
    %v8181 = vunpack.c.l.b16 %v7918
    %v8182 = vunpack.c.l.b16 %v7919
    %v8183 = vunpack.c.l.b16 %v7920
    %v8184 = vunpack.c.l.b16 %v7921
    %v8185 = vunpack.c.l.b16 %v7922
    %v8186 = vunpack.c.l.b16 %v7923
    %v8187 = vunpack.c.l.b16 %v7924
    %v8188 = vunpack.c.l.b16 %v7925
    %v8189 = vunpack.c.l.b16 %v7926
    %v8190 = vunpack.c.l.b16 %v7927
    %v8191 = vunpack.c.l.b16 %v7928
    %v8192 = vunpack.c.l.b16 %v7929
    %v8193 = vunpack.c.l.b16 %v7930
    %v8194 = vunpack.c.l.b16 %v7931
    %v8195 = vunpack.c.l.b16 %v7932
    %v8196 = vunpack.c.l.b16 %v7933
    %v8197 = vunpack.c.l.b16 %v7934
    %v8198 = vunpack.c.l.b16 %v7935
    %v8199 = vunpack.c.l.b16 %v7936
    %v8200 = vunpack.c.l.b16 %v7937
    %v8201 = vunpack.c.l.b16 %v7938
    %v8202 = vunpack.c.l.b16 %v7939
    %v8203 = vunpack.c.l.b16 %v7940
    %v8204 = vunpack.c.l.b16 %v7941
    %v8205 = vunpack.c.l.b16 %v7942
    %v8206 = vunpack.c.l.b16 %v7943
    %v8207 = vunpack.c.l.b16 %v7944
    %v8208 = vunpack.c.l.b16 %v7945
    %v8209 = vunpack.c.l.b16 %v7946
    %v8210 = vunpack.c.l.b16 %v7947
    %v8211 = vunpack.c.l.b16 %v7948
    %v8212 = vunpack.c.l.b16 %v7949
    %v8213 = vunpack.c.l.b16 %v7950
    %v8214 = vunpack.c.l.b16 %v7951
    %v8215 = vunpack.c.l.b16 %v7952
    %v8216 = vunpack.c.l.b16 %v7953
    %v8217 = vunpack.c.l.b16 %v7954
    %v8218 = vunpack.c.l.b16 %v7955
    %v8219 = vunpack.c.l.b16 %v7956
    %v8220 = vunpack.c.l.b16 %v7957
    %v8221 = vunpack.c.l.b16 %v7958
    %v8222 = vunpack.c.l.b16 %v7959
    %v8223 = vunpack.c.l.b16 %v7960
    %v8224 = vunpack.c.l.b16 %v7961
    %v8225 = vunpack.c.l.b16 %v7962
    %v8226 = vunpack.c.l.b16 %v7963
    %v8227 = vunpack.c.l.b16 %v7964
    %v8228 = vunpack.c.l.b16 %v7965
    %v8229 = vunpack.c.l.b16 %v7966
    %v8230 = vunpack.c.l.b16 %v7967
    %v8231 = vunpack.c.l.b16 %v7968
    %v8232 = vunpack.c.l.b16 %v7969
    %v8233 = vunpack.c.l.b16 %v7970
    %v8234 = vunpack.c.l.b16 %v7971
    %v8235 = vunpack.c.l.b16 %v7972
    %v8236 = vunpack.c.l.b16 %v7973
    %v8237 = vunpack.c.l.b16 %v7974
    %v8238 = vunpack.c.l.b16 %v7975
    %v8239 = vunpack.c.l.b16 %v7976
    %v8240 = vunpack.c.l.b16 %v7977
    %v8241 = vunpack.c.l.b16 %v7978
    %v8242 = vunpack.c.l.b16 %v7979
    %v8243 = vpack.c.b16 %v8116, %v8115
    %v8244 = vpack.c.b16 %v8118, %v8117
    %v8245 = vpack.c.b16 %v8120, %v8119
    %v8246 = vpack.c.b16 %v8122, %v8121
    %v8247 = vpack.c.b16 %v8124, %v8123
    %v8248 = vpack.c.b16 %v8126, %v8125
    %v8249 = vpack.c.b16 %v8128, %v8127
    %v8250 = vpack.c.b16 %v8130, %v8129
    %v8251 = vpack.c.b16 %v8132, %v8131
    %v8252 = vpack.c.b16 %v8134, %v8133
    %v8253 = vpack.c.b16 %v8136, %v8135
    %v8254 = vpack.c.b16 %v8138, %v8137
    %v8255 = vpack.c.b16 %v8140, %v8139
    %v8256 = vpack.c.b16 %v8142, %v8141
    %v8257 = vpack.c.b16 %v8144, %v8143
    %v8258 = vpack.c.b16 %v8146, %v8145
    %v8259 = vpack.c.b16 %v8148, %v8147
    %v8260 = vpack.c.b16 %v8150, %v8149
    %v8261 = vpack.c.b16 %v8152, %v8151
    %v8262 = vpack.c.b16 %v8154, %v8153
    %v8263 = vpack.c.b16 %v8156, %v8155
    %v8264 = vpack.c.b16 %v8158, %v8157
    %v8265 = vpack.c.b16 %v8160, %v8159
    %v8266 = vpack.c.b16 %v8162, %v8161
    %v8267 = vpack.c.b16 %v8164, %v8163
    %v8268 = vpack.c.b16 %v8166, %v8165
    %v8269 = vpack.c.b16 %v8168, %v8167
    %v8270 = vpack.c.b16 %v8170, %v8169
    %v8271 = vpack.c.b16 %v8172, %v8171
    %v8272 = vpack.c.b16 %v8174, %v8173
    %v8273 = vpack.c.b16 %v8176, %v8175
    %v8274 = vpack.c.b16 %v8178, %v8177
    %v8275 = vpack.c.b16 %v8180, %v8179
    %v8276 = vpack.c.b16 %v8182, %v8181
    %v8277 = vpack.c.b16 %v8184, %v8183
    %v8278 = vpack.c.b16 %v8186, %v8185
    %v8279 = vpack.c.b16 %v8188, %v8187
    %v8280 = vpack.c.b16 %v8190, %v8189
    %v8281 = vpack.c.b16 %v8192, %v8191
    %v8282 = vpack.c.b16 %v8194, %v8193
    %v8283 = vpack.c.b16 %v8196, %v8195
    %v8284 = vpack.c.b16 %v8198, %v8197
    %v8285 = vpack.c.b16 %v8200, %v8199
    %v8286 = vpack.c.b16 %v8202, %v8201
    %v8287 = vpack.c.b16 %v8204, %v8203
    %v8288 = vpack.c.b16 %v8206, %v8205
    %v8289 = vpack.c.b16 %v8208, %v8207
    %v8290 = vpack.c.b16 %v8210, %v8209
    %v8291 = vpack.c.b16 %v8212, %v8211
    %v8292 = vpack.c.b16 %v8214, %v8213
    %v8293 = vpack.c.b16 %v8216, %v8215
    %v8294 = vpack.c.b16 %v8218, %v8217
    %v8295 = vpack.c.b16 %v8220, %v8219
    %v8296 = vpack.c.b16 %v8222, %v8221
    %v8297 = vpack.c.b16 %v8224, %v8223
    %v8298 = vpack.c.b16 %v8226, %v8225
    %v8299 = vpack.c.b16 %v8228, %v8227
    %v8300 = vpack.c.b16 %v8230, %v8229
    %v8301 = vpack.c.b16 %v8232, %v8231
    %v8302 = vpack.c.b16 %v8234, %v8233
    %v8303 = vpack.c.b16 %v8236, %v8235
    %v8304 = vpack.c.b16 %v8238, %v8237
    %v8305 = vpack.c.b16 %v8240, %v8239
    %v8306 = vpack.c.b16 %v8242, %v8241
    %8371 = vmatprep.subr.bf16.mxu0 0
    %8372 = vmatpush1.bf16.msra.mxu0 %v8243
    %8373 = vmatprep.subr.bf16.mxu0 0
    %8374 = vmatpush1.bf16.msra.mxu0 %v8244
    %8375 = vmatprep.subr.bf16.mxu0 0
    %8376 = vmatpush1.bf16.msra.mxu0 %v8245
    %8377 = vmatprep.subr.bf16.mxu0 0
    %8378 = vmatpush1.bf16.msra.mxu0 %v8246
    %8379 = vmatprep.subr.bf16.mxu0 0
    %8380 = vmatpush1.bf16.msra.mxu0 %v8247
    %8381 = vmatprep.subr.bf16.mxu0 0
    %8382 = vmatpush1.bf16.msra.mxu0 %v8248
    %8383 = vmatprep.subr.bf16.mxu0 0
    %8384 = vmatpush1.bf16.msra.mxu0 %v8249
    %8385 = vmatprep.subr.bf16.mxu0 0
    %8386 = vmatpush1.bf16.msra.mxu0 %v8250
    %8387 = vmatprep.subr.bf16.mxu0 0
    %8388 = vmatpush1.bf16.msra.mxu0 %v8251
    %8389 = vmatprep.subr.bf16.mxu0 0
    %8390 = vmatpush1.bf16.msra.mxu0 %v8252
    %8391 = vmatprep.subr.bf16.mxu0 0
    %8392 = vmatpush1.bf16.msra.mxu0 %v8253
    %8393 = vmatprep.subr.bf16.mxu0 0
    %8394 = vmatpush1.bf16.msra.mxu0 %v8254
    %8395 = vmatprep.subr.bf16.mxu0 0
    %8396 = vmatpush1.bf16.msra.mxu0 %v8255
    %8397 = vmatprep.subr.bf16.mxu0 0
    %8398 = vmatpush1.bf16.msra.mxu0 %v8256
    %8399 = vmatprep.subr.bf16.mxu0 0
    %8400 = vmatpush1.bf16.msra.mxu0 %v8257
    %8401 = vmatprep.subr.bf16.mxu0 0
    %8402 = vmatpush1.bf16.msra.mxu0 %v8258
    %8403 = vmatprep.mubr.bf16.mxu0 %v7845
    %8404 = vmatmul.mubr.bf16.gmra.mrb[0].mxu0 %v7844
    %v8405 = vpop.f32.mrb[0].mxu0
    %v8406 = vadd.f32 %v7985, %v8405
    %v8407 = vpop.f32.mrb[0].mxu0
    %v8408 = vpop.f32.mrb[0].mxu0
    %v8409 = vpop.f32.mrb[0].mxu0
    %8410 = vdwg.mxu0
    %8411 = vmatprep.subr.bf16.mxu0 0
    %8412 = vmatpush1.bf16.msra.mxu0 %v8259
    %8413 = vmatprep.subr.bf16.mxu0 0
    %8414 = vmatpush1.bf16.msra.mxu0 %v8260
    %8415 = vmatprep.subr.bf16.mxu0 0
    %8416 = vmatpush1.bf16.msra.mxu0 %v8261
    %8417 = vmatprep.subr.bf16.mxu0 0
    %8418 = vmatpush1.bf16.msra.mxu0 %v8262
    %8419 = vmatprep.subr.bf16.mxu0 0
    %8420 = vmatpush1.bf16.msra.mxu0 %v8263
    %8421 = vmatprep.subr.bf16.mxu0 0
    %8422 = vmatpush1.bf16.msra.mxu0 %v8264
    %8423 = vmatprep.subr.bf16.mxu0 0
    %8424 = vmatpush1.bf16.msra.mxu0 %v8265
    %8425 = vmatprep.subr.bf16.mxu0 0
    %8426 = vmatpush1.bf16.msra.mxu0 %v8266
    %8427 = vmatprep.subr.bf16.mxu0 0
    %8428 = vmatpush1.bf16.msra.mxu0 %v8267
    %8429 = vmatprep.subr.bf16.mxu0 0
    %8430 = vmatpush1.bf16.msra.mxu0 %v8268
    %8431 = vmatprep.subr.bf16.mxu0 0
    %8432 = vmatpush1.bf16.msra.mxu0 %v8269
    %8433 = vmatprep.subr.bf16.mxu0 0
    %8434 = vmatpush1.bf16.msra.mxu0 %v8270
    %8435 = vmatprep.subr.bf16.mxu0 0
    %8436 = vmatpush1.bf16.msra.mxu0 %v8271
    %8437 = vmatprep.subr.bf16.mxu0 0
    %8438 = vmatpush1.bf16.msra.mxu0 %v8272
    %8439 = vmatprep.subr.bf16.mxu0 0
    %8440 = vmatpush1.bf16.msra.mxu0 %v8273
    %8441 = vmatprep.subr.bf16.mxu0 0
    %8442 = vmatpush1.bf16.msra.mxu0 %v8274
    %8443 = vmatprep.mubr.bf16.mxu0 %v7847
    %8444 = vmatmul.mubr.bf16.gmra.mrb[0].mxu0 %v7846
    %v8445 = vpop.f32.mrb[0].mxu0
    %v8446 = vadd.f32 %v8406, %v8445
    %v8447 = vpop.f32.mrb[0].mxu0
    %v8448 = vpop.f32.mrb[0].mxu0
    %v8449 = vpop.f32.mrb[0].mxu0
    %8450 = vdwg.mxu0
    %8451 = vmatprep.subr.bf16.mxu0 0
    %8452 = vmatpush1.bf16.msra.mxu0 %v8275
    %8453 = vmatprep.subr.bf16.mxu0 0
    %8454 = vmatpush1.bf16.msra.mxu0 %v8276
    %8455 = vmatprep.subr.bf16.mxu0 0
    %8456 = vmatpush1.bf16.msra.mxu0 %v8277
    %8457 = vmatprep.subr.bf16.mxu0 0
    %8458 = vmatpush1.bf16.msra.mxu0 %v8278
    %8459 = vmatprep.subr.bf16.mxu0 0
    %8460 = vmatpush1.bf16.msra.mxu0 %v8279
    %8461 = vmatprep.subr.bf16.mxu0 0
    %8462 = vmatpush1.bf16.msra.mxu0 %v8280
    %8463 = vmatprep.subr.bf16.mxu0 0
    %8464 = vmatpush1.bf16.msra.mxu0 %v8281
    %8465 = vmatprep.subr.bf16.mxu0 0
    %8466 = vmatpush1.bf16.msra.mxu0 %v8282
    %8467 = vmatprep.subr.bf16.mxu0 0
    %8468 = vmatpush1.bf16.msra.mxu0 %v8283
    %8469 = vmatprep.subr.bf16.mxu0 0
    %8470 = vmatpush1.bf16.msra.mxu0 %v8284
    %8471 = vmatprep.subr.bf16.mxu0 0
    %8472 = vmatpush1.bf16.msra.mxu0 %v8285
    %8473 = vmatprep.subr.bf16.mxu0 0
    %8474 = vmatpush1.bf16.msra.mxu0 %v8286
    %8475 = vmatprep.subr.bf16.mxu0 0
    %8476 = vmatpush1.bf16.msra.mxu0 %v8287
    %8477 = vmatprep.subr.bf16.mxu0 0
    %8478 = vmatpush1.bf16.msra.mxu0 %v8288
    %8479 = vmatprep.subr.bf16.mxu0 0
    %8480 = vmatpush1.bf16.msra.mxu0 %v8289
    %8481 = vmatprep.subr.bf16.mxu0 0
    %8482 = vmatpush1.bf16.msra.mxu0 %v8290
    %8483 = vmatprep.mubr.bf16.mxu0 %v7849
    %8484 = vmatmul.mubr.bf16.gmra.mrb[0].mxu0 %v7848
    %v8485 = vpop.f32.mrb[0].mxu0
    %v8486 = vadd.f32 %v8446, %v8485
    %v8487 = vpop.f32.mrb[0].mxu0
    %v8488 = vpop.f32.mrb[0].mxu0
    %v8489 = vpop.f32.mrb[0].mxu0
    %8490 = vdwg.mxu0
    %8491 = vmatprep.subr.bf16.mxu0 0
    %8492 = vmatpush1.bf16.msra.mxu0 %v8291
    %8493 = vmatprep.subr.bf16.mxu0 0
    %8494 = vmatpush1.bf16.msra.mxu0 %v8292
    %8495 = vmatprep.subr.bf16.mxu0 0
    %8496 = vmatpush1.bf16.msra.mxu0 %v8293
    %8497 = vmatprep.subr.bf16.mxu0 0
    %8498 = vmatpush1.bf16.msra.mxu0 %v8294
    %8499 = vmatprep.subr.bf16.mxu0 0
    %8500 = vmatpush1.bf16.msra.mxu0 %v8295
    %8501 = vmatprep.subr.bf16.mxu0 0
    %8502 = vmatpush1.bf16.msra.mxu0 %v8296
    %8503 = vmatprep.subr.bf16.mxu0 0
    %8504 = vmatpush1.bf16.msra.mxu0 %v8297
    %8505 = vmatprep.subr.bf16.mxu0 0
    %8506 = vmatpush1.bf16.msra.mxu0 %v8298
    %8507 = vmatprep.subr.bf16.mxu0 0
    %8508 = vmatpush1.bf16.msra.mxu0 %v8299
    %8509 = vmatprep.subr.bf16.mxu0 0
    %8510 = vmatpush1.bf16.msra.mxu0 %v8300
    %8511 = vmatprep.subr.bf16.mxu0 0
    %8512 = vmatpush1.bf16.msra.mxu0 %v8301
    %8513 = vmatprep.subr.bf16.mxu0 0
    %8514 = vmatpush1.bf16.msra.mxu0 %v8302
    %8515 = vmatprep.subr.bf16.mxu0 0
    %8516 = vmatpush1.bf16.msra.mxu0 %v8303
    %8517 = vmatprep.subr.bf16.mxu0 0
    %8518 = vmatpush1.bf16.msra.mxu0 %v8304
    %8519 = vmatprep.subr.bf16.mxu0 0
    %8520 = vmatpush1.bf16.msra.mxu0 %v8305
    %8521 = vmatprep.subr.bf16.mxu0 0
    %8522 = vmatpush1.bf16.msra.mxu0 %v8306
    %8523 = vmatprep.mubr.bf16.mxu0 %v7851
    %8524 = vmatmul.mubr.bf16.gmra.mrb[0].mxu0 %v7850
    %v8525 = vpop.f32.mrb[0].mxu0
    %v8526 = vadd.f32 %v8486, %v8525
    %v8527 = vpop.f32.mrb[0].mxu0
    %v8528 = vpop.f32.mrb[0].mxu0
    %v8529 = vpop.f32.mrb[0].mxu0
    %8530 = vdwg.mxu0
    %vm8531 = vcmask 74752
    %v8532 = vsel %vm8531, %v8526, -inf
    %8533 = vmax.xlane.f32.xlu0 %v8532
    %v8534 = vpop.xlane.xlu0 %8533
    %v8535 = vsub.f32 %v8526, %v8534
    %v8536 = vmul.f32 %v8535, 1.442695
    %v8537 = vpow.pop %v8536
    %v8538 = vsel %vm8531, %v8537, 0.0
    %8539 = vadd.xlane.f32.xlu0 %v8538
    %v8540 = vpop.xlane.xlu0 %8539
    %v8541 = vlog2.pop %v8540
    %v8542 = vmul.f32 %v8541, 0.6931472
    %v8543 = vadd.f32 %v8534, %v8542
    %v8544 = vsub.f32 %v8526, %v8543
    %8545 = vst.msk [vmem:[#allocation14] sm:$0x3] %vm8531, %v8544
    // Predicated region
    $region54: #{tpu_custom_call.1} parent=1 // pred_check
      _
    $region55: #{tpu_custom_call.1} parent=1 // pred_check_branch
      %8547 = sbr.rel (0) target = $region57
    $region56: #{tpu_custom_call.1} parent=1 // pred_region
      %s8549 = ssub.s32 32, 32
      %8550 = vsyncadd [#allocation4], %s8549
      %s8552 = sshll.u32 [#allocation14], 4
      %s8553 = int_to_ptr.vmem [resolvable:$true] %s8552
      %8555 = dma.vmem_to_hbm [thread:$0]  %s8553, 32, %s7, [#allocation4]
    $region57: #{tpu_custom_call.1} parent=1 // pred_fallthru
      _
    // Predicated region
    $region58: #{tpu_custom_call.1} parent=1 // pred_check
      _
    $region59: #{tpu_custom_call.1} parent=1 // pred_check_branch
      %8557 = sbr.rel (0) target = $region61
    $region60: #{tpu_custom_call.1} parent=1 // pred_region
      %s8559 = ssub.s32 16, 16
      %8560 = vsyncadd [#allocation5], %s8559
      %8563 = dma.smem_to_hbm [#allocation15], 16, %s8, [#allocation5]
    $region61: #{tpu_custom_call.1} parent=1 // pred_fallthru
      _
    // Predicated region
    $region62: #{tpu_custom_call.1} parent=1 // pred_check
      _
    $region63: #{tpu_custom_call.1} parent=1 // pred_check_branch
      %8565 = sbr.rel (0) target = $region65
    $region64: #{tpu_custom_call.1} parent=1 // pred_region
      %8566 = dma.done [#allocation4], 32
    $region65: #{tpu_custom_call.1} parent=1 // pred_fallthru
      _
    // Predicated region
    $region66: #{tpu_custom_call.1} parent=1 // pred_check
      _
    $region67: #{tpu_custom_call.1} parent=1 // pred_check_branch
      %8568 = sbr.rel (0) target = $region69
    $region68: #{tpu_custom_call.1} parent=1 // pred_region
      %8569 = dma.done [#allocation5], 16
    $region69: #{tpu_custom_call.1} parent=1 // pred_fallthru
      _
    %8570 = sfence
    %8571 = vsyncpa [#allocation3], 1
    %8572 = vsyncpa [#allocation7], 1
    %8573 = vsyncpa [#allocation10], 1
    %8574 = vsyncpa [#allocation13], 1
    %8575 = vsyncpa [#allocation4], 1
    %8576 = vsyncpa [#allocation5], 1

</llo_original>
